<compile_context>
chip_gen: v5e
topology: v5e:2x2
jax: 0.10.0
libtpu: 0.0.40
codegen_flags: <defaults>
</compile_context>

<pallas_src>
import functools

import numpy as np
import jax
import jax.numpy as jnp
from jax.experimental import pallas as pl
from jax.experimental.pallas import tpu as pltpu

LEAKY_SLOPE = 0.01   # nn.LeakyReLU / F.leaky_relu default
LN_EPS = 1e-5        # nn.LayerNorm default
NHEAD = 8            # static hyper-parameter (TransformerEncoderLayer(feat_dim, 8, ...))
NLAYERS = 2
DIM_FF = 2048        # nn.TransformerEncoderLayer default dim_feedforward


def _round_up(x, m):
    return (x + m - 1) // m * m


def _pad_cols(a, n):
    return a if a.shape[1] == n else jnp.pad(a, ((0, 0), (0, n - a.shape[1])))


def _pad_rows(a, n):
    return a if a.shape[0] == n else jnp.pad(a, ((0, n - a.shape[0]), (0, 0)))


def _pad_vec(a, n):
    return a if a.shape[0] == n else jnp.pad(a, ((0, n - a.shape[0]),))


def inverse_sigmoid(x):
    eps = 1e-05
    x = min(x, 1 - eps)
    x = max(x, eps)
    return float(np.log(x / (1 - x)))


# --------------------------------------------------------------------------
# Generation-dependent sizing
# --------------------------------------------------------------------------

@functools.lru_cache(maxsize=None)
def _vmem_capacity_bytes():
    try:
        return int(pltpu.get_tpu_info().vmem_capacity_bytes)
    except Exception:
        return 64 << 20   # conservative (v7x-sized) fallback


def _default_tiles():
    if _vmem_capacity_bytes() >= (100 << 20):    # v5e / v6e: 128 MiB physical VMEM
        return 512, 1024
    return 256, 512                              # v7x: 64 MiB physical VMEM


def _vmem_limit_bytes():
    if _vmem_capacity_bytes() >= (100 << 20):
        return 96 * 1024 * 1024                  # raise above the 32 MiB scoped default
    return None                                  # v7x: keep the default scoped limit


# --------------------------------------------------------------------------
# Pallas kernels
# --------------------------------------------------------------------------

def _dense_kernel(*refs, act, has_res, has_ln, nk, ln_n, use_acc):
    """acc += x @ w ; last K step: +bias -> act -> (+residual) -> (LayerNorm, true-N stats)."""
    it = iter(refs)
    x_ref = next(it)
    w_ref = next(it)
    b_ref = next(it)
    res_ref = next(it) if has_res else None
    g_ref = next(it) if has_ln else None
    beta_ref = next(it) if has_ln else None
    o_ref = next(it)
    acc_ref = next(it) if use_acc else None

    # bf16 MXU operands, f32 accumulation.
    part = jnp.dot(x_ref[...].astype(jnp.bfloat16),
                   w_ref[...].astype(jnp.bfloat16),
                   preferred_element_type=jnp.float32)

    if use_acc:
        @pl.when(pl.program_id(1) == 0)
        def _():
            acc_ref[...] = jnp.zeros_like(acc_ref)
        acc_ref[...] += part

    def epilogue():
        y = (acc_ref[...] if use_acc else part) + b_ref[...].astype(jnp.float32)
        if act == "leaky_relu":
            y = jnp.where(y >= 0, y, LEAKY_SLOPE * y)
        elif act == "relu":
            y = jnp.maximum(y, 0.0)
        elif act == "sigmoid":
            y = jax.nn.sigmoid(y)
        if has_res:
            y = y + res_ref[...].astype(jnp.float32)
        if has_ln:
            # LayerNorm with TRUE-N divisor; padded columns (if any) are zero by construction
            # (zero-padded w/b/residual) and are masked out of the variance; gamma/beta are
            # zero-padded so the padded outputs stay exactly 0.
            np_cols = y.shape[-1]
            inv_n = 1.0 / float(ln_n)
            if np_cols == ln_n:
                mu = jnp.sum(y, axis=-1, keepdims=True) * inv_n
                yc = y - mu
            else:
                col = jax.lax.broadcasted_iota(jnp.int32, y.shape, 1)
                valid = col < ln_n
                mu = jnp.sum(jnp.where(valid, y, 0.0), axis=-1, keepdims=True) * inv_n
                yc = jnp.where(valid, y - mu, 0.0)
            var = jnp.sum(yc * yc, axis=-1, keepdims=True) * inv_n
            y = yc * jax.lax.rsqrt(var + LN_EPS)
            y = y * g_ref[...].astype(jnp.float32) + beta_ref[...].astype(jnp.float32)
        o_ref[...] = y.astype(o_ref.dtype)

    if use_acc:
        pl.when(pl.program_id(1) == nk - 1)(epilogue)
    else:
        epilogue()


def dense(x, w, b, *, act="none", residual=None, ln=None, ln_true_n=None,
          out_dtype=jnp.bfloat16, tm=None, tk=None):
    """y = epilogue(x @ w + b), epilogue = act -> (+residual) -> LayerNorm(gamma,beta).

    x: (M, K) f32/bf16, w: (K, N) bf16 (pre-transposed torch Linear weight), b: (N,) f32.
    N is always padded to a 128 multiple for lane-dense stores; if the caller's N is already a
    128 multiple (pre-padded weights) the padded width is carried through (no slicing).
    ln_true_n: true feature width for LN statistics when N is a pre-padded slab.
    """
    M, K = x.shape
    Kw, N = w.shape
    assert K == Kw and b.shape[-1] == N

    if tm is None or tk is None:
        dtm, dtk = _default_tiles()
        tm = tm or dtm
        tk = tk or dtk

    # Pad tiny contraction dims (e.g. the K=3 backbone 1x1 conv) up to a sublane multiple.
    if K % 8:
        Kp8 = _round_up(K, 8)
        x = jnp.pad(x, ((0, 0), (0, Kp8 - K)))
        w = jnp.pad(w, ((0, Kp8 - K), (0, 0)))
        K = Kp8

    # Lane-dense output: ALWAYS pad N to a 128 multiple (LN stats use the true-N divisor).
    gamma = beta = None
    if ln is not None:
        gamma, beta = ln
    Np = _round_up(N, 128)
    if Np != N:
        w = jnp.pad(w, ((0, 0), (0, Np - N)))
        b = jnp.pad(b, ((0, Np - N),))
        if residual is not None:
            residual = jnp.pad(residual, ((0, 0), (0, Np - N)))
        if ln is not None:
            gamma = jnp.pad(gamma, ((0, Np - N),))
            beta = jnp.pad(beta, ((0, Np - N),))
    ln_n = int(ln_true_n) if ln_true_n is not None else N

    # Tile / pad M.
    tm_eff = min(tm, _round_up(M, 8))
    Mp = _round_up(M, tm_eff)
    if Mp != M:
        x = jnp.pad(x, ((0, Mp - M), (0, 0)))
        if residual is not None:
            residual = jnp.pad(residual, ((0, Mp - M), (0, 0)))
    gm = Mp // tm_eff

    # Robust K tiling: largest clean divisor, else zero-pad K up to a tk multiple.
    if K <= tk:
        tk_eff = K
    else:
        tk_eff = 0
        for cand in (tk, tk // 2, 512, 256, 128):
            if cand and cand <= K and K % cand == 0:
                tk_eff = cand
                break
        if tk_eff == 0:
            tk_eff = tk
            Kpad = _round_up(K, tk)
            x = jnp.pad(x, ((0, 0), (0, Kpad - K)))
            w = jnp.pad(w, ((0, Kpad - K), (0, 0)))
            K = Kpad
    gk = K // tk_eff
    use_acc = gk > 1

    in_specs = [
        pl.BlockSpec((tm_eff, tk_eff), lambda i, k: (i, k)),
        pl.BlockSpec((tk_eff, Np), lambda i, k: (k, 0)),
        pl.BlockSpec((1, Np), lambda i, k: (0, 0)),
    ]
    inputs = [x, w, b.reshape(1, Np)]
    if residual is not None:
        in_specs.append(pl.BlockSpec((tm_eff, Np), lambda i, k: (i, 0)))
        inputs.append(residual)
    if ln is not None:
        in_specs.append(pl.BlockSpec((1, Np), lambda i, k: (0, 0)))
        in_specs.append(pl.BlockSpec((1, Np), lambda i, k: (0, 0)))
        inputs.append(gamma.reshape(1, Np))
        inputs.append(beta.reshape(1, Np))

    out_itemsize = jnp.dtype(out_dtype).itemsize
    bytes_accessed = (x.size * x.dtype.itemsize + w.size * w.dtype.itemsize
                      + Mp * Np * out_itemsize
                      + (residual.size * residual.dtype.itemsize if residual is not None else 0))
    cost = pl.CostEstimate(
        flops=int(2 * Mp * K * Np),
        transcendentals=int(Mp * Np) if act == "sigmoid" else 0,
        bytes_accessed=int(bytes_accessed))

    out = pl.pallas_call(
        functools.partial(_dense_kernel, act=act,
                          has_res=residual is not None,
                          has_ln=ln is not None, nk=gk, ln_n=ln_n, use_acc=use_acc),
        out_shape=jax.ShapeDtypeStruct((Mp, Np), out_dtype),
        grid=(gm, gk),
        in_specs=in_specs,
        out_specs=pl.BlockSpec((tm_eff, Np), lambda i, k: (i, 0)),
        scratch_shapes=([pltpu.VMEM((tm_eff, Np), jnp.float32)] if use_acc else []),
        compiler_params=pltpu.CompilerParams(
            dimension_semantics=("parallel", "arbitrary"),
            vmem_limit_bytes=_vmem_limit_bytes()),
        cost_estimate=cost,
    )(*inputs)
    if Mp != M or Np != N:
        out = out[:M, :N]
    return out


def _attn_kernel(qkv_ref, o_ref):
    """One (batch, head): q/k/v are aligned (S, dh) blocks; q is pre-scaled (folded into in_proj)."""
    q = qkv_ref[0, 0]                                                   # (S, dh) bf16
    k = qkv_ref[0, 1]
    v = qkv_ref[0, 2]
    s = jax.lax.dot_general(q, k, (((1,), (1,)), ((), ())),
                            preferred_element_type=jnp.float32)         # (S, S) f32
    s = s - jnp.max(s, axis=-1, keepdims=True)
    p = jnp.exp(s)
    denom = jnp.sum(p, axis=-1, keepdims=True)
    p = p * pl.reciprocal(denom, approx=True)                           # EUP, frees VALU
    o = jnp.dot(p.astype(jnp.bfloat16), v,
                preferred_element_type=jnp.float32)                     # (S, dh)
    o_ref[0] = o.astype(o_ref.dtype)


def mha_attention(qkv):
    """qkv: (B*nhead, 3, S, dh) bf16 (q already scaled) -> (B*nhead, S, dh) bf16."""
    BH, three, S, dh = qkv.shape
    assert three == 3
    cost = pl.CostEstimate(
        flops=int(2 * BH * (2 * S * S * dh)),
        transcendentals=int(BH * S * S),
        bytes_accessed=int(qkv.size * 2 + BH * S * dh * 2))
    return pl.pallas_call(
        _attn_kernel,
        out_shape=jax.ShapeDtypeStruct((BH, S, dh), jnp.bfloat16),
        grid=(BH,),
        in_specs=[pl.BlockSpec((1, 3, S, dh), lambda i: (i, 0, 0, 0))],
        out_specs=pl.BlockSpec((1, S, dh), lambda i: (i, 0, 0)),
        compiler_params=pltpu.CompilerParams(dimension_semantics=("parallel",)),
        cost_estimate=cost,
    )(qkv)


def _norm_pool_kernel(x_ref, g_ref, b_ref, o_ref, *, true_n):
    x = x_ref[0].astype(jnp.float32)                # (S, Dp), padded columns are 0
    inv_n = 1.0 / float(true_n)
    if x.shape[-1] == true_n:
        mu = jnp.sum(x, axis=-1, keepdims=True) * inv_n
        xc = x - mu
    else:
        col = jax.lax.broadcasted_iota(jnp.int32, x.shape, 1)
        valid = col < true_n
        mu = jnp.sum(jnp.where(valid, x, 0.0), axis=-1, keepdims=True) * inv_n
        xc = jnp.where(valid, x - mu, 0.0)
    var = jnp.sum(xc * xc, axis=-1, keepdims=True) * inv_n
    y = xc * jax.lax.rsqrt(var + LN_EPS)
    y = y * g_ref[...].astype(jnp.float32) + b_ref[...].astype(jnp.float32)
    o_ref[0] = (jnp.sum(y, axis=0, keepdims=True) * (1.0 / x.shape[0])).astype(o_ref.dtype)


def norm_meanpool(x, gamma, beta, true_n):
    """Final encoder LayerNorm fused with AdaptiveAvgPool2d((1,1)): (B,S,Dp) -> (B,true_n)."""
    B, S, Dp = x.shape
    out = pl.pallas_call(
        functools.partial(_norm_pool_kernel, true_n=true_n),
        out_shape=jax.ShapeDtypeStruct((B, 1, Dp), jnp.float32),
        grid=(B,),
        in_specs=[pl.BlockSpec((1, S, Dp), lambda b: (b, 0, 0)),
                  pl.BlockSpec((1, Dp), lambda b: (0, 0)),
                  pl.BlockSpec((1, Dp), lambda b: (0, 0))],
        out_specs=pl.BlockSpec((1, 1, Dp), lambda b: (b, 0, 0)),
        compiler_params=pltpu.CompilerParams(dimension_semantics=("parallel",)),
    )(x, gamma.reshape(1, Dp), beta.reshape(1, Dp))
    return out.reshape(B, Dp)[:, :true_n]


# --------------------------------------------------------------------------
# Parameter initialization (deterministic, synthetic). Weights are stored
# pre-transposed to (in_dim, out_dim), bf16, and pre-padded so the encoder
# feature width is a 128-lane multiple end-to-end (padded rows/cols are 0).
# --------------------------------------------------------------------------

def _linear_init(key, in_dim, out_dim):
    kw, kb = jax.random.split(key)
    bound = 1.0 / np.sqrt(in_dim)
    w = jax.random.uniform(kw, (in_dim, out_dim), jnp.float32, -bound, bound)
    b = jax.random.uniform(kb, (out_dim,), jnp.float32, -bound, bound)
    return w.astype(jnp.bfloat16), b


def init_backbone(key):
    # stand-in for torchvision resnet50 (see TODO at top)
    k1, k2 = jax.random.split(key)
    w14, b14 = _linear_init(k1, 3, 2048)
    w28, b28 = _linear_init(k2, 3, 1024)
    return dict(w14=w14, b14=b14, w28=w28, b28=b28)


def init_image_mid(key, in_feat_dim, feat_dim, nhead=NHEAD, nlayers=NLAYERS, dim_ff=DIM_FF):
    D = feat_dim
    Dp = _round_up(D, 128)
    dh = D // nhead
    q_scale = 1.0 / float(np.sqrt(dh))

    keys = jax.random.split(key, 3 + nlayers)
    conv_w, conv_b = _linear_init(keys[0], in_feat_dim, D)      # 1x1 conv
    conv_w = _pad_cols(conv_w, Dp)
    conv_b = _pad_vec(conv_b, Dp)
    half = D // 2
    row_embed = 0.02 * jax.random.normal(keys[1], (50, half), jnp.float32)
    col_embed = 0.02 * jax.random.normal(keys[2], (50, half), jnp.float32)

    layers = []
    for i in range(nlayers):
        lk = jax.random.split(keys[3 + i], 4)
        in_w, in_b = _linear_init(lk[0], D, 3 * D)              # MHA in_proj, packed q|k|v
        # fold the 1/sqrt(dh) attention scale into the q columns (exact rewrite)
        scale_col = jnp.concatenate([jnp.full((D,), q_scale, jnp.float32),
                                     jnp.ones((2 * D,), jnp.float32)])
        in_w = (in_w.astype(jnp.float32) * scale_col[None, :]).astype(jnp.bfloat16)
        in_b = in_b * scale_col
        in_w = _pad_rows(in_w, Dp)                              # consumes padded activations
        out_w, out_b = _linear_init(lk[1], D, D)                # MHA out_proj
        out_w = _pad_cols(out_w, Dp)
        out_b = _pad_vec(out_b, Dp)
        ff1_w, ff1_b = _linear_init(lk[2], D, dim_ff)
        ff1_w = _pad_rows(ff1_w, Dp)
        ff2_w, ff2_b = _linear_init(lk[3], dim_ff, D)
        ff2_w = _pad_cols(ff2_w, Dp)
        ff2_b = _pad_vec(ff2_b, Dp)
        layers.append(dict(
            in_w=in_w, in_b=in_b, out_w=out_w, out_b=out_b,
            ff1_w=ff1_w, ff1_b=ff1_b, ff2_w=ff2_w, ff2_b=ff2_b,
            ln1_g=_pad_vec(jnp.ones((D,), jnp.float32), Dp),    # zero-padded gamma/beta keep
            ln1_b=jnp.zeros((Dp,), jnp.float32),                # padded columns exactly 0
            ln2_g=_pad_vec(jnp.ones((D,), jnp.float32), Dp),
            ln2_b=jnp.zeros((Dp,), jnp.float32)))
    # NOTE: nhead / true D are static (derived from row_embed width); no ints in the pytree.
    return dict(conv_w=conv_w, conv_b=conv_b,
                row_embed=row_embed, col_embed=col_embed,
                layers=layers,
                norm_g=_pad_vec(jnp.ones((D,), jnp.float32), Dp),
                norm_b=jnp.zeros((Dp,), jnp.float32))


def init_label_estimator(key, num_data, num_classes, observed_matrix):
    lo, hi = inverse_sigmoid(0.2), inverse_sigmoid(0.8)
    logits = jax.random.uniform(key, (num_data, num_classes), jnp.float32, lo, hi)
    logits = jnp.where(observed_matrix == 1, inverse_sigmoid(0.995), logits)
    logits = jnp.where(observed_matrix == -1, inverse_sigmoid(0.005), logits)
    return logits


def init_scob(key, num_classes, feat_dim, observed_matrix):
    assert feat_dim // 2 * 2 == feat_dim
    ks = jax.random.split(key, 7)
    half = feat_dim // 2
    p1w, p1b = _linear_init(ks[3], feat_dim, feat_dim)
    p2w, p2b = _linear_init(ks[4], feat_dim, feat_dim)
    cls_w, cls_b = _linear_init(ks[5], feat_dim, num_classes)
    return dict(
        backbone=init_backbone(ks[0]),
        fm1_14=init_image_mid(ks[1], 2048, half),
        fm1_28=init_image_mid(ks[2], 1024, half),
        proj_w1=p1w, proj_b1=p1b,
        proj_w2=p2w, proj_b2=p2b,
        cls_w=cls_w, cls_b=cls_b,
        g_logits=init_label_estimator(ks[6], observed_matrix.shape[0],
                                      num_classes, observed_matrix),
    )


# --------------------------------------------------------------------------
# Forward passes (glue in JAX, compute in the Pallas kernels above)
# --------------------------------------------------------------------------

def backbone_forward(p, x):
    """Stand-in ImageBackbone: NCHW image -> NHWC feature maps
    (x14: B,H/32,W/32,2048) and (x28: B,H/16,W/16,1024)."""
    B, C, H, W = x.shape

    def pool_to(xs, ph, pw):
        return xs.reshape(B, C, ph, H // ph, pw, W // pw).mean(axis=(3, 5))

    def proj(xs, w, b):
        Bp, Cp, Hp, Wp = xs.shape
        flat = jnp.transpose(xs, (0, 2, 3, 1)).reshape(Bp * Hp * Wp, Cp)
        y = dense(flat, w, b, act="relu")            # 1x1 conv == channel matmul, bf16 out
        return y.reshape(Bp, Hp, Wp, -1)             # keep NHWC (avoids two transposes)

    x14 = proj(pool_to(x, H // 32, W // 32), p["w14"], p["b14"])
    x28 = proj(pool_to(x, H // 16, W // 16), p["w28"], p["b28"])
    return x14, x28


def learned_pos(row_embed, col_embed, H, W):
    """DETR 'learned' position embedding: pos[h, w] = concat(col_embed[w], row_embed[h])."""
    x_emb = col_embed[:W]                                    # (W, D/2)
    y_emb = row_embed[:H]                                    # (H, D/2)
    pos = jnp.concatenate([
        jnp.broadcast_to(x_emb[None, :, :], (H, W, x_emb.shape[-1])),
        jnp.broadcast_to(y_emb[:, None, :], (H, W, y_emb.shape[-1])),
    ], axis=-1)
    return pos.reshape(H * W, -1)                            # (H*W, D)


def encoder_layer_forward(p, xf, B, S, D, Dp, nhead):
    """torch.nn.TransformerEncoderLayer (batch_first, post-norm, leaky_relu, eval dropout).

    xf is the (B*S, Dp) bf16 padded activation slab; LN epilogues use the true-D divisor."""
    dh = D // nhead
    qkv = dense(xf, p["in_w"], p["in_b"])                         # (B*S, 3D) bf16, q pre-scaled
    # Re-pack so every head's q/k/v is an aligned rectangular block; (B*nhead,) parallel grid.
    qkv = qkv.reshape(B, S, 3, nhead, dh).transpose(0, 3, 2, 1, 4).reshape(B * nhead, 3, S, dh)
    attn = mha_attention(qkv)                                     # (B*nhead, S, dh) bf16
    attn = attn.reshape(B, nhead, S, dh).transpose(0, 2, 1, 3).reshape(B * S, D)
    # out_proj with fused residual + norm1:  x1 = LN1(x + sa(x))
    x1 = dense(attn, p["out_w"], p["out_b"],
               residual=xf, ln=(p["ln1_g"], p["ln1_b"]), ln_true_n=D)    # (B*S, Dp) bf16
    h = dense(x1, p["ff1_w"], p["ff1_b"], act="leaky_relu")              # (B*S, dim_ff) bf16
    # ff2 with fused residual + norm2:       x2 = LN2(x1 + ff(x1))
    x2 = dense(h, p["ff2_w"], p["ff2_b"],
               residual=x1, ln=(p["ln2_g"], p["ln2_b"]), ln_true_n=D)
    return x2


def image_mid_forward(p, x_nhwc, nhead=NHEAD):
    """ImageMid: 1x1 conv (+pos fused) -> 2-layer transformer encoder -> final LN + avgpool."""
    B, Ph, Pw, Cin = x_nhwc.shape
    Dp = p["conv_w"].shape[1]                  # padded (lane-dense) feature width
    D = 2 * p["row_embed"].shape[1]            # true feature width
    S = Ph * Pw

    pos = learned_pos(p["row_embed"], p["col_embed"], Ph, Pw)            # (S, D)
    if Dp != D:
        pos = jnp.pad(pos, ((0, 0), (0, Dp - D)))                        # zero-padded cols
    pos_b = jnp.broadcast_to(pos[None], (B, S, Dp)).reshape(B * S, Dp)

    xf = x_nhwc.reshape(B * S, Cin)                                      # NHWC row-major tokens
    x = dense(xf, p["conv_w"], p["conv_b"], residual=pos_b)              # 1x1 conv + pos, (B*S,Dp)

    for lp in p["layers"]:
        x = encoder_layer_forward(lp, x, B, S, D, Dp, nhead)

    feat = norm_meanpool(x.reshape(B, S, Dp), p["norm_g"], p["norm_b"], D)  # (B, D) f32
    return feat


def scob_forward(params, x, idx):
    low14, low28 = backbone_forward(params["backbone"], x)
    high14 = image_mid_forward(params["fm1_14"], low14)
    high28 = image_mid_forward(params["fm1_28"], low28)
    high = jnp.concatenate([high14, high28], axis=1)                     # (B, feat_dim) f32

    logits = dense(high, params["cls_w"], params["cls_b"],
                   act="sigmoid", out_dtype=jnp.float32)                 # ImageClassifier
    projected = dense(
        dense(high, params["proj_w1"], params["proj_b1"], act="leaky_relu"),
        params["proj_w2"], params["proj_b2"], out_dtype=jnp.float32)     # FeatProjector
    # LabelEstimator: tiny gather + sigmoid on (B, num_classes) — left to XLA on purpose.
    estimated = jax.nn.sigmoid(params["g_logits"][idx])
    return logits, projected, estimated


# --------------------------------------------------------------------------

if __name__ == "__main__":
    key = jax.random.PRNGKey(0)
    k_params, k_x = jax.random.split(key)

    num_classes, feat_dim = 10, 32
    num_data, B = 20, 2

    obs_np = (np.arange(num_data * num_classes).reshape(num_data, num_classes) % 3) - 1
    observed_matrix = jnp.asarray(obs_np, dtype=jnp.int32)

    params = init_scob(k_params, num_classes, feat_dim, observed_matrix)

    x = jax.random.normal(k_x, (B, 3, 64, 64), jnp.float32)   # NCHW image
    idx = jnp.array([0, 3], dtype=jnp.int32)

    logits, projected_feats, estimated_labels = jax.jit(scob_forward)(params, x, idx)
    jax.block_until_ready((logits, projected_feats, estimated_labels))

    assert logits.shape == (B, num_classes)
    assert projected_feats.shape == (B, feat_dim)
    assert estimated_labels.shape == (B, num_classes)
    assert bool(jnp.all(jnp.isfinite(logits)))
    assert bool(jnp.all(jnp.isfinite(projected_feats)))
    assert bool(jnp.all((logits >= 0) & (logits <= 1)))
    assert bool(jnp.all((estimated_labels >= 0) & (estimated_labels <= 1)))
    print("KERNEL_OK")
</pallas_src>

<mosaic_0001>
module attributes {stable_mosaic.version = 11 : i64} {
  func.func @_dense_kernel(%arg0: i32, %arg1: i32, %arg2: memref<32x8xf32, #tpu.memory_space<vmem>>, %arg3: memref<8x1024xbf16, #tpu.memory_space<vmem>>, %arg4: memref<1x1024xf32, #tpu.memory_space<vmem>>, %arg5: memref<32x1024xbf16, #tpu.memory_space<vmem>>) attributes {dimension_semantics = [#tpu.dimension_semantics<parallel>, #tpu.dimension_semantics<arbitrary>], iteration_bounds = array<i64: 1, 1>, scalar_prefetch = 0 : i64, scratch_operands = 0 : i64, tpu.core_type = #tpu.core_type<tc>, window_params = [{transform_indices = @transform_0, window_bounds = array<i64: 32, 8>}, {transform_indices = @transform_1, window_bounds = array<i64: 8, 1024>}, {pipeline_mode = #tpu.pipeline_mode<synchronous>, transform_indices = @transform_2, window_bounds = array<i64: 1, 1024>}, {transform_indices = @transform_3, window_bounds = array<i64: 32, 1024>}]} {
    %c0 = arith.constant 0 : index
    %c0_0 = arith.constant 0 : index
    %0 = vector.load %arg2[%c0, %c0_0] : memref<32x8xf32, #tpu.memory_space<vmem>>, vector<32x8xf32>
    %1 = arith.truncf %0 : vector<32x8xf32> to vector<32x8xbf16>
    %c0_1 = arith.constant 0 : index
    %c0_2 = arith.constant 0 : index
    %2 = vector.load %arg3[%c0_1, %c0_2] : memref<8x1024xbf16, #tpu.memory_space<vmem>>, vector<8x1024xbf16>
    %cst = arith.constant dense<0.000000e+00> : vector<32x1024xf32>
    %3 = tpu.matmul %1, %2, %cst {dimension_numbers = #tpu.dot_dimension_numbers<[1], [0], [0], [1], [0, 0, 1, 1], [], []>} : vector<32x8xbf16>, vector<8x1024xbf16>, vector<32x1024xf32> -> vector<32x1024xf32>
    %c0_3 = arith.constant 0 : index
    %c0_4 = arith.constant 0 : index
    %4 = vector.load %arg4[%c0_3, %c0_4] : memref<1x1024xf32, #tpu.memory_space<vmem>>, vector<1x1024xf32>
    %5 = vector.broadcast %4 : vector<1x1024xf32> to vector<32x1024xf32>
    %6 = arith.addf %3, %5 : vector<32x1024xf32>
    %cst_5 = arith.constant 0.000000e+00 : f32
    %7 = vector.broadcast %cst_5 : f32 to vector<32x1024xf32>
    %8 = arith.maximumf %6, %7 : vector<32x1024xf32>
    %9 = arith.truncf %8 : vector<32x1024xf32> to vector<32x1024xbf16>
    %c0_6 = arith.constant 0 : index
    %c0_7 = arith.constant 0 : index
    %10 = vector.load %arg5[%c0_6, %c0_7] : memref<32x1024xbf16, #tpu.memory_space<vmem>>, vector<32x1024xbf16>
    tpu.vector_store %arg5[%c0_6, %c0_7], %9 {strides = array<i32>} : memref<32x1024xbf16, #tpu.memory_space<vmem>>, vector<32x1024xbf16>,
    return
  }
  func.func @transform_0(%arg0: i32, %arg1: i32) -> (i32, i32) {
    %c0_i32 = arith.constant 0 : i32
    return %arg0, %arg1 : i32, i32
  }
  func.func @transform_1(%arg0: i32, %arg1: i32) -> (i32, i32) {
    %c0_i32 = arith.constant 0 : i32
    %c0_i32_0 = arith.constant 0 : i32
    return %arg1, %c0_i32 : i32, i32
  }
  func.func @transform_2(%arg0: i32, %arg1: i32) -> (i32, i32) {
    %c0_i32 = arith.constant 0 : i32
    %c0_i32_0 = arith.constant 0 : i32
    %c0_i32_1 = arith.constant 0 : i32
    return %c0_i32, %c0_i32_0 : i32, i32
  }
  func.func @transform_3(%arg0: i32, %arg1: i32) -> (i32, i32) {
    %c0_i32 = arith.constant 0 : i32
    %c0_i32_0 = arith.constant 0 : i32
    return %arg0, %c0_i32 : i32, i32
  }
}

module attributes {stable_mosaic.version = 11 : i64} {
  func.func @_dense_kernel(%arg0: i32, %arg1: i32, %arg2: memref<32x512xbf16, #tpu.memory_space<vmem>>, %arg3: memref<512x128xbf16, #tpu.memory_space<vmem>>, %arg4: memref<1x128xf32, #tpu.memory_space<vmem>>, %arg5: memref<32x128xf32, #tpu.memory_space<vmem>>, %arg6: memref<32x128xbf16, #tpu.memory_space<vmem>>, %arg7: memref<32x128xf32, #tpu.memory_space<vmem>>) attributes {dimension_semantics = [#tpu.dimension_semantics<parallel>, #tpu.dimension_semantics<arbitrary>], iteration_bounds = array<i64: 1, 2>, scalar_prefetch = 0 : i64, scratch_operands = 1 : i64, tpu.core_type = #tpu.core_type<tc>, window_params = [{transform_indices = @transform_0, window_bounds = array<i64: 32, 512>}, {transform_indices = @transform_1, window_bounds = array<i64: 512, 128>}, {pipeline_mode = #tpu.pipeline_mode<synchronous>, transform_indices = @transform_2, window_bounds = array<i64: 1, 128>}, {transform_indices = @transform_3, window_bounds = array<i64: 32, 128>}, {transform_indices = @transform_4, window_bounds = array<i64: 32, 128>}]} {
    %c0 = arith.constant 0 : index
    %c0_0 = arith.constant 0 : index
    %0 = vector.load %arg2[%c0, %c0_0] : memref<32x512xbf16, #tpu.memory_space<vmem>>, vector<32x512xbf16>
    %c0_1 = arith.constant 0 : index
    %c0_2 = arith.constant 0 : index
    %1 = vector.load %arg3[%c0_1, %c0_2] : memref<512x128xbf16, #tpu.memory_space<vmem>>, vector<512x128xbf16>
    %cst = arith.constant dense<0.000000e+00> : vector<32x128xf32>
    %2 = tpu.matmul %0, %1, %cst {dimension_numbers = #tpu.dot_dimension_numbers<[1], [0], [0], [1], [0, 0, 1, 1], [], []>} : vector<32x512xbf16>, vector<512x128xbf16>, vector<32x128xf32> -> vector<32x128xf32>
    %c0_i32 = arith.constant 0 : i32
    %3 = arith.cmpi eq, %arg1, %c0_i32 : i32
    %4 = arith.extui %3 : i1 to i32
    %c0_i32_3 = arith.constant 0 : i32
    %5 = arith.cmpi ne, %4, %c0_i32_3 : i32
    scf.if %5 {
      %cst_9 = arith.constant 0.000000e+00 : f32
      %12 = vector.broadcast %cst_9 : f32 to vector<32x128xf32>
      %c0_10 = arith.constant 0 : index
      %c0_11 = arith.constant 0 : index
      %13 = vector.load %arg7[%c0_10, %c0_11] : memref<32x128xf32, #tpu.memory_space<vmem>>, vector<32x128xf32>
      tpu.vector_store %arg7[%c0_10, %c0_11], %12 {strides = array<i32>} : memref<32x128xf32, #tpu.memory_space<vmem>>, vector<32x128xf32>,
    } else {
    }
    %c0_4 = arith.constant 0 : index
    %c0_5 = arith.constant 0 : index
    %6 = vector.load %arg7[%c0_4, %c0_5] : memref<32x128xf32, #tpu.memory_space<vmem>>, vector<32x128xf32>
    %7 = arith.addf %6, %2 : vector<32x128xf32>
    %c0_6 = arith.constant 0 : index
    %c0_7 = arith.constant 0 : index
    %8 = vector.load %arg7[%c0_6, %c0_7] : memref<32x128xf32, #tpu.memory_space<vmem>>, vector<32x128xf32>
    tpu.vector_store %arg7[%c0_6, %c0_7], %7 {strides = array<i32>} : memref<32x128xf32, #tpu.memory_space<vmem>>, vector<32x128xf32>,
    %c1_i32 = arith.constant 1 : i32
    %9 = arith.cmpi eq, %arg1, %c1_i32 : i32
    %10 = arith.extui %9 : i1 to i32
    %c0_i32_8 = arith.constant 0 : i32
    %11 = arith.cmpi ne, %10, %c0_i32_8 : i32
    scf.if %11 {
      %c0_9 = arith.constant 0 : index
      %c0_10 = arith.constant 0 : index
      %12 = vector.load %arg7[%c0_9, %c0_10] : memref<32x128xf32, #tpu.memory_space<vmem>>, vector<32x128xf32>
      %c0_11 = arith.constant 0 : index
      %c0_12 = arith.constant 0 : index
      %13 = vector.load %arg4[%c0_11, %c0_12] : memref<1x128xf32, #tpu.memory_space<vmem>>, vector<1x128xf32>
      %14 = vector.broadcast %13 : vector<1x128xf32> to vector<32x128xf32>
      %15 = arith.addf %12, %14 : vector<32x128xf32>
      %c0_13 = arith.constant 0 : index
      %c0_14 = arith.constant 0 : index
      %16 = vector.load %arg5[%c0_13, %c0_14] : memref<32x128xf32, #tpu.memory_space<vmem>>, vector<32x128xf32>
      %17 = arith.addf %15, %16 : vector<32x128xf32>
      %18 = arith.truncf %17 : vector<32x128xf32> to vector<32x128xbf16>
      %c0_15 = arith.constant 0 : index
      %c0_16 = arith.constant 0 : index
      %19 = vector.load %arg6[%c0_15, %c0_16] : memref<32x128xbf16, #tpu.memory_space<vmem>>, vector<32x128xbf16>
      tpu.vector_store %arg6[%c0_15, %c0_16], %18 {strides = array<i32>} : memref<32x128xbf16, #tpu.memory_space<vmem>>, vector<32x128xbf16>,
    } else {
    }
    return
  }
  func.func @transform_0(%arg0: i32, %arg1: i32) -> (i32, i32) {
    %c0_i32 = arith.constant 0 : i32
    return %arg0, %arg1 : i32, i32
  }
  func.func @transform_1(%arg0: i32, %arg1: i32) -> (i32, i32) {
    %c0_i32 = arith.constant 0 : i32
    %c0_i32_0 = arith.constant 0 : i32
    return %arg1, %c0_i32 : i32, i32
  }
  func.func @transform_2(%arg0: i32, %arg1: i32) -> (i32, i32) {
    %c0_i32 = arith.constant 0 : i32
    %c0_i32_0 = arith.constant 0 : i32
    %c0_i32_1 = arith.constant 0 : i32
    return %c0_i32, %c0_i32_0 : i32, i32
  }
  func.func @transform_3(%arg0: i32, %arg1: i32) -> (i32, i32) {
    %c0_i32 = arith.constant 0 : i32
    %c0_i32_0 = arith.constant 0 : i32
    return %arg0, %c0_i32 : i32, i32
  }
  func.func @transform_4(%arg0: i32, %arg1: i32) -> (i32, i32) {
    %c0_i32 = arith.constant 0 : i32
    %c0_i32_0 = arith.constant 0 : i32
    return %arg0, %c0_i32 : i32, i32
  }
}

module attributes {stable_mosaic.version = 11 : i64} {
  func.func @_dense_kernel(%arg0: i32, %arg1: i32, %arg2: memref<32x128xbf16, #tpu.memory_space<vmem>>, %arg3: memref<128x128xbf16, #tpu.memory_space<vmem>>, %arg4: memref<1x128xf32, #tpu.memory_space<vmem>>, %arg5: memref<32x128xbf16, #tpu.memory_space<vmem>>) attributes {dimension_semantics = [#tpu.dimension_semantics<parallel>, #tpu.dimension_semantics<arbitrary>], iteration_bounds = array<i64: 1, 1>, scalar_prefetch = 0 : i64, scratch_operands = 0 : i64, tpu.core_type = #tpu.core_type<tc>, window_params = [{transform_indices = @transform_0, window_bounds = array<i64: 32, 128>}, {transform_indices = @transform_1, window_bounds = array<i64: 128, 128>}, {pipeline_mode = #tpu.pipeline_mode<synchronous>, transform_indices = @transform_2, window_bounds = array<i64: 1, 128>}, {transform_indices = @transform_3, window_bounds = array<i64: 32, 128>}]} {
    %c0 = arith.constant 0 : index
    %c0_0 = arith.constant 0 : index
    %0 = vector.load %arg2[%c0, %c0_0] : memref<32x128xbf16, #tpu.memory_space<vmem>>, vector<32x128xbf16>
    %c0_1 = arith.constant 0 : index
    %c0_2 = arith.constant 0 : index
    %1 = vector.load %arg3[%c0_1, %c0_2] : memref<128x128xbf16, #tpu.memory_space<vmem>>, vector<128x128xbf16>
    %cst = arith.constant dense<0.000000e+00> : vector<32x128xf32>
    %2 = tpu.matmul %0, %1, %cst {dimension_numbers = #tpu.dot_dimension_numbers<[1], [0], [0], [1], [0, 0, 1, 1], [], []>} : vector<32x128xbf16>, vector<128x128xbf16>, vector<32x128xf32> -> vector<32x128xf32>
    %c0_3 = arith.constant 0 : index
    %c0_4 = arith.constant 0 : index
    %3 = vector.load %arg4[%c0_3, %c0_4] : memref<1x128xf32, #tpu.memory_space<vmem>>, vector<1x128xf32>
    %4 = vector.broadcast %3 : vector<1x128xf32> to vector<32x128xf32>
    %5 = arith.addf %2, %4 : vector<32x128xf32>
    %6 = arith.truncf %5 : vector<32x128xf32> to vector<32x128xbf16>
    %c0_5 = arith.constant 0 : index
    %c0_6 = arith.constant 0 : index
    %7 = vector.load %arg5[%c0_5, %c0_6] : memref<32x128xbf16, #tpu.memory_space<vmem>>, vector<32x128xbf16>
    tpu.vector_store %arg5[%c0_5, %c0_6], %6 {strides = array<i32>} : memref<32x128xbf16, #tpu.memory_space<vmem>>, vector<32x128xbf16>,
    return
  }
  func.func @transform_0(%arg0: i32, %arg1: i32) -> (i32, i32) {
    %c0_i32 = arith.constant 0 : i32
    return %arg0, %arg1 : i32, i32
  }
  func.func @transform_1(%arg0: i32, %arg1: i32) -> (i32, i32) {
    %c0_i32 = arith.constant 0 : i32
    %c0_i32_0 = arith.constant 0 : i32
    return %arg1, %c0_i32 : i32, i32
  }
  func.func @transform_2(%arg0: i32, %arg1: i32) -> (i32, i32) {
    %c0_i32 = arith.constant 0 : i32
    %c0_i32_0 = arith.constant 0 : i32
    %c0_i32_1 = arith.constant 0 : i32
    return %c0_i32, %c0_i32_0 : i32, i32
  }
  func.func @transform_3(%arg0: i32, %arg1: i32) -> (i32, i32) {
    %c0_i32 = arith.constant 0 : i32
    %c0_i32_0 = arith.constant 0 : i32
    return %arg0, %c0_i32 : i32, i32
  }
}

module attributes {stable_mosaic.version = 11 : i64} {
  func.func @_dense_kernel(%arg0: i32, %arg1: i32, %arg2: memref<32x128xbf16, #tpu.memory_space<vmem>>, %arg3: memref<128x2048xbf16, #tpu.memory_space<vmem>>, %arg4: memref<1x2048xf32, #tpu.memory_space<vmem>>, %arg5: memref<32x2048xbf16, #tpu.memory_space<vmem>>) attributes {dimension_semantics = [#tpu.dimension_semantics<parallel>, #tpu.dimension_semantics<arbitrary>], iteration_bounds = array<i64: 1, 1>, scalar_prefetch = 0 : i64, scratch_operands = 0 : i64, tpu.core_type = #tpu.core_type<tc>, window_params = [{transform_indices = @transform_0, window_bounds = array<i64: 32, 128>}, {transform_indices = @transform_1, window_bounds = array<i64: 128, 2048>}, {pipeline_mode = #tpu.pipeline_mode<synchronous>, transform_indices = @transform_2, window_bounds = array<i64: 1, 2048>}, {transform_indices = @transform_3, window_bounds = array<i64: 32, 2048>}]} {
    %c0 = arith.constant 0 : index
    %c0_0 = arith.constant 0 : index
    %0 = vector.load %arg2[%c0, %c0_0] : memref<32x128xbf16, #tpu.memory_space<vmem>>, vector<32x128xbf16>
    %c0_1 = arith.constant 0 : index
    %c0_2 = arith.constant 0 : index
    %1 = vector.load %arg3[%c0_1, %c0_2] : memref<128x2048xbf16, #tpu.memory_space<vmem>>, vector<128x2048xbf16>
    %cst = arith.constant dense<0.000000e+00> : vector<32x2048xf32>
    %2 = tpu.matmul %0, %1, %cst {dimension_numbers = #tpu.dot_dimension_numbers<[1], [0], [0], [1], [0, 0, 1, 1], [], []>} : vector<32x128xbf16>, vector<128x2048xbf16>, vector<32x2048xf32> -> vector<32x2048xf32>
    %c0_3 = arith.constant 0 : index
    %c0_4 = arith.constant 0 : index
    %3 = vector.load %arg4[%c0_3, %c0_4] : memref<1x2048xf32, #tpu.memory_space<vmem>>, vector<1x2048xf32>
    %4 = vector.broadcast %3 : vector<1x2048xf32> to vector<32x2048xf32>
    %5 = arith.addf %2, %4 : vector<32x2048xf32>
    %cst_5 = arith.constant 0.000000e+00 : f32
    %6 = vector.broadcast %cst_5 : f32 to vector<32x2048xf32>
    %7 = arith.cmpf oge, %5, %6 : vector<32x2048xf32>
    %cst_6 = arith.constant 0.00999999977 : f32
    %8 = vector.broadcast %cst_6 : f32 to vector<32x2048xf32>
    %9 = arith.mulf %8, %5 : vector<32x2048xf32>
    %10 = arith.select %7, %5, %9 : vector<32x2048xi1>, vector<32x2048xf32>
    %11 = arith.truncf %10 : vector<32x2048xf32> to vector<32x2048xbf16>
    %c0_7 = arith.constant 0 : index
    %c0_8 = arith.constant 0 : index
    %12 = vector.load %arg5[%c0_7, %c0_8] : memref<32x2048xbf16, #tpu.memory_space<vmem>>, vector<32x2048xbf16>
    tpu.vector_store %arg5[%c0_7, %c0_8], %11 {strides = array<i32>} : memref<32x2048xbf16, #tpu.memory_space<vmem>>, vector<32x2048xbf16>,
    return
  }
  func.func @transform_0(%arg0: i32, %arg1: i32) -> (i32, i32) {
    %c0_i32 = arith.constant 0 : i32
    return %arg0, %arg1 : i32, i32
  }
  func.func @transform_1(%arg0: i32, %arg1: i32) -> (i32, i32) {
    %c0_i32 = arith.constant 0 : i32
    %c0_i32_0 = arith.constant 0 : i32
    return %arg1, %c0_i32 : i32, i32
  }
  func.func @transform_2(%arg0: i32, %arg1: i32) -> (i32, i32) {
    %c0_i32 = arith.constant 0 : i32
    %c0_i32_0 = arith.constant 0 : i32
    %c0_i32_1 = arith.constant 0 : i32
    return %c0_i32, %c0_i32_0 : i32, i32
  }
  func.func @transform_3(%arg0: i32, %arg1: i32) -> (i32, i32) {
    %c0_i32 = arith.constant 0 : i32
    %c0_i32_0 = arith.constant 0 : i32
    return %arg0, %c0_i32 : i32, i32
  }
}

module attributes {stable_mosaic.version = 11 : i64} {
  func.func @_attn_kernel(%arg0: i32, %arg1: memref<1x3x16x2xbf16, #tpu.memory_space<vmem>>, %arg2: memref<1x16x2xbf16, #tpu.memory_space<vmem>>) attributes {dimension_semantics = [#tpu.dimension_semantics<parallel>], iteration_bounds = array<i64: 16>, scalar_prefetch = 0 : i64, scratch_operands = 0 : i64, tpu.core_type = #tpu.core_type<tc>, window_params = [{transform_indices = @transform_0, window_bounds = array<i64: 1, 3, 16, 2>}, {transform_indices = @transform_1, window_bounds = array<i64: 1, 16, 2>}]} {
    %c0 = arith.constant 0 : index
    %c0_0 = arith.constant 0 : index
    %c0_1 = arith.constant 0 : index
    %c0_2 = arith.constant 0 : index
    %0 = vector.load %arg1[%c0, %c0_0, %c0_1, %c0_2] : memref<1x3x16x2xbf16, #tpu.memory_space<vmem>>, vector<1x1x16x2xbf16>
    %1 = vector.shape_cast %0 : vector<1x1x16x2xbf16> to vector<16x2xbf16>
    %c0_3 = arith.constant 0 : index
    %c1 = arith.constant 1 : index
    %c0_4 = arith.constant 0 : index
    %c0_5 = arith.constant 0 : index
    %2 = vector.load %arg1[%c0_3, %c1, %c0_4, %c0_5] : memref<1x3x16x2xbf16, #tpu.memory_space<vmem>>, vector<1x1x16x2xbf16>
    %3 = vector.shape_cast %2 : vector<1x1x16x2xbf16> to vector<16x2xbf16>
    %c0_6 = arith.constant 0 : index
    %c2 = arith.constant 2 : index
    %c0_7 = arith.constant 0 : index
    %c0_8 = arith.constant 0 : index
    %4 = vector.load %arg1[%c0_6, %c2, %c0_7, %c0_8] : memref<1x3x16x2xbf16, #tpu.memory_space<vmem>>, vector<1x1x16x2xbf16>
    %5 = vector.shape_cast %4 : vector<1x1x16x2xbf16> to vector<16x2xbf16>
    %cst = arith.constant dense<0.000000e+00> : vector<16x16xf32>
    %6 = tpu.matmul %1, %3, %cst {dimension_numbers = #tpu.dot_dimension_numbers<[1], [1], [0], [0], [0, 0, 1, 0], [], []>} : vector<16x2xbf16>, vector<16x2xbf16>, vector<16x16xf32> -> vector<16x16xf32>
    %cst_9 = arith.constant dense<0xFF800000> : vector<16xf32>
    %7 = vector.multi_reduction <maximumf>, %6, %cst_9 [1] : vector<16x16xf32> to vector<16xf32>
    %8 = vector.shape_cast %7 : vector<16xf32> to vector<16x1xf32>
    %9 = vector.broadcast %8 : vector<16x1xf32> to vector<16x16xf32>
    %10 = arith.subf %6, %9 : vector<16x16xf32>
    %11 = math.exp %10 : vector<16x16xf32>
    %cst_10 = arith.constant dense<0.000000e+00> : vector<16xf32>
    %12 = vector.multi_reduction <add>, %11, %cst_10 [1] : vector<16x16xf32> to vector<16xf32>
    %13 = vector.shape_cast %12 : vector<16xf32> to vector<16x1xf32>
    %14 = tpu.reciprocal %13 {approx = true} : vector<16x1xf32> -> vector<16x1xf32>
    %15 = vector.broadcast %14 : vector<16x1xf32> to vector<16x16xf32>
    %16 = arith.mulf %11, %15 : vector<16x16xf32>
    %17 = arith.truncf %16 : vector<16x16xf32> to vector<16x16xbf16>
    %cst_11 = arith.constant dense<0.000000e+00> : vector<16x2xf32>
    %18 = tpu.matmul %17, %5, %cst_11 {dimension_numbers = #tpu.dot_dimension_numbers<[1], [0], [0], [1], [0, 0, 1, 1], [], []>} : vector<16x16xbf16>, vector<16x2xbf16>, vector<16x2xf32> -> vector<16x2xf32>
    %19 = arith.truncf %18 : vector<16x2xf32> to vector<16x2xbf16>
    %c0_12 = arith.constant 0 : index
    %c0_13 = arith.constant 0 : index
    %c0_14 = arith.constant 0 : index
    %20 = vector.load %arg2[%c0_12, %c0_13, %c0_14] : memref<1x16x2xbf16, #tpu.memory_space<vmem>>, vector<1x16x2xbf16>
    %21 = vector.shape_cast %20 : vector<1x16x2xbf16> to vector<16x2xbf16>
    %22 = vector.shape_cast %19 : vector<16x2xbf16> to vector<1x16x2xbf16>
    tpu.vector_store %arg2[%c0_12, %c0_13, %c0_14], %22 {strides = array<i32>} : memref<1x16x2xbf16, #tpu.memory_space<vmem>>, vector<1x16x2xbf16>,
    return
  }
  func.func @transform_0(%arg0: i32) -> (i32, i32, i32, i32) {
    %c0_i32 = arith.constant 0 : i32
    %c0_i32_0 = arith.constant 0 : i32
    %c0_i32_1 = arith.constant 0 : i32
    %c0_i32_2 = arith.constant 0 : i32
    return %arg0, %c0_i32, %c0_i32_0, %c0_i32_1 : i32, i32, i32, i32
  }
  func.func @transform_1(%arg0: i32) -> (i32, i32, i32) {
    %c0_i32 = arith.constant 0 : i32
    %c0_i32_0 = arith.constant 0 : i32
    %c0_i32_1 = arith.constant 0 : i32
    return %arg0, %c0_i32, %c0_i32_0 : i32, i32, i32
  }
}

module attributes {stable_mosaic.version = 11 : i64} {
  func.func @_dense_kernel(%arg0: i32, %arg1: i32, %arg2: memref<32x16xbf16, #tpu.memory_space<vmem>>, %arg3: memref<16x128xbf16, #tpu.memory_space<vmem>>, %arg4: memref<1x128xf32, #tpu.memory_space<vmem>>, %arg5: memref<32x128xbf16, #tpu.memory_space<vmem>>, %arg6: memref<1x128xf32, #tpu.memory_space<vmem>>, %arg7: memref<1x128xf32, #tpu.memory_space<vmem>>, %arg8: memref<32x128xbf16, #tpu.memory_space<vmem>>) attributes {dimension_semantics = [#tpu.dimension_semantics<parallel>, #tpu.dimension_semantics<arbitrary>], iteration_bounds = array<i64: 1, 1>, scalar_prefetch = 0 : i64, scratch_operands = 0 : i64, tpu.core_type = #tpu.core_type<tc>, window_params = [{transform_indices = @transform_0, window_bounds = array<i64: 32, 16>}, {transform_indices = @transform_1, window_bounds = array<i64: 16, 128>}, {pipeline_mode = #tpu.pipeline_mode<synchronous>, transform_indices = @transform_2, window_bounds = array<i64: 1, 128>}, {transform_indices = @transform_3, window_bounds = array<i64: 32, 128>}, {pipeline_mode = #tpu.pipeline_mode<synchronous>, transform_indices = @transform_4, window_bounds = array<i64: 1, 128>}, {pipeline_mode = #tpu.pipeline_mode<synchronous>, transform_indices = @transform_5, window_bounds = array<i64: 1, 128>}, {transform_indices = @transform_6, window_bounds = array<i64: 32, 128>}]} {
    %c0 = arith.constant 0 : index
    %c0_0 = arith.constant 0 : index
    %0 = vector.load %arg2[%c0, %c0_0] : memref<32x16xbf16, #tpu.memory_space<vmem>>, vector<32x16xbf16>
    %c0_1 = arith.constant 0 : index
    %c0_2 = arith.constant 0 : index
    %1 = vector.load %arg3[%c0_1, %c0_2] : memref<16x128xbf16, #tpu.memory_space<vmem>>, vector<16x128xbf16>
    %cst = arith.constant dense<0.000000e+00> : vector<32x128xf32>
    %2 = tpu.matmul %0, %1, %cst {dimension_numbers = #tpu.dot_dimension_numbers<[1], [0], [0], [1], [0, 0, 1, 1], [], []>} : vector<32x16xbf16>, vector<16x128xbf16>, vector<32x128xf32> -> vector<32x128xf32>
    %c0_3 = arith.constant 0 : index
    %c0_4 = arith.constant 0 : index
    %3 = vector.load %arg4[%c0_3, %c0_4] : memref<1x128xf32, #tpu.memory_space<vmem>>, vector<1x128xf32>
    %4 = vector.broadcast %3 : vector<1x128xf32> to vector<32x128xf32>
    %5 = arith.addf %2, %4 : vector<32x128xf32>
    %c0_5 = arith.constant 0 : index
    %c0_6 = arith.constant 0 : index
    %6 = vector.load %arg5[%c0_5, %c0_6] : memref<32x128xbf16, #tpu.memory_space<vmem>>, vector<32x128xbf16>
    %7 = arith.extf %6 : vector<32x128xbf16> to vector<32x128xf32>
    %8 = arith.addf %5, %7 : vector<32x128xf32>
    %9 = tpu.iota {dimensions = array<i32: 1>} : vector<32x128xi32>
    %c16_i32 = arith.constant 16 : i32
    %10 = vector.broadcast %c16_i32 : i32 to vector<32x128xi32>
    %11 = arith.cmpi slt, %9, %10 : vector<32x128xi32>
    %cst_7 = arith.constant 0.000000e+00 : f32
    %12 = vector.broadcast %cst_7 : f32 to vector<32x128xf32>
    %13 = arith.select %11, %8, %12 : vector<32x128xi1>, vector<32x128xf32>
    %cst_8 = arith.constant dense<0.000000e+00> : vector<32xf32>
    %14 = vector.multi_reduction <add>, %13, %cst_8 [1] : vector<32x128xf32> to vector<32xf32>
    %15 = vector.shape_cast %14 : vector<32xf32> to vector<32x1xf32>
    %cst_9 = arith.constant 6.250000e-02 : f32
    %16 = vector.broadcast %cst_9 : f32 to vector<32x1xf32>
    %17 = arith.mulf %15, %16 : vector<32x1xf32>
    %18 = vector.broadcast %17 : vector<32x1xf32> to vector<32x128xf32>
    %19 = arith.subf %8, %18 : vector<32x128xf32>
    %cst_10 = arith.constant 0.000000e+00 : f32
    %20 = vector.broadcast %cst_10 : f32 to vector<32x128xf32>
    %21 = arith.select %11, %19, %20 : vector<32x128xi1>, vector<32x128xf32>
    %22 = arith.mulf %21, %21 : vector<32x128xf32>
    %cst_11 = arith.constant dense<0.000000e+00> : vector<32xf32>
    %23 = vector.multi_reduction <add>, %22, %cst_11 [1] : vector<32x128xf32> to vector<32xf32>
    %24 = vector.shape_cast %23 : vector<32xf32> to vector<32x1xf32>
    %cst_12 = arith.constant 6.250000e-02 : f32
    %25 = vector.broadcast %cst_12 : f32 to vector<32x1xf32>
    %26 = arith.mulf %24, %25 : vector<32x1xf32>
    %cst_13 = arith.constant 9.99999974E-6 : f32
    %27 = vector.broadcast %cst_13 : f32 to vector<32x1xf32>
    %28 = arith.addf %26, %27 : vector<32x1xf32>
    %29 = math.rsqrt %28 : vector<32x1xf32>
    %30 = vector.broadcast %29 : vector<32x1xf32> to vector<32x128xf32>
    %31 = arith.mulf %21, %30 : vector<32x128xf32>
    %c0_14 = arith.constant 0 : index
    %c0_15 = arith.constant 0 : index
    %32 = vector.load %arg6[%c0_14, %c0_15] : memref<1x128xf32, #tpu.memory_space<vmem>>, vector<1x128xf32>
    %33 = vector.broadcast %32 : vector<1x128xf32> to vector<32x128xf32>
    %34 = arith.mulf %31, %33 : vector<32x128xf32>
    %c0_16 = arith.constant 0 : index
    %c0_17 = arith.constant 0 : index
    %35 = vector.load %arg7[%c0_16, %c0_17] : memref<1x128xf32, #tpu.memory_space<vmem>>, vector<1x128xf32>
    %36 = vector.broadcast %35 : vector<1x128xf32> to vector<32x128xf32>
    %37 = arith.addf %34, %36 : vector<32x128xf32>
    %38 = arith.truncf %37 : vector<32x128xf32> to vector<32x128xbf16>
    %c0_18 = arith.constant 0 : index
    %c0_19 = arith.constant 0 : index
    %39 = vector.load %arg8[%c0_18, %c0_19] : memref<32x128xbf16, #tpu.memory_space<vmem>>, vector<32x128xbf16>
    tpu.vector_store %arg8[%c0_18, %c0_19], %38 {strides = array<i32>} : memref<32x128xbf16, #tpu.memory_space<vmem>>, vector<32x128xbf16>,
    return
  }
  func.func @transform_0(%arg0: i32, %arg1: i32) -> (i32, i32) {
    %c0_i32 = arith.constant 0 : i32
    return %arg0, %arg1 : i32, i32
  }
  func.func @transform_1(%arg0: i32, %arg1: i32) -> (i32, i32) {
    %c0_i32 = arith.constant 0 : i32
    %c0_i32_0 = arith.constant 0 : i32
    return %arg1, %c0_i32 : i32, i32
  }
  func.func @transform_2(%arg0: i32, %arg1: i32) -> (i32, i32) {
    %c0_i32 = arith.constant 0 : i32
    %c0_i32_0 = arith.constant 0 : i32
    %c0_i32_1 = arith.constant 0 : i32
    return %c0_i32, %c0_i32_0 : i32, i32
  }
  func.func @transform_3(%arg0: i32, %arg1: i32) -> (i32, i32) {
    %c0_i32 = arith.constant 0 : i32
    %c0_i32_0 = arith.constant 0 : i32
    return %arg0, %c0_i32 : i32, i32
  }
  func.func @transform_4(%arg0: i32, %arg1: i32) -> (i32, i32) {
    %c0_i32 = arith.constant 0 : i32
    %c0_i32_0 = arith.constant 0 : i32
    %c0_i32_1 = arith.constant 0 : i32
    return %c0_i32, %c0_i32_0 : i32, i32
  }
  func.func @transform_5(%arg0: i32, %arg1: i32) -> (i32, i32) {
    %c0_i32 = arith.constant 0 : i32
    %c0_i32_0 = arith.constant 0 : i32
    %c0_i32_1 = arith.constant 0 : i32
    return %c0_i32, %c0_i32_0 : i32, i32
  }
  func.func @transform_6(%arg0: i32, %arg1: i32) -> (i32, i32) {
    %c0_i32 = arith.constant 0 : i32
    %c0_i32_0 = arith.constant 0 : i32
    return %arg0, %c0_i32 : i32, i32
  }
}

module attributes {stable_mosaic.version = 11 : i64} {
  func.func @_dense_kernel(%arg0: i32, %arg1: i32, %arg2: memref<32x512xbf16, #tpu.memory_space<vmem>>, %arg3: memref<512x128xbf16, #tpu.memory_space<vmem>>, %arg4: memref<1x128xf32, #tpu.memory_space<vmem>>, %arg5: memref<32x128xbf16, #tpu.memory_space<vmem>>, %arg6: memref<1x128xf32, #tpu.memory_space<vmem>>, %arg7: memref<1x128xf32, #tpu.memory_space<vmem>>, %arg8: memref<32x128xbf16, #tpu.memory_space<vmem>>, %arg9: memref<32x128xf32, #tpu.memory_space<vmem>>) attributes {dimension_semantics = [#tpu.dimension_semantics<parallel>, #tpu.dimension_semantics<arbitrary>], iteration_bounds = array<i64: 1, 4>, scalar_prefetch = 0 : i64, scratch_operands = 1 : i64, tpu.core_type = #tpu.core_type<tc>, window_params = [{transform_indices = @transform_0, window_bounds = array<i64: 32, 512>}, {transform_indices = @transform_1, window_bounds = array<i64: 512, 128>}, {pipeline_mode = #tpu.pipeline_mode<synchronous>, transform_indices = @transform_2, window_bounds = array<i64: 1, 128>}, {transform_indices = @transform_3, window_bounds = array<i64: 32, 128>}, {pipeline_mode = #tpu.pipeline_mode<synchronous>, transform_indices = @transform_4, window_bounds = array<i64: 1, 128>}, {pipeline_mode = #tpu.pipeline_mode<synchronous>, transform_indices = @transform_5, window_bounds = array<i64: 1, 128>}, {transform_indices = @transform_6, window_bounds = array<i64: 32, 128>}]} {
    %c0 = arith.constant 0 : index
    %c0_0 = arith.constant 0 : index
    %0 = vector.load %arg2[%c0, %c0_0] : memref<32x512xbf16, #tpu.memory_space<vmem>>, vector<32x512xbf16>
    %c0_1 = arith.constant 0 : index
    %c0_2 = arith.constant 0 : index
    %1 = vector.load %arg3[%c0_1, %c0_2] : memref<512x128xbf16, #tpu.memory_space<vmem>>, vector<512x128xbf16>
    %cst = arith.constant dense<0.000000e+00> : vector<32x128xf32>
    %2 = tpu.matmul %0, %1, %cst {dimension_numbers = #tpu.dot_dimension_numbers<[1], [0], [0], [1], [0, 0, 1, 1], [], []>} : vector<32x512xbf16>, vector<512x128xbf16>, vector<32x128xf32> -> vector<32x128xf32>
    %c0_i32 = arith.constant 0 : i32
    %3 = arith.cmpi eq, %arg1, %c0_i32 : i32
    %4 = arith.extui %3 : i1 to i32
    %c0_i32_3 = arith.constant 0 : i32
    %5 = arith.cmpi ne, %4, %c0_i32_3 : i32
    scf.if %5 {
      %cst_9 = arith.constant 0.000000e+00 : f32
      %12 = vector.broadcast %cst_9 : f32 to vector<32x128xf32>
      %c0_10 = arith.constant 0 : index
      %c0_11 = arith.constant 0 : index
      %13 = vector.load %arg9[%c0_10, %c0_11] : memref<32x128xf32, #tpu.memory_space<vmem>>, vector<32x128xf32>
      tpu.vector_store %arg9[%c0_10, %c0_11], %12 {strides = array<i32>} : memref<32x128xf32, #tpu.memory_space<vmem>>, vector<32x128xf32>,
    } else {
    }
    %c0_4 = arith.constant 0 : index
    %c0_5 = arith.constant 0 : index
    %6 = vector.load %arg9[%c0_4, %c0_5] : memref<32x128xf32, #tpu.memory_space<vmem>>, vector<32x128xf32>
    %7 = arith.addf %6, %2 : vector<32x128xf32>
    %c0_6 = arith.constant 0 : index
    %c0_7 = arith.constant 0 : index
    %8 = vector.load %arg9[%c0_6, %c0_7] : memref<32x128xf32, #tpu.memory_space<vmem>>, vector<32x128xf32>
    tpu.vector_store %arg9[%c0_6, %c0_7], %7 {strides = array<i32>} : memref<32x128xf32, #tpu.memory_space<vmem>>, vector<32x128xf32>,
    %c3_i32 = arith.constant 3 : i32
    %9 = arith.cmpi eq, %arg1, %c3_i32 : i32
    %10 = arith.extui %9 : i1 to i32
    %c0_i32_8 = arith.constant 0 : i32
    %11 = arith.cmpi ne, %10, %c0_i32_8 : i32
    scf.if %11 {
      %c0_9 = arith.constant 0 : index
      %c0_10 = arith.constant 0 : index
      %12 = vector.load %arg9[%c0_9, %c0_10] : memref<32x128xf32, #tpu.memory_space<vmem>>, vector<32x128xf32>
      %c0_11 = arith.constant 0 : index
      %c0_12 = arith.constant 0 : index
      %13 = vector.load %arg4[%c0_11, %c0_12] : memref<1x128xf32, #tpu.memory_space<vmem>>, vector<1x128xf32>
      %14 = vector.broadcast %13 : vector<1x128xf32> to vector<32x128xf32>
      %15 = arith.addf %12, %14 : vector<32x128xf32>
      %c0_13 = arith.constant 0 : index
      %c0_14 = arith.constant 0 : index
      %16 = vector.load %arg5[%c0_13, %c0_14] : memref<32x128xbf16, #tpu.memory_space<vmem>>, vector<32x128xbf16>
      %17 = arith.extf %16 : vector<32x128xbf16> to vector<32x128xf32>
      %18 = arith.addf %15, %17 : vector<32x128xf32>
      %19 = tpu.iota {dimensions = array<i32: 1>} : vector<32x128xi32>
      %c16_i32 = arith.constant 16 : i32
      %20 = vector.broadcast %c16_i32 : i32 to vector<32x128xi32>
      %21 = arith.cmpi slt, %19, %20 : vector<32x128xi32>
      %cst_15 = arith.constant 0.000000e+00 : f32
      %22 = vector.broadcast %cst_15 : f32 to vector<32x128xf32>
      %23 = arith.select %21, %18, %22 : vector<32x128xi1>, vector<32x128xf32>
      %cst_16 = arith.constant dense<0.000000e+00> : vector<32xf32>
      %24 = vector.multi_reduction <add>, %23, %cst_16 [1] : vector<32x128xf32> to vector<32xf32>
      %25 = vector.shape_cast %24 : vector<32xf32> to vector<32x1xf32>
      %cst_17 = arith.constant 6.250000e-02 : f32
      %26 = vector.broadcast %cst_17 : f32 to vector<32x1xf32>
      %27 = arith.mulf %25, %26 : vector<32x1xf32>
      %28 = vector.broadcast %27 : vector<32x1xf32> to vector<32x128xf32>
      %29 = arith.subf %18, %28 : vector<32x128xf32>
      %cst_18 = arith.constant 0.000000e+00 : f32
      %30 = vector.broadcast %cst_18 : f32 to vector<32x128xf32>
      %31 = arith.select %21, %29, %30 : vector<32x128xi1>, vector<32x128xf32>
      %32 = arith.mulf %31, %31 : vector<32x128xf32>
      %cst_19 = arith.constant dense<0.000000e+00> : vector<32xf32>
      %33 = vector.multi_reduction <add>, %32, %cst_19 [1] : vector<32x128xf32> to vector<32xf32>
      %34 = vector.shape_cast %33 : vector<32xf32> to vector<32x1xf32>
      %cst_20 = arith.constant 6.250000e-02 : f32
      %35 = vector.broadcast %cst_20 : f32 to vector<32x1xf32>
      %36 = arith.mulf %34, %35 : vector<32x1xf32>
      %cst_21 = arith.constant 9.99999974E-6 : f32
      %37 = vector.broadcast %cst_21 : f32 to vector<32x1xf32>
      %38 = arith.addf %36, %37 : vector<32x1xf32>
      %39 = math.rsqrt %38 : vector<32x1xf32>
      %40 = vector.broadcast %39 : vector<32x1xf32> to vector<32x128xf32>
      %41 = arith.mulf %31, %40 : vector<32x128xf32>
      %c0_22 = arith.constant 0 : index
      %c0_23 = arith.constant 0 : index
      %42 = vector.load %arg6[%c0_22, %c0_23] : memref<1x128xf32, #tpu.memory_space<vmem>>, vector<1x128xf32>
      %43 = vector.broadcast %42 : vector<1x128xf32> to vector<32x128xf32>
      %44 = arith.mulf %41, %43 : vector<32x128xf32>
      %c0_24 = arith.constant 0 : index
      %c0_25 = arith.constant 0 : index
      %45 = vector.load %arg7[%c0_24, %c0_25] : memref<1x128xf32, #tpu.memory_space<vmem>>, vector<1x128xf32>
      %46 = vector.broadcast %45 : vector<1x128xf32> to vector<32x128xf32>
      %47 = arith.addf %44, %46 : vector<32x128xf32>
      %48 = arith.truncf %47 : vector<32x128xf32> to vector<32x128xbf16>
      %c0_26 = arith.constant 0 : index
      %c0_27 = arith.constant 0 : index
      %49 = vector.load %arg8[%c0_26, %c0_27] : memref<32x128xbf16, #tpu.memory_space<vmem>>, vector<32x128xbf16>
      tpu.vector_store %arg8[%c0_26, %c0_27], %48 {strides = array<i32>} : memref<32x128xbf16, #tpu.memory_space<vmem>>, vector<32x128xbf16>,
    } else {
    }
    return
  }
  func.func @transform_0(%arg0: i32, %arg1: i32) -> (i32, i32) {
    %c0_i32 = arith.constant 0 : i32
    return %arg0, %arg1 : i32, i32
  }
  func.func @transform_1(%arg0: i32, %arg1: i32) -> (i32, i32) {
    %c0_i32 = arith.constant 0 : i32
    %c0_i32_0 = arith.constant 0 : i32
    return %arg1, %c0_i32 : i32, i32
  }
  func.func @transform_2(%arg0: i32, %arg1: i32) -> (i32, i32) {
    %c0_i32 = arith.constant 0 : i32
    %c0_i32_0 = arith.constant 0 : i32
    %c0_i32_1 = arith.constant 0 : i32
    return %c0_i32, %c0_i32_0 : i32, i32
  }
  func.func @transform_3(%arg0: i32, %arg1: i32) -> (i32, i32) {
    %c0_i32 = arith.constant 0 : i32
    %c0_i32_0 = arith.constant 0 : i32
    return %arg0, %c0_i32 : i32, i32
  }
  func.func @transform_4(%arg0: i32, %arg1: i32) -> (i32, i32) {
    %c0_i32 = arith.constant 0 : i32
    %c0_i32_0 = arith.constant 0 : i32
    %c0_i32_1 = arith.constant 0 : i32
    return %c0_i32, %c0_i32_0 : i32, i32
  }
  func.func @transform_5(%arg0: i32, %arg1: i32) -> (i32, i32) {
    %c0_i32 = arith.constant 0 : i32
    %c0_i32_0 = arith.constant 0 : i32
    %c0_i32_1 = arith.constant 0 : i32
    return %c0_i32, %c0_i32_0 : i32, i32
  }
  func.func @transform_6(%arg0: i32, %arg1: i32) -> (i32, i32) {
    %c0_i32 = arith.constant 0 : i32
    %c0_i32_0 = arith.constant 0 : i32
    return %arg0, %c0_i32 : i32, i32
  }
}

module attributes {stable_mosaic.version = 11 : i64} {
  func.func @_norm_pool_kernel(%arg0: i32, %arg1: memref<1x16x128xbf16, #tpu.memory_space<vmem>>, %arg2: memref<1x128xf32, #tpu.memory_space<vmem>>, %arg3: memref<1x128xf32, #tpu.memory_space<vmem>>, %arg4: memref<1x1x128xf32, #tpu.memory_space<vmem>>) attributes {dimension_semantics = [#tpu.dimension_semantics<parallel>], iteration_bounds = array<i64: 2>, scalar_prefetch = 0 : i64, scratch_operands = 0 : i64, tpu.core_type = #tpu.core_type<tc>, window_params = [{transform_indices = @transform_0, window_bounds = array<i64: 1, 16, 128>}, {pipeline_mode = #tpu.pipeline_mode<synchronous>, transform_indices = @transform_1, window_bounds = array<i64: 1, 128>}, {pipeline_mode = #tpu.pipeline_mode<synchronous>, transform_indices = @transform_2, window_bounds = array<i64: 1, 128>}, {transform_indices = @transform_3, window_bounds = array<i64: 1, 1, 128>}]} {
    %c0 = arith.constant 0 : index
    %c0_0 = arith.constant 0 : index
    %c0_1 = arith.constant 0 : index
    %0 = vector.load %arg1[%c0, %c0_0, %c0_1] : memref<1x16x128xbf16, #tpu.memory_space<vmem>>, vector<1x16x128xbf16>
    %1 = vector.shape_cast %0 : vector<1x16x128xbf16> to vector<16x128xbf16>
    %2 = arith.extf %1 : vector<16x128xbf16> to vector<16x128xf32>
    %3 = tpu.iota {dimensions = array<i32: 1>} : vector<16x128xi32>
    %c16_i32 = arith.constant 16 : i32
    %4 = vector.broadcast %c16_i32 : i32 to vector<16x128xi32>
    %5 = arith.cmpi slt, %3, %4 : vector<16x128xi32>
    %cst = arith.constant 0.000000e+00 : f32
    %6 = vector.broadcast %cst : f32 to vector<16x128xf32>
    %7 = arith.select %5, %2, %6 : vector<16x128xi1>, vector<16x128xf32>
    %cst_2 = arith.constant dense<0.000000e+00> : vector<16xf32>
    %8 = vector.multi_reduction <add>, %7, %cst_2 [1] : vector<16x128xf32> to vector<16xf32>
    %9 = vector.shape_cast %8 : vector<16xf32> to vector<16x1xf32>
    %cst_3 = arith.constant 6.250000e-02 : f32
    %10 = vector.broadcast %cst_3 : f32 to vector<16x1xf32>
    %11 = arith.mulf %9, %10 : vector<16x1xf32>
    %12 = vector.broadcast %11 : vector<16x1xf32> to vector<16x128xf32>
    %13 = arith.subf %2, %12 : vector<16x128xf32>
    %cst_4 = arith.constant 0.000000e+00 : f32
    %14 = vector.broadcast %cst_4 : f32 to vector<16x128xf32>
    %15 = arith.select %5, %13, %14 : vector<16x128xi1>, vector<16x128xf32>
    %16 = arith.mulf %15, %15 : vector<16x128xf32>
    %cst_5 = arith.constant dense<0.000000e+00> : vector<16xf32>
    %17 = vector.multi_reduction <add>, %16, %cst_5 [1] : vector<16x128xf32> to vector<16xf32>
    %18 = vector.shape_cast %17 : vector<16xf32> to vector<16x1xf32>
    %cst_6 = arith.constant 6.250000e-02 : f32
    %19 = vector.broadcast %cst_6 : f32 to vector<16x1xf32>
    %20 = arith.mulf %18, %19 : vector<16x1xf32>
    %cst_7 = arith.constant 9.99999974E-6 : f32
    %21 = vector.broadcast %cst_7 : f32 to vector<16x1xf32>
    %22 = arith.addf %20, %21 : vector<16x1xf32>
    %23 = math.rsqrt %22 : vector<16x1xf32>
    %24 = vector.broadcast %23 : vector<16x1xf32> to vector<16x128xf32>
    %25 = arith.mulf %15, %24 : vector<16x128xf32>
    %c0_8 = arith.constant 0 : index
    %c0_9 = arith.constant 0 : index
    %26 = vector.load %arg2[%c0_8, %c0_9] : memref<1x128xf32, #tpu.memory_space<vmem>>, vector<1x128xf32>
    %27 = vector.broadcast %26 : vector<1x128xf32> to vector<16x128xf32>
    %28 = arith.mulf %25, %27 : vector<16x128xf32>
    %c0_10 = arith.constant 0 : index
    %c0_11 = arith.constant 0 : index
    %29 = vector.load %arg3[%c0_10, %c0_11] : memref<1x128xf32, #tpu.memory_space<vmem>>, vector<1x128xf32>
    %30 = vector.broadcast %29 : vector<1x128xf32> to vector<16x128xf32>
    %31 = arith.addf %28, %30 : vector<16x128xf32>
    %cst_12 = arith.constant dense<0.000000e+00> : vector<128xf32>
    %32 = vector.multi_reduction <add>, %31, %cst_12 [0] : vector<16x128xf32> to vector<128xf32>
    %33 = vector.shape_cast %32 : vector<128xf32> to vector<1x128xf32>
    %cst_13 = arith.constant 6.250000e-02 : f32
    %34 = vector.broadcast %cst_13 : f32 to vector<1x128xf32>
    %35 = arith.mulf %33, %34 : vector<1x128xf32>
    %c0_14 = arith.constant 0 : index
    %c0_15 = arith.constant 0 : index
    %c0_16 = arith.constant 0 : index
    %36 = vector.load %arg4[%c0_14, %c0_15, %c0_16] : memref<1x1x128xf32, #tpu.memory_space<vmem>>, vector<1x1x128xf32>
    %37 = vector.shape_cast %36 : vector<1x1x128xf32> to vector<1x128xf32>
    %38 = vector.shape_cast %35 : vector<1x128xf32> to vector<1x1x128xf32>
    tpu.vector_store %arg4[%c0_14, %c0_15, %c0_16], %38 {strides = array<i32>} : memref<1x1x128xf32, #tpu.memory_space<vmem>>, vector<1x1x128xf32>,
    return
  }
  func.func @transform_0(%arg0: i32) -> (i32, i32, i32) {
    %c0_i32 = arith.constant 0 : i32
    %c0_i32_0 = arith.constant 0 : i32
    %c0_i32_1 = arith.constant 0 : i32
    return %arg0, %c0_i32, %c0_i32_0 : i32, i32, i32
  }
  func.func @transform_1(%arg0: i32) -> (i32, i32) {
    %c0_i32 = arith.constant 0 : i32
    %c0_i32_0 = arith.constant 0 : i32
    %c0_i32_1 = arith.constant 0 : i32
    return %c0_i32, %c0_i32_0 : i32, i32
  }
  func.func @transform_2(%arg0: i32) -> (i32, i32) {
    %c0_i32 = arith.constant 0 : i32
    %c0_i32_0 = arith.constant 0 : i32
    %c0_i32_1 = arith.constant 0 : i32
    return %c0_i32, %c0_i32_0 : i32, i32
  }
  func.func @transform_3(%arg0: i32) -> (i32, i32, i32) {
    %c0_i32 = arith.constant 0 : i32
    %c0_i32_0 = arith.constant 0 : i32
    %c0_i32_1 = arith.constant 0 : i32
    return %arg0, %c0_i32, %c0_i32_0 : i32, i32, i32
  }
}

module attributes {stable_mosaic.version = 11 : i64} {
  func.func @_dense_kernel(%arg0: i32, %arg1: i32, %arg2: memref<8x8xf32, #tpu.memory_space<vmem>>, %arg3: memref<8x2048xbf16, #tpu.memory_space<vmem>>, %arg4: memref<1x2048xf32, #tpu.memory_space<vmem>>, %arg5: memref<8x2048xbf16, #tpu.memory_space<vmem>>) attributes {dimension_semantics = [#tpu.dimension_semantics<parallel>, #tpu.dimension_semantics<arbitrary>], iteration_bounds = array<i64: 1, 1>, scalar_prefetch = 0 : i64, scratch_operands = 0 : i64, tpu.core_type = #tpu.core_type<tc>, window_params = [{transform_indices = @transform_0, window_bounds = array<i64: 8, 8>}, {transform_indices = @transform_1, window_bounds = array<i64: 8, 2048>}, {pipeline_mode = #tpu.pipeline_mode<synchronous>, transform_indices = @transform_2, window_bounds = array<i64: 1, 2048>}, {transform_indices = @transform_3, window_bounds = array<i64: 8, 2048>}]} {
    %c0 = arith.constant 0 : index
    %c0_0 = arith.constant 0 : index
    %0 = vector.load %arg2[%c0, %c0_0] : memref<8x8xf32, #tpu.memory_space<vmem>>, vector<8x8xf32>
    %1 = arith.truncf %0 : vector<8x8xf32> to vector<8x8xbf16>
    %c0_1 = arith.constant 0 : index
    %c0_2 = arith.constant 0 : index
    %2 = vector.load %arg3[%c0_1, %c0_2] : memref<8x2048xbf16, #tpu.memory_space<vmem>>, vector<8x2048xbf16>
    %cst = arith.constant dense<0.000000e+00> : vector<8x2048xf32>
    %3 = tpu.matmul %1, %2, %cst {dimension_numbers = #tpu.dot_dimension_numbers<[1], [0], [0], [1], [0, 0, 1, 1], [], []>} : vector<8x8xbf16>, vector<8x2048xbf16>, vector<8x2048xf32> -> vector<8x2048xf32>
    %c0_3 = arith.constant 0 : index
    %c0_4 = arith.constant 0 : index
    %4 = vector.load %arg4[%c0_3, %c0_4] : memref<1x2048xf32, #tpu.memory_space<vmem>>, vector<1x2048xf32>
    %5 = vector.broadcast %4 : vector<1x2048xf32> to vector<8x2048xf32>
    %6 = arith.addf %3, %5 : vector<8x2048xf32>
    %cst_5 = arith.constant 0.000000e+00 : f32
    %7 = vector.broadcast %cst_5 : f32 to vector<8x2048xf32>
    %8 = arith.maximumf %6, %7 : vector<8x2048xf32>
    %9 = arith.truncf %8 : vector<8x2048xf32> to vector<8x2048xbf16>
    %c0_6 = arith.constant 0 : index
    %c0_7 = arith.constant 0 : index
    %10 = vector.load %arg5[%c0_6, %c0_7] : memref<8x2048xbf16, #tpu.memory_space<vmem>>, vector<8x2048xbf16>
    tpu.vector_store %arg5[%c0_6, %c0_7], %9 {strides = array<i32>} : memref<8x2048xbf16, #tpu.memory_space<vmem>>, vector<8x2048xbf16>,
    return
  }
  func.func @transform_0(%arg0: i32, %arg1: i32) -> (i32, i32) {
    %c0_i32 = arith.constant 0 : i32
    return %arg0, %arg1 : i32, i32
  }
  func.func @transform_1(%arg0: i32, %arg1: i32) -> (i32, i32) {
    %c0_i32 = arith.constant 0 : i32
    %c0_i32_0 = arith.constant 0 : i32
    return %arg1, %c0_i32 : i32, i32
  }
  func.func @transform_2(%arg0: i32, %arg1: i32) -> (i32, i32) {
    %c0_i32 = arith.constant 0 : i32
    %c0_i32_0 = arith.constant 0 : i32
    %c0_i32_1 = arith.constant 0 : i32
    return %c0_i32, %c0_i32_0 : i32, i32
  }
  func.func @transform_3(%arg0: i32, %arg1: i32) -> (i32, i32) {
    %c0_i32 = arith.constant 0 : i32
    %c0_i32_0 = arith.constant 0 : i32
    return %arg0, %c0_i32 : i32, i32
  }
}

module attributes {stable_mosaic.version = 11 : i64} {
  func.func @_dense_kernel(%arg0: i32, %arg1: i32, %arg2: memref<8x128xbf16, #tpu.memory_space<vmem>>, %arg3: memref<128x128xbf16, #tpu.memory_space<vmem>>, %arg4: memref<1x128xf32, #tpu.memory_space<vmem>>, %arg5: memref<8x128xbf16, #tpu.memory_space<vmem>>) attributes {dimension_semantics = [#tpu.dimension_semantics<parallel>, #tpu.dimension_semantics<arbitrary>], iteration_bounds = array<i64: 1, 1>, scalar_prefetch = 0 : i64, scratch_operands = 0 : i64, tpu.core_type = #tpu.core_type<tc>, window_params = [{transform_indices = @transform_0, window_bounds = array<i64: 8, 128>}, {transform_indices = @transform_1, window_bounds = array<i64: 128, 128>}, {pipeline_mode = #tpu.pipeline_mode<synchronous>, transform_indices = @transform_2, window_bounds = array<i64: 1, 128>}, {transform_indices = @transform_3, window_bounds = array<i64: 8, 128>}]} {
    %c0 = arith.constant 0 : index
    %c0_0 = arith.constant 0 : index
    %0 = vector.load %arg2[%c0, %c0_0] : memref<8x128xbf16, #tpu.memory_space<vmem>>, vector<8x128xbf16>
    %c0_1 = arith.constant 0 : index
    %c0_2 = arith.constant 0 : index
    %1 = vector.load %arg3[%c0_1, %c0_2] : memref<128x128xbf16, #tpu.memory_space<vmem>>, vector<128x128xbf16>
    %cst = arith.constant dense<0.000000e+00> : vector<8x128xf32>
    %2 = tpu.matmul %0, %1, %cst {dimension_numbers = #tpu.dot_dimension_numbers<[1], [0], [0], [1], [0, 0, 1, 1], [], []>} : vector<8x128xbf16>, vector<128x128xbf16>, vector<8x128xf32> -> vector<8x128xf32>
    %c0_3 = arith.constant 0 : index
    %c0_4 = arith.constant 0 : index
    %3 = vector.load %arg4[%c0_3, %c0_4] : memref<1x128xf32, #tpu.memory_space<vmem>>, vector<1x128xf32>
    %4 = vector.broadcast %3 : vector<1x128xf32> to vector<8x128xf32>
    %5 = arith.addf %2, %4 : vector<8x128xf32>
    %6 = arith.truncf %5 : vector<8x128xf32> to vector<8x128xbf16>
    %c0_5 = arith.constant 0 : index
    %c0_6 = arith.constant 0 : index
    %7 = vector.load %arg5[%c0_5, %c0_6] : memref<8x128xbf16, #tpu.memory_space<vmem>>, vector<8x128xbf16>
    tpu.vector_store %arg5[%c0_5, %c0_6], %6 {strides = array<i32>} : memref<8x128xbf16, #tpu.memory_space<vmem>>, vector<8x128xbf16>,
    return
  }
  func.func @transform_0(%arg0: i32, %arg1: i32) -> (i32, i32) {
    %c0_i32 = arith.constant 0 : i32
    return %arg0, %arg1 : i32, i32
  }
  func.func @transform_1(%arg0: i32, %arg1: i32) -> (i32, i32) {
    %c0_i32 = arith.constant 0 : i32
    %c0_i32_0 = arith.constant 0 : i32
    return %arg1, %c0_i32 : i32, i32
  }
  func.func @transform_2(%arg0: i32, %arg1: i32) -> (i32, i32) {
    %c0_i32 = arith.constant 0 : i32
    %c0_i32_0 = arith.constant 0 : i32
    %c0_i32_1 = arith.constant 0 : i32
    return %c0_i32, %c0_i32_0 : i32, i32
  }
  func.func @transform_3(%arg0: i32, %arg1: i32) -> (i32, i32) {
    %c0_i32 = arith.constant 0 : i32
    %c0_i32_0 = arith.constant 0 : i32
    return %arg0, %c0_i32 : i32, i32
  }
}

module attributes {stable_mosaic.version = 11 : i64} {
  func.func @_dense_kernel(%arg0: i32, %arg1: i32, %arg2: memref<8x512xbf16, #tpu.memory_space<vmem>>, %arg3: memref<512x128xbf16, #tpu.memory_space<vmem>>, %arg4: memref<1x128xf32, #tpu.memory_space<vmem>>, %arg5: memref<8x128xf32, #tpu.memory_space<vmem>>, %arg6: memref<8x128xbf16, #tpu.memory_space<vmem>>, %arg7: memref<8x128xf32, #tpu.memory_space<vmem>>) attributes {dimension_semantics = [#tpu.dimension_semantics<parallel>, #tpu.dimension_semantics<arbitrary>], iteration_bounds = array<i64: 1, 4>, scalar_prefetch = 0 : i64, scratch_operands = 1 : i64, tpu.core_type = #tpu.core_type<tc>, window_params = [{transform_indices = @transform_0, window_bounds = array<i64: 8, 512>}, {transform_indices = @transform_1, window_bounds = array<i64: 512, 128>}, {pipeline_mode = #tpu.pipeline_mode<synchronous>, transform_indices = @transform_2, window_bounds = array<i64: 1, 128>}, {transform_indices = @transform_3, window_bounds = array<i64: 8, 128>}, {transform_indices = @transform_4, window_bounds = array<i64: 8, 128>}]} {
    %c0 = arith.constant 0 : index
    %c0_0 = arith.constant 0 : index
    %0 = vector.load %arg2[%c0, %c0_0] : memref<8x512xbf16, #tpu.memory_space<vmem>>, vector<8x512xbf16>
    %c0_1 = arith.constant 0 : index
    %c0_2 = arith.constant 0 : index
    %1 = vector.load %arg3[%c0_1, %c0_2] : memref<512x128xbf16, #tpu.memory_space<vmem>>, vector<512x128xbf16>
    %cst = arith.constant dense<0.000000e+00> : vector<8x128xf32>
    %2 = tpu.matmul %0, %1, %cst {dimension_numbers = #tpu.dot_dimension_numbers<[1], [0], [0], [1], [0, 0, 1, 1], [], []>} : vector<8x512xbf16>, vector<512x128xbf16>, vector<8x128xf32> -> vector<8x128xf32>
    %c0_i32 = arith.constant 0 : i32
    %3 = arith.cmpi eq, %arg1, %c0_i32 : i32
    %4 = arith.extui %3 : i1 to i32
    %c0_i32_3 = arith.constant 0 : i32
    %5 = arith.cmpi ne, %4, %c0_i32_3 : i32
    scf.if %5 {
      %cst_9 = arith.constant 0.000000e+00 : f32
      %12 = vector.broadcast %cst_9 : f32 to vector<8x128xf32>
      %c0_10 = arith.constant 0 : index
      %c0_11 = arith.constant 0 : index
      %13 = vector.load %arg7[%c0_10, %c0_11] : memref<8x128xf32, #tpu.memory_space<vmem>>, vector<8x128xf32>
      tpu.vector_store %arg7[%c0_10, %c0_11], %12 {strides = array<i32>} : memref<8x128xf32, #tpu.memory_space<vmem>>, vector<8x128xf32>,
    } else {
    }
    %c0_4 = arith.constant 0 : index
    %c0_5 = arith.constant 0 : index
    %6 = vector.load %arg7[%c0_4, %c0_5] : memref<8x128xf32, #tpu.memory_space<vmem>>, vector<8x128xf32>
    %7 = arith.addf %6, %2 : vector<8x128xf32>
    %c0_6 = arith.constant 0 : index
    %c0_7 = arith.constant 0 : index
    %8 = vector.load %arg7[%c0_6, %c0_7] : memref<8x128xf32, #tpu.memory_space<vmem>>, vector<8x128xf32>
    tpu.vector_store %arg7[%c0_6, %c0_7], %7 {strides = array<i32>} : memref<8x128xf32, #tpu.memory_space<vmem>>, vector<8x128xf32>,
    %c3_i32 = arith.constant 3 : i32
    %9 = arith.cmpi eq, %arg1, %c3_i32 : i32
    %10 = arith.extui %9 : i1 to i32
    %c0_i32_8 = arith.constant 0 : i32
    %11 = arith.cmpi ne, %10, %c0_i32_8 : i32
    scf.if %11 {
      %c0_9 = arith.constant 0 : index
      %c0_10 = arith.constant 0 : index
      %12 = vector.load %arg7[%c0_9, %c0_10] : memref<8x128xf32, #tpu.memory_space<vmem>>, vector<8x128xf32>
      %c0_11 = arith.constant 0 : index
      %c0_12 = arith.constant 0 : index
      %13 = vector.load %arg4[%c0_11, %c0_12] : memref<1x128xf32, #tpu.memory_space<vmem>>, vector<1x128xf32>
      %14 = vector.broadcast %13 : vector<1x128xf32> to vector<8x128xf32>
      %15 = arith.addf %12, %14 : vector<8x128xf32>
      %c0_13 = arith.constant 0 : index
      %c0_14 = arith.constant 0 : index
      %16 = vector.load %arg5[%c0_13, %c0_14] : memref<8x128xf32, #tpu.memory_space<vmem>>, vector<8x128xf32>
      %17 = arith.addf %15, %16 : vector<8x128xf32>
      %18 = arith.truncf %17 : vector<8x128xf32> to vector<8x128xbf16>
      %c0_15 = arith.constant 0 : index
      %c0_16 = arith.constant 0 : index
      %19 = vector.load %arg6[%c0_15, %c0_16] : memref<8x128xbf16, #tpu.memory_space<vmem>>, vector<8x128xbf16>
      tpu.vector_store %arg6[%c0_15, %c0_16], %18 {strides = array<i32>} : memref<8x128xbf16, #tpu.memory_space<vmem>>, vector<8x128xbf16>,
    } else {
    }
    return
  }
  func.func @transform_0(%arg0: i32, %arg1: i32) -> (i32, i32) {
    %c0_i32 = arith.constant 0 : i32
    return %arg0, %arg1 : i32, i32
  }
  func.func @transform_1(%arg0: i32, %arg1: i32) -> (i32, i32) {
    %c0_i32 = arith.constant 0 : i32
    %c0_i32_0 = arith.constant 0 : i32
    return %arg1, %c0_i32 : i32, i32
  }
  func.func @transform_2(%arg0: i32, %arg1: i32) -> (i32, i32) {
    %c0_i32 = arith.constant 0 : i32
    %c0_i32_0 = arith.constant 0 : i32
    %c0_i32_1 = arith.constant 0 : i32
    return %c0_i32, %c0_i32_0 : i32, i32
  }
  func.func @transform_3(%arg0: i32, %arg1: i32) -> (i32, i32) {
    %c0_i32 = arith.constant 0 : i32
    %c0_i32_0 = arith.constant 0 : i32
    return %arg0, %c0_i32 : i32, i32
  }
  func.func @transform_4(%arg0: i32, %arg1: i32) -> (i32, i32) {
    %c0_i32 = arith.constant 0 : i32
    %c0_i32_0 = arith.constant 0 : i32
    return %arg0, %c0_i32 : i32, i32
  }
}

module attributes {stable_mosaic.version = 11 : i64} {
  func.func @_attn_kernel(%arg0: i32, %arg1: memref<1x3x4x2xbf16, #tpu.memory_space<vmem>>, %arg2: memref<1x4x2xbf16, #tpu.memory_space<vmem>>) attributes {dimension_semantics = [#tpu.dimension_semantics<parallel>], iteration_bounds = array<i64: 16>, scalar_prefetch = 0 : i64, scratch_operands = 0 : i64, tpu.core_type = #tpu.core_type<tc>, window_params = [{transform_indices = @transform_0, window_bounds = array<i64: 1, 3, 4, 2>}, {transform_indices = @transform_1, window_bounds = array<i64: 1, 4, 2>}]} {
    %c0 = arith.constant 0 : index
    %c0_0 = arith.constant 0 : index
    %c0_1 = arith.constant 0 : index
    %c0_2 = arith.constant 0 : index
    %0 = vector.load %arg1[%c0, %c0_0, %c0_1, %c0_2] : memref<1x3x4x2xbf16, #tpu.memory_space<vmem>>, vector<1x1x4x2xbf16>
    %1 = vector.shape_cast %0 : vector<1x1x4x2xbf16> to vector<4x2xbf16>
    %c0_3 = arith.constant 0 : index
    %c1 = arith.constant 1 : index
    %c0_4 = arith.constant 0 : index
    %c0_5 = arith.constant 0 : index
    %2 = vector.load %arg1[%c0_3, %c1, %c0_4, %c0_5] : memref<1x3x4x2xbf16, #tpu.memory_space<vmem>>, vector<1x1x4x2xbf16>
    %3 = vector.shape_cast %2 : vector<1x1x4x2xbf16> to vector<4x2xbf16>
    %c0_6 = arith.constant 0 : index
    %c2 = arith.constant 2 : index
    %c0_7 = arith.constant 0 : index
    %c0_8 = arith.constant 0 : index
    %4 = vector.load %arg1[%c0_6, %c2, %c0_7, %c0_8] : memref<1x3x4x2xbf16, #tpu.memory_space<vmem>>, vector<1x1x4x2xbf16>
    %5 = vector.shape_cast %4 : vector<1x1x4x2xbf16> to vector<4x2xbf16>
    %cst = arith.constant dense<0.000000e+00> : vector<4x4xf32>
    %6 = tpu.matmul %1, %3, %cst {dimension_numbers = #tpu.dot_dimension_numbers<[1], [1], [0], [0], [0, 0, 1, 0], [], []>} : vector<4x2xbf16>, vector<4x2xbf16>, vector<4x4xf32> -> vector<4x4xf32>
    %cst_9 = arith.constant dense<0xFF800000> : vector<4xf32>
    %7 = vector.multi_reduction <maximumf>, %6, %cst_9 [1] : vector<4x4xf32> to vector<4xf32>
    %8 = vector.shape_cast %7 : vector<4xf32> to vector<4x1xf32>
    %9 = vector.broadcast %8 : vector<4x1xf32> to vector<4x4xf32>
    %10 = arith.subf %6, %9 : vector<4x4xf32>
    %11 = math.exp %10 : vector<4x4xf32>
    %cst_10 = arith.constant dense<0.000000e+00> : vector<4xf32>
    %12 = vector.multi_reduction <add>, %11, %cst_10 [1] : vector<4x4xf32> to vector<4xf32>
    %13 = vector.shape_cast %12 : vector<4xf32> to vector<4x1xf32>
    %14 = tpu.reciprocal %13 {approx = true} : vector<4x1xf32> -> vector<4x1xf32>
    %15 = vector.broadcast %14 : vector<4x1xf32> to vector<4x4xf32>
    %16 = arith.mulf %11, %15 : vector<4x4xf32>
    %17 = arith.truncf %16 : vector<4x4xf32> to vector<4x4xbf16>
    %cst_11 = arith.constant dense<0.000000e+00> : vector<4x2xf32>
    %18 = tpu.matmul %17, %5, %cst_11 {dimension_numbers = #tpu.dot_dimension_numbers<[1], [0], [0], [1], [0, 0, 1, 1], [], []>} : vector<4x4xbf16>, vector<4x2xbf16>, vector<4x2xf32> -> vector<4x2xf32>
    %19 = arith.truncf %18 : vector<4x2xf32> to vector<4x2xbf16>
    %c0_12 = arith.constant 0 : index
    %c0_13 = arith.constant 0 : index
    %c0_14 = arith.constant 0 : index
    %20 = vector.load %arg2[%c0_12, %c0_13, %c0_14] : memref<1x4x2xbf16, #tpu.memory_space<vmem>>, vector<1x4x2xbf16>
    %21 = vector.shape_cast %20 : vector<1x4x2xbf16> to vector<4x2xbf16>
    %22 = vector.shape_cast %19 : vector<4x2xbf16> to vector<1x4x2xbf16>
    tpu.vector_store %arg2[%c0_12, %c0_13, %c0_14], %22 {strides = array<i32>} : memref<1x4x2xbf16, #tpu.memory_space<vmem>>, vector<1x4x2xbf16>,
    return
  }
  func.func @transform_0(%arg0: i32) -> (i32, i32, i32, i32) {
    %c0_i32 = arith.constant 0 : i32
    %c0_i32_0 = arith.constant 0 : i32
    %c0_i32_1 = arith.constant 0 : i32
    %c0_i32_2 = arith.constant 0 : i32
    return %arg0, %c0_i32, %c0_i32_0, %c0_i32_1 : i32, i32, i32, i32
  }
  func.func @transform_1(%arg0: i32) -> (i32, i32, i32) {
    %c0_i32 = arith.constant 0 : i32
    %c0_i32_0 = arith.constant 0 : i32
    %c0_i32_1 = arith.constant 0 : i32
    return %arg0, %c0_i32, %c0_i32_0 : i32, i32, i32
  }
}

module attributes {stable_mosaic.version = 11 : i64} {
  func.func @_dense_kernel(%arg0: i32, %arg1: i32, %arg2: memref<8x16xbf16, #tpu.memory_space<vmem>>, %arg3: memref<16x128xbf16, #tpu.memory_space<vmem>>, %arg4: memref<1x128xf32, #tpu.memory_space<vmem>>, %arg5: memref<8x128xbf16, #tpu.memory_space<vmem>>, %arg6: memref<1x128xf32, #tpu.memory_space<vmem>>, %arg7: memref<1x128xf32, #tpu.memory_space<vmem>>, %arg8: memref<8x128xbf16, #tpu.memory_space<vmem>>) attributes {dimension_semantics = [#tpu.dimension_semantics<parallel>, #tpu.dimension_semantics<arbitrary>], iteration_bounds = array<i64: 1, 1>, scalar_prefetch = 0 : i64, scratch_operands = 0 : i64, tpu.core_type = #tpu.core_type<tc>, window_params = [{transform_indices = @transform_0, window_bounds = array<i64: 8, 16>}, {transform_indices = @transform_1, window_bounds = array<i64: 16, 128>}, {pipeline_mode = #tpu.pipeline_mode<synchronous>, transform_indices = @transform_2, window_bounds = array<i64: 1, 128>}, {transform_indices = @transform_3, window_bounds = array<i64: 8, 128>}, {pipeline_mode = #tpu.pipeline_mode<synchronous>, transform_indices = @transform_4, window_bounds = array<i64: 1, 128>}, {pipeline_mode = #tpu.pipeline_mode<synchronous>, transform_indices = @transform_5, window_bounds = array<i64: 1, 128>}, {transform_indices = @transform_6, window_bounds = array<i64: 8, 128>}]} {
    %c0 = arith.constant 0 : index
    %c0_0 = arith.constant 0 : index
    %0 = vector.load %arg2[%c0, %c0_0] : memref<8x16xbf16, #tpu.memory_space<vmem>>, vector<8x16xbf16>
    %c0_1 = arith.constant 0 : index
    %c0_2 = arith.constant 0 : index
    %1 = vector.load %arg3[%c0_1, %c0_2] : memref<16x128xbf16, #tpu.memory_space<vmem>>, vector<16x128xbf16>
    %cst = arith.constant dense<0.000000e+00> : vector<8x128xf32>
    %2 = tpu.matmul %0, %1, %cst {dimension_numbers = #tpu.dot_dimension_numbers<[1], [0], [0], [1], [0, 0, 1, 1], [], []>} : vector<8x16xbf16>, vector<16x128xbf16>, vector<8x128xf32> -> vector<8x128xf32>
    %c0_3 = arith.constant 0 : index
    %c0_4 = arith.constant 0 : index
    %3 = vector.load %arg4[%c0_3, %c0_4] : memref<1x128xf32, #tpu.memory_space<vmem>>, vector<1x128xf32>
    %4 = vector.broadcast %3 : vector<1x128xf32> to vector<8x128xf32>
    %5 = arith.addf %2, %4 : vector<8x128xf32>
    %c0_5 = arith.constant 0 : index
    %c0_6 = arith.constant 0 : index
    %6 = vector.load %arg5[%c0_5, %c0_6] : memref<8x128xbf16, #tpu.memory_space<vmem>>, vector<8x128xbf16>
    %7 = arith.extf %6 : vector<8x128xbf16> to vector<8x128xf32>
    %8 = arith.addf %5, %7 : vector<8x128xf32>
    %9 = tpu.iota {dimensions = array<i32: 1>} : vector<8x128xi32>
    %c16_i32 = arith.constant 16 : i32
    %10 = vector.broadcast %c16_i32 : i32 to vector<8x128xi32>
    %11 = arith.cmpi slt, %9, %10 : vector<8x128xi32>
    %cst_7 = arith.constant 0.000000e+00 : f32
    %12 = vector.broadcast %cst_7 : f32 to vector<8x128xf32>
    %13 = arith.select %11, %8, %12 : vector<8x128xi1>, vector<8x128xf32>
    %cst_8 = arith.constant dense<0.000000e+00> : vector<8xf32>
    %14 = vector.multi_reduction <add>, %13, %cst_8 [1] : vector<8x128xf32> to vector<8xf32>
    %15 = vector.shape_cast %14 : vector<8xf32> to vector<8x1xf32>
    %cst_9 = arith.constant 6.250000e-02 : f32
    %16 = vector.broadcast %cst_9 : f32 to vector<8x1xf32>
    %17 = arith.mulf %15, %16 : vector<8x1xf32>
    %18 = vector.broadcast %17 : vector<8x1xf32> to vector<8x128xf32>
    %19 = arith.subf %8, %18 : vector<8x128xf32>
    %cst_10 = arith.constant 0.000000e+00 : f32
    %20 = vector.broadcast %cst_10 : f32 to vector<8x128xf32>
    %21 = arith.select %11, %19, %20 : vector<8x128xi1>, vector<8x128xf32>
    %22 = arith.mulf %21, %21 : vector<8x128xf32>
    %cst_11 = arith.constant dense<0.000000e+00> : vector<8xf32>
    %23 = vector.multi_reduction <add>, %22, %cst_11 [1] : vector<8x128xf32> to vector<8xf32>
    %24 = vector.shape_cast %23 : vector<8xf32> to vector<8x1xf32>
    %cst_12 = arith.constant 6.250000e-02 : f32
    %25 = vector.broadcast %cst_12 : f32 to vector<8x1xf32>
    %26 = arith.mulf %24, %25 : vector<8x1xf32>
    %cst_13 = arith.constant 9.99999974E-6 : f32
    %27 = vector.broadcast %cst_13 : f32 to vector<8x1xf32>
    %28 = arith.addf %26, %27 : vector<8x1xf32>
    %29 = math.rsqrt %28 : vector<8x1xf32>
    %30 = vector.broadcast %29 : vector<8x1xf32> to vector<8x128xf32>
    %31 = arith.mulf %21, %30 : vector<8x128xf32>
    %c0_14 = arith.constant 0 : index
    %c0_15 = arith.constant 0 : index
    %32 = vector.load %arg6[%c0_14, %c0_15] : memref<1x128xf32, #tpu.memory_space<vmem>>, vector<1x128xf32>
    %33 = vector.broadcast %32 : vector<1x128xf32> to vector<8x128xf32>
    %34 = arith.mulf %31, %33 : vector<8x128xf32>
    %c0_16 = arith.constant 0 : index
    %c0_17 = arith.constant 0 : index
    %35 = vector.load %arg7[%c0_16, %c0_17] : memref<1x128xf32, #tpu.memory_space<vmem>>, vector<1x128xf32>
    %36 = vector.broadcast %35 : vector<1x128xf32> to vector<8x128xf32>
    %37 = arith.addf %34, %36 : vector<8x128xf32>
    %38 = arith.truncf %37 : vector<8x128xf32> to vector<8x128xbf16>
    %c0_18 = arith.constant 0 : index
    %c0_19 = arith.constant 0 : index
    %39 = vector.load %arg8[%c0_18, %c0_19] : memref<8x128xbf16, #tpu.memory_space<vmem>>, vector<8x128xbf16>
    tpu.vector_store %arg8[%c0_18, %c0_19], %38 {strides = array<i32>} : memref<8x128xbf16, #tpu.memory_space<vmem>>, vector<8x128xbf16>,
    return
  }
  func.func @transform_0(%arg0: i32, %arg1: i32) -> (i32, i32) {
    %c0_i32 = arith.constant 0 : i32
    return %arg0, %arg1 : i32, i32
  }
  func.func @transform_1(%arg0: i32, %arg1: i32) -> (i32, i32) {
    %c0_i32 = arith.constant 0 : i32
    %c0_i32_0 = arith.constant 0 : i32
    return %arg1, %c0_i32 : i32, i32
  }
  func.func @transform_2(%arg0: i32, %arg1: i32) -> (i32, i32) {
    %c0_i32 = arith.constant 0 : i32
    %c0_i32_0 = arith.constant 0 : i32
    %c0_i32_1 = arith.constant 0 : i32
    return %c0_i32, %c0_i32_0 : i32, i32
  }
  func.func @transform_3(%arg0: i32, %arg1: i32) -> (i32, i32) {
    %c0_i32 = arith.constant 0 : i32
    %c0_i32_0 = arith.constant 0 : i32
    return %arg0, %c0_i32 : i32, i32
  }
  func.func @transform_4(%arg0: i32, %arg1: i32) -> (i32, i32) {
    %c0_i32 = arith.constant 0 : i32
    %c0_i32_0 = arith.constant 0 : i32
    %c0_i32_1 = arith.constant 0 : i32
    return %c0_i32, %c0_i32_0 : i32, i32
  }
  func.func @transform_5(%arg0: i32, %arg1: i32) -> (i32, i32) {
    %c0_i32 = arith.constant 0 : i32
    %c0_i32_0 = arith.constant 0 : i32
    %c0_i32_1 = arith.constant 0 : i32
    return %c0_i32, %c0_i32_0 : i32, i32
  }
  func.func @transform_6(%arg0: i32, %arg1: i32) -> (i32, i32) {
    %c0_i32 = arith.constant 0 : i32
    %c0_i32_0 = arith.constant 0 : i32
    return %arg0, %c0_i32 : i32, i32
  }
}

module attributes {stable_mosaic.version = 11 : i64} {
  func.func @_dense_kernel(%arg0: i32, %arg1: i32, %arg2: memref<8x512xbf16, #tpu.memory_space<vmem>>, %arg3: memref<512x128xbf16, #tpu.memory_space<vmem>>, %arg4: memref<1x128xf32, #tpu.memory_space<vmem>>, %arg5: memref<8x128xbf16, #tpu.memory_space<vmem>>, %arg6: memref<1x128xf32, #tpu.memory_space<vmem>>, %arg7: memref<1x128xf32, #tpu.memory_space<vmem>>, %arg8: memref<8x128xbf16, #tpu.memory_space<vmem>>, %arg9: memref<8x128xf32, #tpu.memory_space<vmem>>) attributes {dimension_semantics = [#tpu.dimension_semantics<parallel>, #tpu.dimension_semantics<arbitrary>], iteration_bounds = array<i64: 1, 4>, scalar_prefetch = 0 : i64, scratch_operands = 1 : i64, tpu.core_type = #tpu.core_type<tc>, window_params = [{transform_indices = @transform_0, window_bounds = array<i64: 8, 512>}, {transform_indices = @transform_1, window_bounds = array<i64: 512, 128>}, {pipeline_mode = #tpu.pipeline_mode<synchronous>, transform_indices = @transform_2, window_bounds = array<i64: 1, 128>}, {transform_indices = @transform_3, window_bounds = array<i64: 8, 128>}, {pipeline_mode = #tpu.pipeline_mode<synchronous>, transform_indices = @transform_4, window_bounds = array<i64: 1, 128>}, {pipeline_mode = #tpu.pipeline_mode<synchronous>, transform_indices = @transform_5, window_bounds = array<i64: 1, 128>}, {transform_indices = @transform_6, window_bounds = array<i64: 8, 128>}]} {
    %c0 = arith.constant 0 : index
    %c0_0 = arith.constant 0 : index
    %0 = vector.load %arg2[%c0, %c0_0] : memref<8x512xbf16, #tpu.memory_space<vmem>>, vector<8x512xbf16>
    %c0_1 = arith.constant 0 : index
    %c0_2 = arith.constant 0 : index
    %1 = vector.load %arg3[%c0_1, %c0_2] : memref<512x128xbf16, #tpu.memory_space<vmem>>, vector<512x128xbf16>
    %cst = arith.constant dense<0.000000e+00> : vector<8x128xf32>
    %2 = tpu.matmul %0, %1, %cst {dimension_numbers = #tpu.dot_dimension_numbers<[1], [0], [0], [1], [0, 0, 1, 1], [], []>} : vector<8x512xbf16>, vector<512x128xbf16>, vector<8x128xf32> -> vector<8x128xf32>
    %c0_i32 = arith.constant 0 : i32
    %3 = arith.cmpi eq, %arg1, %c0_i32 : i32
    %4 = arith.extui %3 : i1 to i32
    %c0_i32_3 = arith.constant 0 : i32
    %5 = arith.cmpi ne, %4, %c0_i32_3 : i32
    scf.if %5 {
      %cst_9 = arith.constant 0.000000e+00 : f32
      %12 = vector.broadcast %cst_9 : f32 to vector<8x128xf32>
      %c0_10 = arith.constant 0 : index
      %c0_11 = arith.constant 0 : index
      %13 = vector.load %arg9[%c0_10, %c0_11] : memref<8x128xf32, #tpu.memory_space<vmem>>, vector<8x128xf32>
      tpu.vector_store %arg9[%c0_10, %c0_11], %12 {strides = array<i32>} : memref<8x128xf32, #tpu.memory_space<vmem>>, vector<8x128xf32>,
    } else {
    }
    %c0_4 = arith.constant 0 : index
    %c0_5 = arith.constant 0 : index
    %6 = vector.load %arg9[%c0_4, %c0_5] : memref<8x128xf32, #tpu.memory_space<vmem>>, vector<8x128xf32>
    %7 = arith.addf %6, %2 : vector<8x128xf32>
    %c0_6 = arith.constant 0 : index
    %c0_7 = arith.constant 0 : index
    %8 = vector.load %arg9[%c0_6, %c0_7] : memref<8x128xf32, #tpu.memory_space<vmem>>, vector<8x128xf32>
    tpu.vector_store %arg9[%c0_6, %c0_7], %7 {strides = array<i32>} : memref<8x128xf32, #tpu.memory_space<vmem>>, vector<8x128xf32>,
    %c3_i32 = arith.constant 3 : i32
    %9 = arith.cmpi eq, %arg1, %c3_i32 : i32
    %10 = arith.extui %9 : i1 to i32
    %c0_i32_8 = arith.constant 0 : i32
    %11 = arith.cmpi ne, %10, %c0_i32_8 : i32
    scf.if %11 {
      %c0_9 = arith.constant 0 : index
      %c0_10 = arith.constant 0 : index
      %12 = vector.load %arg9[%c0_9, %c0_10] : memref<8x128xf32, #tpu.memory_space<vmem>>, vector<8x128xf32>
      %c0_11 = arith.constant 0 : index
      %c0_12 = arith.constant 0 : index
      %13 = vector.load %arg4[%c0_11, %c0_12] : memref<1x128xf32, #tpu.memory_space<vmem>>, vector<1x128xf32>
      %14 = vector.broadcast %13 : vector<1x128xf32> to vector<8x128xf32>
      %15 = arith.addf %12, %14 : vector<8x128xf32>
      %c0_13 = arith.constant 0 : index
      %c0_14 = arith.constant 0 : index
      %16 = vector.load %arg5[%c0_13, %c0_14] : memref<8x128xbf16, #tpu.memory_space<vmem>>, vector<8x128xbf16>
      %17 = arith.extf %16 : vector<8x128xbf16> to vector<8x128xf32>
      %18 = arith.addf %15, %17 : vector<8x128xf32>
      %19 = tpu.iota {dimensions = array<i32: 1>} : vector<8x128xi32>
      %c16_i32 = arith.constant 16 : i32
      %20 = vector.broadcast %c16_i32 : i32 to vector<8x128xi32>
      %21 = arith.cmpi slt, %19, %20 : vector<8x128xi32>
      %cst_15 = arith.constant 0.000000e+00 : f32
      %22 = vector.broadcast %cst_15 : f32 to vector<8x128xf32>
      %23 = arith.select %21, %18, %22 : vector<8x128xi1>, vector<8x128xf32>
      %cst_16 = arith.constant dense<0.000000e+00> : vector<8xf32>
      %24 = vector.multi_reduction <add>, %23, %cst_16 [1] : vector<8x128xf32> to vector<8xf32>
      %25 = vector.shape_cast %24 : vector<8xf32> to vector<8x1xf32>
      %cst_17 = arith.constant 6.250000e-02 : f32
      %26 = vector.broadcast %cst_17 : f32 to vector<8x1xf32>
      %27 = arith.mulf %25, %26 : vector<8x1xf32>
      %28 = vector.broadcast %27 : vector<8x1xf32> to vector<8x128xf32>
      %29 = arith.subf %18, %28 : vector<8x128xf32>
      %cst_18 = arith.constant 0.000000e+00 : f32
      %30 = vector.broadcast %cst_18 : f32 to vector<8x128xf32>
      %31 = arith.select %21, %29, %30 : vector<8x128xi1>, vector<8x128xf32>
      %32 = arith.mulf %31, %31 : vector<8x128xf32>
      %cst_19 = arith.constant dense<0.000000e+00> : vector<8xf32>
      %33 = vector.multi_reduction <add>, %32, %cst_19 [1] : vector<8x128xf32> to vector<8xf32>
      %34 = vector.shape_cast %33 : vector<8xf32> to vector<8x1xf32>
      %cst_20 = arith.constant 6.250000e-02 : f32
      %35 = vector.broadcast %cst_20 : f32 to vector<8x1xf32>
      %36 = arith.mulf %34, %35 : vector<8x1xf32>
      %cst_21 = arith.constant 9.99999974E-6 : f32
      %37 = vector.broadcast %cst_21 : f32 to vector<8x1xf32>
      %38 = arith.addf %36, %37 : vector<8x1xf32>
      %39 = math.rsqrt %38 : vector<8x1xf32>
      %40 = vector.broadcast %39 : vector<8x1xf32> to vector<8x128xf32>
      %41 = arith.mulf %31, %40 : vector<8x128xf32>
      %c0_22 = arith.constant 0 : index
      %c0_23 = arith.constant 0 : index
      %42 = vector.load %arg6[%c0_22, %c0_23] : memref<1x128xf32, #tpu.memory_space<vmem>>, vector<1x128xf32>
      %43 = vector.broadcast %42 : vector<1x128xf32> to vector<8x128xf32>
      %44 = arith.mulf %41, %43 : vector<8x128xf32>
      %c0_24 = arith.constant 0 : index
      %c0_25 = arith.constant 0 : index
      %45 = vector.load %arg7[%c0_24, %c0_25] : memref<1x128xf32, #tpu.memory_space<vmem>>, vector<1x128xf32>
      %46 = vector.broadcast %45 : vector<1x128xf32> to vector<8x128xf32>
      %47 = arith.addf %44, %46 : vector<8x128xf32>
      %48 = arith.truncf %47 : vector<8x128xf32> to vector<8x128xbf16>
      %c0_26 = arith.constant 0 : index
      %c0_27 = arith.constant 0 : index
      %49 = vector.load %arg8[%c0_26, %c0_27] : memref<8x128xbf16, #tpu.memory_space<vmem>>, vector<8x128xbf16>
      tpu.vector_store %arg8[%c0_26, %c0_27], %48 {strides = array<i32>} : memref<8x128xbf16, #tpu.memory_space<vmem>>, vector<8x128xbf16>,
    } else {
    }
    return
  }
  func.func @transform_0(%arg0: i32, %arg1: i32) -> (i32, i32) {
    %c0_i32 = arith.constant 0 : i32
    return %arg0, %arg1 : i32, i32
  }
  func.func @transform_1(%arg0: i32, %arg1: i32) -> (i32, i32) {
    %c0_i32 = arith.constant 0 : i32
    %c0_i32_0 = arith.constant 0 : i32
    return %arg1, %c0_i32 : i32, i32
  }
  func.func @transform_2(%arg0: i32, %arg1: i32) -> (i32, i32) {
    %c0_i32 = arith.constant 0 : i32
    %c0_i32_0 = arith.constant 0 : i32
    %c0_i32_1 = arith.constant 0 : i32
    return %c0_i32, %c0_i32_0 : i32, i32
  }
  func.func @transform_3(%arg0: i32, %arg1: i32) -> (i32, i32) {
    %c0_i32 = arith.constant 0 : i32
    %c0_i32_0 = arith.constant 0 : i32
    return %arg0, %c0_i32 : i32, i32
  }
  func.func @transform_4(%arg0: i32, %arg1: i32) -> (i32, i32) {
    %c0_i32 = arith.constant 0 : i32
    %c0_i32_0 = arith.constant 0 : i32
    %c0_i32_1 = arith.constant 0 : i32
    return %c0_i32, %c0_i32_0 : i32, i32
  }
  func.func @transform_5(%arg0: i32, %arg1: i32) -> (i32, i32) {
    %c0_i32 = arith.constant 0 : i32
    %c0_i32_0 = arith.constant 0 : i32
    %c0_i32_1 = arith.constant 0 : i32
    return %c0_i32, %c0_i32_0 : i32, i32
  }
  func.func @transform_6(%arg0: i32, %arg1: i32) -> (i32, i32) {
    %c0_i32 = arith.constant 0 : i32
    %c0_i32_0 = arith.constant 0 : i32
    return %arg0, %c0_i32 : i32, i32
  }
}

module attributes {stable_mosaic.version = 11 : i64} {
  func.func @_dense_kernel(%arg0: i32, %arg1: i32, %arg2: memref<8x128xbf16, #tpu.memory_space<vmem>>, %arg3: memref<128x2048xbf16, #tpu.memory_space<vmem>>, %arg4: memref<1x2048xf32, #tpu.memory_space<vmem>>, %arg5: memref<8x2048xbf16, #tpu.memory_space<vmem>>) attributes {dimension_semantics = [#tpu.dimension_semantics<parallel>, #tpu.dimension_semantics<arbitrary>], iteration_bounds = array<i64: 1, 1>, scalar_prefetch = 0 : i64, scratch_operands = 0 : i64, tpu.core_type = #tpu.core_type<tc>, window_params = [{transform_indices = @transform_0, window_bounds = array<i64: 8, 128>}, {transform_indices = @transform_1, window_bounds = array<i64: 128, 2048>}, {pipeline_mode = #tpu.pipeline_mode<synchronous>, transform_indices = @transform_2, window_bounds = array<i64: 1, 2048>}, {transform_indices = @transform_3, window_bounds = array<i64: 8, 2048>}]} {
    %c0 = arith.constant 0 : index
    %c0_0 = arith.constant 0 : index
    %0 = vector.load %arg2[%c0, %c0_0] : memref<8x128xbf16, #tpu.memory_space<vmem>>, vector<8x128xbf16>
    %c0_1 = arith.constant 0 : index
    %c0_2 = arith.constant 0 : index
    %1 = vector.load %arg3[%c0_1, %c0_2] : memref<128x2048xbf16, #tpu.memory_space<vmem>>, vector<128x2048xbf16>
    %cst = arith.constant dense<0.000000e+00> : vector<8x2048xf32>
    %2 = tpu.matmul %0, %1, %cst {dimension_numbers = #tpu.dot_dimension_numbers<[1], [0], [0], [1], [0, 0, 1, 1], [], []>} : vector<8x128xbf16>, vector<128x2048xbf16>, vector<8x2048xf32> -> vector<8x2048xf32>
    %c0_3 = arith.constant 0 : index
    %c0_4 = arith.constant 0 : index
    %3 = vector.load %arg4[%c0_3, %c0_4] : memref<1x2048xf32, #tpu.memory_space<vmem>>, vector<1x2048xf32>
    %4 = vector.broadcast %3 : vector<1x2048xf32> to vector<8x2048xf32>
    %5 = arith.addf %2, %4 : vector<8x2048xf32>
    %cst_5 = arith.constant 0.000000e+00 : f32
    %6 = vector.broadcast %cst_5 : f32 to vector<8x2048xf32>
    %7 = arith.cmpf oge, %5, %6 : vector<8x2048xf32>
    %cst_6 = arith.constant 0.00999999977 : f32
    %8 = vector.broadcast %cst_6 : f32 to vector<8x2048xf32>
    %9 = arith.mulf %8, %5 : vector<8x2048xf32>
    %10 = arith.select %7, %5, %9 : vector<8x2048xi1>, vector<8x2048xf32>
    %11 = arith.truncf %10 : vector<8x2048xf32> to vector<8x2048xbf16>
    %c0_7 = arith.constant 0 : index
    %c0_8 = arith.constant 0 : index
    %12 = vector.load %arg5[%c0_7, %c0_8] : memref<8x2048xbf16, #tpu.memory_space<vmem>>, vector<8x2048xbf16>
    tpu.vector_store %arg5[%c0_7, %c0_8], %11 {strides = array<i32>} : memref<8x2048xbf16, #tpu.memory_space<vmem>>, vector<8x2048xbf16>,
    return
  }
  func.func @transform_0(%arg0: i32, %arg1: i32) -> (i32, i32) {
    %c0_i32 = arith.constant 0 : i32
    return %arg0, %arg1 : i32, i32
  }
  func.func @transform_1(%arg0: i32, %arg1: i32) -> (i32, i32) {
    %c0_i32 = arith.constant 0 : i32
    %c0_i32_0 = arith.constant 0 : i32
    return %arg1, %c0_i32 : i32, i32
  }
  func.func @transform_2(%arg0: i32, %arg1: i32) -> (i32, i32) {
    %c0_i32 = arith.constant 0 : i32
    %c0_i32_0 = arith.constant 0 : i32
    %c0_i32_1 = arith.constant 0 : i32
    return %c0_i32, %c0_i32_0 : i32, i32
  }
  func.func @transform_3(%arg0: i32, %arg1: i32) -> (i32, i32) {
    %c0_i32 = arith.constant 0 : i32
    %c0_i32_0 = arith.constant 0 : i32
    return %arg0, %c0_i32 : i32, i32
  }
}

module attributes {stable_mosaic.version = 11 : i64} {
  func.func @_norm_pool_kernel(%arg0: i32, %arg1: memref<1x4x128xbf16, #tpu.memory_space<vmem>>, %arg2: memref<1x128xf32, #tpu.memory_space<vmem>>, %arg3: memref<1x128xf32, #tpu.memory_space<vmem>>, %arg4: memref<1x1x128xf32, #tpu.memory_space<vmem>>) attributes {dimension_semantics = [#tpu.dimension_semantics<parallel>], iteration_bounds = array<i64: 2>, scalar_prefetch = 0 : i64, scratch_operands = 0 : i64, tpu.core_type = #tpu.core_type<tc>, window_params = [{transform_indices = @transform_0, window_bounds = array<i64: 1, 4, 128>}, {pipeline_mode = #tpu.pipeline_mode<synchronous>, transform_indices = @transform_1, window_bounds = array<i64: 1, 128>}, {pipeline_mode = #tpu.pipeline_mode<synchronous>, transform_indices = @transform_2, window_bounds = array<i64: 1, 128>}, {transform_indices = @transform_3, window_bounds = array<i64: 1, 1, 128>}]} {
    %c0 = arith.constant 0 : index
    %c0_0 = arith.constant 0 : index
    %c0_1 = arith.constant 0 : index
    %0 = vector.load %arg1[%c0, %c0_0, %c0_1] : memref<1x4x128xbf16, #tpu.memory_space<vmem>>, vector<1x4x128xbf16>
    %1 = vector.shape_cast %0 : vector<1x4x128xbf16> to vector<4x128xbf16>
    %2 = arith.extf %1 : vector<4x128xbf16> to vector<4x128xf32>
    %3 = tpu.iota {dimensions = array<i32: 1>} : vector<4x128xi32>
    %c16_i32 = arith.constant 16 : i32
    %4 = vector.broadcast %c16_i32 : i32 to vector<4x128xi32>
    %5 = arith.cmpi slt, %3, %4 : vector<4x128xi32>
    %cst = arith.constant 0.000000e+00 : f32
    %6 = vector.broadcast %cst : f32 to vector<4x128xf32>
    %7 = arith.select %5, %2, %6 : vector<4x128xi1>, vector<4x128xf32>
    %cst_2 = arith.constant dense<0.000000e+00> : vector<4xf32>
    %8 = vector.multi_reduction <add>, %7, %cst_2 [1] : vector<4x128xf32> to vector<4xf32>
    %9 = vector.shape_cast %8 : vector<4xf32> to vector<4x1xf32>
    %cst_3 = arith.constant 6.250000e-02 : f32
    %10 = vector.broadcast %cst_3 : f32 to vector<4x1xf32>
    %11 = arith.mulf %9, %10 : vector<4x1xf32>
    %12 = vector.broadcast %11 : vector<4x1xf32> to vector<4x128xf32>
    %13 = arith.subf %2, %12 : vector<4x128xf32>
    %cst_4 = arith.constant 0.000000e+00 : f32
    %14 = vector.broadcast %cst_4 : f32 to vector<4x128xf32>
    %15 = arith.select %5, %13, %14 : vector<4x128xi1>, vector<4x128xf32>
    %16 = arith.mulf %15, %15 : vector<4x128xf32>
    %cst_5 = arith.constant dense<0.000000e+00> : vector<4xf32>
    %17 = vector.multi_reduction <add>, %16, %cst_5 [1] : vector<4x128xf32> to vector<4xf32>
    %18 = vector.shape_cast %17 : vector<4xf32> to vector<4x1xf32>
    %cst_6 = arith.constant 6.250000e-02 : f32
    %19 = vector.broadcast %cst_6 : f32 to vector<4x1xf32>
    %20 = arith.mulf %18, %19 : vector<4x1xf32>
    %cst_7 = arith.constant 9.99999974E-6 : f32
    %21 = vector.broadcast %cst_7 : f32 to vector<4x1xf32>
    %22 = arith.addf %20, %21 : vector<4x1xf32>
    %23 = math.rsqrt %22 : vector<4x1xf32>
    %24 = vector.broadcast %23 : vector<4x1xf32> to vector<4x128xf32>
    %25 = arith.mulf %15, %24 : vector<4x128xf32>
    %c0_8 = arith.constant 0 : index
    %c0_9 = arith.constant 0 : index
    %26 = vector.load %arg2[%c0_8, %c0_9] : memref<1x128xf32, #tpu.memory_space<vmem>>, vector<1x128xf32>
    %27 = vector.broadcast %26 : vector<1x128xf32> to vector<4x128xf32>
    %28 = arith.mulf %25, %27 : vector<4x128xf32>
    %c0_10 = arith.constant 0 : index
    %c0_11 = arith.constant 0 : index
    %29 = vector.load %arg3[%c0_10, %c0_11] : memref<1x128xf32, #tpu.memory_space<vmem>>, vector<1x128xf32>
    %30 = vector.broadcast %29 : vector<1x128xf32> to vector<4x128xf32>
    %31 = arith.addf %28, %30 : vector<4x128xf32>
    %cst_12 = arith.constant dense<0.000000e+00> : vector<128xf32>
    %32 = vector.multi_reduction <add>, %31, %cst_12 [0] : vector<4x128xf32> to vector<128xf32>
    %33 = vector.shape_cast %32 : vector<128xf32> to vector<1x128xf32>
    %cst_13 = arith.constant 2.500000e-01 : f32
    %34 = vector.broadcast %cst_13 : f32 to vector<1x128xf32>
    %35 = arith.mulf %33, %34 : vector<1x128xf32>
    %c0_14 = arith.constant 0 : index
    %c0_15 = arith.constant 0 : index
    %c0_16 = arith.constant 0 : index
    %36 = vector.load %arg4[%c0_14, %c0_15, %c0_16] : memref<1x1x128xf32, #tpu.memory_space<vmem>>, vector<1x1x128xf32>
    %37 = vector.shape_cast %36 : vector<1x1x128xf32> to vector<1x128xf32>
    %38 = vector.shape_cast %35 : vector<1x128xf32> to vector<1x1x128xf32>
    tpu.vector_store %arg4[%c0_14, %c0_15, %c0_16], %38 {strides = array<i32>} : memref<1x1x128xf32, #tpu.memory_space<vmem>>, vector<1x1x128xf32>,
    return
  }
  func.func @transform_0(%arg0: i32) -> (i32, i32, i32) {
    %c0_i32 = arith.constant 0 : i32
    %c0_i32_0 = arith.constant 0 : i32
    %c0_i32_1 = arith.constant 0 : i32
    return %arg0, %c0_i32, %c0_i32_0 : i32, i32, i32
  }
  func.func @transform_1(%arg0: i32) -> (i32, i32) {
    %c0_i32 = arith.constant 0 : i32
    %c0_i32_0 = arith.constant 0 : i32
    %c0_i32_1 = arith.constant 0 : i32
    return %c0_i32, %c0_i32_0 : i32, i32
  }
  func.func @transform_2(%arg0: i32) -> (i32, i32) {
    %c0_i32 = arith.constant 0 : i32
    %c0_i32_0 = arith.constant 0 : i32
    %c0_i32_1 = arith.constant 0 : i32
    return %c0_i32, %c0_i32_0 : i32, i32
  }
  func.func @transform_3(%arg0: i32) -> (i32, i32, i32) {
    %c0_i32 = arith.constant 0 : i32
    %c0_i32_0 = arith.constant 0 : i32
    %c0_i32_1 = arith.constant 0 : i32
    return %arg0, %c0_i32, %c0_i32_0 : i32, i32, i32
  }
}

module attributes {stable_mosaic.version = 11 : i64} {
  func.func @_dense_kernel(%arg0: i32, %arg1: i32, %arg2: memref<8x32xf32, #tpu.memory_space<vmem>>, %arg3: memref<32x128xbf16, #tpu.memory_space<vmem>>, %arg4: memref<1x128xf32, #tpu.memory_space<vmem>>, %arg5: memref<8x128xf32, #tpu.memory_space<vmem>>) attributes {dimension_semantics = [#tpu.dimension_semantics<parallel>, #tpu.dimension_semantics<arbitrary>], iteration_bounds = array<i64: 1, 1>, scalar_prefetch = 0 : i64, scratch_operands = 0 : i64, tpu.core_type = #tpu.core_type<tc>, window_params = [{transform_indices = @transform_0, window_bounds = array<i64: 8, 32>}, {transform_indices = @transform_1, window_bounds = array<i64: 32, 128>}, {pipeline_mode = #tpu.pipeline_mode<synchronous>, transform_indices = @transform_2, window_bounds = array<i64: 1, 128>}, {transform_indices = @transform_3, window_bounds = array<i64: 8, 128>}]} {
    %c0 = arith.constant 0 : index
    %c0_0 = arith.constant 0 : index
    %0 = vector.load %arg2[%c0, %c0_0] : memref<8x32xf32, #tpu.memory_space<vmem>>, vector<8x32xf32>
    %1 = arith.truncf %0 : vector<8x32xf32> to vector<8x32xbf16>
    %c0_1 = arith.constant 0 : index
    %c0_2 = arith.constant 0 : index
    %2 = vector.load %arg3[%c0_1, %c0_2] : memref<32x128xbf16, #tpu.memory_space<vmem>>, vector<32x128xbf16>
    %cst = arith.constant dense<0.000000e+00> : vector<8x128xf32>
    %3 = tpu.matmul %1, %2, %cst {dimension_numbers = #tpu.dot_dimension_numbers<[1], [0], [0], [1], [0, 0, 1, 1], [], []>} : vector<8x32xbf16>, vector<32x128xbf16>, vector<8x128xf32> -> vector<8x128xf32>
    %c0_3 = arith.constant 0 : index
    %c0_4 = arith.constant 0 : index
    %4 = vector.load %arg4[%c0_3, %c0_4] : memref<1x128xf32, #tpu.memory_space<vmem>>, vector<1x128xf32>
    %5 = vector.broadcast %4 : vector<1x128xf32> to vector<8x128xf32>
    %6 = arith.addf %3, %5 : vector<8x128xf32>
    %7 = arith.negf %6 : vector<8x128xf32>
    %8 = math.exp %7 : vector<8x128xf32>
    %cst_5 = arith.constant 1.000000e+00 : f32
    %9 = vector.broadcast %cst_5 : f32 to vector<8x128xf32>
    %10 = arith.addf %9, %8 : vector<8x128xf32>
    %11 = arith.divf %9, %10 : vector<8x128xf32>
    %c0_6 = arith.constant 0 : index
    %c0_7 = arith.constant 0 : index
    %12 = vector.load %arg5[%c0_6, %c0_7] : memref<8x128xf32, #tpu.memory_space<vmem>>, vector<8x128xf32>
    tpu.vector_store %arg5[%c0_6, %c0_7], %11 {strides = array<i32>} : memref<8x128xf32, #tpu.memory_space<vmem>>, vector<8x128xf32>,
    return
  }
  func.func @transform_0(%arg0: i32, %arg1: i32) -> (i32, i32) {
    %c0_i32 = arith.constant 0 : i32
    return %arg0, %arg1 : i32, i32
  }
  func.func @transform_1(%arg0: i32, %arg1: i32) -> (i32, i32) {
    %c0_i32 = arith.constant 0 : i32
    %c0_i32_0 = arith.constant 0 : i32
    return %arg1, %c0_i32 : i32, i32
  }
  func.func @transform_2(%arg0: i32, %arg1: i32) -> (i32, i32) {
    %c0_i32 = arith.constant 0 : i32
    %c0_i32_0 = arith.constant 0 : i32
    %c0_i32_1 = arith.constant 0 : i32
    return %c0_i32, %c0_i32_0 : i32, i32
  }
  func.func @transform_3(%arg0: i32, %arg1: i32) -> (i32, i32) {
    %c0_i32 = arith.constant 0 : i32
    %c0_i32_0 = arith.constant 0 : i32
    return %arg0, %c0_i32 : i32, i32
  }
}

module attributes {stable_mosaic.version = 11 : i64} {
  func.func @_dense_kernel(%arg0: i32, %arg1: i32, %arg2: memref<8x32xf32, #tpu.memory_space<vmem>>, %arg3: memref<32x128xbf16, #tpu.memory_space<vmem>>, %arg4: memref<1x128xf32, #tpu.memory_space<vmem>>, %arg5: memref<8x128xbf16, #tpu.memory_space<vmem>>) attributes {dimension_semantics = [#tpu.dimension_semantics<parallel>, #tpu.dimension_semantics<arbitrary>], iteration_bounds = array<i64: 1, 1>, scalar_prefetch = 0 : i64, scratch_operands = 0 : i64, tpu.core_type = #tpu.core_type<tc>, window_params = [{transform_indices = @transform_0, window_bounds = array<i64: 8, 32>}, {transform_indices = @transform_1, window_bounds = array<i64: 32, 128>}, {pipeline_mode = #tpu.pipeline_mode<synchronous>, transform_indices = @transform_2, window_bounds = array<i64: 1, 128>}, {transform_indices = @transform_3, window_bounds = array<i64: 8, 128>}]} {
    %c0 = arith.constant 0 : index
    %c0_0 = arith.constant 0 : index
    %0 = vector.load %arg2[%c0, %c0_0] : memref<8x32xf32, #tpu.memory_space<vmem>>, vector<8x32xf32>
    %1 = arith.truncf %0 : vector<8x32xf32> to vector<8x32xbf16>
    %c0_1 = arith.constant 0 : index
    %c0_2 = arith.constant 0 : index
    %2 = vector.load %arg3[%c0_1, %c0_2] : memref<32x128xbf16, #tpu.memory_space<vmem>>, vector<32x128xbf16>
    %cst = arith.constant dense<0.000000e+00> : vector<8x128xf32>
    %3 = tpu.matmul %1, %2, %cst {dimension_numbers = #tpu.dot_dimension_numbers<[1], [0], [0], [1], [0, 0, 1, 1], [], []>} : vector<8x32xbf16>, vector<32x128xbf16>, vector<8x128xf32> -> vector<8x128xf32>
    %c0_3 = arith.constant 0 : index
    %c0_4 = arith.constant 0 : index
    %4 = vector.load %arg4[%c0_3, %c0_4] : memref<1x128xf32, #tpu.memory_space<vmem>>, vector<1x128xf32>
    %5 = vector.broadcast %4 : vector<1x128xf32> to vector<8x128xf32>
    %6 = arith.addf %3, %5 : vector<8x128xf32>
    %cst_5 = arith.constant 0.000000e+00 : f32
    %7 = vector.broadcast %cst_5 : f32 to vector<8x128xf32>
    %8 = arith.cmpf oge, %6, %7 : vector<8x128xf32>
    %cst_6 = arith.constant 0.00999999977 : f32
    %9 = vector.broadcast %cst_6 : f32 to vector<8x128xf32>
    %10 = arith.mulf %9, %6 : vector<8x128xf32>
    %11 = arith.select %8, %6, %10 : vector<8x128xi1>, vector<8x128xf32>
    %12 = arith.truncf %11 : vector<8x128xf32> to vector<8x128xbf16>
    %c0_7 = arith.constant 0 : index
    %c0_8 = arith.constant 0 : index
    %13 = vector.load %arg5[%c0_7, %c0_8] : memref<8x128xbf16, #tpu.memory_space<vmem>>, vector<8x128xbf16>
    tpu.vector_store %arg5[%c0_7, %c0_8], %12 {strides = array<i32>} : memref<8x128xbf16, #tpu.memory_space<vmem>>, vector<8x128xbf16>,
    return
  }
  func.func @transform_0(%arg0: i32, %arg1: i32) -> (i32, i32) {
    %c0_i32 = arith.constant 0 : i32
    return %arg0, %arg1 : i32, i32
  }
  func.func @transform_1(%arg0: i32, %arg1: i32) -> (i32, i32) {
    %c0_i32 = arith.constant 0 : i32
    %c0_i32_0 = arith.constant 0 : i32
    return %arg1, %c0_i32 : i32, i32
  }
  func.func @transform_2(%arg0: i32, %arg1: i32) -> (i32, i32) {
    %c0_i32 = arith.constant 0 : i32
    %c0_i32_0 = arith.constant 0 : i32
    %c0_i32_1 = arith.constant 0 : i32
    return %c0_i32, %c0_i32_0 : i32, i32
  }
  func.func @transform_3(%arg0: i32, %arg1: i32) -> (i32, i32) {
    %c0_i32 = arith.constant 0 : i32
    %c0_i32_0 = arith.constant 0 : i32
    return %arg0, %c0_i32 : i32, i32
  }
}

module attributes {stable_mosaic.version = 11 : i64} {
  func.func @_dense_kernel(%arg0: i32, %arg1: i32, %arg2: memref<8x32xbf16, #tpu.memory_space<vmem>>, %arg3: memref<32x128xbf16, #tpu.memory_space<vmem>>, %arg4: memref<1x128xf32, #tpu.memory_space<vmem>>, %arg5: memref<8x128xf32, #tpu.memory_space<vmem>>) attributes {dimension_semantics = [#tpu.dimension_semantics<parallel>, #tpu.dimension_semantics<arbitrary>], iteration_bounds = array<i64: 1, 1>, scalar_prefetch = 0 : i64, scratch_operands = 0 : i64, tpu.core_type = #tpu.core_type<tc>, window_params = [{transform_indices = @transform_0, window_bounds = array<i64: 8, 32>}, {transform_indices = @transform_1, window_bounds = array<i64: 32, 128>}, {pipeline_mode = #tpu.pipeline_mode<synchronous>, transform_indices = @transform_2, window_bounds = array<i64: 1, 128>}, {transform_indices = @transform_3, window_bounds = array<i64: 8, 128>}]} {
    %c0 = arith.constant 0 : index
    %c0_0 = arith.constant 0 : index
    %0 = vector.load %arg2[%c0, %c0_0] : memref<8x32xbf16, #tpu.memory_space<vmem>>, vector<8x32xbf16>
    %c0_1 = arith.constant 0 : index
    %c0_2 = arith.constant 0 : index
    %1 = vector.load %arg3[%c0_1, %c0_2] : memref<32x128xbf16, #tpu.memory_space<vmem>>, vector<32x128xbf16>
    %cst = arith.constant dense<0.000000e+00> : vector<8x128xf32>
    %2 = tpu.matmul %0, %1, %cst {dimension_numbers = #tpu.dot_dimension_numbers<[1], [0], [0], [1], [0, 0, 1, 1], [], []>} : vector<8x32xbf16>, vector<32x128xbf16>, vector<8x128xf32> -> vector<8x128xf32>
    %c0_3 = arith.constant 0 : index
    %c0_4 = arith.constant 0 : index
    %3 = vector.load %arg4[%c0_3, %c0_4] : memref<1x128xf32, #tpu.memory_space<vmem>>, vector<1x128xf32>
    %4 = vector.broadcast %3 : vector<1x128xf32> to vector<8x128xf32>
    %5 = arith.addf %2, %4 : vector<8x128xf32>
    %c0_5 = arith.constant 0 : index
    %c0_6 = arith.constant 0 : index
    %6 = vector.load %arg5[%c0_5, %c0_6] : memref<8x128xf32, #tpu.memory_space<vmem>>, vector<8x128xf32>
    tpu.vector_store %arg5[%c0_5, %c0_6], %5 {strides = array<i32>} : memref<8x128xf32, #tpu.memory_space<vmem>>, vector<8x128xf32>,
    return
  }
  func.func @transform_0(%arg0: i32, %arg1: i32) -> (i32, i32) {
    %c0_i32 = arith.constant 0 : i32
    return %arg0, %arg1 : i32, i32
  }
  func.func @transform_1(%arg0: i32, %arg1: i32) -> (i32, i32) {
    %c0_i32 = arith.constant 0 : i32
    %c0_i32_0 = arith.constant 0 : i32
    return %arg1, %c0_i32 : i32, i32
  }
  func.func @transform_2(%arg0: i32, %arg1: i32) -> (i32, i32) {
    %c0_i32 = arith.constant 0 : i32
    %c0_i32_0 = arith.constant 0 : i32
    %c0_i32_1 = arith.constant 0 : i32
    return %c0_i32, %c0_i32_0 : i32, i32
  }
  func.func @transform_3(%arg0: i32, %arg1: i32) -> (i32, i32) {
    %c0_i32 = arith.constant 0 : i32
    %c0_i32_0 = arith.constant 0 : i32
    return %arg0, %c0_i32 : i32, i32
  }
}

</mosaic_0001>

<llo_original>
// kernel: scob_forward.30
$region0: #{scob_forward.30}
  #allocation0 [shape = 'u32[]', space=smem, size = 0x4, offset = 0x4, fixed_abs, tag = 'smem constant byte address 0x4 - core index']
  #allocation1 [shape = 'u32[72,128]{1,0:T(1,128)}', space=vmem, size = 0x9000, scoped, tag = 'internal scratch']
  %s0 = inlined_call_operand.vmem [shape: f32[32,8], index: 0, kind: input, shape index: {}]
  %s1 = inlined_call_operand.vmem [shape: bf16[8,1024], index: 1, kind: input, shape index: {}]
  %s2 = inlined_call_operand.vmem [shape: f32[1,1024], index: 2, kind: input, shape index: {}]
  %s3 = inlined_call_operand.vmem [shape: bf16[32,1024], index: 3, kind: output, shape index: {}]
  %s4 = sld [smem:[#allocation0]]
  $region22: #{scob_forward.30} parent=0
    _
  %s6 = ssub.s32 1, %s4
  %s7 = scalar_select 0, %s6, %s4
  // Predicated region
  $region2: #{scob_forward.30} parent=0 // pred_check
    _
  $region3: #{scob_forward.30} parent=0 // pred_check_branch
    %9 = sbr.rel (0) target = $region5
  $region4: #{scob_forward.30} parent=0 // pred_region
    _
  $region5: #{scob_forward.30} parent=0 // pred_fallthru
    _
  // Predicated region
  $region6: #{scob_forward.30} parent=0 // pred_check
    _
  $region7: #{scob_forward.30} parent=0 // pred_check_branch
    %11 = sbr.rel (0) target = $region9
  $region8: #{scob_forward.30} parent=0 // pred_region
    _
  $region9: #{scob_forward.30} parent=0 // pred_fallthru
    _
  // Predicated region
  $region10: #{scob_forward.30} parent=0 // pred_check
    _
  $region11: #{scob_forward.30} parent=0 // pred_check_branch
    %13 = sbr.rel (0) target = $region13
  $region12: #{scob_forward.30} parent=0 // pred_region
    _
  $region13: #{scob_forward.30} parent=0 // pred_fallthru
    _
  %v15 = vld [vmem:[%s0] sm:$0xff]
  %v16 = vld [vmem:[%s0 + $0x8] sm:$0xff]
  %v17 = vld [vmem:[%s0 + $0x10] sm:$0xff]
  %v18 = vld [vmem:[%s0 + $0x18] sm:$0xff]
  %v19 = vpack.c.bf16 %v16, %v15
  %v20 = vpack.c.bf16 %v18, %v17
  %v21 = vld [vmem:[%s1] sm:$0xff]
  %v22 = vld [vmem:[%s1 + $0x8] sm:$0xff]
  %v23 = vld [vmem:[%s1 + $0x10] sm:$0xff]
  %v24 = vld [vmem:[%s1 + $0x18] sm:$0xff]
  %v25 = vld [vmem:[%s2] sm:$0xff]
  %v27 = vperm.slane %v25, 0
  %v28 = vperm.slane %v25, 1
  %v29 = vperm.slane %v25, 2
  %v30 = vperm.slane %v25, 3
  %v31 = vperm.slane %v25, 4
  %v32 = vperm.slane %v25, 5
  %v33 = vperm.slane %v25, 6
  %v34 = vperm.slane %v25, 7
  %v47 = vunpack.c.l.b16 %v21
  %v48 = vunpack.c.h.b16 %v21
  %v49 = vunpack.c.l.b16 %v22
  %v50 = vunpack.c.h.b16 %v22
  %v51 = vunpack.c.l.b16 %v23
  %v52 = vunpack.c.h.b16 %v23
  %v53 = vunpack.c.l.b16 %v24
  %v54 = vunpack.c.h.b16 %v24
  %v55 = vpack.c.b16 %v47, %v47
  %v56 = vpack.c.b16 %v48, %v48
  %v57 = vpack.c.b16 %v49, %v49
  %v58 = vpack.c.b16 %v50, %v50
  %v59 = vpack.c.b16 %v51, %v51
  %v60 = vpack.c.b16 %v52, %v52
  %v61 = vpack.c.b16 %v53, %v53
  %v62 = vpack.c.b16 %v54, %v54
  %vm63 = vcmask 64512
  %v65 = vsel %vm63, %v19, 0
  %v68 = vsel %vm63, %v20, 0
  %vm70 = vcmask 1043456
  %v72 = vsel %vm70, %v55, 0
  %v75 = vsel %vm70, %v56, 0
  %v78 = vsel %vm70, %v57, 0
  %v81 = vsel %vm70, %v58, 0
  %v84 = vsel %vm70, %v59, 0
  %v87 = vsel %vm70, %v60, 0
  %v90 = vsel %vm70, %v61, 0
  %v93 = vsel %vm70, %v62, 0
  %95 = vmatpush.bf16.msra.mxu0 0
  %96 = vmatpush.bf16.msra.mxu0 0
  %97 = vmatpush.bf16.msra.mxu0 0
  %98 = vmatpush.bf16.msra.mxu0 0
  %99 = vmatpush.bf16.msra.mxu0 0
  %100 = vmatpush.bf16.msra.mxu0 0
  %101 = vmatpush.bf16.msra.mxu0 0
  %102 = vmatpush.bf16.msra.mxu0 %v72
  %103 = vmatmul.bf16.gmra.mxu0 %v65
  %v104 = vpop.f32.mrf.mxu0
  %v105 = vadd.f32 %v27, %v104
  %v106 = vpop.f32.mrf.mxu0
  %v107 = vadd.f32 %v27, %v106
  %108 = vmatmul.bf16.gmra.mxu0 %v68
  %v109 = vpop.f32.mrf.mxu0
  %v110 = vadd.f32 %v27, %v109
  %v111 = vpop.f32.mrf.mxu0
  %v112 = vadd.f32 %v27, %v111
  %113 = vdwg.mxu0
  %114 = vmatpush.bf16.msra.mxu0 0
  %115 = vmatpush.bf16.msra.mxu0 0
  %116 = vmatpush.bf16.msra.mxu0 0
  %117 = vmatpush.bf16.msra.mxu0 0
  %118 = vmatpush.bf16.msra.mxu0 0
  %119 = vmatpush.bf16.msra.mxu0 0
  %120 = vmatpush.bf16.msra.mxu0 0
  %121 = vmatpush.bf16.msra.mxu0 %v75
  %122 = vmatmul.bf16.gmra.mxu0 %v65
  %v123 = vpop.f32.mrf.mxu0
  %v124 = vadd.f32 %v28, %v123
  %v125 = vpop.f32.mrf.mxu0
  %v126 = vadd.f32 %v28, %v125
  %127 = vmatmul.bf16.gmra.mxu0 %v68
  %v128 = vpop.f32.mrf.mxu0
  %v129 = vadd.f32 %v28, %v128
  %v130 = vpop.f32.mrf.mxu0
  %v131 = vadd.f32 %v28, %v130
  %132 = vdwg.mxu0
  %133 = vmatpush.bf16.msra.mxu0 0
  %134 = vmatpush.bf16.msra.mxu0 0
  %135 = vmatpush.bf16.msra.mxu0 0
  %136 = vmatpush.bf16.msra.mxu0 0
  %137 = vmatpush.bf16.msra.mxu0 0
  %138 = vmatpush.bf16.msra.mxu0 0
  %139 = vmatpush.bf16.msra.mxu0 0
  %140 = vmatpush.bf16.msra.mxu0 %v78
  %141 = vmatmul.bf16.gmra.mxu0 %v65
  %v142 = vpop.f32.mrf.mxu0
  %v143 = vadd.f32 %v29, %v142
  %v144 = vpop.f32.mrf.mxu0
  %v145 = vadd.f32 %v29, %v144
  %146 = vmatmul.bf16.gmra.mxu0 %v68
  %v147 = vpop.f32.mrf.mxu0
  %v148 = vadd.f32 %v29, %v147
  %v149 = vpop.f32.mrf.mxu0
  %v150 = vadd.f32 %v29, %v149
  %151 = vdwg.mxu0
  %152 = vmatpush.bf16.msra.mxu0 0
  %153 = vmatpush.bf16.msra.mxu0 0
  %154 = vmatpush.bf16.msra.mxu0 0
  %155 = vmatpush.bf16.msra.mxu0 0
  %156 = vmatpush.bf16.msra.mxu0 0
  %157 = vmatpush.bf16.msra.mxu0 0
  %158 = vmatpush.bf16.msra.mxu0 0
  %159 = vmatpush.bf16.msra.mxu0 %v81
  %160 = vmatmul.bf16.gmra.mxu0 %v65
  %v161 = vpop.f32.mrf.mxu0
  %v162 = vadd.f32 %v30, %v161
  %v163 = vpop.f32.mrf.mxu0
  %v164 = vadd.f32 %v30, %v163
  %165 = vmatmul.bf16.gmra.mxu0 %v68
  %v166 = vpop.f32.mrf.mxu0
  %v167 = vadd.f32 %v30, %v166
  %v168 = vpop.f32.mrf.mxu0
  %v169 = vadd.f32 %v30, %v168
  %170 = vdwg.mxu0
  %171 = vmatpush.bf16.msra.mxu0 0
  %172 = vmatpush.bf16.msra.mxu0 0
  %173 = vmatpush.bf16.msra.mxu0 0
  %174 = vmatpush.bf16.msra.mxu0 0
  %175 = vmatpush.bf16.msra.mxu0 0
  %176 = vmatpush.bf16.msra.mxu0 0
  %177 = vmatpush.bf16.msra.mxu0 0
  %178 = vmatpush.bf16.msra.mxu0 %v84
  %179 = vmatmul.bf16.gmra.mxu0 %v65
  %v180 = vpop.f32.mrf.mxu0
  %v181 = vadd.f32 %v31, %v180
  %v182 = vpop.f32.mrf.mxu0
  %v183 = vadd.f32 %v31, %v182
  %184 = vmatmul.bf16.gmra.mxu0 %v68
  %v185 = vpop.f32.mrf.mxu0
  %v186 = vadd.f32 %v31, %v185
  %v187 = vpop.f32.mrf.mxu0
  %v188 = vadd.f32 %v31, %v187
  %189 = vdwg.mxu0
  %190 = vmatpush.bf16.msra.mxu0 0
  %191 = vmatpush.bf16.msra.mxu0 0
  %192 = vmatpush.bf16.msra.mxu0 0
  %193 = vmatpush.bf16.msra.mxu0 0
  %194 = vmatpush.bf16.msra.mxu0 0
  %195 = vmatpush.bf16.msra.mxu0 0
  %196 = vmatpush.bf16.msra.mxu0 0
  %197 = vmatpush.bf16.msra.mxu0 %v87
  %198 = vmatmul.bf16.gmra.mxu0 %v65
  %v199 = vpop.f32.mrf.mxu0
  %v200 = vadd.f32 %v32, %v199
  %v201 = vpop.f32.mrf.mxu0
  %v202 = vadd.f32 %v32, %v201
  %203 = vmatmul.bf16.gmra.mxu0 %v68
  %v204 = vpop.f32.mrf.mxu0
  %v205 = vadd.f32 %v32, %v204
  %v206 = vpop.f32.mrf.mxu0
  %v207 = vadd.f32 %v32, %v206
  %208 = vdwg.mxu0
  %209 = vmatpush.bf16.msra.mxu0 0
  %210 = vmatpush.bf16.msra.mxu0 0
  %211 = vmatpush.bf16.msra.mxu0 0
  %212 = vmatpush.bf16.msra.mxu0 0
  %213 = vmatpush.bf16.msra.mxu0 0
  %214 = vmatpush.bf16.msra.mxu0 0
  %215 = vmatpush.bf16.msra.mxu0 0
  %216 = vmatpush.bf16.msra.mxu0 %v90
  %217 = vmatmul.bf16.gmra.mxu0 %v65
  %v218 = vpop.f32.mrf.mxu0
  %v219 = vadd.f32 %v33, %v218
  %v220 = vpop.f32.mrf.mxu0
  %v221 = vadd.f32 %v33, %v220
  %222 = vmatmul.bf16.gmra.mxu0 %v68
  %v223 = vpop.f32.mrf.mxu0
  %v224 = vadd.f32 %v33, %v223
  %v225 = vpop.f32.mrf.mxu0
  %v226 = vadd.f32 %v33, %v225
  %227 = vdwg.mxu0
  %228 = vmatpush.bf16.msra.mxu0 0
  %229 = vmatpush.bf16.msra.mxu0 0
  %230 = vmatpush.bf16.msra.mxu0 0
  %231 = vmatpush.bf16.msra.mxu0 0
  %232 = vmatpush.bf16.msra.mxu0 0
  %233 = vmatpush.bf16.msra.mxu0 0
  %234 = vmatpush.bf16.msra.mxu0 0
  %235 = vmatpush.bf16.msra.mxu0 %v93
  %236 = vmatmul.bf16.gmra.mxu0 %v65
  %v237 = vpop.f32.mrf.mxu0
  %v238 = vadd.f32 %v34, %v237
  %v239 = vpop.f32.mrf.mxu0
  %v240 = vadd.f32 %v34, %v239
  %241 = vmatmul.bf16.gmra.mxu0 %v68
  %v242 = vpop.f32.mrf.mxu0
  %v243 = vadd.f32 %v34, %v242
  %v244 = vpop.f32.mrf.mxu0
  %v245 = vadd.f32 %v34, %v244
  %246 = vdwg.mxu0
  %v247 = vmax.f32 %v105, 0.0
  %v248 = vmax.f32 %v124, 0.0
  %v249 = vmax.f32 %v143, 0.0
  %v250 = vmax.f32 %v162, 0.0
  %v251 = vmax.f32 %v181, 0.0
  %v252 = vmax.f32 %v200, 0.0
  %v253 = vmax.f32 %v219, 0.0
  %v254 = vmax.f32 %v238, 0.0
  %v255 = vmax.f32 %v107, 0.0
  %v256 = vmax.f32 %v126, 0.0
  %v257 = vmax.f32 %v145, 0.0
  %v258 = vmax.f32 %v164, 0.0
  %v259 = vmax.f32 %v183, 0.0
  %v260 = vmax.f32 %v202, 0.0
  %v261 = vmax.f32 %v221, 0.0
  %v262 = vmax.f32 %v240, 0.0
  %v263 = vmax.f32 %v110, 0.0
  %v264 = vmax.f32 %v129, 0.0
  %v265 = vmax.f32 %v148, 0.0
  %v266 = vmax.f32 %v167, 0.0
  %v267 = vmax.f32 %v186, 0.0
  %v268 = vmax.f32 %v205, 0.0
  %v269 = vmax.f32 %v224, 0.0
  %v270 = vmax.f32 %v243, 0.0
  %v271 = vmax.f32 %v112, 0.0
  %v272 = vmax.f32 %v131, 0.0
  %v273 = vmax.f32 %v150, 0.0
  %v274 = vmax.f32 %v169, 0.0
  %v275 = vmax.f32 %v188, 0.0
  %v276 = vmax.f32 %v207, 0.0
  %v277 = vmax.f32 %v226, 0.0
  %v278 = vmax.f32 %v245, 0.0
  %v279 = vpack.c.bf16 %v248, %v247
  %v280 = vpack.c.bf16 %v250, %v249
  %v281 = vpack.c.bf16 %v252, %v251
  %v282 = vpack.c.bf16 %v254, %v253
  %v283 = vpack.c.bf16 %v256, %v255
  %v284 = vpack.c.bf16 %v258, %v257
  %v285 = vpack.c.bf16 %v260, %v259
  %v286 = vpack.c.bf16 %v262, %v261
  %v287 = vpack.c.bf16 %v264, %v263
  %v288 = vpack.c.bf16 %v266, %v265
  %v289 = vpack.c.bf16 %v268, %v267
  %v290 = vpack.c.bf16 %v270, %v269
  %v291 = vpack.c.bf16 %v272, %v271
  %v292 = vpack.c.bf16 %v274, %v273
  %v293 = vpack.c.bf16 %v276, %v275
  %v294 = vpack.c.bf16 %v278, %v277
  %295 = vst [vmem:[%s3] sm:$0xff] %v279
  %296 = vst [vmem:[%s3 + $0x8] sm:$0xff] %v280
  %297 = vst [vmem:[%s3 + $0x10] sm:$0xff] %v281
  %298 = vst [vmem:[%s3 + $0x18] sm:$0xff] %v282
  %299 = vst [vmem:[%s3 + $0x20] sm:$0xff] %v283
  %300 = vst [vmem:[%s3 + $0x28] sm:$0xff] %v284
  %301 = vst [vmem:[%s3 + $0x30] sm:$0xff] %v285
  %302 = vst [vmem:[%s3 + $0x38] sm:$0xff] %v286
  %303 = vst [vmem:[%s3 + $0x40] sm:$0xff] %v287
  %304 = vst [vmem:[%s3 + $0x48] sm:$0xff] %v288
  %305 = vst [vmem:[%s3 + $0x50] sm:$0xff] %v289
  %306 = vst [vmem:[%s3 + $0x58] sm:$0xff] %v290
  %307 = vst [vmem:[%s3 + $0x60] sm:$0xff] %v291
  %308 = vst [vmem:[%s3 + $0x68] sm:$0xff] %v292
  %309 = vst [vmem:[%s3 + $0x70] sm:$0xff] %v293
  %310 = vst [vmem:[%s3 + $0x78] sm:$0xff] %v294
  // Predicated region
  $region14: #{scob_forward.30} parent=0 // pred_check
    _
  $region15: #{scob_forward.30} parent=0 // pred_check_branch
    %312 = sbr.rel (0) target = $region17
  $region16: #{scob_forward.30} parent=0 // pred_region
    _
  $region17: #{scob_forward.30} parent=0 // pred_fallthru
    _
  // Predicated region
  $region18: #{scob_forward.30} parent=0 // pred_check
    _
  $region19: #{scob_forward.30} parent=0 // pred_check_branch
    %314 = sbr.rel (0) target = $region21
  $region20: #{scob_forward.30} parent=0 // pred_region
    _
  $region21: #{scob_forward.30} parent=0 // pred_fallthru
    _

// kernel: scob_forward.43
$region0: #{scob_forward.43}
  #allocation0 [shape = 'u32[]', space=smem, size = 0x4, offset = 0x4, fixed_abs, tag = 'smem constant byte address 0x4 - core index']
  #allocation1 [shape = 'u32[72,128]{1,0:T(1,128)}', space=vmem, size = 0x9000, scoped, tag = 'internal scratch']
  #allocation2 [shape = 'f32[32,128]{1,0:T(8,128)}', space=vmem, size = 0x4000, scoped, tag = 'scratch operand']
  %s0 = inlined_call_operand.vmem [shape: bf16[32,1024], index: 0, kind: input, shape index: {}]
  %s1 = inlined_call_operand.vmem [shape: bf16[1024,128], index: 1, kind: input, shape index: {}]
  %s2 = inlined_call_operand.vmem [shape: f32[1,128], index: 2, kind: input, shape index: {}]
  %s3 = inlined_call_operand.vmem [shape: f32[32,128], index: 3, kind: input, shape index: {}]
  %s4 = inlined_call_operand.vmem [shape: bf16[32,128], index: 4, kind: output, shape index: {}]
  %s5 = sld [smem:[#allocation0]]
  $region80: #{scob_forward.43} parent=0
    _
  %s7 = ssub.s32 1, %s5
  %s8 = scalar_select 0, %s7, %s5
  $region1: #{scob_forward.43} parent=0
    #allocation3 [shape = 'u8[65536]{0}', space=vmem, size = 0x10000, scoped, tag = 'input window, operand 0']
    loop: start=0, step=1, limit=4
    $region2: #{scob_forward.43} parent=1 // loop_pre_header
      _
    $region3: #{scob_forward.43} parent=1 // loop_header
      %s10 = sphi 0, %s14
      %p11 = scmp.ge.s32.totalorder %s10, 4
      %s17 = sphi 0, %s29
      %s18 = sphi 0, %s25
      %s19 = sphi 0, %s17
      %s20 = sphi 0, %s18
      %s21 = sphi 0, %s19
      %s22 = sphi 0, %s20
      %s34 = sphi 0, %s36
      %s37 = sphi 0, %s34
      %s38 = sphi 0, %s37
      %s54 = sphi 0, %s38
      %s60 = sphi 0, %s62
      %s63 = sphi 0, %s60
      %s64 = sphi 0, %s63
      %s80 = sphi 0, %s64
      %s84 = sphi 0, %s84
      %s86 = sphi 0, %s84
      %s87 = sphi 0, %s86
      %s101 = sphi 0, %s87
      %s107 = sphi 0, %s109
      %s110 = sphi 0, %s107
      %s111 = sphi 0, %s110
      %s127 = sphi 0, %s111
      %s133 = sphi 0, %s135
      %s136 = sphi 0, %s133
      %s137 = sphi 0, %s136
      %s153 = sphi 0, %s137
    $region4: #{scob_forward.43} parent=1 // loop_header_branch
      %13 = sbr.rel (%p11) target = $region8
    $region5: #{scob_forward.43} parent=1 // loop_body
      %s15 = ssub.s32 %s10, 1
      %s16 = ssub.s32 %s10, 2
      %s23 = sadd.s32 1, %s18
      %p24 = scmp.ge.s32.totalorder %s23, 2
      %s25 = scalar_select %p24, 0, %s23
      %s26 = sadd.s32 1, %s17
      %s27 = scalar_select %p24, %s26, %s17
      %p28 = scmp.ge.s32.totalorder %s27, 1
      %s29 = scalar_select %p28, 0, %s27
      %s30 = ssub.s32 %s17, %s29
      %s31 = ssub.s32 %s18, %s25
      %s32 = sor.u32 %s30, %s31
      %p33 = scmp.eq.s32.totalorder %s32, 0
      %s35 = sadd.s32 %s34, 1
      %s36 = scalar_select %p33, %s34, %s35
      %p39 = pneg %p33
      %p40 = scmp.eq.s32.totalorder %s10, 1
      %p41 = por %p39, %p40
      %p42 = scmp.ne.s32.totalorder %s34, %s37
      %p43 = scmp.eq.s32.totalorder %s10, 0
      %p44 = por %p42, %p43
      %p45 = scmp.ne.s32.totalorder %s34, %s37
      %p46 = scmp.eq.s32.totalorder %s15, 1
      %p47 = por %p45, %p46
      %p48 = scmp.ne.s32.totalorder %s37, %s38
      %p49 = scmp.eq.s32.totalorder %s15, 0
      %p50 = por %p48, %p49
      %p51 = scmp.ne.s32.totalorder %s37, %s38
      %p52 = scmp.eq.s32.totalorder %s16, 1
      %p53 = por %p51, %p52
      %p55 = scmp.ne.s32.totalorder %s38, %s54
      %p56 = scmp.eq.s32.totalorder %s16, 0
      %p57 = por %p55, %p56
      %s58 = ssub.s32 %s18, %s25
      %p59 = scmp.eq.s32.totalorder %s58, 0
      %s61 = sadd.s32 %s60, 1
      %s62 = scalar_select %p59, %s60, %s61
      %p65 = pneg %p59
      %p66 = scmp.eq.s32.totalorder %s10, 1
      %p67 = por %p65, %p66
      %p68 = scmp.ne.s32.totalorder %s60, %s63
      %p69 = scmp.eq.s32.totalorder %s10, 0
      %p70 = por %p68, %p69
      %p71 = scmp.ne.s32.totalorder %s60, %s63
      %p72 = scmp.eq.s32.totalorder %s15, 1
      %p73 = por %p71, %p72
      %p74 = scmp.ne.s32.totalorder %s63, %s64
      %p75 = scmp.eq.s32.totalorder %s15, 0
      %p76 = por %p74, %p75
      %p77 = scmp.ne.s32.totalorder %s63, %s64
      %p78 = scmp.eq.s32.totalorder %s16, 1
      %p79 = por %p77, %p78
      %p81 = scmp.ne.s32.totalorder %s64, %s80
      %p82 = scmp.eq.s32.totalorder %s16, 0
      %p83 = por %p81, %p82
      %s85 = sadd.s32 %s84, 1
      %p88 = scmp.eq.s32.totalorder %s10, 1
      %p89 = scmp.ne.s32.totalorder %s84, %s86
      %p90 = scmp.eq.s32.totalorder %s10, 0
      %p91 = por %p89, %p90
      %p92 = scmp.ne.s32.totalorder %s84, %s86
      %p93 = scmp.eq.s32.totalorder %s15, 1
      %p94 = por %p92, %p93
      %p95 = scmp.ne.s32.totalorder %s86, %s87
      %p96 = scmp.eq.s32.totalorder %s15, 0
      %p97 = por %p95, %p96
      %p98 = scmp.ne.s32.totalorder %s86, %s87
      %p99 = scmp.eq.s32.totalorder %s16, 1
      %p100 = por %p98, %p99
      %p102 = scmp.ne.s32.totalorder %s87, %s101
      %p103 = scmp.eq.s32.totalorder %s16, 0
      %p104 = por %p102, %p103
      %s105 = ssub.s32 %s17, %s29
      %p106 = scmp.eq.s32.totalorder %s105, 0
      %s108 = sadd.s32 %s107, 1
      %s109 = scalar_select %p106, %s107, %s108
      %p112 = pneg %p106
      %p113 = scmp.eq.s32.totalorder %s10, 1
      %p114 = por %p112, %p113
      %p115 = scmp.ne.s32.totalorder %s107, %s110
      %p116 = scmp.eq.s32.totalorder %s10, 0
      %p117 = por %p115, %p116
      %p118 = scmp.ne.s32.totalorder %s107, %s110
      %p119 = scmp.eq.s32.totalorder %s15, 1
      %p120 = por %p118, %p119
      %p121 = scmp.ne.s32.totalorder %s110, %s111
      %p122 = scmp.eq.s32.totalorder %s15, 0
      %p123 = por %p121, %p122
      %p124 = scmp.ne.s32.totalorder %s110, %s111
      %p125 = scmp.eq.s32.totalorder %s16, 1
      %p126 = por %p124, %p125
      %p128 = scmp.ne.s32.totalorder %s111, %s127
      %p129 = scmp.eq.s32.totalorder %s16, 0
      %p130 = por %p128, %p129
      %s131 = ssub.s32 %s17, %s29
      %p132 = scmp.eq.s32.totalorder %s131, 0
      %s134 = sadd.s32 %s133, 1
      %s135 = scalar_select %p132, %s133, %s134
      %p138 = pneg %p132
      %p139 = scmp.eq.s32.totalorder %s10, 1
      %p140 = por %p138, %p139
      %p141 = scmp.ne.s32.totalorder %s133, %s136
      %p142 = scmp.eq.s32.totalorder %s10, 0
      %p143 = por %p141, %p142
      %p144 = scmp.ne.s32.totalorder %s133, %s136
      %p145 = scmp.eq.s32.totalorder %s15, 1
      %p146 = por %p144, %p145
      %p147 = scmp.ne.s32.totalorder %s136, %s137
      %p148 = scmp.eq.s32.totalorder %s15, 0
      %p149 = por %p147, %p148
      %p150 = scmp.ne.s32.totalorder %s136, %s137
      %p151 = scmp.eq.s32.totalorder %s16, 1
      %p152 = por %p150, %p151
      %p154 = scmp.ne.s32.totalorder %s137, %s153
      %p155 = scmp.eq.s32.totalorder %s16, 0
      %p156 = por %p154, %p155
      %p157 = scmp.le.s32.totalorder 1, %s10
      %p158 = scmp.lt.s32.totalorder %s10, 3
      %p159 = pnand %p157, %p158
      %p160 = pneg %p159
      // Predicated region
      $region9: #{scob_forward.43} parent=5 // pred_check
        _
      $region10: #{scob_forward.43} parent=5 // pred_check_branch
        %162 = sbr.rel (%p159) target = $region12
      $region11: #{scob_forward.43} parent=5 // pred_region
        %s163 = ssub.s32 %s10, 1
        // Predicated region
        $region13: #{scob_forward.43} parent=11 // pred_check
          %p164 = pneg %p97
        $region14: #{scob_forward.43} parent=11 // pred_check_branch
          %166 = sbr.rel (%p164) target = $region16
        $region15: #{scob_forward.43} parent=11 // pred_region
          _
        $region16: #{scob_forward.43} parent=11 // pred_fallthru
          _
        // Predicated region
        $region17: #{scob_forward.43} parent=11 // pred_check
          %p167 = pneg %p123
        $region18: #{scob_forward.43} parent=11 // pred_check_branch
          %169 = sbr.rel (%p167) target = $region20
        $region19: #{scob_forward.43} parent=11 // pred_region
          %s170 = smul.u32 4, %s19
          %p171 = scmp.lt.s32.totalorder %s170, 3
          %s172 = scalar_select %p171, %s170, 3
          %s173 = smul.addr %s172, 8
          %s174 = scalar_lea.vmem %s3, %s173
          %s175 = smul.u32 4, %s19
        $region20: #{scob_forward.43} parent=11 // pred_fallthru
          _
      $region12: #{scob_forward.43} parent=5 // pred_fallthru
        _
      %p176 = scmp.lt.s32.totalorder %s10, 2
      // Predicated region
      $region21: #{scob_forward.43} parent=5 // pred_check
        %p177 = pneg %p176
      $region22: #{scob_forward.43} parent=5 // pred_check_branch
        %179 = sbr.rel (%p177) target = $region24
      $region23: #{scob_forward.43} parent=5 // pred_region
        // Predicated region
        $region25: #{scob_forward.43} parent=23 // pred_check
          %p180 = pneg %p44
        $region26: #{scob_forward.43} parent=23 // pred_check_branch
          %182 = sbr.rel (%p180) target = $region28
        $region27: #{scob_forward.43} parent=23 // pred_region
          %s183 = sand.u32 %s34, 1
          %s184 = sand.u32 %s34, 1
          %s185 = smul.addr %s184, 64
          %s186 = scalar_lea.vmem [#allocation3], %s185
          %s187 = smul.u32 4, %s17
          %s188 = smul.u32 4, %s18
          %s189 = smul.addr %s187, 8
          %s190 = sadd.s32 %s188, %s189
          %s191 = smul.addr %s190, 4
          %s192 = scalar_lea.vmem %s0, %s191
          // Predicated region
          $region29: #{scob_forward.43} parent=27 // pred_check
            _
          $region30: #{scob_forward.43} parent=27 // pred_check_branch
            %194 = sbr.rel (0) target = $region32
          $region31: #{scob_forward.43} parent=27 // pred_region
            // Predicated region
            $region33: #{scob_forward.43} parent=31 // pred_check
              _
            $region34: #{scob_forward.43} parent=31 // pred_check_branch
              %196 = sbr.rel (0) target = $region36
            $region35: #{scob_forward.43} parent=31 // pred_region
              loop: start=0, step=1, limit=1
              $region37: #{scob_forward.43} parent=35 // loop_pre_header
                _
              $region38: #{scob_forward.43} parent=35 // loop_header
                %s198 = sphi 0, %s202
                %p199 = scmp.ge.s32.totalorder %s198, 1
                %s203 = sphi %s192, %s192
                %s204 = sphi %s186, %s186
              $region39: #{scob_forward.43} parent=35 // loop_header_branch
                %201 = sbr.rel (%p199) target = $region43
              $region40: #{scob_forward.43} parent=35 // loop_body
                %v205 = vld [vmem:[%s203] sm:$0xff]
                %206 = vst [vmem:[%s204] sm:$0xff] %v205
                %v207 = vld [vmem:[%s203 + $0x8] sm:$0xff]
                %208 = vst [vmem:[%s204 + $0x8] sm:$0xff] %v207
                %v209 = vld [vmem:[%s203 + $0x20] sm:$0xff]
                %210 = vst [vmem:[%s204 + $0x10] sm:$0xff] %v209
                %v211 = vld [vmem:[%s203 + $0x28] sm:$0xff]
                %212 = vst [vmem:[%s204 + $0x18] sm:$0xff] %v211
                %v213 = vld [vmem:[%s203 + $0x40] sm:$0xff]
                %214 = vst [vmem:[%s204 + $0x20] sm:$0xff] %v213
                %v215 = vld [vmem:[%s203 + $0x48] sm:$0xff]
                %216 = vst [vmem:[%s204 + $0x28] sm:$0xff] %v215
                %v217 = vld [vmem:[%s203 + $0x60] sm:$0xff]
                %218 = vst [vmem:[%s204 + $0x30] sm:$0xff] %v217
                %v219 = vld [vmem:[%s203 + $0x68] sm:$0xff]
                %220 = vst [vmem:[%s204 + $0x38] sm:$0xff] %v219
              $region41: #{scob_forward.43} parent=35 // loop_footer
                %s202 = sadd.s32 1, %s198
              $region42: #{scob_forward.43} parent=35 // loop_footer_branch
                %197 = sbr.rel target = $region38
              $region43: #{scob_forward.43} parent=35 // loop_exit
                _
            $region36: #{scob_forward.43} parent=31 // pred_fallthru
              _
            // Predicated region
            $region44: #{scob_forward.43} parent=31 // pred_check
              _
            $region45: #{scob_forward.43} parent=31 // pred_check_branch
              %222 = sbr.rel target = $region47
            $region46: #{scob_forward.43} parent=31 // pred_region
              _
            $region47: #{scob_forward.43} parent=31 // pred_fallthru
              _
          $region32: #{scob_forward.43} parent=27 // pred_fallthru
            _
          %223 = vnop
        $region28: #{scob_forward.43} parent=23 // pred_fallthru
          _
        // Predicated region
        $region48: #{scob_forward.43} parent=23 // pred_check
          %p224 = pneg %p70
        $region49: #{scob_forward.43} parent=23 // pred_check_branch
          %226 = sbr.rel (%p224) target = $region51
        $region50: #{scob_forward.43} parent=23 // pred_region
          %s227 = smul.u32 64, %s18
          %p228 = scmp.lt.s32.totalorder %s227, 127
          %s229 = scalar_select %p228, %s227, 127
          %s230 = smul.addr %s229, 4
          %s231 = scalar_lea.vmem %s1, %s230
          %s232 = smul.u32 64, %s18
        $region51: #{scob_forward.43} parent=23 // pred_fallthru
          _
      $region24: #{scob_forward.43} parent=5 // pred_fallthru
        _
      %p233 = scmp.le.s32.totalorder 1, %s10
      %p234 = scmp.lt.s32.totalorder %s10, 3
      %p235 = pnand %p233, %p234
      %p236 = pneg %p235
      // Predicated region
      $region52: #{scob_forward.43} parent=5 // pred_check
        _
      $region53: #{scob_forward.43} parent=5 // pred_check_branch
        %238 = sbr.rel (%p235) target = $region55
      $region54: #{scob_forward.43} parent=5 // pred_region
        %s239 = ssub.s32 %s10, 1
        %s240 = sand.u32 %s37, 1
        %s241 = sand.u32 %s37, 1
        %s242 = smul.addr %s241, 64
        %s243 = scalar_lea.vmem [#allocation3], %s242
        // Predicated region
        $region56: #{scob_forward.43} parent=54 // pred_check
          %p244 = pneg %p50
        $region57: #{scob_forward.43} parent=54 // pred_check_branch
          %246 = sbr.rel (%p244) target = $region59
        $region58: #{scob_forward.43} parent=54 // pred_region
          _
        $region59: #{scob_forward.43} parent=54 // pred_fallthru
          _
        %s247 = sand.u32 %s37, 1
        %s248 = sand.u32 %s37, 1
        %s249 = smul.addr %s248, 64
        %s250 = scalar_lea.vmem [#allocation3], %s249
        %p251 = pneg %p50
        %p252 = pneg %p47
        %s253 = smul.u32 64, %s20
        %p254 = scmp.lt.s32.totalorder %s253, 127
        %s255 = scalar_select %p254, %s253, 127
        %s256 = smul.addr %s255, 4
        %s257 = scalar_lea.vmem %s1, %s256
        %p258 = pneg %p76
        %p259 = pneg %p73
        %p260 = pneg %p97
        %p261 = pneg %p94
        %s262 = smul.u32 4, %s19
        %p263 = scmp.lt.s32.totalorder %s262, 3
        %s264 = scalar_select %p263, %s262, 3
        %s265 = smul.addr %s264, 8
        %s266 = scalar_lea.vmem %s3, %s265
        %p267 = pneg %p123
        %p268 = pneg %p120
        %p269 = pneg %p149
        %p270 = pneg %p146
        %s271 = smul.u32 4, %s19
        %p272 = scmp.lt.s32.totalorder %s271, 3
        %s273 = scalar_select %p272, %s271, 3
        %s274 = smul.addr %s273, 4
        %s275 = scalar_lea.vmem %s4, %s274
        %s276 = smul.u32 4, %s19
        %s277 = smul.u32 4, %s20
        %s278 = smul.u32 64, %s20
        %p279 = scmp.lt.s32.totalorder %s278, 127
        %s280 = scalar_select %p279, %s278, 127
        %s281 = smul.addr %s280, 4
        %s282 = scalar_lea.vmem %s1, %s281
        %s283 = smul.u32 64, %s20
        %s284 = smul.u32 4, %s19
        %p285 = scmp.lt.s32.totalorder %s284, 3
        %s286 = scalar_select %p285, %s284, 3
        %s287 = smul.addr %s286, 8
        %s288 = scalar_lea.vmem %s3, %s287
        %s289 = smul.u32 4, %s19
        %s290 = smul.u32 4, %s19
        %p291 = scmp.lt.s32.totalorder %s290, 3
        %s292 = scalar_select %p291, %s290, 3
        %s293 = smul.addr %s292, 4
        %s294 = scalar_lea.vmem %s4, %s293
        %s295 = smul.u32 4, %s19
        %v296 = vld [vmem:[%s243] sm:$0xff]
        %v297 = vld [vmem:[%s243 + $0x8] sm:$0xff]
        %v298 = vld [vmem:[%s243 + $0x10] sm:$0xff]
        %v299 = vld [vmem:[%s243 + $0x18] sm:$0xff]
        %v300 = vld [vmem:[%s243 + $0x20] sm:$0xff]
        %v301 = vld [vmem:[%s243 + $0x28] sm:$0xff]
        %v302 = vld [vmem:[%s243 + $0x30] sm:$0xff]
        %v303 = vld [vmem:[%s243 + $0x38] sm:$0xff]
        %v304 = vld [vmem:[%s282] sm:$0xf]
        %v305 = vld [vmem:[%s282 + $0x4] sm:$0xf]
        %v306 = vld [vmem:[%s282 + $0x8] sm:$0xf]
        %v307 = vld [vmem:[%s282 + $0xc] sm:$0xf]
        %v308 = vld [vmem:[%s282 + $0x10] sm:$0xf]
        %v309 = vld [vmem:[%s282 + $0x14] sm:$0xf]
        %v310 = vld [vmem:[%s282 + $0x18] sm:$0xf]
        %v311 = vld [vmem:[%s282 + $0x1c] sm:$0xf]
        %v312 = vld [vmem:[%s282 + $0x20] sm:$0xf]
        %v313 = vld [vmem:[%s282 + $0x24] sm:$0xf]
        %v314 = vld [vmem:[%s282 + $0x28] sm:$0xf]
        %v315 = vld [vmem:[%s282 + $0x2c] sm:$0xf]
        %v316 = vld [vmem:[%s282 + $0x30] sm:$0xf]
        %v317 = vld [vmem:[%s282 + $0x34] sm:$0xf]
        %v318 = vld [vmem:[%s282 + $0x38] sm:$0xf]
        %v319 = vld [vmem:[%s282 + $0x3c] sm:$0xf]
        %v320 = vld [vmem:[%s282 + $0x40] sm:$0xf]
        %v321 = vld [vmem:[%s282 + $0x44] sm:$0xf]
        %v322 = vld [vmem:[%s282 + $0x48] sm:$0xf]
        %v323 = vld [vmem:[%s282 + $0x4c] sm:$0xf]
        %v324 = vld [vmem:[%s282 + $0x50] sm:$0xf]
        %v325 = vld [vmem:[%s282 + $0x54] sm:$0xf]
        %v326 = vld [vmem:[%s282 + $0x58] sm:$0xf]
        %v327 = vld [vmem:[%s282 + $0x5c] sm:$0xf]
        %v328 = vld [vmem:[%s282 + $0x60] sm:$0xf]
        %v329 = vld [vmem:[%s282 + $0x64] sm:$0xf]
        %v330 = vld [vmem:[%s282 + $0x68] sm:$0xf]
        %v331 = vld [vmem:[%s282 + $0x6c] sm:$0xf]
        %v332 = vld [vmem:[%s282 + $0x70] sm:$0xf]
        %v333 = vld [vmem:[%s282 + $0x74] sm:$0xf]
        %v334 = vld [vmem:[%s282 + $0x78] sm:$0xf]
        %v335 = vld [vmem:[%s282 + $0x7c] sm:$0xf]
        %v336 = vld [vmem:[%s282 + $0x80] sm:$0xf]
        %v337 = vld [vmem:[%s282 + $0x84] sm:$0xf]
        %v338 = vld [vmem:[%s282 + $0x88] sm:$0xf]
        %v339 = vld [vmem:[%s282 + $0x8c] sm:$0xf]
        %v340 = vld [vmem:[%s282 + $0x90] sm:$0xf]
        %v341 = vld [vmem:[%s282 + $0x94] sm:$0xf]
        %v342 = vld [vmem:[%s282 + $0x98] sm:$0xf]
        %v343 = vld [vmem:[%s282 + $0x9c] sm:$0xf]
        %v344 = vld [vmem:[%s282 + $0xa0] sm:$0xf]
        %v345 = vld [vmem:[%s282 + $0xa4] sm:$0xf]
        %v346 = vld [vmem:[%s282 + $0xa8] sm:$0xf]
        %v347 = vld [vmem:[%s282 + $0xac] sm:$0xf]
        %v348 = vld [vmem:[%s282 + $0xb0] sm:$0xf]
        %v349 = vld [vmem:[%s282 + $0xb4] sm:$0xf]
        %v350 = vld [vmem:[%s282 + $0xb8] sm:$0xf]
        %v351 = vld [vmem:[%s282 + $0xbc] sm:$0xf]
        %v352 = vld [vmem:[%s282 + $0xc0] sm:$0xf]
        %v353 = vld [vmem:[%s282 + $0xc4] sm:$0xf]
        %v354 = vld [vmem:[%s282 + $0xc8] sm:$0xf]
        %v355 = vld [vmem:[%s282 + $0xcc] sm:$0xf]
        %v356 = vld [vmem:[%s282 + $0xd0] sm:$0xf]
        %v357 = vld [vmem:[%s282 + $0xd4] sm:$0xf]
        %v358 = vld [vmem:[%s282 + $0xd8] sm:$0xf]
        %v359 = vld [vmem:[%s282 + $0xdc] sm:$0xf]
        %v360 = vld [vmem:[%s282 + $0xe0] sm:$0xf]
        %v361 = vld [vmem:[%s282 + $0xe4] sm:$0xf]
        %v362 = vld [vmem:[%s282 + $0xe8] sm:$0xf]
        %v363 = vld [vmem:[%s282 + $0xec] sm:$0xf]
        %v364 = vld [vmem:[%s282 + $0xf0] sm:$0xf]
        %v365 = vld [vmem:[%s282 + $0xf4] sm:$0xf]
        %v366 = vld [vmem:[%s282 + $0xf8] sm:$0xf]
        %v367 = vld [vmem:[%s282 + $0xfc] sm:$0xf]
        %v376 = vunpack.c.l.b16 %v296
        %v377 = vunpack.c.h.b16 %v296
        %v378 = vunpack.c.l.b16 %v297
        %v379 = vunpack.c.h.b16 %v297
        %v380 = vunpack.c.l.b16 %v298
        %v381 = vunpack.c.h.b16 %v298
        %v382 = vunpack.c.l.b16 %v299
        %v383 = vunpack.c.h.b16 %v299
        %v384 = vunpack.c.l.b16 %v300
        %v385 = vunpack.c.h.b16 %v300
        %v386 = vunpack.c.l.b16 %v301
        %v387 = vunpack.c.h.b16 %v301
        %v388 = vunpack.c.l.b16 %v302
        %v389 = vunpack.c.h.b16 %v302
        %v390 = vunpack.c.l.b16 %v303
        %v391 = vunpack.c.h.b16 %v303
        %v392 = vpack.c.b16 %v380, %v376
        %v393 = vpack.c.b16 %v381, %v377
        %v394 = vpack.c.b16 %v382, %v378
        %v395 = vpack.c.b16 %v383, %v379
        %v396 = vpack.c.b16 %v388, %v384
        %v397 = vpack.c.b16 %v389, %v385
        %v398 = vpack.c.b16 %v390, %v386
        %v399 = vpack.c.b16 %v391, %v387
        %v472 = vunpack.c.l.b16 %v304
        %v473 = vunpack.c.l.b16 %v305
        %v474 = vunpack.c.l.b16 %v306
        %v475 = vunpack.c.l.b16 %v307
        %v476 = vunpack.c.l.b16 %v308
        %v477 = vunpack.c.l.b16 %v309
        %v478 = vunpack.c.l.b16 %v310
        %v479 = vunpack.c.l.b16 %v311
        %v480 = vunpack.c.l.b16 %v312
        %v481 = vunpack.c.l.b16 %v313
        %v482 = vunpack.c.l.b16 %v314
        %v483 = vunpack.c.l.b16 %v315
        %v484 = vunpack.c.l.b16 %v316
        %v485 = vunpack.c.l.b16 %v317
        %v486 = vunpack.c.l.b16 %v318
        %v487 = vunpack.c.l.b16 %v319
        %v488 = vunpack.c.l.b16 %v320
        %v489 = vunpack.c.l.b16 %v321
        %v490 = vunpack.c.l.b16 %v322
        %v491 = vunpack.c.l.b16 %v323
        %v492 = vunpack.c.l.b16 %v324
        %v493 = vunpack.c.l.b16 %v325
        %v494 = vunpack.c.l.b16 %v326
        %v495 = vunpack.c.l.b16 %v327
        %v496 = vunpack.c.l.b16 %v328
        %v497 = vunpack.c.l.b16 %v329
        %v498 = vunpack.c.l.b16 %v330
        %v499 = vunpack.c.l.b16 %v331
        %v500 = vunpack.c.l.b16 %v332
        %v501 = vunpack.c.l.b16 %v333
        %v502 = vunpack.c.l.b16 %v334
        %v503 = vunpack.c.l.b16 %v335
        %v504 = vunpack.c.l.b16 %v336
        %v505 = vunpack.c.l.b16 %v337
        %v506 = vunpack.c.l.b16 %v338
        %v507 = vunpack.c.l.b16 %v339
        %v508 = vunpack.c.l.b16 %v340
        %v509 = vunpack.c.l.b16 %v341
        %v510 = vunpack.c.l.b16 %v342
        %v511 = vunpack.c.l.b16 %v343
        %v512 = vunpack.c.l.b16 %v344
        %v513 = vunpack.c.l.b16 %v345
        %v514 = vunpack.c.l.b16 %v346
        %v515 = vunpack.c.l.b16 %v347
        %v516 = vunpack.c.l.b16 %v348
        %v517 = vunpack.c.l.b16 %v349
        %v518 = vunpack.c.l.b16 %v350
        %v519 = vunpack.c.l.b16 %v351
        %v520 = vunpack.c.l.b16 %v352
        %v521 = vunpack.c.l.b16 %v353
        %v522 = vunpack.c.l.b16 %v354
        %v523 = vunpack.c.l.b16 %v355
        %v524 = vunpack.c.l.b16 %v356
        %v525 = vunpack.c.l.b16 %v357
        %v526 = vunpack.c.l.b16 %v358
        %v527 = vunpack.c.l.b16 %v359
        %v528 = vunpack.c.l.b16 %v360
        %v529 = vunpack.c.l.b16 %v361
        %v530 = vunpack.c.l.b16 %v362
        %v531 = vunpack.c.l.b16 %v363
        %v532 = vunpack.c.l.b16 %v364
        %v533 = vunpack.c.l.b16 %v365
        %v534 = vunpack.c.l.b16 %v366
        %v535 = vunpack.c.l.b16 %v367
        %v536 = vpack.c.b16 %v473, %v472
        %v537 = vpack.c.b16 %v475, %v474
        %v538 = vpack.c.b16 %v477, %v476
        %v539 = vpack.c.b16 %v479, %v478
        %v540 = vpack.c.b16 %v481, %v480
        %v541 = vpack.c.b16 %v483, %v482
        %v542 = vpack.c.b16 %v485, %v484
        %v543 = vpack.c.b16 %v487, %v486
        %v544 = vpack.c.b16 %v489, %v488
        %v545 = vpack.c.b16 %v491, %v490
        %v546 = vpack.c.b16 %v493, %v492
        %v547 = vpack.c.b16 %v495, %v494
        %v548 = vpack.c.b16 %v497, %v496
        %v549 = vpack.c.b16 %v499, %v498
        %v550 = vpack.c.b16 %v501, %v500
        %v551 = vpack.c.b16 %v503, %v502
        %v552 = vpack.c.b16 %v505, %v504
        %v553 = vpack.c.b16 %v507, %v506
        %v554 = vpack.c.b16 %v509, %v508
        %v555 = vpack.c.b16 %v511, %v510
        %v556 = vpack.c.b16 %v513, %v512
        %v557 = vpack.c.b16 %v515, %v514
        %v558 = vpack.c.b16 %v517, %v516
        %v559 = vpack.c.b16 %v519, %v518
        %v560 = vpack.c.b16 %v521, %v520
        %v561 = vpack.c.b16 %v523, %v522
        %v562 = vpack.c.b16 %v525, %v524
        %v563 = vpack.c.b16 %v527, %v526
        %v564 = vpack.c.b16 %v529, %v528
        %v565 = vpack.c.b16 %v531, %v530
        %v566 = vpack.c.b16 %v533, %v532
        %v567 = vpack.c.b16 %v535, %v534
        %600 = vmatpush.bf16.msra.mxu0 %v543
        %601 = vmatpush.bf16.msra.mxu0 %v542
        %602 = vmatpush.bf16.msra.mxu0 %v541
        %603 = vmatpush.bf16.msra.mxu0 %v540
        %604 = vmatpush.bf16.msra.mxu0 %v539
        %605 = vmatpush.bf16.msra.mxu0 %v538
        %606 = vmatpush.bf16.msra.mxu0 %v537
        %607 = vmatpush.bf16.msra.mxu0 %v536
        %608 = vmatmul.bf16.gmra.mxu0 %v392
        %v609 = vpop.f32.mrf.mxu0
        %v610 = vadd.f32 0.0, %v609
        %v611 = vpop.f32.mrf.mxu0
        %v612 = vadd.f32 0.0, %v611
        %613 = vmatmul.bf16.gmra.mxu0 %v396
        %v614 = vpop.f32.mrf.mxu0
        %v615 = vadd.f32 0.0, %v614
        %v616 = vpop.f32.mrf.mxu0
        %v617 = vadd.f32 0.0, %v616
        %618 = vdwg.mxu0
        %619 = vmatpush.bf16.msra.mxu0 %v551
        %620 = vmatpush.bf16.msra.mxu0 %v550
        %621 = vmatpush.bf16.msra.mxu0 %v549
        %622 = vmatpush.bf16.msra.mxu0 %v548
        %623 = vmatpush.bf16.msra.mxu0 %v547
        %624 = vmatpush.bf16.msra.mxu0 %v546
        %625 = vmatpush.bf16.msra.mxu0 %v545
        %626 = vmatpush.bf16.msra.mxu0 %v544
        %627 = vmatmul.bf16.gmra.mxu0 %v393
        %v628 = vpop.f32.mrf.mxu0
        %v629 = vadd.f32 %v610, %v628
        %v630 = vpop.f32.mrf.mxu0
        %v631 = vadd.f32 %v612, %v630
        %632 = vmatmul.bf16.gmra.mxu0 %v397
        %v633 = vpop.f32.mrf.mxu0
        %v634 = vadd.f32 %v615, %v633
        %v635 = vpop.f32.mrf.mxu0
        %v636 = vadd.f32 %v617, %v635
        %637 = vdwg.mxu0
        %638 = vmatpush.bf16.msra.mxu0 %v559
        %639 = vmatpush.bf16.msra.mxu0 %v558
        %640 = vmatpush.bf16.msra.mxu0 %v557
        %641 = vmatpush.bf16.msra.mxu0 %v556
        %642 = vmatpush.bf16.msra.mxu0 %v555
        %643 = vmatpush.bf16.msra.mxu0 %v554
        %644 = vmatpush.bf16.msra.mxu0 %v553
        %645 = vmatpush.bf16.msra.mxu0 %v552
        %646 = vmatmul.bf16.gmra.mxu0 %v394
        %v647 = vpop.f32.mrf.mxu0
        %v648 = vadd.f32 %v629, %v647
        %v649 = vpop.f32.mrf.mxu0
        %v650 = vadd.f32 %v631, %v649
        %651 = vmatmul.bf16.gmra.mxu0 %v398
        %v652 = vpop.f32.mrf.mxu0
        %v653 = vadd.f32 %v634, %v652
        %v654 = vpop.f32.mrf.mxu0
        %v655 = vadd.f32 %v636, %v654
        %656 = vdwg.mxu0
        %657 = vmatpush.bf16.msra.mxu0 %v567
        %658 = vmatpush.bf16.msra.mxu0 %v566
        %659 = vmatpush.bf16.msra.mxu0 %v565
        %660 = vmatpush.bf16.msra.mxu0 %v564
        %661 = vmatpush.bf16.msra.mxu0 %v563
        %662 = vmatpush.bf16.msra.mxu0 %v562
        %663 = vmatpush.bf16.msra.mxu0 %v561
        %664 = vmatpush.bf16.msra.mxu0 %v560
        %665 = vmatmul.bf16.gmra.mxu0 %v395
        %v666 = vpop.f32.mrf.mxu0
        %v667 = vadd.f32 %v648, %v666
        %v668 = vpop.f32.mrf.mxu0
        %v669 = vadd.f32 %v650, %v668
        %670 = vmatmul.bf16.gmra.mxu0 %v399
        %v671 = vpop.f32.mrf.mxu0
        %v672 = vadd.f32 %v653, %v671
        %v673 = vpop.f32.mrf.mxu0
        %v674 = vadd.f32 %v655, %v673
        %675 = vdwg.mxu0
        %p676 = scmp.eq.s32.totalorder %s20, 0
        // Predicated region
        $region60: #{scob_forward.43} parent=54 // pred_check
          %p677 = pneg %p676
        $region61: #{scob_forward.43} parent=54 // pred_check_branch
          %679 = sbr.rel (%p677) target = $region63
        $region62: #{scob_forward.43} parent=54 // pred_region
          %680 = vst [vmem:[#allocation2] sm:$0xff] 0.0
          %681 = vst [vmem:[#allocation2 + $0x8] sm:$0xff] 0.0
          %682 = vst [vmem:[#allocation2 + $0x10] sm:$0xff] 0.0
          %683 = vst [vmem:[#allocation2 + $0x18] sm:$0xff] 0.0
        $region63: #{scob_forward.43} parent=54 // pred_fallthru
          _
        %v684 = vld [vmem:[#allocation2] sm:$0xff]
        %v685 = vld [vmem:[#allocation2 + $0x8] sm:$0xff]
        %v686 = vld [vmem:[#allocation2 + $0x10] sm:$0xff]
        %v687 = vld [vmem:[#allocation2 + $0x18] sm:$0xff]
        %v688 = vadd.f32 %v684, %v667
        %v689 = vadd.f32 %v685, %v669
        %v690 = vadd.f32 %v686, %v672
        %v691 = vadd.f32 %v687, %v674
        %692 = vst [vmem:[#allocation2] sm:$0xff] %v688
        %693 = vst [vmem:[#allocation2 + $0x8] sm:$0xff] %v689
        %694 = vst [vmem:[#allocation2 + $0x10] sm:$0xff] %v690
        %695 = vst [vmem:[#allocation2 + $0x18] sm:$0xff] %v691
        %p696 = scmp.eq.s32.totalorder %s20, 1
        // Predicated region
        $region64: #{scob_forward.43} parent=54 // pred_check
          %p697 = pneg %p696
        $region65: #{scob_forward.43} parent=54 // pred_check_branch
          %699 = sbr.rel (%p697) target = $region67
        $region66: #{scob_forward.43} parent=54 // pred_region
          %v700 = vld [vmem:[#allocation2] sm:$0xff]
          %v701 = vld [vmem:[#allocation2 + $0x8] sm:$0xff]
          %v702 = vld [vmem:[#allocation2 + $0x10] sm:$0xff]
          %v703 = vld [vmem:[#allocation2 + $0x18] sm:$0xff]
          %v704 = vld [vmem:[%s2] sm:$0x1]
          %v706 = vperm.slane %v704, 0
          %v708 = vadd.f32 %v700, %v706
          %v709 = vadd.f32 %v701, %v706
          %v710 = vadd.f32 %v702, %v706
          %v711 = vadd.f32 %v703, %v706
          %v712 = vld [vmem:[%s288] sm:$0xff]
          %v713 = vld [vmem:[%s288 + $0x8] sm:$0xff]
          %v714 = vld [vmem:[%s288 + $0x10] sm:$0xff]
          %v715 = vld [vmem:[%s288 + $0x18] sm:$0xff]
          %v716 = vadd.f32 %v708, %v712
          %v717 = vadd.f32 %v709, %v713
          %v718 = vadd.f32 %v710, %v714
          %v719 = vadd.f32 %v711, %v715
          %v720 = vpack.c.bf16 %v716, %v716
          %v721 = vpack.c.bf16 %v717, %v717
          %v722 = vpack.c.bf16 %v718, %v718
          %v723 = vpack.c.bf16 %v719, %v719
          %724 = vst [vmem:[%s294] sm:$0xf] %v720
          %725 = vst [vmem:[%s294 + $0x4] sm:$0xf] %v721
          %726 = vst [vmem:[%s294 + $0x8] sm:$0xf] %v722
          %727 = vst [vmem:[%s294 + $0xc] sm:$0xf] %v723
        $region67: #{scob_forward.43} parent=54 // pred_fallthru
          _
        %s728 = smul.u32 4, %s19
        %p729 = scmp.lt.s32.totalorder %s728, 3
        %s730 = scalar_select %p729, %s728, 3
        %s731 = smul.addr %s730, 4
        %s732 = scalar_lea.vmem %s4, %s731
        // Predicated region
        $region68: #{scob_forward.43} parent=54 // pred_check
          %p733 = pneg %p146
        $region69: #{scob_forward.43} parent=54 // pred_check_branch
          %735 = sbr.rel (%p733) target = $region71
        $region70: #{scob_forward.43} parent=54 // pred_region
          %s736 = smul.u32 4, %s19
        $region71: #{scob_forward.43} parent=54 // pred_fallthru
          _
        // Predicated region
        $region72: #{scob_forward.43} parent=54 // pred_check
          %p737 = pneg %p146
        $region73: #{scob_forward.43} parent=54 // pred_check_branch
          %739 = sbr.rel (%p737) target = $region75
        $region74: #{scob_forward.43} parent=54 // pred_region
          %s740 = smul.u32 4, %s19
          %p741 = scmp.lt.s32.totalorder %s740, 3
          %s742 = scalar_select %p741, %s740, 3
          %s743 = smul.addr %s742, 4
          %s744 = scalar_lea.vmem %s4, %s743
        $region75: #{scob_forward.43} parent=54 // pred_fallthru
          _
      $region55: #{scob_forward.43} parent=5 // pred_fallthru
        _
      %p745 = scmp.le.s32.totalorder 2, %s10
      // Predicated region
      $region76: #{scob_forward.43} parent=5 // pred_check
        %p746 = pneg %p745
      $region77: #{scob_forward.43} parent=5 // pred_check_branch
        %748 = sbr.rel (%p746) target = $region79
      $region78: #{scob_forward.43} parent=5 // pred_region
        %s749 = ssub.s32 %s10, 2
      $region79: #{scob_forward.43} parent=5 // pred_fallthru
        _
    $region6: #{scob_forward.43} parent=1 // loop_footer
      %s14 = sadd.s32 1, %s10
    $region7: #{scob_forward.43} parent=1 // loop_footer_branch
      %9 = sbr.rel target = $region3
    $region8: #{scob_forward.43} parent=1 // loop_exit
      _

// kernel: scob_forward.44
$region0: #{scob_forward.44}
  #allocation0 [shape = 'u32[]', space=smem, size = 0x4, offset = 0x4, fixed_abs, tag = 'smem constant byte address 0x4 - core index']
  #allocation1 [shape = 'u32[72,128]{1,0:T(1,128)}', space=vmem, size = 0x9000, scoped, tag = 'internal scratch']
  %s0 = inlined_call_operand.vmem [shape: bf16[32,128], index: 0, kind: input, shape index: {}]
  %s1 = inlined_call_operand.vmem [shape: bf16[128,128], index: 1, kind: input, shape index: {}]
  %s2 = inlined_call_operand.vmem [shape: f32[1,128], index: 2, kind: input, shape index: {}]
  %s3 = inlined_call_operand.vmem [shape: bf16[32,128], index: 3, kind: output, shape index: {}]
  %s4 = sld [smem:[#allocation0]]
  $region22: #{scob_forward.44} parent=0
    _
  %s6 = ssub.s32 1, %s4
  %s7 = scalar_select 0, %s6, %s4
  // Predicated region
  $region2: #{scob_forward.44} parent=0 // pred_check
    _
  $region3: #{scob_forward.44} parent=0 // pred_check_branch
    %9 = sbr.rel (0) target = $region5
  $region4: #{scob_forward.44} parent=0 // pred_region
    _
  $region5: #{scob_forward.44} parent=0 // pred_fallthru
    _
  // Predicated region
  $region6: #{scob_forward.44} parent=0 // pred_check
    _
  $region7: #{scob_forward.44} parent=0 // pred_check_branch
    %11 = sbr.rel (0) target = $region9
  $region8: #{scob_forward.44} parent=0 // pred_region
    _
  $region9: #{scob_forward.44} parent=0 // pred_fallthru
    _
  // Predicated region
  $region10: #{scob_forward.44} parent=0 // pred_check
    _
  $region11: #{scob_forward.44} parent=0 // pred_check_branch
    %13 = sbr.rel (0) target = $region13
  $region12: #{scob_forward.44} parent=0 // pred_region
    _
  $region13: #{scob_forward.44} parent=0 // pred_fallthru
    _
  %v14 = vld [vmem:[%s0] sm:$0xf]
  %v15 = vld [vmem:[%s0 + $0x4] sm:$0xf]
  %v16 = vld [vmem:[%s0 + $0x8] sm:$0xf]
  %v17 = vld [vmem:[%s0 + $0xc] sm:$0xf]
  %v18 = vld [vmem:[%s1] sm:$0xf]
  %v19 = vld [vmem:[%s1 + $0x4] sm:$0xf]
  %v20 = vld [vmem:[%s1 + $0x8] sm:$0xf]
  %v21 = vld [vmem:[%s1 + $0xc] sm:$0xf]
  %v22 = vld [vmem:[%s1 + $0x10] sm:$0xf]
  %v23 = vld [vmem:[%s1 + $0x14] sm:$0xf]
  %v24 = vld [vmem:[%s1 + $0x18] sm:$0xf]
  %v25 = vld [vmem:[%s1 + $0x1c] sm:$0xf]
  %v26 = vld [vmem:[%s1 + $0x20] sm:$0xf]
  %v27 = vld [vmem:[%s1 + $0x24] sm:$0xf]
  %v28 = vld [vmem:[%s1 + $0x28] sm:$0xf]
  %v29 = vld [vmem:[%s1 + $0x2c] sm:$0xf]
  %v30 = vld [vmem:[%s1 + $0x30] sm:$0xf]
  %v31 = vld [vmem:[%s1 + $0x34] sm:$0xf]
  %v32 = vld [vmem:[%s1 + $0x38] sm:$0xf]
  %v33 = vld [vmem:[%s1 + $0x3c] sm:$0xf]
  %v34 = vld [vmem:[%s2] sm:$0x1]
  %v36 = vperm.slane %v34, 0
  %v42 = vunpack.c.l.b16 %v14
  %v43 = vunpack.c.l.b16 %v15
  %v44 = vunpack.c.l.b16 %v16
  %v45 = vunpack.c.l.b16 %v17
  %v46 = vpack.c.b16 %v43, %v42
  %v47 = vpack.c.b16 %v45, %v44
  %v66 = vunpack.c.l.b16 %v18
  %v67 = vunpack.c.l.b16 %v19
  %v68 = vunpack.c.l.b16 %v20
  %v69 = vunpack.c.l.b16 %v21
  %v70 = vunpack.c.l.b16 %v22
  %v71 = vunpack.c.l.b16 %v23
  %v72 = vunpack.c.l.b16 %v24
  %v73 = vunpack.c.l.b16 %v25
  %v74 = vunpack.c.l.b16 %v26
  %v75 = vunpack.c.l.b16 %v27
  %v76 = vunpack.c.l.b16 %v28
  %v77 = vunpack.c.l.b16 %v29
  %v78 = vunpack.c.l.b16 %v30
  %v79 = vunpack.c.l.b16 %v31
  %v80 = vunpack.c.l.b16 %v32
  %v81 = vunpack.c.l.b16 %v33
  %v82 = vpack.c.b16 %v67, %v66
  %v83 = vpack.c.b16 %v69, %v68
  %v84 = vpack.c.b16 %v71, %v70
  %v85 = vpack.c.b16 %v73, %v72
  %v86 = vpack.c.b16 %v75, %v74
  %v87 = vpack.c.b16 %v77, %v76
  %v88 = vpack.c.b16 %v79, %v78
  %v89 = vpack.c.b16 %v81, %v80
  %98 = vmatpush.bf16.msra.mxu0 %v89
  %99 = vmatpush.bf16.msra.mxu0 %v88
  %100 = vmatpush.bf16.msra.mxu0 %v87
  %101 = vmatpush.bf16.msra.mxu0 %v86
  %102 = vmatpush.bf16.msra.mxu0 %v85
  %103 = vmatpush.bf16.msra.mxu0 %v84
  %104 = vmatpush.bf16.msra.mxu0 %v83
  %105 = vmatpush.bf16.msra.mxu0 %v82
  %106 = vmatmul.bf16.gmra.mxu0 %v46
  %v107 = vpop.f32.mrf.mxu0
  %v108 = vadd.f32 %v36, %v107
  %v109 = vpop.f32.mrf.mxu0
  %v110 = vadd.f32 %v36, %v109
  %111 = vmatmul.bf16.gmra.mxu0 %v47
  %v112 = vpop.f32.mrf.mxu0
  %v113 = vadd.f32 %v36, %v112
  %v114 = vpop.f32.mrf.mxu0
  %v115 = vadd.f32 %v36, %v114
  %116 = vdwg.mxu0
  %v117 = vpack.c.bf16 %v108, %v108
  %v118 = vpack.c.bf16 %v110, %v110
  %v119 = vpack.c.bf16 %v113, %v113
  %v120 = vpack.c.bf16 %v115, %v115
  %121 = vst [vmem:[%s3] sm:$0xf] %v117
  %122 = vst [vmem:[%s3 + $0x4] sm:$0xf] %v118
  %123 = vst [vmem:[%s3 + $0x8] sm:$0xf] %v119
  %124 = vst [vmem:[%s3 + $0xc] sm:$0xf] %v120
  // Predicated region
  $region14: #{scob_forward.44} parent=0 // pred_check
    _
  $region15: #{scob_forward.44} parent=0 // pred_check_branch
    %126 = sbr.rel (0) target = $region17
  $region16: #{scob_forward.44} parent=0 // pred_region
    _
  $region17: #{scob_forward.44} parent=0 // pred_fallthru
    _
  // Predicated region
  $region18: #{scob_forward.44} parent=0 // pred_check
    _
  $region19: #{scob_forward.44} parent=0 // pred_check_branch
    %128 = sbr.rel (0) target = $region21
  $region20: #{scob_forward.44} parent=0 // pred_region
    _
  $region21: #{scob_forward.44} parent=0 // pred_fallthru
    _

// kernel: scob_forward.45
$region0: #{scob_forward.45}
  #allocation0 [shape = 'u32[]', space=smem, size = 0x4, offset = 0x4, fixed_abs, tag = 'smem constant byte address 0x4 - core index']
  #allocation1 [shape = 'u32[72,128]{1,0:T(1,128)}', space=vmem, size = 0x9000, scoped, tag = 'internal scratch']
  %s0 = inlined_call_operand.vmem [shape: bf16[16,3,16,2], index: 0, kind: input, shape index: {}]
  %s1 = inlined_call_operand.vmem [shape: bf16[16,16,2], index: 1, kind: output, shape index: {}]
  %s2 = sld [smem:[#allocation0]]
  $region37: #{scob_forward.45} parent=0
    _
  %s4 = ssub.s32 1, %s2
  %s5 = scalar_select 0, %s4, %s2
  loop: start=0, step=1, limit=18
  $region2: #{scob_forward.45} parent=0 // loop_pre_header
    _
  $region3: #{scob_forward.45} parent=0 // loop_header
    %s7 = sphi 0, %s11
    %p8 = scmp.ge.s32.totalorder %s7, 18
    %s17 = sphi 0, %s19
    %s20 = sphi 0, %s17
    %s21 = sphi 0, %s20
    %s37 = sphi 0, %s21
    %s43 = sphi 0, %s45
    %s46 = sphi 0, %s43
    %s47 = sphi 0, %s46
    %s63 = sphi 0, %s47
  $region4: #{scob_forward.45} parent=0 // loop_header_branch
    %10 = sbr.rel (%p8) target = $region8
  $region5: #{scob_forward.45} parent=0 // loop_body
    %s12 = ssub.s32 %s7, 1
    %s13 = ssub.s32 %s7, 2
    %s14 = sadd.s32 %s7, 1
    %s15 = ssub.s32 %s7, %s14
    %p16 = scmp.eq.s32.totalorder %s15, 0
    %s18 = sadd.s32 %s17, 1
    %s19 = scalar_select %p16, %s17, %s18
    %p22 = pneg %p16
    %p23 = scmp.eq.s32.totalorder %s7, 15
    %p24 = por %p22, %p23
    %p25 = scmp.ne.s32.totalorder %s17, %s20
    %p26 = scmp.eq.s32.totalorder %s7, 0
    %p27 = por %p25, %p26
    %p28 = scmp.ne.s32.totalorder %s17, %s20
    %p29 = scmp.eq.s32.totalorder %s12, 15
    %p30 = por %p28, %p29
    %p31 = scmp.ne.s32.totalorder %s20, %s21
    %p32 = scmp.eq.s32.totalorder %s12, 0
    %p33 = por %p31, %p32
    %p34 = scmp.ne.s32.totalorder %s20, %s21
    %p35 = scmp.eq.s32.totalorder %s13, 15
    %p36 = por %p34, %p35
    %p38 = scmp.ne.s32.totalorder %s21, %s37
    %p39 = scmp.eq.s32.totalorder %s13, 0
    %p40 = por %p38, %p39
    %s41 = ssub.s32 %s7, %s14
    %p42 = scmp.eq.s32.totalorder %s41, 0
    %s44 = sadd.s32 %s43, 1
    %s45 = scalar_select %p42, %s43, %s44
    %p48 = pneg %p42
    %p49 = scmp.eq.s32.totalorder %s7, 15
    %p50 = por %p48, %p49
    %p51 = scmp.ne.s32.totalorder %s43, %s46
    %p52 = scmp.eq.s32.totalorder %s7, 0
    %p53 = por %p51, %p52
    %p54 = scmp.ne.s32.totalorder %s43, %s46
    %p55 = scmp.eq.s32.totalorder %s12, 15
    %p56 = por %p54, %p55
    %p57 = scmp.ne.s32.totalorder %s46, %s47
    %p58 = scmp.eq.s32.totalorder %s12, 0
    %p59 = por %p57, %p58
    %p60 = scmp.ne.s32.totalorder %s46, %s47
    %p61 = scmp.eq.s32.totalorder %s13, 15
    %p62 = por %p60, %p61
    %p64 = scmp.ne.s32.totalorder %s47, %s63
    %p65 = scmp.eq.s32.totalorder %s13, 0
    %p66 = por %p64, %p65
    %p67 = scmp.le.s32.totalorder 1, %s7
    %p68 = scmp.lt.s32.totalorder %s7, 17
    %p69 = pnand %p67, %p68
    %p70 = pneg %p69
    // Predicated region
    $region9: #{scob_forward.45} parent=5 // pred_check
      _
    $region10: #{scob_forward.45} parent=5 // pred_check_branch
      %72 = sbr.rel (%p69) target = $region12
    $region11: #{scob_forward.45} parent=5 // pred_region
      %s73 = ssub.s32 %s7, 1
    $region12: #{scob_forward.45} parent=5 // pred_fallthru
      _
    %p74 = scmp.lt.s32.totalorder %s7, 16
    // Predicated region
    $region13: #{scob_forward.45} parent=5 // pred_check
      %p75 = pneg %p74
    $region14: #{scob_forward.45} parent=5 // pred_check_branch
      %77 = sbr.rel (%p75) target = $region16
    $region15: #{scob_forward.45} parent=5 // pred_region
      // Predicated region
      $region17: #{scob_forward.45} parent=15 // pred_check
        %p78 = pneg %p27
      $region18: #{scob_forward.45} parent=15 // pred_check_branch
        %80 = sbr.rel (%p78) target = $region20
      $region19: #{scob_forward.45} parent=15 // pred_region
        %p81 = scmp.lt.s32.totalorder %s7, 15
        %s82 = scalar_select %p81, %s7, 15
        %s83 = smul.addr %s82, 6
        %s84 = smul.addr %s83, 4
        %s85 = scalar_lea.vmem %s0, %s84
      $region20: #{scob_forward.45} parent=15 // pred_fallthru
        _
    $region16: #{scob_forward.45} parent=5 // pred_fallthru
      _
    %p86 = scmp.le.s32.totalorder 1, %s7
    %p87 = scmp.lt.s32.totalorder %s7, 17
    %p88 = pnand %p86, %p87
    %p89 = pneg %p88
    // Predicated region
    $region21: #{scob_forward.45} parent=5 // pred_check
      _
    $region22: #{scob_forward.45} parent=5 // pred_check_branch
      %91 = sbr.rel (%p88) target = $region24
    $region23: #{scob_forward.45} parent=5 // pred_region
      %s92 = ssub.s32 %s7, 1
      %p93 = scmp.lt.s32.totalorder %s12, 15
      %s94 = scalar_select %p93, %s12, 15
      %s95 = smul.addr %s94, 6
      %s96 = smul.addr %s95, 4
      %s97 = scalar_lea.vmem %s0, %s96
      %p98 = pneg %p33
      %p99 = pneg %p30
      %p100 = pneg %p59
      %p101 = pneg %p56
      %p102 = scmp.lt.s32.totalorder %s12, 15
      %s103 = scalar_select %p102, %s12, 15
      %s104 = smul.addr %s103, 2
      %s105 = smul.addr %s104, 4
      %s106 = scalar_lea.vmem %s1, %s105
      %p107 = scmp.lt.s32.totalorder %s12, 15
      %s108 = scalar_select %p107, %s12, 15
      %s109 = smul.addr %s108, 6
      %s110 = smul.addr %s109, 4
      %s111 = scalar_lea.vmem %s0, %s110
      %p112 = scmp.lt.s32.totalorder %s12, 15
      %s113 = scalar_select %p112, %s12, 15
      %s114 = smul.addr %s113, 2
      %s115 = smul.addr %s114, 4
      %s116 = scalar_lea.vmem %s1, %s115
      %v118 = vld [vmem:[%s111] sm:$0xf]
      %v119 = vld [vmem:[%s111 + $0x4] sm:$0xf]
      %s120 = scalar_lea.vmem %s111, 8
      %v121 = vld [vmem:[%s120] sm:$0xf]
      %v122 = vld [vmem:[%s120 + $0x4] sm:$0xf]
      %s123 = scalar_lea.vmem %s111, 16
      %v124 = vld [vmem:[%s123] sm:$0xf]
      %v125 = vld [vmem:[%s123 + $0x4] sm:$0xf]
      %v128 = vunpack.c.l.b16 %v118
      %v129 = vunpack.c.l.b16 %v119
      %v130 = vpack.c.b16 %v129, %v128
      %v133 = vunpack.c.l.b16 %v121
      %v134 = vunpack.c.l.b16 %v122
      %v135 = vpack.c.b16 %v134, %v133
      %vm136 = vcmask 15360
      %v138 = vsel %vm136, %v130, 0
      %v141 = vsel %vm136, %v135, 0
      %143 = vmatpush.bf16.xpose.msra.mxu0 0
      %144 = vmatpush.bf16.xpose.msra.mxu0 0
      %145 = vmatpush.bf16.xpose.msra.mxu0 0
      %146 = vmatpush.bf16.xpose.msra.mxu0 0
      %147 = vmatpush.bf16.xpose.msra.mxu0 0
      %148 = vmatpush.bf16.xpose.msra.mxu0 0
      %149 = vmatpush.bf16.xpose.msra.mxu0 0
      %150 = vmatpush.bf16.xpose.msra.mxu0 %v141
      %151 = vmatmul.bf16.gmra.mxu0 %v138
      %v152 = vpop.f32.mrf.mxu0
      %v153 = vadd.f32 0.0, %v152
      %v154 = vpop.f32.mrf.mxu0
      %v155 = vadd.f32 0.0, %v154
      %156 = vdwg.mxu0
      %vm157 = vcmask 130048
      %v158 = vsel %vm157, %v153, -inf
      %159 = vmax.xlane.f32.xlu0 %v158
      %v160 = vpop.xlane.xlu0 %159
      %v161 = vsel %vm157, %v155, -inf
      %162 = vmax.xlane.f32.xlu0 %v161
      %v163 = vpop.xlane.xlu0 %162
      %v164 = vsub.f32 %v153, %v160
      %v165 = vsub.f32 %v155, %v163
      %v166 = vmul.f32 %v164, 1.442695
      %v167 = vpow.pop %v166
      %v168 = vmul.f32 %v165, 1.442695
      %v169 = vpow.pop %v168
      %v170 = vsel %vm157, %v167, 0.0
      %171 = vadd.xlane.f32.xlu0 %v170
      %v172 = vpop.xlane.xlu0 %171
      %v173 = vsel %vm157, %v169, 0.0
      %174 = vadd.xlane.f32.xlu0 %v173
      %v175 = vpop.xlane.xlu0 %174
      %v176 = vrcp.pop %v172
      %v177 = vrcp.pop %v175
      %v178 = vmul.f32 %v167, %v176
      %v179 = vmul.f32 %v169, %v177
      %v180 = vpack.c.bf16 %v179, %v178
      %v183 = vunpack.c.l.b16 %v124
      %v184 = vunpack.c.l.b16 %v125
      %v185 = vpack.c.b16 %v184, %v183
      %v188 = vsel %vm157, %v180, 0
      %190 = vmatpush.bf16.msra.mxu0 0
      %191 = vmatpush.bf16.msra.mxu0 0
      %192 = vmatpush.bf16.msra.mxu0 0
      %193 = vmatpush.bf16.msra.mxu0 0
      %194 = vmatpush.bf16.msra.mxu0 0
      %195 = vmatpush.bf16.msra.mxu0 0
      %196 = vmatpush.bf16.msra.mxu0 0
      %197 = vmatpush.bf16.msra.mxu0 %v185
      %198 = vmatmul.bf16.gmra.mxu0 %v188
      %v199 = vpop.f32.mrf.mxu0
      %v200 = vadd.f32 0.0, %v199
      %v201 = vpop.f32.mrf.mxu0
      %v202 = vadd.f32 0.0, %v201
      %203 = vdwg.mxu0
      %v204 = vpack.c.bf16 %v200, %v200
      %v205 = vpack.c.bf16 %v202, %v202
      %vm206 = vcmask 11264
      %207 = vst.msk [vmem:[%s116] sm:$0xf] %vm206, %v204
      %208 = vst.msk [vmem:[%s116 + $0x4] sm:$0xf] %vm206, %v205
      %p209 = scmp.lt.s32.totalorder %s12, 15
      %s210 = scalar_select %p209, %s12, 15
      %s211 = smul.addr %s210, 2
      %s212 = smul.addr %s211, 4
      %s213 = scalar_lea.vmem %s1, %s212
      // Predicated region
      $region25: #{scob_forward.45} parent=23 // pred_check
        %p214 = pneg %p56
      $region26: #{scob_forward.45} parent=23 // pred_check_branch
        %216 = sbr.rel (%p214) target = $region28
      $region27: #{scob_forward.45} parent=23 // pred_region
        _
      $region28: #{scob_forward.45} parent=23 // pred_fallthru
        _
    $region24: #{scob_forward.45} parent=5 // pred_fallthru
      _
    %p217 = scmp.le.s32.totalorder 2, %s7
    // Predicated region
    $region29: #{scob_forward.45} parent=5 // pred_check
      %p218 = pneg %p217
    $region30: #{scob_forward.45} parent=5 // pred_check_branch
      %220 = sbr.rel (%p218) target = $region32
    $region31: #{scob_forward.45} parent=5 // pred_region
      %s221 = ssub.s32 %s7, 2
      // Predicated region
      $region33: #{scob_forward.45} parent=31 // pred_check
        %p222 = pneg %p62
      $region34: #{scob_forward.45} parent=31 // pred_check_branch
        %224 = sbr.rel (%p222) target = $region36
      $region35: #{scob_forward.45} parent=31 // pred_region
        %p225 = scmp.lt.s32.totalorder %s13, 15
        %s226 = scalar_select %p225, %s13, 15
        %s227 = smul.addr %s226, 2
        %s228 = smul.addr %s227, 4
        %s229 = scalar_lea.vmem %s1, %s228
      $region36: #{scob_forward.45} parent=31 // pred_fallthru
        _
    $region32: #{scob_forward.45} parent=5 // pred_fallthru
      _
  $region6: #{scob_forward.45} parent=0 // loop_footer
    %s11 = sadd.s32 1, %s7
  $region7: #{scob_forward.45} parent=0 // loop_footer_branch
    %6 = sbr.rel target = $region3
  $region8: #{scob_forward.45} parent=0 // loop_exit
    _

// kernel: scob_forward.46
$region0: #{scob_forward.46}
  #allocation0 [shape = 'u32[]', space=smem, size = 0x4, offset = 0x4, fixed_abs, tag = 'smem constant byte address 0x4 - core index']
  #allocation1 [shape = 'u32[72,128]{1,0:T(1,128)}', space=vmem, size = 0x9000, scoped, tag = 'internal scratch']
  %s0 = inlined_call_operand.vmem [shape: bf16[32,16], index: 0, kind: input, shape index: {}]
  %s1 = inlined_call_operand.vmem [shape: bf16[16,128], index: 1, kind: input, shape index: {}]
  %s2 = inlined_call_operand.vmem [shape: f32[1,128], index: 2, kind: input, shape index: {}]
  %s3 = inlined_call_operand.vmem [shape: bf16[32,128], index: 3, kind: input, shape index: {}]
  %s4 = inlined_call_operand.vmem [shape: f32[1,128], index: 4, kind: input, shape index: {}]
  %s5 = inlined_call_operand.vmem [shape: f32[1,128], index: 5, kind: input, shape index: {}]
  %s6 = inlined_call_operand.vmem [shape: bf16[32,128], index: 6, kind: output, shape index: {}]
  %s7 = sld [smem:[#allocation0]]
  $region34: #{scob_forward.46} parent=0
    _
  %s9 = ssub.s32 1, %s7
  %s10 = scalar_select 0, %s9, %s7
  // Predicated region
  $region2: #{scob_forward.46} parent=0 // pred_check
    _
  $region3: #{scob_forward.46} parent=0 // pred_check_branch
    %12 = sbr.rel (0) target = $region5
  $region4: #{scob_forward.46} parent=0 // pred_region
    _
  $region5: #{scob_forward.46} parent=0 // pred_fallthru
    _
  // Predicated region
  $region6: #{scob_forward.46} parent=0 // pred_check
    _
  $region7: #{scob_forward.46} parent=0 // pred_check_branch
    %14 = sbr.rel (0) target = $region9
  $region8: #{scob_forward.46} parent=0 // pred_region
    _
  $region9: #{scob_forward.46} parent=0 // pred_fallthru
    _
  // Predicated region
  $region10: #{scob_forward.46} parent=0 // pred_check
    _
  $region11: #{scob_forward.46} parent=0 // pred_check_branch
    %16 = sbr.rel (0) target = $region13
  $region12: #{scob_forward.46} parent=0 // pred_region
    _
  $region13: #{scob_forward.46} parent=0 // pred_fallthru
    _
  // Predicated region
  $region14: #{scob_forward.46} parent=0 // pred_check
    _
  $region15: #{scob_forward.46} parent=0 // pred_check_branch
    %18 = sbr.rel (0) target = $region17
  $region16: #{scob_forward.46} parent=0 // pred_region
    _
  $region17: #{scob_forward.46} parent=0 // pred_fallthru
    _
  // Predicated region
  $region18: #{scob_forward.46} parent=0 // pred_check
    _
  $region19: #{scob_forward.46} parent=0 // pred_check_branch
    %20 = sbr.rel (0) target = $region21
  $region20: #{scob_forward.46} parent=0 // pred_region
    _
  $region21: #{scob_forward.46} parent=0 // pred_fallthru
    _
  // Predicated region
  $region22: #{scob_forward.46} parent=0 // pred_check
    _
  $region23: #{scob_forward.46} parent=0 // pred_check_branch
    %22 = sbr.rel (0) target = $region25
  $region24: #{scob_forward.46} parent=0 // pred_region
    _
  $region25: #{scob_forward.46} parent=0 // pred_fallthru
    _
  %v24 = vld [vmem:[%s0] sm:$0xf]
  %v25 = vld [vmem:[%s0 + $0x4] sm:$0xf]
  %v26 = vld [vmem:[%s0 + $0x8] sm:$0xf]
  %v27 = vld [vmem:[%s0 + $0xc] sm:$0xf]
  %v28 = vld [vmem:[%s1] sm:$0xf]
  %v29 = vld [vmem:[%s1 + $0x4] sm:$0xf]
  %v30 = vld [vmem:[%s2] sm:$0x1]
  %v32 = vperm.slane %v30, 0
  %v38 = vunpack.c.l.b16 %v24
  %v39 = vunpack.c.l.b16 %v25
  %v40 = vunpack.c.l.b16 %v26
  %v41 = vunpack.c.l.b16 %v27
  %v42 = vpack.c.b16 %v39, %v38
  %v43 = vpack.c.b16 %v41, %v40
  %v46 = vunpack.c.l.b16 %v28
  %v47 = vunpack.c.l.b16 %v29
  %v48 = vpack.c.b16 %v47, %v46
  %vm50 = vcmask 130048
  %v52 = vsel %vm50, %v42, 0
  %v55 = vsel %vm50, %v43, 0
  %57 = vmatpush.bf16.msra.mxu0 0
  %58 = vmatpush.bf16.msra.mxu0 0
  %59 = vmatpush.bf16.msra.mxu0 0
  %60 = vmatpush.bf16.msra.mxu0 0
  %61 = vmatpush.bf16.msra.mxu0 0
  %62 = vmatpush.bf16.msra.mxu0 0
  %63 = vmatpush.bf16.msra.mxu0 0
  %64 = vmatpush.bf16.msra.mxu0 %v48
  %65 = vmatmul.bf16.gmra.mxu0 %v52
  %v66 = vpop.f32.mrf.mxu0
  %v67 = vadd.f32 %v32, %v66
  %v68 = vpop.f32.mrf.mxu0
  %v69 = vadd.f32 %v32, %v68
  %70 = vmatmul.bf16.gmra.mxu0 %v55
  %v71 = vpop.f32.mrf.mxu0
  %v72 = vadd.f32 %v32, %v71
  %v73 = vpop.f32.mrf.mxu0
  %v74 = vadd.f32 %v32, %v73
  %75 = vdwg.mxu0
  %v76 = vld [vmem:[%s3] sm:$0xf]
  %v77 = vld [vmem:[%s3 + $0x4] sm:$0xf]
  %v78 = vld [vmem:[%s3 + $0x8] sm:$0xf]
  %v79 = vld [vmem:[%s3 + $0xc] sm:$0xf]
  %v80 = vunpack.c.l.bf16 %v76
  %v81 = vunpack.c.l.bf16 %v77
  %v82 = vunpack.c.l.bf16 %v78
  %v83 = vunpack.c.l.bf16 %v79
  %v84 = vadd.f32 %v67, %v80
  %v85 = vadd.f32 %v69, %v81
  %v86 = vadd.f32 %v72, %v82
  %v87 = vadd.f32 %v74, %v83
  %v88 = vlaneseq
  %v89 = vand.u32 %v88, 127
  %vm90 = vcmp.lt.s32.totalorder %v89, 16
  %v91 = vsel %vm90, %v84, 0.0
  %v92 = vsel %vm90, %v85, 0.0
  %v93 = vsel %vm90, %v86, 0.0
  %v94 = vsel %vm90, %v87, 0.0
  %95 = vadd.xlane.f32.xlu0 %v91
  %v96 = vpop.xlane.xlu0 %95
  %97 = vadd.xlane.f32.xlu0 %v92
  %v98 = vpop.xlane.xlu0 %97
  %99 = vadd.xlane.f32.xlu0 %v93
  %v100 = vpop.xlane.xlu0 %99
  %101 = vadd.xlane.f32.xlu0 %v94
  %v102 = vpop.xlane.xlu0 %101
  %v103 = vmul.f32 %v96, 0.0625
  %v104 = vmul.f32 %v98, 0.0625
  %v105 = vmul.f32 %v100, 0.0625
  %v106 = vmul.f32 %v102, 0.0625
  %v107 = vsub.f32 %v84, %v103
  %v108 = vsub.f32 %v85, %v104
  %v109 = vsub.f32 %v86, %v105
  %v110 = vsub.f32 %v87, %v106
  %v111 = vsel %vm90, %v107, 0.0
  %v112 = vsel %vm90, %v108, 0.0
  %v113 = vsel %vm90, %v109, 0.0
  %v114 = vsel %vm90, %v110, 0.0
  %v115 = vmul.f32 %v111, %v111
  %v116 = vmul.f32 %v112, %v112
  %v117 = vmul.f32 %v113, %v113
  %v118 = vmul.f32 %v114, %v114
  %119 = vadd.xlane.f32.xlu0 %v115
  %v120 = vpop.xlane.xlu0 %119
  %121 = vadd.xlane.f32.xlu0 %v116
  %v122 = vpop.xlane.xlu0 %121
  %123 = vadd.xlane.f32.xlu0 %v117
  %v124 = vpop.xlane.xlu0 %123
  %125 = vadd.xlane.f32.xlu0 %v118
  %v126 = vpop.xlane.xlu0 %125
  %v127 = vmul.f32 %v120, 0.0625
  %v128 = vmul.f32 %v122, 0.0625
  %v129 = vmul.f32 %v124, 0.0625
  %v130 = vmul.f32 %v126, 0.0625
  %v131 = vadd.f32 %v127, 1e-05
  %v132 = vadd.f32 %v128, 1e-05
  %v133 = vadd.f32 %v129, 1e-05
  %v134 = vadd.f32 %v130, 1e-05
  %v135 = vrsqrt.pop %v131
  %v136 = vmul.f32 %v135, %v131
  %v137 = vmul.f32 %v136, %v135
  %v138 = vmul.f32 0.5, %v137
  %v139 = vsub.f32 1.5, %v138
  %v140 = vmul.f32 %v135, %v139
  %vm141 = vweird.f32 %v131
  %vm142 = vweird.f32 %v135
  %vm143 = vmor %vm141, %vm142
  %v144 = vsel %vm143, %v135, %v140
  %v145 = vrsqrt.pop %v132
  %v146 = vmul.f32 %v145, %v132
  %v147 = vmul.f32 %v146, %v145
  %v148 = vmul.f32 0.5, %v147
  %v149 = vsub.f32 1.5, %v148
  %v150 = vmul.f32 %v145, %v149
  %vm151 = vweird.f32 %v132
  %vm152 = vweird.f32 %v145
  %vm153 = vmor %vm151, %vm152
  %v154 = vsel %vm153, %v145, %v150
  %v155 = vrsqrt.pop %v133
  %v156 = vmul.f32 %v155, %v133
  %v157 = vmul.f32 %v156, %v155
  %v158 = vmul.f32 0.5, %v157
  %v159 = vsub.f32 1.5, %v158
  %v160 = vmul.f32 %v155, %v159
  %vm161 = vweird.f32 %v133
  %vm162 = vweird.f32 %v155
  %vm163 = vmor %vm161, %vm162
  %v164 = vsel %vm163, %v155, %v160
  %v165 = vrsqrt.pop %v134
  %v166 = vmul.f32 %v165, %v134
  %v167 = vmul.f32 %v166, %v165
  %v168 = vmul.f32 0.5, %v167
  %v169 = vsub.f32 1.5, %v168
  %v170 = vmul.f32 %v165, %v169
  %vm171 = vweird.f32 %v134
  %vm172 = vweird.f32 %v165
  %vm173 = vmor %vm171, %vm172
  %v174 = vsel %vm173, %v165, %v170
  %v175 = vmul.f32 %v111, %v144
  %v176 = vmul.f32 %v112, %v154
  %v177 = vmul.f32 %v113, %v164
  %v178 = vmul.f32 %v114, %v174
  %v179 = vld [vmem:[%s4] sm:$0x1]
  %v181 = vperm.slane %v179, 0
  %v183 = vmul.f32 %v175, %v181
  %v184 = vmul.f32 %v176, %v181
  %v185 = vmul.f32 %v177, %v181
  %v186 = vmul.f32 %v178, %v181
  %v187 = vld [vmem:[%s5] sm:$0x1]
  %v189 = vperm.slane %v187, 0
  %v191 = vadd.f32 %v183, %v189
  %v192 = vadd.f32 %v184, %v189
  %v193 = vadd.f32 %v185, %v189
  %v194 = vadd.f32 %v186, %v189
  %v195 = vpack.c.bf16 %v191, %v191
  %v196 = vpack.c.bf16 %v192, %v192
  %v197 = vpack.c.bf16 %v193, %v193
  %v198 = vpack.c.bf16 %v194, %v194
  %199 = vst [vmem:[%s6] sm:$0xf] %v195
  %200 = vst [vmem:[%s6 + $0x4] sm:$0xf] %v196
  %201 = vst [vmem:[%s6 + $0x8] sm:$0xf] %v197
  %202 = vst [vmem:[%s6 + $0xc] sm:$0xf] %v198
  // Predicated region
  $region26: #{scob_forward.46} parent=0 // pred_check
    _
  $region27: #{scob_forward.46} parent=0 // pred_check_branch
    %204 = sbr.rel (0) target = $region29
  $region28: #{scob_forward.46} parent=0 // pred_region
    _
  $region29: #{scob_forward.46} parent=0 // pred_fallthru
    _
  // Predicated region
  $region30: #{scob_forward.46} parent=0 // pred_check
    _
  $region31: #{scob_forward.46} parent=0 // pred_check_branch
    %206 = sbr.rel (0) target = $region33
  $region32: #{scob_forward.46} parent=0 // pred_region
    _
  $region33: #{scob_forward.46} parent=0 // pred_fallthru
    _

// kernel: scob_forward.48
$region0: #{scob_forward.48}
  #allocation0 [shape = 'u32[]', space=smem, size = 0x4, offset = 0x4, fixed_abs, tag = 'smem constant byte address 0x4 - core index']
  #allocation1 [shape = 'u32[72,128]{1,0:T(1,128)}', space=vmem, size = 0x9000, scoped, tag = 'internal scratch']
  #allocation2 [shape = 'f32[32,128]{1,0:T(8,128)}', space=vmem, size = 0x4000, scoped, tag = 'scratch operand']
  %s0 = inlined_call_operand.vmem [shape: bf16[32,2048], index: 0, kind: input, shape index: {}]
  %s1 = inlined_call_operand.vmem [shape: bf16[2048,128], index: 1, kind: input, shape index: {}]
  %s2 = inlined_call_operand.vmem [shape: f32[1,128], index: 2, kind: input, shape index: {}]
  %s3 = inlined_call_operand.vmem [shape: bf16[32,128], index: 3, kind: input, shape index: {}]
  %s4 = inlined_call_operand.vmem [shape: f32[1,128], index: 4, kind: input, shape index: {}]
  %s5 = inlined_call_operand.vmem [shape: f32[1,128], index: 5, kind: input, shape index: {}]
  %s6 = inlined_call_operand.vmem [shape: bf16[32,128], index: 6, kind: output, shape index: {}]
  %s7 = sld [smem:[#allocation0]]
  $region88: #{scob_forward.48} parent=0
    _
  %s9 = ssub.s32 1, %s7
  %s10 = scalar_select 0, %s9, %s7
  $region1: #{scob_forward.48} parent=0
    #allocation3 [shape = 'u8[65536]{0}', space=vmem, size = 0x10000, scoped, tag = 'input window, operand 0']
    loop: start=0, step=1, limit=6
    $region2: #{scob_forward.48} parent=1 // loop_pre_header
      _
    $region3: #{scob_forward.48} parent=1 // loop_header
      %s12 = sphi 0, %s16
      %p13 = scmp.ge.s32.totalorder %s12, 6
      %s19 = sphi 0, %s31
      %s20 = sphi 0, %s27
      %s21 = sphi 0, %s19
      %s22 = sphi 0, %s20
      %s23 = sphi 0, %s21
      %s24 = sphi 0, %s22
      %s36 = sphi 0, %s38
      %s39 = sphi 0, %s36
      %s40 = sphi 0, %s39
      %s56 = sphi 0, %s40
      %s62 = sphi 0, %s64
      %s65 = sphi 0, %s62
      %s66 = sphi 0, %s65
      %s82 = sphi 0, %s66
      %s86 = sphi 0, %s86
      %s88 = sphi 0, %s86
      %s89 = sphi 0, %s88
      %s103 = sphi 0, %s89
      %s109 = sphi 0, %s111
      %s112 = sphi 0, %s109
      %s113 = sphi 0, %s112
      %s129 = sphi 0, %s113
      %s133 = sphi 0, %s133
      %s135 = sphi 0, %s133
      %s136 = sphi 0, %s135
      %s150 = sphi 0, %s136
      %s154 = sphi 0, %s154
      %s156 = sphi 0, %s154
      %s157 = sphi 0, %s156
      %s171 = sphi 0, %s157
      %s177 = sphi 0, %s179
      %s180 = sphi 0, %s177
      %s181 = sphi 0, %s180
      %s197 = sphi 0, %s181
    $region4: #{scob_forward.48} parent=1 // loop_header_branch
      %15 = sbr.rel (%p13) target = $region8
    $region5: #{scob_forward.48} parent=1 // loop_body
      %s17 = ssub.s32 %s12, 1
      %s18 = ssub.s32 %s12, 2
      %s25 = sadd.s32 1, %s20
      %p26 = scmp.ge.s32.totalorder %s25, 4
      %s27 = scalar_select %p26, 0, %s25
      %s28 = sadd.s32 1, %s19
      %s29 = scalar_select %p26, %s28, %s19
      %p30 = scmp.ge.s32.totalorder %s29, 1
      %s31 = scalar_select %p30, 0, %s29
      %s32 = ssub.s32 %s19, %s31
      %s33 = ssub.s32 %s20, %s27
      %s34 = sor.u32 %s32, %s33
      %p35 = scmp.eq.s32.totalorder %s34, 0
      %s37 = sadd.s32 %s36, 1
      %s38 = scalar_select %p35, %s36, %s37
      %p41 = pneg %p35
      %p42 = scmp.eq.s32.totalorder %s12, 3
      %p43 = por %p41, %p42
      %p44 = scmp.ne.s32.totalorder %s36, %s39
      %p45 = scmp.eq.s32.totalorder %s12, 0
      %p46 = por %p44, %p45
      %p47 = scmp.ne.s32.totalorder %s36, %s39
      %p48 = scmp.eq.s32.totalorder %s17, 3
      %p49 = por %p47, %p48
      %p50 = scmp.ne.s32.totalorder %s39, %s40
      %p51 = scmp.eq.s32.totalorder %s17, 0
      %p52 = por %p50, %p51
      %p53 = scmp.ne.s32.totalorder %s39, %s40
      %p54 = scmp.eq.s32.totalorder %s18, 3
      %p55 = por %p53, %p54
      %p57 = scmp.ne.s32.totalorder %s40, %s56
      %p58 = scmp.eq.s32.totalorder %s18, 0
      %p59 = por %p57, %p58
      %s60 = ssub.s32 %s20, %s27
      %p61 = scmp.eq.s32.totalorder %s60, 0
      %s63 = sadd.s32 %s62, 1
      %s64 = scalar_select %p61, %s62, %s63
      %p67 = pneg %p61
      %p68 = scmp.eq.s32.totalorder %s12, 3
      %p69 = por %p67, %p68
      %p70 = scmp.ne.s32.totalorder %s62, %s65
      %p71 = scmp.eq.s32.totalorder %s12, 0
      %p72 = por %p70, %p71
      %p73 = scmp.ne.s32.totalorder %s62, %s65
      %p74 = scmp.eq.s32.totalorder %s17, 3
      %p75 = por %p73, %p74
      %p76 = scmp.ne.s32.totalorder %s65, %s66
      %p77 = scmp.eq.s32.totalorder %s17, 0
      %p78 = por %p76, %p77
      %p79 = scmp.ne.s32.totalorder %s65, %s66
      %p80 = scmp.eq.s32.totalorder %s18, 3
      %p81 = por %p79, %p80
      %p83 = scmp.ne.s32.totalorder %s66, %s82
      %p84 = scmp.eq.s32.totalorder %s18, 0
      %p85 = por %p83, %p84
      %s87 = sadd.s32 %s86, 1
      %p90 = scmp.eq.s32.totalorder %s12, 3
      %p91 = scmp.ne.s32.totalorder %s86, %s88
      %p92 = scmp.eq.s32.totalorder %s12, 0
      %p93 = por %p91, %p92
      %p94 = scmp.ne.s32.totalorder %s86, %s88
      %p95 = scmp.eq.s32.totalorder %s17, 3
      %p96 = por %p94, %p95
      %p97 = scmp.ne.s32.totalorder %s88, %s89
      %p98 = scmp.eq.s32.totalorder %s17, 0
      %p99 = por %p97, %p98
      %p100 = scmp.ne.s32.totalorder %s88, %s89
      %p101 = scmp.eq.s32.totalorder %s18, 3
      %p102 = por %p100, %p101
      %p104 = scmp.ne.s32.totalorder %s89, %s103
      %p105 = scmp.eq.s32.totalorder %s18, 0
      %p106 = por %p104, %p105
      %s107 = ssub.s32 %s19, %s31
      %p108 = scmp.eq.s32.totalorder %s107, 0
      %s110 = sadd.s32 %s109, 1
      %s111 = scalar_select %p108, %s109, %s110
      %p114 = pneg %p108
      %p115 = scmp.eq.s32.totalorder %s12, 3
      %p116 = por %p114, %p115
      %p117 = scmp.ne.s32.totalorder %s109, %s112
      %p118 = scmp.eq.s32.totalorder %s12, 0
      %p119 = por %p117, %p118
      %p120 = scmp.ne.s32.totalorder %s109, %s112
      %p121 = scmp.eq.s32.totalorder %s17, 3
      %p122 = por %p120, %p121
      %p123 = scmp.ne.s32.totalorder %s112, %s113
      %p124 = scmp.eq.s32.totalorder %s17, 0
      %p125 = por %p123, %p124
      %p126 = scmp.ne.s32.totalorder %s112, %s113
      %p127 = scmp.eq.s32.totalorder %s18, 3
      %p128 = por %p126, %p127
      %p130 = scmp.ne.s32.totalorder %s113, %s129
      %p131 = scmp.eq.s32.totalorder %s18, 0
      %p132 = por %p130, %p131
      %s134 = sadd.s32 %s133, 1
      %p137 = scmp.eq.s32.totalorder %s12, 3
      %p138 = scmp.ne.s32.totalorder %s133, %s135
      %p139 = scmp.eq.s32.totalorder %s12, 0
      %p140 = por %p138, %p139
      %p141 = scmp.ne.s32.totalorder %s133, %s135
      %p142 = scmp.eq.s32.totalorder %s17, 3
      %p143 = por %p141, %p142
      %p144 = scmp.ne.s32.totalorder %s135, %s136
      %p145 = scmp.eq.s32.totalorder %s17, 0
      %p146 = por %p144, %p145
      %p147 = scmp.ne.s32.totalorder %s135, %s136
      %p148 = scmp.eq.s32.totalorder %s18, 3
      %p149 = por %p147, %p148
      %p151 = scmp.ne.s32.totalorder %s136, %s150
      %p152 = scmp.eq.s32.totalorder %s18, 0
      %p153 = por %p151, %p152
      %s155 = sadd.s32 %s154, 1
      %p158 = scmp.eq.s32.totalorder %s12, 3
      %p159 = scmp.ne.s32.totalorder %s154, %s156
      %p160 = scmp.eq.s32.totalorder %s12, 0
      %p161 = por %p159, %p160
      %p162 = scmp.ne.s32.totalorder %s154, %s156
      %p163 = scmp.eq.s32.totalorder %s17, 3
      %p164 = por %p162, %p163
      %p165 = scmp.ne.s32.totalorder %s156, %s157
      %p166 = scmp.eq.s32.totalorder %s17, 0
      %p167 = por %p165, %p166
      %p168 = scmp.ne.s32.totalorder %s156, %s157
      %p169 = scmp.eq.s32.totalorder %s18, 3
      %p170 = por %p168, %p169
      %p172 = scmp.ne.s32.totalorder %s157, %s171
      %p173 = scmp.eq.s32.totalorder %s18, 0
      %p174 = por %p172, %p173
      %s175 = ssub.s32 %s19, %s31
      %p176 = scmp.eq.s32.totalorder %s175, 0
      %s178 = sadd.s32 %s177, 1
      %s179 = scalar_select %p176, %s177, %s178
      %p182 = pneg %p176
      %p183 = scmp.eq.s32.totalorder %s12, 3
      %p184 = por %p182, %p183
      %p185 = scmp.ne.s32.totalorder %s177, %s180
      %p186 = scmp.eq.s32.totalorder %s12, 0
      %p187 = por %p185, %p186
      %p188 = scmp.ne.s32.totalorder %s177, %s180
      %p189 = scmp.eq.s32.totalorder %s17, 3
      %p190 = por %p188, %p189
      %p191 = scmp.ne.s32.totalorder %s180, %s181
      %p192 = scmp.eq.s32.totalorder %s17, 0
      %p193 = por %p191, %p192
      %p194 = scmp.ne.s32.totalorder %s180, %s181
      %p195 = scmp.eq.s32.totalorder %s18, 3
      %p196 = por %p194, %p195
      %p198 = scmp.ne.s32.totalorder %s181, %s197
      %p199 = scmp.eq.s32.totalorder %s18, 0
      %p200 = por %p198, %p199
      %p201 = scmp.le.s32.totalorder 1, %s12
      %p202 = scmp.lt.s32.totalorder %s12, 5
      %p203 = pnand %p201, %p202
      %p204 = pneg %p203
      // Predicated region
      $region9: #{scob_forward.48} parent=5 // pred_check
        _
      $region10: #{scob_forward.48} parent=5 // pred_check_branch
        %206 = sbr.rel (%p203) target = $region12
      $region11: #{scob_forward.48} parent=5 // pred_region
        %s207 = ssub.s32 %s12, 1
        // Predicated region
        $region13: #{scob_forward.48} parent=11 // pred_check
          %p208 = pneg %p99
        $region14: #{scob_forward.48} parent=11 // pred_check_branch
          %210 = sbr.rel (%p208) target = $region16
        $region15: #{scob_forward.48} parent=11 // pred_region
          _
        $region16: #{scob_forward.48} parent=11 // pred_fallthru
          _
        // Predicated region
        $region17: #{scob_forward.48} parent=11 // pred_check
          %p211 = pneg %p125
        $region18: #{scob_forward.48} parent=11 // pred_check_branch
          %213 = sbr.rel (%p211) target = $region20
        $region19: #{scob_forward.48} parent=11 // pred_region
          %s214 = smul.u32 4, %s21
          %p215 = scmp.lt.s32.totalorder %s214, 3
          %s216 = scalar_select %p215, %s214, 3
          %s217 = smul.addr %s216, 4
          %s218 = scalar_lea.vmem %s3, %s217
          %s219 = smul.u32 4, %s21
        $region20: #{scob_forward.48} parent=11 // pred_fallthru
          _
        // Predicated region
        $region21: #{scob_forward.48} parent=11 // pred_check
          %p220 = pneg %p146
        $region22: #{scob_forward.48} parent=11 // pred_check_branch
          %222 = sbr.rel (%p220) target = $region24
        $region23: #{scob_forward.48} parent=11 // pred_region
          _
        $region24: #{scob_forward.48} parent=11 // pred_fallthru
          _
        // Predicated region
        $region25: #{scob_forward.48} parent=11 // pred_check
          %p223 = pneg %p167
        $region26: #{scob_forward.48} parent=11 // pred_check_branch
          %225 = sbr.rel (%p223) target = $region28
        $region27: #{scob_forward.48} parent=11 // pred_region
          _
        $region28: #{scob_forward.48} parent=11 // pred_fallthru
          _
      $region12: #{scob_forward.48} parent=5 // pred_fallthru
        _
      %p226 = scmp.lt.s32.totalorder %s12, 4
      // Predicated region
      $region29: #{scob_forward.48} parent=5 // pred_check
        %p227 = pneg %p226
      $region30: #{scob_forward.48} parent=5 // pred_check_branch
        %229 = sbr.rel (%p227) target = $region32
      $region31: #{scob_forward.48} parent=5 // pred_region
        // Predicated region
        $region33: #{scob_forward.48} parent=31 // pred_check
          %p230 = pneg %p46
        $region34: #{scob_forward.48} parent=31 // pred_check_branch
          %232 = sbr.rel (%p230) target = $region36
        $region35: #{scob_forward.48} parent=31 // pred_region
          %s233 = sand.u32 %s36, 1
          %s234 = sand.u32 %s36, 1
          %s235 = smul.addr %s234, 64
          %s236 = scalar_lea.vmem [#allocation3], %s235
          %s237 = smul.u32 4, %s19
          %s238 = smul.u32 4, %s20
          %s239 = smul.addr %s237, 16
          %s240 = sadd.s32 %s238, %s239
          %s241 = smul.addr %s240, 4
          %s242 = scalar_lea.vmem %s0, %s241
          // Predicated region
          $region37: #{scob_forward.48} parent=35 // pred_check
            _
          $region38: #{scob_forward.48} parent=35 // pred_check_branch
            %244 = sbr.rel (0) target = $region40
          $region39: #{scob_forward.48} parent=35 // pred_region
            // Predicated region
            $region41: #{scob_forward.48} parent=39 // pred_check
              _
            $region42: #{scob_forward.48} parent=39 // pred_check_branch
              %246 = sbr.rel (0) target = $region44
            $region43: #{scob_forward.48} parent=39 // pred_region
              loop: start=0, step=1, limit=1
              $region45: #{scob_forward.48} parent=43 // loop_pre_header
                _
              $region46: #{scob_forward.48} parent=43 // loop_header
                %s248 = sphi 0, %s252
                %p249 = scmp.ge.s32.totalorder %s248, 1
                %s253 = sphi %s242, %s242
                %s254 = sphi %s236, %s236
              $region47: #{scob_forward.48} parent=43 // loop_header_branch
                %251 = sbr.rel (%p249) target = $region51
              $region48: #{scob_forward.48} parent=43 // loop_body
                %v255 = vld [vmem:[%s253] sm:$0xff]
                %256 = vst [vmem:[%s254] sm:$0xff] %v255
                %v257 = vld [vmem:[%s253 + $0x8] sm:$0xff]
                %258 = vst [vmem:[%s254 + $0x8] sm:$0xff] %v257
                %v259 = vld [vmem:[%s253 + $0x40] sm:$0xff]
                %260 = vst [vmem:[%s254 + $0x10] sm:$0xff] %v259
                %v261 = vld [vmem:[%s253 + $0x48] sm:$0xff]
                %262 = vst [vmem:[%s254 + $0x18] sm:$0xff] %v261
                %v263 = vld [vmem:[%s253 + $0x80] sm:$0xff]
                %264 = vst [vmem:[%s254 + $0x20] sm:$0xff] %v263
                %v265 = vld [vmem:[%s253 + $0x88] sm:$0xff]
                %266 = vst [vmem:[%s254 + $0x28] sm:$0xff] %v265
                %v267 = vld [vmem:[%s253 + $0xc0] sm:$0xff]
                %268 = vst [vmem:[%s254 + $0x30] sm:$0xff] %v267
                %v269 = vld [vmem:[%s253 + $0xc8] sm:$0xff]
                %270 = vst [vmem:[%s254 + $0x38] sm:$0xff] %v269
              $region49: #{scob_forward.48} parent=43 // loop_footer
                %s252 = sadd.s32 1, %s248
              $region50: #{scob_forward.48} parent=43 // loop_footer_branch
                %247 = sbr.rel target = $region46
              $region51: #{scob_forward.48} parent=43 // loop_exit
                _
            $region44: #{scob_forward.48} parent=39 // pred_fallthru
              _
            // Predicated region
            $region52: #{scob_forward.48} parent=39 // pred_check
              _
            $region53: #{scob_forward.48} parent=39 // pred_check_branch
              %272 = sbr.rel target = $region55
            $region54: #{scob_forward.48} parent=39 // pred_region
              _
            $region55: #{scob_forward.48} parent=39 // pred_fallthru
              _
          $region40: #{scob_forward.48} parent=35 // pred_fallthru
            _
          %273 = vnop
        $region36: #{scob_forward.48} parent=31 // pred_fallthru
          _
        // Predicated region
        $region56: #{scob_forward.48} parent=31 // pred_check
          %p274 = pneg %p72
        $region57: #{scob_forward.48} parent=31 // pred_check_branch
          %276 = sbr.rel (%p274) target = $region59
        $region58: #{scob_forward.48} parent=31 // pred_region
          %s277 = smul.u32 64, %s20
          %p278 = scmp.lt.s32.totalorder %s277, 255
          %s279 = scalar_select %p278, %s277, 255
          %s280 = smul.addr %s279, 4
          %s281 = scalar_lea.vmem %s1, %s280
          %s282 = smul.u32 64, %s20
        $region59: #{scob_forward.48} parent=31 // pred_fallthru
          _
      $region32: #{scob_forward.48} parent=5 // pred_fallthru
        _
      %p283 = scmp.le.s32.totalorder 1, %s12
      %p284 = scmp.lt.s32.totalorder %s12, 5
      %p285 = pnand %p283, %p284
      %p286 = pneg %p285
      // Predicated region
      $region60: #{scob_forward.48} parent=5 // pred_check
        _
      $region61: #{scob_forward.48} parent=5 // pred_check_branch
        %288 = sbr.rel (%p285) target = $region63
      $region62: #{scob_forward.48} parent=5 // pred_region
        %s289 = ssub.s32 %s12, 1
        %s290 = sand.u32 %s39, 1
        %s291 = sand.u32 %s39, 1
        %s292 = smul.addr %s291, 64
        %s293 = scalar_lea.vmem [#allocation3], %s292
        // Predicated region
        $region64: #{scob_forward.48} parent=62 // pred_check
          %p294 = pneg %p52
        $region65: #{scob_forward.48} parent=62 // pred_check_branch
          %296 = sbr.rel (%p294) target = $region67
        $region66: #{scob_forward.48} parent=62 // pred_region
          _
        $region67: #{scob_forward.48} parent=62 // pred_fallthru
          _
        %s297 = sand.u32 %s39, 1
        %s298 = sand.u32 %s39, 1
        %s299 = smul.addr %s298, 64
        %s300 = scalar_lea.vmem [#allocation3], %s299
        %p301 = pneg %p52
        %p302 = pneg %p49
        %s303 = smul.u32 64, %s22
        %p304 = scmp.lt.s32.totalorder %s303, 255
        %s305 = scalar_select %p304, %s303, 255
        %s306 = smul.addr %s305, 4
        %s307 = scalar_lea.vmem %s1, %s306
        %p308 = pneg %p78
        %p309 = pneg %p75
        %p310 = pneg %p99
        %p311 = pneg %p96
        %s312 = smul.u32 4, %s21
        %p313 = scmp.lt.s32.totalorder %s312, 3
        %s314 = scalar_select %p313, %s312, 3
        %s315 = smul.addr %s314, 4
        %s316 = scalar_lea.vmem %s3, %s315
        %p317 = pneg %p125
        %p318 = pneg %p122
        %p319 = pneg %p146
        %p320 = pneg %p143
        %p321 = pneg %p167
        %p322 = pneg %p164
        %p323 = pneg %p193
        %p324 = pneg %p190
        %s325 = smul.u32 4, %s21
        %p326 = scmp.lt.s32.totalorder %s325, 3
        %s327 = scalar_select %p326, %s325, 3
        %s328 = smul.addr %s327, 4
        %s329 = scalar_lea.vmem %s6, %s328
        %s330 = smul.u32 4, %s21
        %s331 = smul.u32 4, %s22
        %s332 = smul.u32 64, %s22
        %p333 = scmp.lt.s32.totalorder %s332, 255
        %s334 = scalar_select %p333, %s332, 255
        %s335 = smul.addr %s334, 4
        %s336 = scalar_lea.vmem %s1, %s335
        %s337 = smul.u32 64, %s22
        %s338 = smul.u32 4, %s21
        %p339 = scmp.lt.s32.totalorder %s338, 3
        %s340 = scalar_select %p339, %s338, 3
        %s341 = smul.addr %s340, 4
        %s342 = scalar_lea.vmem %s3, %s341
        %s343 = smul.u32 4, %s21
        %s344 = smul.u32 4, %s21
        %p345 = scmp.lt.s32.totalorder %s344, 3
        %s346 = scalar_select %p345, %s344, 3
        %s347 = smul.addr %s346, 4
        %s348 = scalar_lea.vmem %s6, %s347
        %s349 = smul.u32 4, %s21
        %v350 = vld [vmem:[%s293] sm:$0xff]
        %v351 = vld [vmem:[%s293 + $0x8] sm:$0xff]
        %v352 = vld [vmem:[%s293 + $0x10] sm:$0xff]
        %v353 = vld [vmem:[%s293 + $0x18] sm:$0xff]
        %v354 = vld [vmem:[%s293 + $0x20] sm:$0xff]
        %v355 = vld [vmem:[%s293 + $0x28] sm:$0xff]
        %v356 = vld [vmem:[%s293 + $0x30] sm:$0xff]
        %v357 = vld [vmem:[%s293 + $0x38] sm:$0xff]
        %v358 = vld [vmem:[%s336] sm:$0xf]
        %v359 = vld [vmem:[%s336 + $0x4] sm:$0xf]
        %v360 = vld [vmem:[%s336 + $0x8] sm:$0xf]
        %v361 = vld [vmem:[%s336 + $0xc] sm:$0xf]
        %v362 = vld [vmem:[%s336 + $0x10] sm:$0xf]
        %v363 = vld [vmem:[%s336 + $0x14] sm:$0xf]
        %v364 = vld [vmem:[%s336 + $0x18] sm:$0xf]
        %v365 = vld [vmem:[%s336 + $0x1c] sm:$0xf]
        %v366 = vld [vmem:[%s336 + $0x20] sm:$0xf]
        %v367 = vld [vmem:[%s336 + $0x24] sm:$0xf]
        %v368 = vld [vmem:[%s336 + $0x28] sm:$0xf]
        %v369 = vld [vmem:[%s336 + $0x2c] sm:$0xf]
        %v370 = vld [vmem:[%s336 + $0x30] sm:$0xf]
        %v371 = vld [vmem:[%s336 + $0x34] sm:$0xf]
        %v372 = vld [vmem:[%s336 + $0x38] sm:$0xf]
        %v373 = vld [vmem:[%s336 + $0x3c] sm:$0xf]
        %v374 = vld [vmem:[%s336 + $0x40] sm:$0xf]
        %v375 = vld [vmem:[%s336 + $0x44] sm:$0xf]
        %v376 = vld [vmem:[%s336 + $0x48] sm:$0xf]
        %v377 = vld [vmem:[%s336 + $0x4c] sm:$0xf]
        %v378 = vld [vmem:[%s336 + $0x50] sm:$0xf]
        %v379 = vld [vmem:[%s336 + $0x54] sm:$0xf]
        %v380 = vld [vmem:[%s336 + $0x58] sm:$0xf]
        %v381 = vld [vmem:[%s336 + $0x5c] sm:$0xf]
        %v382 = vld [vmem:[%s336 + $0x60] sm:$0xf]
        %v383 = vld [vmem:[%s336 + $0x64] sm:$0xf]
        %v384 = vld [vmem:[%s336 + $0x68] sm:$0xf]
        %v385 = vld [vmem:[%s336 + $0x6c] sm:$0xf]
        %v386 = vld [vmem:[%s336 + $0x70] sm:$0xf]
        %v387 = vld [vmem:[%s336 + $0x74] sm:$0xf]
        %v388 = vld [vmem:[%s336 + $0x78] sm:$0xf]
        %v389 = vld [vmem:[%s336 + $0x7c] sm:$0xf]
        %v390 = vld [vmem:[%s336 + $0x80] sm:$0xf]
        %v391 = vld [vmem:[%s336 + $0x84] sm:$0xf]
        %v392 = vld [vmem:[%s336 + $0x88] sm:$0xf]
        %v393 = vld [vmem:[%s336 + $0x8c] sm:$0xf]
        %v394 = vld [vmem:[%s336 + $0x90] sm:$0xf]
        %v395 = vld [vmem:[%s336 + $0x94] sm:$0xf]
        %v396 = vld [vmem:[%s336 + $0x98] sm:$0xf]
        %v397 = vld [vmem:[%s336 + $0x9c] sm:$0xf]
        %v398 = vld [vmem:[%s336 + $0xa0] sm:$0xf]
        %v399 = vld [vmem:[%s336 + $0xa4] sm:$0xf]
        %v400 = vld [vmem:[%s336 + $0xa8] sm:$0xf]
        %v401 = vld [vmem:[%s336 + $0xac] sm:$0xf]
        %v402 = vld [vmem:[%s336 + $0xb0] sm:$0xf]
        %v403 = vld [vmem:[%s336 + $0xb4] sm:$0xf]
        %v404 = vld [vmem:[%s336 + $0xb8] sm:$0xf]
        %v405 = vld [vmem:[%s336 + $0xbc] sm:$0xf]
        %v406 = vld [vmem:[%s336 + $0xc0] sm:$0xf]
        %v407 = vld [vmem:[%s336 + $0xc4] sm:$0xf]
        %v408 = vld [vmem:[%s336 + $0xc8] sm:$0xf]
        %v409 = vld [vmem:[%s336 + $0xcc] sm:$0xf]
        %v410 = vld [vmem:[%s336 + $0xd0] sm:$0xf]
        %v411 = vld [vmem:[%s336 + $0xd4] sm:$0xf]
        %v412 = vld [vmem:[%s336 + $0xd8] sm:$0xf]
        %v413 = vld [vmem:[%s336 + $0xdc] sm:$0xf]
        %v414 = vld [vmem:[%s336 + $0xe0] sm:$0xf]
        %v415 = vld [vmem:[%s336 + $0xe4] sm:$0xf]
        %v416 = vld [vmem:[%s336 + $0xe8] sm:$0xf]
        %v417 = vld [vmem:[%s336 + $0xec] sm:$0xf]
        %v418 = vld [vmem:[%s336 + $0xf0] sm:$0xf]
        %v419 = vld [vmem:[%s336 + $0xf4] sm:$0xf]
        %v420 = vld [vmem:[%s336 + $0xf8] sm:$0xf]
        %v421 = vld [vmem:[%s336 + $0xfc] sm:$0xf]
        %v430 = vunpack.c.l.b16 %v350
        %v431 = vunpack.c.h.b16 %v350
        %v432 = vunpack.c.l.b16 %v351
        %v433 = vunpack.c.h.b16 %v351
        %v434 = vunpack.c.l.b16 %v352
        %v435 = vunpack.c.h.b16 %v352
        %v436 = vunpack.c.l.b16 %v353
        %v437 = vunpack.c.h.b16 %v353
        %v438 = vunpack.c.l.b16 %v354
        %v439 = vunpack.c.h.b16 %v354
        %v440 = vunpack.c.l.b16 %v355
        %v441 = vunpack.c.h.b16 %v355
        %v442 = vunpack.c.l.b16 %v356
        %v443 = vunpack.c.h.b16 %v356
        %v444 = vunpack.c.l.b16 %v357
        %v445 = vunpack.c.h.b16 %v357
        %v446 = vpack.c.b16 %v434, %v430
        %v447 = vpack.c.b16 %v435, %v431
        %v448 = vpack.c.b16 %v436, %v432
        %v449 = vpack.c.b16 %v437, %v433
        %v450 = vpack.c.b16 %v442, %v438
        %v451 = vpack.c.b16 %v443, %v439
        %v452 = vpack.c.b16 %v444, %v440
        %v453 = vpack.c.b16 %v445, %v441
        %v526 = vunpack.c.l.b16 %v358
        %v527 = vunpack.c.l.b16 %v359
        %v528 = vunpack.c.l.b16 %v360
        %v529 = vunpack.c.l.b16 %v361
        %v530 = vunpack.c.l.b16 %v362
        %v531 = vunpack.c.l.b16 %v363
        %v532 = vunpack.c.l.b16 %v364
        %v533 = vunpack.c.l.b16 %v365
        %v534 = vunpack.c.l.b16 %v366
        %v535 = vunpack.c.l.b16 %v367
        %v536 = vunpack.c.l.b16 %v368
        %v537 = vunpack.c.l.b16 %v369
        %v538 = vunpack.c.l.b16 %v370
        %v539 = vunpack.c.l.b16 %v371
        %v540 = vunpack.c.l.b16 %v372
        %v541 = vunpack.c.l.b16 %v373
        %v542 = vunpack.c.l.b16 %v374
        %v543 = vunpack.c.l.b16 %v375
        %v544 = vunpack.c.l.b16 %v376
        %v545 = vunpack.c.l.b16 %v377
        %v546 = vunpack.c.l.b16 %v378
        %v547 = vunpack.c.l.b16 %v379
        %v548 = vunpack.c.l.b16 %v380
        %v549 = vunpack.c.l.b16 %v381
        %v550 = vunpack.c.l.b16 %v382
        %v551 = vunpack.c.l.b16 %v383
        %v552 = vunpack.c.l.b16 %v384
        %v553 = vunpack.c.l.b16 %v385
        %v554 = vunpack.c.l.b16 %v386
        %v555 = vunpack.c.l.b16 %v387
        %v556 = vunpack.c.l.b16 %v388
        %v557 = vunpack.c.l.b16 %v389
        %v558 = vunpack.c.l.b16 %v390
        %v559 = vunpack.c.l.b16 %v391
        %v560 = vunpack.c.l.b16 %v392
        %v561 = vunpack.c.l.b16 %v393
        %v562 = vunpack.c.l.b16 %v394
        %v563 = vunpack.c.l.b16 %v395
        %v564 = vunpack.c.l.b16 %v396
        %v565 = vunpack.c.l.b16 %v397
        %v566 = vunpack.c.l.b16 %v398
        %v567 = vunpack.c.l.b16 %v399
        %v568 = vunpack.c.l.b16 %v400
        %v569 = vunpack.c.l.b16 %v401
        %v570 = vunpack.c.l.b16 %v402
        %v571 = vunpack.c.l.b16 %v403
        %v572 = vunpack.c.l.b16 %v404
        %v573 = vunpack.c.l.b16 %v405
        %v574 = vunpack.c.l.b16 %v406
        %v575 = vunpack.c.l.b16 %v407
        %v576 = vunpack.c.l.b16 %v408
        %v577 = vunpack.c.l.b16 %v409
        %v578 = vunpack.c.l.b16 %v410
        %v579 = vunpack.c.l.b16 %v411
        %v580 = vunpack.c.l.b16 %v412
        %v581 = vunpack.c.l.b16 %v413
        %v582 = vunpack.c.l.b16 %v414
        %v583 = vunpack.c.l.b16 %v415
        %v584 = vunpack.c.l.b16 %v416
        %v585 = vunpack.c.l.b16 %v417
        %v586 = vunpack.c.l.b16 %v418
        %v587 = vunpack.c.l.b16 %v419
        %v588 = vunpack.c.l.b16 %v420
        %v589 = vunpack.c.l.b16 %v421
        %v590 = vpack.c.b16 %v527, %v526
        %v591 = vpack.c.b16 %v529, %v528
        %v592 = vpack.c.b16 %v531, %v530
        %v593 = vpack.c.b16 %v533, %v532
        %v594 = vpack.c.b16 %v535, %v534
        %v595 = vpack.c.b16 %v537, %v536
        %v596 = vpack.c.b16 %v539, %v538
        %v597 = vpack.c.b16 %v541, %v540
        %v598 = vpack.c.b16 %v543, %v542
        %v599 = vpack.c.b16 %v545, %v544
        %v600 = vpack.c.b16 %v547, %v546
        %v601 = vpack.c.b16 %v549, %v548
        %v602 = vpack.c.b16 %v551, %v550
        %v603 = vpack.c.b16 %v553, %v552
        %v604 = vpack.c.b16 %v555, %v554
        %v605 = vpack.c.b16 %v557, %v556
        %v606 = vpack.c.b16 %v559, %v558
        %v607 = vpack.c.b16 %v561, %v560
        %v608 = vpack.c.b16 %v563, %v562
        %v609 = vpack.c.b16 %v565, %v564
        %v610 = vpack.c.b16 %v567, %v566
        %v611 = vpack.c.b16 %v569, %v568
        %v612 = vpack.c.b16 %v571, %v570
        %v613 = vpack.c.b16 %v573, %v572
        %v614 = vpack.c.b16 %v575, %v574
        %v615 = vpack.c.b16 %v577, %v576
        %v616 = vpack.c.b16 %v579, %v578
        %v617 = vpack.c.b16 %v581, %v580
        %v618 = vpack.c.b16 %v583, %v582
        %v619 = vpack.c.b16 %v585, %v584
        %v620 = vpack.c.b16 %v587, %v586
        %v621 = vpack.c.b16 %v589, %v588
        %654 = vmatpush.bf16.msra.mxu0 %v597
        %655 = vmatpush.bf16.msra.mxu0 %v596
        %656 = vmatpush.bf16.msra.mxu0 %v595
        %657 = vmatpush.bf16.msra.mxu0 %v594
        %658 = vmatpush.bf16.msra.mxu0 %v593
        %659 = vmatpush.bf16.msra.mxu0 %v592
        %660 = vmatpush.bf16.msra.mxu0 %v591
        %661 = vmatpush.bf16.msra.mxu0 %v590
        %662 = vmatmul.bf16.gmra.mxu0 %v446
        %v663 = vpop.f32.mrf.mxu0
        %v664 = vadd.f32 0.0, %v663
        %v665 = vpop.f32.mrf.mxu0
        %v666 = vadd.f32 0.0, %v665
        %667 = vmatmul.bf16.gmra.mxu0 %v450
        %v668 = vpop.f32.mrf.mxu0
        %v669 = vadd.f32 0.0, %v668
        %v670 = vpop.f32.mrf.mxu0
        %v671 = vadd.f32 0.0, %v670
        %672 = vdwg.mxu0
        %673 = vmatpush.bf16.msra.mxu0 %v605
        %674 = vmatpush.bf16.msra.mxu0 %v604
        %675 = vmatpush.bf16.msra.mxu0 %v603
        %676 = vmatpush.bf16.msra.mxu0 %v602
        %677 = vmatpush.bf16.msra.mxu0 %v601
        %678 = vmatpush.bf16.msra.mxu0 %v600
        %679 = vmatpush.bf16.msra.mxu0 %v599
        %680 = vmatpush.bf16.msra.mxu0 %v598
        %681 = vmatmul.bf16.gmra.mxu0 %v447
        %v682 = vpop.f32.mrf.mxu0
        %v683 = vadd.f32 %v664, %v682
        %v684 = vpop.f32.mrf.mxu0
        %v685 = vadd.f32 %v666, %v684
        %686 = vmatmul.bf16.gmra.mxu0 %v451
        %v687 = vpop.f32.mrf.mxu0
        %v688 = vadd.f32 %v669, %v687
        %v689 = vpop.f32.mrf.mxu0
        %v690 = vadd.f32 %v671, %v689
        %691 = vdwg.mxu0
        %692 = vmatpush.bf16.msra.mxu0 %v613
        %693 = vmatpush.bf16.msra.mxu0 %v612
        %694 = vmatpush.bf16.msra.mxu0 %v611
        %695 = vmatpush.bf16.msra.mxu0 %v610
        %696 = vmatpush.bf16.msra.mxu0 %v609
        %697 = vmatpush.bf16.msra.mxu0 %v608
        %698 = vmatpush.bf16.msra.mxu0 %v607
        %699 = vmatpush.bf16.msra.mxu0 %v606
        %700 = vmatmul.bf16.gmra.mxu0 %v448
        %v701 = vpop.f32.mrf.mxu0
        %v702 = vadd.f32 %v683, %v701
        %v703 = vpop.f32.mrf.mxu0
        %v704 = vadd.f32 %v685, %v703
        %705 = vmatmul.bf16.gmra.mxu0 %v452
        %v706 = vpop.f32.mrf.mxu0
        %v707 = vadd.f32 %v688, %v706
        %v708 = vpop.f32.mrf.mxu0
        %v709 = vadd.f32 %v690, %v708
        %710 = vdwg.mxu0
        %711 = vmatpush.bf16.msra.mxu0 %v621
        %712 = vmatpush.bf16.msra.mxu0 %v620
        %713 = vmatpush.bf16.msra.mxu0 %v619
        %714 = vmatpush.bf16.msra.mxu0 %v618
        %715 = vmatpush.bf16.msra.mxu0 %v617
        %716 = vmatpush.bf16.msra.mxu0 %v616
        %717 = vmatpush.bf16.msra.mxu0 %v615
        %718 = vmatpush.bf16.msra.mxu0 %v614
        %719 = vmatmul.bf16.gmra.mxu0 %v449
        %v720 = vpop.f32.mrf.mxu0
        %v721 = vadd.f32 %v702, %v720
        %v722 = vpop.f32.mrf.mxu0
        %v723 = vadd.f32 %v704, %v722
        %724 = vmatmul.bf16.gmra.mxu0 %v453
        %v725 = vpop.f32.mrf.mxu0
        %v726 = vadd.f32 %v707, %v725
        %v727 = vpop.f32.mrf.mxu0
        %v728 = vadd.f32 %v709, %v727
        %729 = vdwg.mxu0
        %p730 = scmp.eq.s32.totalorder %s22, 0
        // Predicated region
        $region68: #{scob_forward.48} parent=62 // pred_check
          %p731 = pneg %p730
        $region69: #{scob_forward.48} parent=62 // pred_check_branch
          %733 = sbr.rel (%p731) target = $region71
        $region70: #{scob_forward.48} parent=62 // pred_region
          %734 = vst [vmem:[#allocation2] sm:$0xff] 0.0
          %735 = vst [vmem:[#allocation2 + $0x8] sm:$0xff] 0.0
          %736 = vst [vmem:[#allocation2 + $0x10] sm:$0xff] 0.0
          %737 = vst [vmem:[#allocation2 + $0x18] sm:$0xff] 0.0
        $region71: #{scob_forward.48} parent=62 // pred_fallthru
          _
        %v738 = vld [vmem:[#allocation2] sm:$0xff]
        %v739 = vld [vmem:[#allocation2 + $0x8] sm:$0xff]
        %v740 = vld [vmem:[#allocation2 + $0x10] sm:$0xff]
        %v741 = vld [vmem:[#allocation2 + $0x18] sm:$0xff]
        %v742 = vadd.f32 %v738, %v721
        %v743 = vadd.f32 %v739, %v723
        %v744 = vadd.f32 %v740, %v726
        %v745 = vadd.f32 %v741, %v728
        %746 = vst [vmem:[#allocation2] sm:$0xff] %v742
        %747 = vst [vmem:[#allocation2 + $0x8] sm:$0xff] %v743
        %748 = vst [vmem:[#allocation2 + $0x10] sm:$0xff] %v744
        %749 = vst [vmem:[#allocation2 + $0x18] sm:$0xff] %v745
        %p750 = scmp.eq.s32.totalorder %s22, 3
        // Predicated region
        $region72: #{scob_forward.48} parent=62 // pred_check
          %p751 = pneg %p750
        $region73: #{scob_forward.48} parent=62 // pred_check_branch
          %753 = sbr.rel (%p751) target = $region75
        $region74: #{scob_forward.48} parent=62 // pred_region
          %v754 = vld [vmem:[#allocation2] sm:$0xff]
          %v755 = vld [vmem:[#allocation2 + $0x8] sm:$0xff]
          %v756 = vld [vmem:[#allocation2 + $0x10] sm:$0xff]
          %v757 = vld [vmem:[#allocation2 + $0x18] sm:$0xff]
          %v758 = vld [vmem:[%s2] sm:$0x1]
          %v760 = vperm.slane %v758, 0
          %v762 = vadd.f32 %v754, %v760
          %v763 = vadd.f32 %v755, %v760
          %v764 = vadd.f32 %v756, %v760
          %v765 = vadd.f32 %v757, %v760
          %v766 = vld [vmem:[%s342] sm:$0xf]
          %v767 = vld [vmem:[%s342 + $0x4] sm:$0xf]
          %v768 = vld [vmem:[%s342 + $0x8] sm:$0xf]
          %v769 = vld [vmem:[%s342 + $0xc] sm:$0xf]
          %v770 = vunpack.c.l.bf16 %v766
          %v771 = vunpack.c.l.bf16 %v767
          %v772 = vunpack.c.l.bf16 %v768
          %v773 = vunpack.c.l.bf16 %v769
          %v774 = vadd.f32 %v762, %v770
          %v775 = vadd.f32 %v763, %v771
          %v776 = vadd.f32 %v764, %v772
          %v777 = vadd.f32 %v765, %v773
          %v778 = vlaneseq
          %v779 = vand.u32 %v778, 127
          %vm780 = vcmp.lt.s32.totalorder %v779, 16
          %v781 = vsel %vm780, %v774, 0.0
          %v782 = vsel %vm780, %v775, 0.0
          %v783 = vsel %vm780, %v776, 0.0
          %v784 = vsel %vm780, %v777, 0.0
          %785 = vadd.xlane.f32.xlu0 %v781
          %v786 = vpop.xlane.xlu0 %785
          %787 = vadd.xlane.f32.xlu0 %v782
          %v788 = vpop.xlane.xlu0 %787
          %789 = vadd.xlane.f32.xlu0 %v783
          %v790 = vpop.xlane.xlu0 %789
          %791 = vadd.xlane.f32.xlu0 %v784
          %v792 = vpop.xlane.xlu0 %791
          %v793 = vmul.f32 %v786, 0.0625
          %v794 = vmul.f32 %v788, 0.0625
          %v795 = vmul.f32 %v790, 0.0625
          %v796 = vmul.f32 %v792, 0.0625
          %v797 = vsub.f32 %v774, %v793
          %v798 = vsub.f32 %v775, %v794
          %v799 = vsub.f32 %v776, %v795
          %v800 = vsub.f32 %v777, %v796
          %v801 = vsel %vm780, %v797, 0.0
          %v802 = vsel %vm780, %v798, 0.0
          %v803 = vsel %vm780, %v799, 0.0
          %v804 = vsel %vm780, %v800, 0.0
          %v805 = vmul.f32 %v801, %v801
          %v806 = vmul.f32 %v802, %v802
          %v807 = vmul.f32 %v803, %v803
          %v808 = vmul.f32 %v804, %v804
          %809 = vadd.xlane.f32.xlu0 %v805
          %v810 = vpop.xlane.xlu0 %809
          %811 = vadd.xlane.f32.xlu0 %v806
          %v812 = vpop.xlane.xlu0 %811
          %813 = vadd.xlane.f32.xlu0 %v807
          %v814 = vpop.xlane.xlu0 %813
          %815 = vadd.xlane.f32.xlu0 %v808
          %v816 = vpop.xlane.xlu0 %815
          %v817 = vmul.f32 %v810, 0.0625
          %v818 = vmul.f32 %v812, 0.0625
          %v819 = vmul.f32 %v814, 0.0625
          %v820 = vmul.f32 %v816, 0.0625
          %v821 = vadd.f32 %v817, 1e-05
          %v822 = vadd.f32 %v818, 1e-05
          %v823 = vadd.f32 %v819, 1e-05
          %v824 = vadd.f32 %v820, 1e-05
          %v825 = vrsqrt.pop %v821
          %v826 = vmul.f32 %v825, %v821
          %v827 = vmul.f32 %v826, %v825
          %v828 = vmul.f32 0.5, %v827
          %v829 = vsub.f32 1.5, %v828
          %v830 = vmul.f32 %v825, %v829
          %vm831 = vweird.f32 %v821
          %vm832 = vweird.f32 %v825
          %vm833 = vmor %vm831, %vm832
          %v834 = vsel %vm833, %v825, %v830
          %v835 = vrsqrt.pop %v822
          %v836 = vmul.f32 %v835, %v822
          %v837 = vmul.f32 %v836, %v835
          %v838 = vmul.f32 0.5, %v837
          %v839 = vsub.f32 1.5, %v838
          %v840 = vmul.f32 %v835, %v839
          %vm841 = vweird.f32 %v822
          %vm842 = vweird.f32 %v835
          %vm843 = vmor %vm841, %vm842
          %v844 = vsel %vm843, %v835, %v840
          %v845 = vrsqrt.pop %v823
          %v846 = vmul.f32 %v845, %v823
          %v847 = vmul.f32 %v846, %v845
          %v848 = vmul.f32 0.5, %v847
          %v849 = vsub.f32 1.5, %v848
          %v850 = vmul.f32 %v845, %v849
          %vm851 = vweird.f32 %v823
          %vm852 = vweird.f32 %v845
          %vm853 = vmor %vm851, %vm852
          %v854 = vsel %vm853, %v845, %v850
          %v855 = vrsqrt.pop %v824
          %v856 = vmul.f32 %v855, %v824
          %v857 = vmul.f32 %v856, %v855
          %v858 = vmul.f32 0.5, %v857
          %v859 = vsub.f32 1.5, %v858
          %v860 = vmul.f32 %v855, %v859
          %vm861 = vweird.f32 %v824
          %vm862 = vweird.f32 %v855
          %vm863 = vmor %vm861, %vm862
          %v864 = vsel %vm863, %v855, %v860
          %v865 = vmul.f32 %v801, %v834
          %v866 = vmul.f32 %v802, %v844
          %v867 = vmul.f32 %v803, %v854
          %v868 = vmul.f32 %v804, %v864
          %v869 = vld [vmem:[%s4] sm:$0x1]
          %v871 = vperm.slane %v869, 0
          %v873 = vmul.f32 %v865, %v871
          %v874 = vmul.f32 %v866, %v871
          %v875 = vmul.f32 %v867, %v871
          %v876 = vmul.f32 %v868, %v871
          %v877 = vld [vmem:[%s5] sm:$0x1]
          %v879 = vperm.slane %v877, 0
          %v881 = vadd.f32 %v873, %v879
          %v882 = vadd.f32 %v874, %v879
          %v883 = vadd.f32 %v875, %v879
          %v884 = vadd.f32 %v876, %v879
          %v885 = vpack.c.bf16 %v881, %v881
          %v886 = vpack.c.bf16 %v882, %v882
          %v887 = vpack.c.bf16 %v883, %v883
          %v888 = vpack.c.bf16 %v884, %v884
          %889 = vst [vmem:[%s348] sm:$0xf] %v885
          %890 = vst [vmem:[%s348 + $0x4] sm:$0xf] %v886
          %891 = vst [vmem:[%s348 + $0x8] sm:$0xf] %v887
          %892 = vst [vmem:[%s348 + $0xc] sm:$0xf] %v888
        $region75: #{scob_forward.48} parent=62 // pred_fallthru
          _
        %s893 = smul.u32 4, %s21
        %p894 = scmp.lt.s32.totalorder %s893, 3
        %s895 = scalar_select %p894, %s893, 3
        %s896 = smul.addr %s895, 4
        %s897 = scalar_lea.vmem %s6, %s896
        // Predicated region
        $region76: #{scob_forward.48} parent=62 // pred_check
          %p898 = pneg %p190
        $region77: #{scob_forward.48} parent=62 // pred_check_branch
          %900 = sbr.rel (%p898) target = $region79
        $region78: #{scob_forward.48} parent=62 // pred_region
          %s901 = smul.u32 4, %s21
        $region79: #{scob_forward.48} parent=62 // pred_fallthru
          _
        // Predicated region
        $region80: #{scob_forward.48} parent=62 // pred_check
          %p902 = pneg %p190
        $region81: #{scob_forward.48} parent=62 // pred_check_branch
          %904 = sbr.rel (%p902) target = $region83
        $region82: #{scob_forward.48} parent=62 // pred_region
          %s905 = smul.u32 4, %s21
          %p906 = scmp.lt.s32.totalorder %s905, 3
          %s907 = scalar_select %p906, %s905, 3
          %s908 = smul.addr %s907, 4
          %s909 = scalar_lea.vmem %s6, %s908
        $region83: #{scob_forward.48} parent=62 // pred_fallthru
          _
      $region63: #{scob_forward.48} parent=5 // pred_fallthru
        _
      %p910 = scmp.le.s32.totalorder 2, %s12
      // Predicated region
      $region84: #{scob_forward.48} parent=5 // pred_check
        %p911 = pneg %p910
      $region85: #{scob_forward.48} parent=5 // pred_check_branch
        %913 = sbr.rel (%p911) target = $region87
      $region86: #{scob_forward.48} parent=5 // pred_region
        %s914 = ssub.s32 %s12, 2
      $region87: #{scob_forward.48} parent=5 // pred_fallthru
        _
    $region6: #{scob_forward.48} parent=1 // loop_footer
      %s16 = sadd.s32 1, %s12
    $region7: #{scob_forward.48} parent=1 // loop_footer_branch
      %11 = sbr.rel target = $region3
    $region8: #{scob_forward.48} parent=1 // loop_exit
      _

// kernel: scob_forward.47
$region0: #{scob_forward.47}
  #allocation0 [shape = 'u32[]', space=smem, size = 0x4, offset = 0x4, fixed_abs, tag = 'smem constant byte address 0x4 - core index']
  #allocation1 [shape = 'u32[72,128]{1,0:T(1,128)}', space=vmem, size = 0x9000, scoped, tag = 'internal scratch']
  %s0 = inlined_call_operand.vmem [shape: bf16[32,128], index: 0, kind: input, shape index: {}]
  %s1 = inlined_call_operand.vmem [shape: bf16[128,2048], index: 1, kind: input, shape index: {}]
  %s2 = inlined_call_operand.vmem [shape: f32[1,2048], index: 2, kind: input, shape index: {}]
  %s3 = inlined_call_operand.vmem [shape: bf16[32,2048], index: 3, kind: output, shape index: {}]
  %s4 = sld [smem:[#allocation0]]
  $region22: #{scob_forward.47} parent=0
    _
  %s6 = ssub.s32 1, %s4
  %s7 = scalar_select 0, %s6, %s4
  // Predicated region
  $region2: #{scob_forward.47} parent=0 // pred_check
    _
  $region3: #{scob_forward.47} parent=0 // pred_check_branch
    %9 = sbr.rel (0) target = $region5
  $region4: #{scob_forward.47} parent=0 // pred_region
    _
  $region5: #{scob_forward.47} parent=0 // pred_fallthru
    _
  // Predicated region
  $region6: #{scob_forward.47} parent=0 // pred_check
    _
  $region7: #{scob_forward.47} parent=0 // pred_check_branch
    %11 = sbr.rel (0) target = $region9
  $region8: #{scob_forward.47} parent=0 // pred_region
    _
  $region9: #{scob_forward.47} parent=0 // pred_fallthru
    _
  // Predicated region
  $region10: #{scob_forward.47} parent=0 // pred_check
    _
  $region11: #{scob_forward.47} parent=0 // pred_check_branch
    %13 = sbr.rel (0) target = $region13
  $region12: #{scob_forward.47} parent=0 // pred_region
    _
  $region13: #{scob_forward.47} parent=0 // pred_fallthru
    _
  %v14 = vld [vmem:[%s0] sm:$0xf]
  %v15 = vld [vmem:[%s0 + $0x4] sm:$0xf]
  %v16 = vld [vmem:[%s0 + $0x8] sm:$0xf]
  %v17 = vld [vmem:[%s0 + $0xc] sm:$0xf]
  %v18 = vld [vmem:[%s1] sm:$0xff]
  %v19 = vld [vmem:[%s1 + $0x8] sm:$0xff]
  %v20 = vld [vmem:[%s1 + $0x10] sm:$0xff]
  %v21 = vld [vmem:[%s1 + $0x18] sm:$0xff]
  %v22 = vld [vmem:[%s1 + $0x20] sm:$0xff]
  %v23 = vld [vmem:[%s1 + $0x28] sm:$0xff]
  %v24 = vld [vmem:[%s1 + $0x30] sm:$0xff]
  %v25 = vld [vmem:[%s1 + $0x38] sm:$0xff]
  %v26 = vld [vmem:[%s1 + $0x40] sm:$0xff]
  %v27 = vld [vmem:[%s1 + $0x48] sm:$0xff]
  %v28 = vld [vmem:[%s1 + $0x50] sm:$0xff]
  %v29 = vld [vmem:[%s1 + $0x58] sm:$0xff]
  %v30 = vld [vmem:[%s1 + $0x60] sm:$0xff]
  %v31 = vld [vmem:[%s1 + $0x68] sm:$0xff]
  %v32 = vld [vmem:[%s1 + $0x70] sm:$0xff]
  %v33 = vld [vmem:[%s1 + $0x78] sm:$0xff]
  %v34 = vld [vmem:[%s1 + $0x80] sm:$0xff]
  %v35 = vld [vmem:[%s1 + $0x88] sm:$0xff]
  %v36 = vld [vmem:[%s1 + $0x90] sm:$0xff]
  %v37 = vld [vmem:[%s1 + $0x98] sm:$0xff]
  %v38 = vld [vmem:[%s1 + $0xa0] sm:$0xff]
  %v39 = vld [vmem:[%s1 + $0xa8] sm:$0xff]
  %v40 = vld [vmem:[%s1 + $0xb0] sm:$0xff]
  %v41 = vld [vmem:[%s1 + $0xb8] sm:$0xff]
  %v42 = vld [vmem:[%s1 + $0xc0] sm:$0xff]
  %v43 = vld [vmem:[%s1 + $0xc8] sm:$0xff]
  %v44 = vld [vmem:[%s1 + $0xd0] sm:$0xff]
  %v45 = vld [vmem:[%s1 + $0xd8] sm:$0xff]
  %v46 = vld [vmem:[%s1 + $0xe0] sm:$0xff]
  %v47 = vld [vmem:[%s1 + $0xe8] sm:$0xff]
  %v48 = vld [vmem:[%s1 + $0xf0] sm:$0xff]
  %v49 = vld [vmem:[%s1 + $0xf8] sm:$0xff]
  %v50 = vld [vmem:[%s1 + $0x100] sm:$0xff]
  %v51 = vld [vmem:[%s1 + $0x108] sm:$0xff]
  %v52 = vld [vmem:[%s1 + $0x110] sm:$0xff]
  %v53 = vld [vmem:[%s1 + $0x118] sm:$0xff]
  %v54 = vld [vmem:[%s1 + $0x120] sm:$0xff]
  %v55 = vld [vmem:[%s1 + $0x128] sm:$0xff]
  %v56 = vld [vmem:[%s1 + $0x130] sm:$0xff]
  %v57 = vld [vmem:[%s1 + $0x138] sm:$0xff]
  %v58 = vld [vmem:[%s1 + $0x140] sm:$0xff]
  %v59 = vld [vmem:[%s1 + $0x148] sm:$0xff]
  %v60 = vld [vmem:[%s1 + $0x150] sm:$0xff]
  %v61 = vld [vmem:[%s1 + $0x158] sm:$0xff]
  %v62 = vld [vmem:[%s1 + $0x160] sm:$0xff]
  %v63 = vld [vmem:[%s1 + $0x168] sm:$0xff]
  %v64 = vld [vmem:[%s1 + $0x170] sm:$0xff]
  %v65 = vld [vmem:[%s1 + $0x178] sm:$0xff]
  %v66 = vld [vmem:[%s1 + $0x180] sm:$0xff]
  %v67 = vld [vmem:[%s1 + $0x188] sm:$0xff]
  %v68 = vld [vmem:[%s1 + $0x190] sm:$0xff]
  %v69 = vld [vmem:[%s1 + $0x198] sm:$0xff]
  %v70 = vld [vmem:[%s1 + $0x1a0] sm:$0xff]
  %v71 = vld [vmem:[%s1 + $0x1a8] sm:$0xff]
  %v72 = vld [vmem:[%s1 + $0x1b0] sm:$0xff]
  %v73 = vld [vmem:[%s1 + $0x1b8] sm:$0xff]
  %v74 = vld [vmem:[%s1 + $0x1c0] sm:$0xff]
  %v75 = vld [vmem:[%s1 + $0x1c8] sm:$0xff]
  %v76 = vld [vmem:[%s1 + $0x1d0] sm:$0xff]
  %v77 = vld [vmem:[%s1 + $0x1d8] sm:$0xff]
  %v78 = vld [vmem:[%s1 + $0x1e0] sm:$0xff]
  %v79 = vld [vmem:[%s1 + $0x1e8] sm:$0xff]
  %v80 = vld [vmem:[%s1 + $0x1f0] sm:$0xff]
  %v81 = vld [vmem:[%s1 + $0x1f8] sm:$0xff]
  %v82 = vld [vmem:[%s1 + $0x200] sm:$0xff]
  %v83 = vld [vmem:[%s1 + $0x208] sm:$0xff]
  %v84 = vld [vmem:[%s1 + $0x210] sm:$0xff]
  %v85 = vld [vmem:[%s1 + $0x218] sm:$0xff]
  %v86 = vld [vmem:[%s1 + $0x220] sm:$0xff]
  %v87 = vld [vmem:[%s1 + $0x228] sm:$0xff]
  %v88 = vld [vmem:[%s1 + $0x230] sm:$0xff]
  %v89 = vld [vmem:[%s1 + $0x238] sm:$0xff]
  %v90 = vld [vmem:[%s1 + $0x240] sm:$0xff]
  %v91 = vld [vmem:[%s1 + $0x248] sm:$0xff]
  %v92 = vld [vmem:[%s1 + $0x250] sm:$0xff]
  %v93 = vld [vmem:[%s1 + $0x258] sm:$0xff]
  %v94 = vld [vmem:[%s1 + $0x260] sm:$0xff]
  %v95 = vld [vmem:[%s1 + $0x268] sm:$0xff]
  %v96 = vld [vmem:[%s1 + $0x270] sm:$0xff]
  %v97 = vld [vmem:[%s1 + $0x278] sm:$0xff]
  %v98 = vld [vmem:[%s1 + $0x280] sm:$0xff]
  %v99 = vld [vmem:[%s1 + $0x288] sm:$0xff]
  %v100 = vld [vmem:[%s1 + $0x290] sm:$0xff]
  %v101 = vld [vmem:[%s1 + $0x298] sm:$0xff]
  %v102 = vld [vmem:[%s1 + $0x2a0] sm:$0xff]
  %v103 = vld [vmem:[%s1 + $0x2a8] sm:$0xff]
  %v104 = vld [vmem:[%s1 + $0x2b0] sm:$0xff]
  %v105 = vld [vmem:[%s1 + $0x2b8] sm:$0xff]
  %v106 = vld [vmem:[%s1 + $0x2c0] sm:$0xff]
  %v107 = vld [vmem:[%s1 + $0x2c8] sm:$0xff]
  %v108 = vld [vmem:[%s1 + $0x2d0] sm:$0xff]
  %v109 = vld [vmem:[%s1 + $0x2d8] sm:$0xff]
  %v110 = vld [vmem:[%s1 + $0x2e0] sm:$0xff]
  %v111 = vld [vmem:[%s1 + $0x2e8] sm:$0xff]
  %v112 = vld [vmem:[%s1 + $0x2f0] sm:$0xff]
  %v113 = vld [vmem:[%s1 + $0x2f8] sm:$0xff]
  %v114 = vld [vmem:[%s1 + $0x300] sm:$0xff]
  %v115 = vld [vmem:[%s1 + $0x308] sm:$0xff]
  %v116 = vld [vmem:[%s1 + $0x310] sm:$0xff]
  %v117 = vld [vmem:[%s1 + $0x318] sm:$0xff]
  %v118 = vld [vmem:[%s1 + $0x320] sm:$0xff]
  %v119 = vld [vmem:[%s1 + $0x328] sm:$0xff]
  %v120 = vld [vmem:[%s1 + $0x330] sm:$0xff]
  %v121 = vld [vmem:[%s1 + $0x338] sm:$0xff]
  %v122 = vld [vmem:[%s1 + $0x340] sm:$0xff]
  %v123 = vld [vmem:[%s1 + $0x348] sm:$0xff]
  %v124 = vld [vmem:[%s1 + $0x350] sm:$0xff]
  %v125 = vld [vmem:[%s1 + $0x358] sm:$0xff]
  %v126 = vld [vmem:[%s1 + $0x360] sm:$0xff]
  %v127 = vld [vmem:[%s1 + $0x368] sm:$0xff]
  %v128 = vld [vmem:[%s1 + $0x370] sm:$0xff]
  %v129 = vld [vmem:[%s1 + $0x378] sm:$0xff]
  %v130 = vld [vmem:[%s1 + $0x380] sm:$0xff]
  %v131 = vld [vmem:[%s1 + $0x388] sm:$0xff]
  %v132 = vld [vmem:[%s1 + $0x390] sm:$0xff]
  %v133 = vld [vmem:[%s1 + $0x398] sm:$0xff]
  %v134 = vld [vmem:[%s1 + $0x3a0] sm:$0xff]
  %v135 = vld [vmem:[%s1 + $0x3a8] sm:$0xff]
  %v136 = vld [vmem:[%s1 + $0x3b0] sm:$0xff]
  %v137 = vld [vmem:[%s1 + $0x3b8] sm:$0xff]
  %v138 = vld [vmem:[%s1 + $0x3c0] sm:$0xff]
  %v139 = vld [vmem:[%s1 + $0x3c8] sm:$0xff]
  %v140 = vld [vmem:[%s1 + $0x3d0] sm:$0xff]
  %v141 = vld [vmem:[%s1 + $0x3d8] sm:$0xff]
  %v142 = vld [vmem:[%s1 + $0x3e0] sm:$0xff]
  %v143 = vld [vmem:[%s1 + $0x3e8] sm:$0xff]
  %v144 = vld [vmem:[%s1 + $0x3f0] sm:$0xff]
  %v145 = vld [vmem:[%s1 + $0x3f8] sm:$0xff]
  %v146 = vld [vmem:[%s2] sm:$0xff]
  %v147 = vld [vmem:[%s2 + $0x8] sm:$0xff]
  %v150 = vperm.slane %v146, 0
  %v151 = vperm.slane %v146, 1
  %v152 = vperm.slane %v146, 2
  %v153 = vperm.slane %v146, 3
  %v154 = vperm.slane %v146, 4
  %v155 = vperm.slane %v146, 5
  %v156 = vperm.slane %v146, 6
  %v157 = vperm.slane %v146, 7
  %v158 = vperm.slane %v147, 0
  %v159 = vperm.slane %v147, 1
  %v160 = vperm.slane %v147, 2
  %v161 = vperm.slane %v147, 3
  %v162 = vperm.slane %v147, 4
  %v163 = vperm.slane %v147, 5
  %v164 = vperm.slane %v147, 6
  %v165 = vperm.slane %v147, 7
  %v186 = vunpack.c.l.b16 %v14
  %v187 = vunpack.c.l.b16 %v15
  %v188 = vunpack.c.l.b16 %v16
  %v189 = vunpack.c.l.b16 %v17
  %v190 = vpack.c.b16 %v187, %v186
  %v191 = vpack.c.b16 %v189, %v188
  %v322 = vunpack.c.l.b16 %v18
  %v323 = vunpack.c.h.b16 %v18
  %v324 = vunpack.c.l.b16 %v19
  %v325 = vunpack.c.h.b16 %v19
  %v326 = vunpack.c.l.b16 %v20
  %v327 = vunpack.c.h.b16 %v20
  %v328 = vunpack.c.l.b16 %v21
  %v329 = vunpack.c.h.b16 %v21
  %v330 = vunpack.c.l.b16 %v22
  %v331 = vunpack.c.h.b16 %v22
  %v332 = vunpack.c.l.b16 %v23
  %v333 = vunpack.c.h.b16 %v23
  %v334 = vunpack.c.l.b16 %v24
  %v335 = vunpack.c.h.b16 %v24
  %v336 = vunpack.c.l.b16 %v25
  %v337 = vunpack.c.h.b16 %v25
  %v338 = vunpack.c.l.b16 %v26
  %v339 = vunpack.c.h.b16 %v26
  %v340 = vunpack.c.l.b16 %v27
  %v341 = vunpack.c.h.b16 %v27
  %v342 = vunpack.c.l.b16 %v28
  %v343 = vunpack.c.h.b16 %v28
  %v344 = vunpack.c.l.b16 %v29
  %v345 = vunpack.c.h.b16 %v29
  %v346 = vunpack.c.l.b16 %v30
  %v347 = vunpack.c.h.b16 %v30
  %v348 = vunpack.c.l.b16 %v31
  %v349 = vunpack.c.h.b16 %v31
  %v350 = vunpack.c.l.b16 %v32
  %v351 = vunpack.c.h.b16 %v32
  %v352 = vunpack.c.l.b16 %v33
  %v353 = vunpack.c.h.b16 %v33
  %v354 = vunpack.c.l.b16 %v34
  %v355 = vunpack.c.h.b16 %v34
  %v356 = vunpack.c.l.b16 %v35
  %v357 = vunpack.c.h.b16 %v35
  %v358 = vunpack.c.l.b16 %v36
  %v359 = vunpack.c.h.b16 %v36
  %v360 = vunpack.c.l.b16 %v37
  %v361 = vunpack.c.h.b16 %v37
  %v362 = vunpack.c.l.b16 %v38
  %v363 = vunpack.c.h.b16 %v38
  %v364 = vunpack.c.l.b16 %v39
  %v365 = vunpack.c.h.b16 %v39
  %v366 = vunpack.c.l.b16 %v40
  %v367 = vunpack.c.h.b16 %v40
  %v368 = vunpack.c.l.b16 %v41
  %v369 = vunpack.c.h.b16 %v41
  %v370 = vunpack.c.l.b16 %v42
  %v371 = vunpack.c.h.b16 %v42
  %v372 = vunpack.c.l.b16 %v43
  %v373 = vunpack.c.h.b16 %v43
  %v374 = vunpack.c.l.b16 %v44
  %v375 = vunpack.c.h.b16 %v44
  %v376 = vunpack.c.l.b16 %v45
  %v377 = vunpack.c.h.b16 %v45
  %v378 = vunpack.c.l.b16 %v46
  %v379 = vunpack.c.h.b16 %v46
  %v380 = vunpack.c.l.b16 %v47
  %v381 = vunpack.c.h.b16 %v47
  %v382 = vunpack.c.l.b16 %v48
  %v383 = vunpack.c.h.b16 %v48
  %v384 = vunpack.c.l.b16 %v49
  %v385 = vunpack.c.h.b16 %v49
  %v386 = vunpack.c.l.b16 %v50
  %v387 = vunpack.c.h.b16 %v50
  %v388 = vunpack.c.l.b16 %v51
  %v389 = vunpack.c.h.b16 %v51
  %v390 = vunpack.c.l.b16 %v52
  %v391 = vunpack.c.h.b16 %v52
  %v392 = vunpack.c.l.b16 %v53
  %v393 = vunpack.c.h.b16 %v53
  %v394 = vunpack.c.l.b16 %v54
  %v395 = vunpack.c.h.b16 %v54
  %v396 = vunpack.c.l.b16 %v55
  %v397 = vunpack.c.h.b16 %v55
  %v398 = vunpack.c.l.b16 %v56
  %v399 = vunpack.c.h.b16 %v56
  %v400 = vunpack.c.l.b16 %v57
  %v401 = vunpack.c.h.b16 %v57
  %v402 = vunpack.c.l.b16 %v58
  %v403 = vunpack.c.h.b16 %v58
  %v404 = vunpack.c.l.b16 %v59
  %v405 = vunpack.c.h.b16 %v59
  %v406 = vunpack.c.l.b16 %v60
  %v407 = vunpack.c.h.b16 %v60
  %v408 = vunpack.c.l.b16 %v61
  %v409 = vunpack.c.h.b16 %v61
  %v410 = vunpack.c.l.b16 %v62
  %v411 = vunpack.c.h.b16 %v62
  %v412 = vunpack.c.l.b16 %v63
  %v413 = vunpack.c.h.b16 %v63
  %v414 = vunpack.c.l.b16 %v64
  %v415 = vunpack.c.h.b16 %v64
  %v416 = vunpack.c.l.b16 %v65
  %v417 = vunpack.c.h.b16 %v65
  %v418 = vunpack.c.l.b16 %v66
  %v419 = vunpack.c.h.b16 %v66
  %v420 = vunpack.c.l.b16 %v67
  %v421 = vunpack.c.h.b16 %v67
  %v422 = vunpack.c.l.b16 %v68
  %v423 = vunpack.c.h.b16 %v68
  %v424 = vunpack.c.l.b16 %v69
  %v425 = vunpack.c.h.b16 %v69
  %v426 = vunpack.c.l.b16 %v70
  %v427 = vunpack.c.h.b16 %v70
  %v428 = vunpack.c.l.b16 %v71
  %v429 = vunpack.c.h.b16 %v71
  %v430 = vunpack.c.l.b16 %v72
  %v431 = vunpack.c.h.b16 %v72
  %v432 = vunpack.c.l.b16 %v73
  %v433 = vunpack.c.h.b16 %v73
  %v434 = vunpack.c.l.b16 %v74
  %v435 = vunpack.c.h.b16 %v74
  %v436 = vunpack.c.l.b16 %v75
  %v437 = vunpack.c.h.b16 %v75
  %v438 = vunpack.c.l.b16 %v76
  %v439 = vunpack.c.h.b16 %v76
  %v440 = vunpack.c.l.b16 %v77
  %v441 = vunpack.c.h.b16 %v77
  %v442 = vunpack.c.l.b16 %v78
  %v443 = vunpack.c.h.b16 %v78
  %v444 = vunpack.c.l.b16 %v79
  %v445 = vunpack.c.h.b16 %v79
  %v446 = vunpack.c.l.b16 %v80
  %v447 = vunpack.c.h.b16 %v80
  %v448 = vunpack.c.l.b16 %v81
  %v449 = vunpack.c.h.b16 %v81
  %v450 = vunpack.c.l.b16 %v82
  %v451 = vunpack.c.h.b16 %v82
  %v452 = vunpack.c.l.b16 %v83
  %v453 = vunpack.c.h.b16 %v83
  %v454 = vunpack.c.l.b16 %v84
  %v455 = vunpack.c.h.b16 %v84
  %v456 = vunpack.c.l.b16 %v85
  %v457 = vunpack.c.h.b16 %v85
  %v458 = vunpack.c.l.b16 %v86
  %v459 = vunpack.c.h.b16 %v86
  %v460 = vunpack.c.l.b16 %v87
  %v461 = vunpack.c.h.b16 %v87
  %v462 = vunpack.c.l.b16 %v88
  %v463 = vunpack.c.h.b16 %v88
  %v464 = vunpack.c.l.b16 %v89
  %v465 = vunpack.c.h.b16 %v89
  %v466 = vunpack.c.l.b16 %v90
  %v467 = vunpack.c.h.b16 %v90
  %v468 = vunpack.c.l.b16 %v91
  %v469 = vunpack.c.h.b16 %v91
  %v470 = vunpack.c.l.b16 %v92
  %v471 = vunpack.c.h.b16 %v92
  %v472 = vunpack.c.l.b16 %v93
  %v473 = vunpack.c.h.b16 %v93
  %v474 = vunpack.c.l.b16 %v94
  %v475 = vunpack.c.h.b16 %v94
  %v476 = vunpack.c.l.b16 %v95
  %v477 = vunpack.c.h.b16 %v95
  %v478 = vunpack.c.l.b16 %v96
  %v479 = vunpack.c.h.b16 %v96
  %v480 = vunpack.c.l.b16 %v97
  %v481 = vunpack.c.h.b16 %v97
  %v482 = vunpack.c.l.b16 %v98
  %v483 = vunpack.c.h.b16 %v98
  %v484 = vunpack.c.l.b16 %v99
  %v485 = vunpack.c.h.b16 %v99
  %v486 = vunpack.c.l.b16 %v100
  %v487 = vunpack.c.h.b16 %v100
  %v488 = vunpack.c.l.b16 %v101
  %v489 = vunpack.c.h.b16 %v101
  %v490 = vunpack.c.l.b16 %v102
  %v491 = vunpack.c.h.b16 %v102
  %v492 = vunpack.c.l.b16 %v103
  %v493 = vunpack.c.h.b16 %v103
  %v494 = vunpack.c.l.b16 %v104
  %v495 = vunpack.c.h.b16 %v104
  %v496 = vunpack.c.l.b16 %v105
  %v497 = vunpack.c.h.b16 %v105
  %v498 = vunpack.c.l.b16 %v106
  %v499 = vunpack.c.h.b16 %v106
  %v500 = vunpack.c.l.b16 %v107
  %v501 = vunpack.c.h.b16 %v107
  %v502 = vunpack.c.l.b16 %v108
  %v503 = vunpack.c.h.b16 %v108
  %v504 = vunpack.c.l.b16 %v109
  %v505 = vunpack.c.h.b16 %v109
  %v506 = vunpack.c.l.b16 %v110
  %v507 = vunpack.c.h.b16 %v110
  %v508 = vunpack.c.l.b16 %v111
  %v509 = vunpack.c.h.b16 %v111
  %v510 = vunpack.c.l.b16 %v112
  %v511 = vunpack.c.h.b16 %v112
  %v512 = vunpack.c.l.b16 %v113
  %v513 = vunpack.c.h.b16 %v113
  %v514 = vunpack.c.l.b16 %v114
  %v515 = vunpack.c.h.b16 %v114
  %v516 = vunpack.c.l.b16 %v115
  %v517 = vunpack.c.h.b16 %v115
  %v518 = vunpack.c.l.b16 %v116
  %v519 = vunpack.c.h.b16 %v116
  %v520 = vunpack.c.l.b16 %v117
  %v521 = vunpack.c.h.b16 %v117
  %v522 = vunpack.c.l.b16 %v118
  %v523 = vunpack.c.h.b16 %v118
  %v524 = vunpack.c.l.b16 %v119
  %v525 = vunpack.c.h.b16 %v119
  %v526 = vunpack.c.l.b16 %v120
  %v527 = vunpack.c.h.b16 %v120
  %v528 = vunpack.c.l.b16 %v121
  %v529 = vunpack.c.h.b16 %v121
  %v530 = vunpack.c.l.b16 %v122
  %v531 = vunpack.c.h.b16 %v122
  %v532 = vunpack.c.l.b16 %v123
  %v533 = vunpack.c.h.b16 %v123
  %v534 = vunpack.c.l.b16 %v124
  %v535 = vunpack.c.h.b16 %v124
  %v536 = vunpack.c.l.b16 %v125
  %v537 = vunpack.c.h.b16 %v125
  %v538 = vunpack.c.l.b16 %v126
  %v539 = vunpack.c.h.b16 %v126
  %v540 = vunpack.c.l.b16 %v127
  %v541 = vunpack.c.h.b16 %v127
  %v542 = vunpack.c.l.b16 %v128
  %v543 = vunpack.c.h.b16 %v128
  %v544 = vunpack.c.l.b16 %v129
  %v545 = vunpack.c.h.b16 %v129
  %v546 = vunpack.c.l.b16 %v130
  %v547 = vunpack.c.h.b16 %v130
  %v548 = vunpack.c.l.b16 %v131
  %v549 = vunpack.c.h.b16 %v131
  %v550 = vunpack.c.l.b16 %v132
  %v551 = vunpack.c.h.b16 %v132
  %v552 = vunpack.c.l.b16 %v133
  %v553 = vunpack.c.h.b16 %v133
  %v554 = vunpack.c.l.b16 %v134
  %v555 = vunpack.c.h.b16 %v134
  %v556 = vunpack.c.l.b16 %v135
  %v557 = vunpack.c.h.b16 %v135
  %v558 = vunpack.c.l.b16 %v136
  %v559 = vunpack.c.h.b16 %v136
  %v560 = vunpack.c.l.b16 %v137
  %v561 = vunpack.c.h.b16 %v137
  %v562 = vunpack.c.l.b16 %v138
  %v563 = vunpack.c.h.b16 %v138
  %v564 = vunpack.c.l.b16 %v139
  %v565 = vunpack.c.h.b16 %v139
  %v566 = vunpack.c.l.b16 %v140
  %v567 = vunpack.c.h.b16 %v140
  %v568 = vunpack.c.l.b16 %v141
  %v569 = vunpack.c.h.b16 %v141
  %v570 = vunpack.c.l.b16 %v142
  %v571 = vunpack.c.h.b16 %v142
  %v572 = vunpack.c.l.b16 %v143
  %v573 = vunpack.c.h.b16 %v143
  %v574 = vunpack.c.l.b16 %v144
  %v575 = vunpack.c.h.b16 %v144
  %v576 = vunpack.c.l.b16 %v145
  %v577 = vunpack.c.h.b16 %v145
  %v578 = vpack.c.b16 %v338, %v322
  %v579 = vpack.c.b16 %v339, %v323
  %v580 = vpack.c.b16 %v340, %v324
  %v581 = vpack.c.b16 %v341, %v325
  %v582 = vpack.c.b16 %v342, %v326
  %v583 = vpack.c.b16 %v343, %v327
  %v584 = vpack.c.b16 %v344, %v328
  %v585 = vpack.c.b16 %v345, %v329
  %v586 = vpack.c.b16 %v346, %v330
  %v587 = vpack.c.b16 %v347, %v331
  %v588 = vpack.c.b16 %v348, %v332
  %v589 = vpack.c.b16 %v349, %v333
  %v590 = vpack.c.b16 %v350, %v334
  %v591 = vpack.c.b16 %v351, %v335
  %v592 = vpack.c.b16 %v352, %v336
  %v593 = vpack.c.b16 %v353, %v337
  %v594 = vpack.c.b16 %v370, %v354
  %v595 = vpack.c.b16 %v371, %v355
  %v596 = vpack.c.b16 %v372, %v356
  %v597 = vpack.c.b16 %v373, %v357
  %v598 = vpack.c.b16 %v374, %v358
  %v599 = vpack.c.b16 %v375, %v359
  %v600 = vpack.c.b16 %v376, %v360
  %v601 = vpack.c.b16 %v377, %v361
  %v602 = vpack.c.b16 %v378, %v362
  %v603 = vpack.c.b16 %v379, %v363
  %v604 = vpack.c.b16 %v380, %v364
  %v605 = vpack.c.b16 %v381, %v365
  %v606 = vpack.c.b16 %v382, %v366
  %v607 = vpack.c.b16 %v383, %v367
  %v608 = vpack.c.b16 %v384, %v368
  %v609 = vpack.c.b16 %v385, %v369
  %v610 = vpack.c.b16 %v402, %v386
  %v611 = vpack.c.b16 %v403, %v387
  %v612 = vpack.c.b16 %v404, %v388
  %v613 = vpack.c.b16 %v405, %v389
  %v614 = vpack.c.b16 %v406, %v390
  %v615 = vpack.c.b16 %v407, %v391
  %v616 = vpack.c.b16 %v408, %v392
  %v617 = vpack.c.b16 %v409, %v393
  %v618 = vpack.c.b16 %v410, %v394
  %v619 = vpack.c.b16 %v411, %v395
  %v620 = vpack.c.b16 %v412, %v396
  %v621 = vpack.c.b16 %v413, %v397
  %v622 = vpack.c.b16 %v414, %v398
  %v623 = vpack.c.b16 %v415, %v399
  %v624 = vpack.c.b16 %v416, %v400
  %v625 = vpack.c.b16 %v417, %v401
  %v626 = vpack.c.b16 %v434, %v418
  %v627 = vpack.c.b16 %v435, %v419
  %v628 = vpack.c.b16 %v436, %v420
  %v629 = vpack.c.b16 %v437, %v421
  %v630 = vpack.c.b16 %v438, %v422
  %v631 = vpack.c.b16 %v439, %v423
  %v632 = vpack.c.b16 %v440, %v424
  %v633 = vpack.c.b16 %v441, %v425
  %v634 = vpack.c.b16 %v442, %v426
  %v635 = vpack.c.b16 %v443, %v427
  %v636 = vpack.c.b16 %v444, %v428
  %v637 = vpack.c.b16 %v445, %v429
  %v638 = vpack.c.b16 %v446, %v430
  %v639 = vpack.c.b16 %v447, %v431
  %v640 = vpack.c.b16 %v448, %v432
  %v641 = vpack.c.b16 %v449, %v433
  %v642 = vpack.c.b16 %v466, %v450
  %v643 = vpack.c.b16 %v467, %v451
  %v644 = vpack.c.b16 %v468, %v452
  %v645 = vpack.c.b16 %v469, %v453
  %v646 = vpack.c.b16 %v470, %v454
  %v647 = vpack.c.b16 %v471, %v455
  %v648 = vpack.c.b16 %v472, %v456
  %v649 = vpack.c.b16 %v473, %v457
  %v650 = vpack.c.b16 %v474, %v458
  %v651 = vpack.c.b16 %v475, %v459
  %v652 = vpack.c.b16 %v476, %v460
  %v653 = vpack.c.b16 %v477, %v461
  %v654 = vpack.c.b16 %v478, %v462
  %v655 = vpack.c.b16 %v479, %v463
  %v656 = vpack.c.b16 %v480, %v464
  %v657 = vpack.c.b16 %v481, %v465
  %v658 = vpack.c.b16 %v498, %v482
  %v659 = vpack.c.b16 %v499, %v483
  %v660 = vpack.c.b16 %v500, %v484
  %v661 = vpack.c.b16 %v501, %v485
  %v662 = vpack.c.b16 %v502, %v486
  %v663 = vpack.c.b16 %v503, %v487
  %v664 = vpack.c.b16 %v504, %v488
  %v665 = vpack.c.b16 %v505, %v489
  %v666 = vpack.c.b16 %v506, %v490
  %v667 = vpack.c.b16 %v507, %v491
  %v668 = vpack.c.b16 %v508, %v492
  %v669 = vpack.c.b16 %v509, %v493
  %v670 = vpack.c.b16 %v510, %v494
  %v671 = vpack.c.b16 %v511, %v495
  %v672 = vpack.c.b16 %v512, %v496
  %v673 = vpack.c.b16 %v513, %v497
  %v674 = vpack.c.b16 %v530, %v514
  %v675 = vpack.c.b16 %v531, %v515
  %v676 = vpack.c.b16 %v532, %v516
  %v677 = vpack.c.b16 %v533, %v517
  %v678 = vpack.c.b16 %v534, %v518
  %v679 = vpack.c.b16 %v535, %v519
  %v680 = vpack.c.b16 %v536, %v520
  %v681 = vpack.c.b16 %v537, %v521
  %v682 = vpack.c.b16 %v538, %v522
  %v683 = vpack.c.b16 %v539, %v523
  %v684 = vpack.c.b16 %v540, %v524
  %v685 = vpack.c.b16 %v541, %v525
  %v686 = vpack.c.b16 %v542, %v526
  %v687 = vpack.c.b16 %v543, %v527
  %v688 = vpack.c.b16 %v544, %v528
  %v689 = vpack.c.b16 %v545, %v529
  %v690 = vpack.c.b16 %v562, %v546
  %v691 = vpack.c.b16 %v563, %v547
  %v692 = vpack.c.b16 %v564, %v548
  %v693 = vpack.c.b16 %v565, %v549
  %v694 = vpack.c.b16 %v566, %v550
  %v695 = vpack.c.b16 %v567, %v551
  %v696 = vpack.c.b16 %v568, %v552
  %v697 = vpack.c.b16 %v569, %v553
  %v698 = vpack.c.b16 %v570, %v554
  %v699 = vpack.c.b16 %v571, %v555
  %v700 = vpack.c.b16 %v572, %v556
  %v701 = vpack.c.b16 %v573, %v557
  %v702 = vpack.c.b16 %v574, %v558
  %v703 = vpack.c.b16 %v575, %v559
  %v704 = vpack.c.b16 %v576, %v560
  %v705 = vpack.c.b16 %v577, %v561
  %834 = vmatpush.bf16.msra.mxu0 %v690
  %835 = vmatpush.bf16.msra.mxu0 %v674
  %836 = vmatpush.bf16.msra.mxu0 %v658
  %837 = vmatpush.bf16.msra.mxu0 %v642
  %838 = vmatpush.bf16.msra.mxu0 %v626
  %839 = vmatpush.bf16.msra.mxu0 %v610
  %840 = vmatpush.bf16.msra.mxu0 %v594
  %841 = vmatpush.bf16.msra.mxu0 %v578
  %842 = vmatmul.bf16.gmra.mxu0 %v190
  %v843 = vpop.f32.mrf.mxu0
  %v844 = vadd.f32 %v150, %v843
  %v845 = vpop.f32.mrf.mxu0
  %v846 = vadd.f32 %v150, %v845
  %847 = vmatmul.bf16.gmra.mxu0 %v191
  %v848 = vpop.f32.mrf.mxu0
  %v849 = vadd.f32 %v150, %v848
  %v850 = vpop.f32.mrf.mxu0
  %v851 = vadd.f32 %v150, %v850
  %852 = vdwg.mxu0
  %853 = vmatpush.bf16.msra.mxu0 %v691
  %854 = vmatpush.bf16.msra.mxu0 %v675
  %855 = vmatpush.bf16.msra.mxu0 %v659
  %856 = vmatpush.bf16.msra.mxu0 %v643
  %857 = vmatpush.bf16.msra.mxu0 %v627
  %858 = vmatpush.bf16.msra.mxu0 %v611
  %859 = vmatpush.bf16.msra.mxu0 %v595
  %860 = vmatpush.bf16.msra.mxu0 %v579
  %861 = vmatmul.bf16.gmra.mxu0 %v190
  %v862 = vpop.f32.mrf.mxu0
  %v863 = vadd.f32 %v151, %v862
  %v864 = vpop.f32.mrf.mxu0
  %v865 = vadd.f32 %v151, %v864
  %866 = vmatmul.bf16.gmra.mxu0 %v191
  %v867 = vpop.f32.mrf.mxu0
  %v868 = vadd.f32 %v151, %v867
  %v869 = vpop.f32.mrf.mxu0
  %v870 = vadd.f32 %v151, %v869
  %871 = vdwg.mxu0
  %872 = vmatpush.bf16.msra.mxu0 %v692
  %873 = vmatpush.bf16.msra.mxu0 %v676
  %874 = vmatpush.bf16.msra.mxu0 %v660
  %875 = vmatpush.bf16.msra.mxu0 %v644
  %876 = vmatpush.bf16.msra.mxu0 %v628
  %877 = vmatpush.bf16.msra.mxu0 %v612
  %878 = vmatpush.bf16.msra.mxu0 %v596
  %879 = vmatpush.bf16.msra.mxu0 %v580
  %880 = vmatmul.bf16.gmra.mxu0 %v190
  %v881 = vpop.f32.mrf.mxu0
  %v882 = vadd.f32 %v152, %v881
  %v883 = vpop.f32.mrf.mxu0
  %v884 = vadd.f32 %v152, %v883
  %885 = vmatmul.bf16.gmra.mxu0 %v191
  %v886 = vpop.f32.mrf.mxu0
  %v887 = vadd.f32 %v152, %v886
  %v888 = vpop.f32.mrf.mxu0
  %v889 = vadd.f32 %v152, %v888
  %890 = vdwg.mxu0
  %891 = vmatpush.bf16.msra.mxu0 %v693
  %892 = vmatpush.bf16.msra.mxu0 %v677
  %893 = vmatpush.bf16.msra.mxu0 %v661
  %894 = vmatpush.bf16.msra.mxu0 %v645
  %895 = vmatpush.bf16.msra.mxu0 %v629
  %896 = vmatpush.bf16.msra.mxu0 %v613
  %897 = vmatpush.bf16.msra.mxu0 %v597
  %898 = vmatpush.bf16.msra.mxu0 %v581
  %899 = vmatmul.bf16.gmra.mxu0 %v190
  %v900 = vpop.f32.mrf.mxu0
  %v901 = vadd.f32 %v153, %v900
  %v902 = vpop.f32.mrf.mxu0
  %v903 = vadd.f32 %v153, %v902
  %904 = vmatmul.bf16.gmra.mxu0 %v191
  %v905 = vpop.f32.mrf.mxu0
  %v906 = vadd.f32 %v153, %v905
  %v907 = vpop.f32.mrf.mxu0
  %v908 = vadd.f32 %v153, %v907
  %909 = vdwg.mxu0
  %910 = vmatpush.bf16.msra.mxu0 %v694
  %911 = vmatpush.bf16.msra.mxu0 %v678
  %912 = vmatpush.bf16.msra.mxu0 %v662
  %913 = vmatpush.bf16.msra.mxu0 %v646
  %914 = vmatpush.bf16.msra.mxu0 %v630
  %915 = vmatpush.bf16.msra.mxu0 %v614
  %916 = vmatpush.bf16.msra.mxu0 %v598
  %917 = vmatpush.bf16.msra.mxu0 %v582
  %918 = vmatmul.bf16.gmra.mxu0 %v190
  %v919 = vpop.f32.mrf.mxu0
  %v920 = vadd.f32 %v154, %v919
  %v921 = vpop.f32.mrf.mxu0
  %v922 = vadd.f32 %v154, %v921
  %923 = vmatmul.bf16.gmra.mxu0 %v191
  %v924 = vpop.f32.mrf.mxu0
  %v925 = vadd.f32 %v154, %v924
  %v926 = vpop.f32.mrf.mxu0
  %v927 = vadd.f32 %v154, %v926
  %928 = vdwg.mxu0
  %929 = vmatpush.bf16.msra.mxu0 %v695
  %930 = vmatpush.bf16.msra.mxu0 %v679
  %931 = vmatpush.bf16.msra.mxu0 %v663
  %932 = vmatpush.bf16.msra.mxu0 %v647
  %933 = vmatpush.bf16.msra.mxu0 %v631
  %934 = vmatpush.bf16.msra.mxu0 %v615
  %935 = vmatpush.bf16.msra.mxu0 %v599
  %936 = vmatpush.bf16.msra.mxu0 %v583
  %937 = vmatmul.bf16.gmra.mxu0 %v190
  %v938 = vpop.f32.mrf.mxu0
  %v939 = vadd.f32 %v155, %v938
  %v940 = vpop.f32.mrf.mxu0
  %v941 = vadd.f32 %v155, %v940
  %942 = vmatmul.bf16.gmra.mxu0 %v191
  %v943 = vpop.f32.mrf.mxu0
  %v944 = vadd.f32 %v155, %v943
  %v945 = vpop.f32.mrf.mxu0
  %v946 = vadd.f32 %v155, %v945
  %947 = vdwg.mxu0
  %948 = vmatpush.bf16.msra.mxu0 %v696
  %949 = vmatpush.bf16.msra.mxu0 %v680
  %950 = vmatpush.bf16.msra.mxu0 %v664
  %951 = vmatpush.bf16.msra.mxu0 %v648
  %952 = vmatpush.bf16.msra.mxu0 %v632
  %953 = vmatpush.bf16.msra.mxu0 %v616
  %954 = vmatpush.bf16.msra.mxu0 %v600
  %955 = vmatpush.bf16.msra.mxu0 %v584
  %956 = vmatmul.bf16.gmra.mxu0 %v190
  %v957 = vpop.f32.mrf.mxu0
  %v958 = vadd.f32 %v156, %v957
  %v959 = vpop.f32.mrf.mxu0
  %v960 = vadd.f32 %v156, %v959
  %961 = vmatmul.bf16.gmra.mxu0 %v191
  %v962 = vpop.f32.mrf.mxu0
  %v963 = vadd.f32 %v156, %v962
  %v964 = vpop.f32.mrf.mxu0
  %v965 = vadd.f32 %v156, %v964
  %966 = vdwg.mxu0
  %967 = vmatpush.bf16.msra.mxu0 %v697
  %968 = vmatpush.bf16.msra.mxu0 %v681
  %969 = vmatpush.bf16.msra.mxu0 %v665
  %970 = vmatpush.bf16.msra.mxu0 %v649
  %971 = vmatpush.bf16.msra.mxu0 %v633
  %972 = vmatpush.bf16.msra.mxu0 %v617
  %973 = vmatpush.bf16.msra.mxu0 %v601
  %974 = vmatpush.bf16.msra.mxu0 %v585
  %975 = vmatmul.bf16.gmra.mxu0 %v190
  %v976 = vpop.f32.mrf.mxu0
  %v977 = vadd.f32 %v157, %v976
  %v978 = vpop.f32.mrf.mxu0
  %v979 = vadd.f32 %v157, %v978
  %980 = vmatmul.bf16.gmra.mxu0 %v191
  %v981 = vpop.f32.mrf.mxu0
  %v982 = vadd.f32 %v157, %v981
  %v983 = vpop.f32.mrf.mxu0
  %v984 = vadd.f32 %v157, %v983
  %985 = vdwg.mxu0
  %986 = vmatpush.bf16.msra.mxu0 %v698
  %987 = vmatpush.bf16.msra.mxu0 %v682
  %988 = vmatpush.bf16.msra.mxu0 %v666
  %989 = vmatpush.bf16.msra.mxu0 %v650
  %990 = vmatpush.bf16.msra.mxu0 %v634
  %991 = vmatpush.bf16.msra.mxu0 %v618
  %992 = vmatpush.bf16.msra.mxu0 %v602
  %993 = vmatpush.bf16.msra.mxu0 %v586
  %994 = vmatmul.bf16.gmra.mxu0 %v190
  %v995 = vpop.f32.mrf.mxu0
  %v996 = vadd.f32 %v158, %v995
  %v997 = vpop.f32.mrf.mxu0
  %v998 = vadd.f32 %v158, %v997
  %999 = vmatmul.bf16.gmra.mxu0 %v191
  %v1000 = vpop.f32.mrf.mxu0
  %v1001 = vadd.f32 %v158, %v1000
  %v1002 = vpop.f32.mrf.mxu0
  %v1003 = vadd.f32 %v158, %v1002
  %1004 = vdwg.mxu0
  %1005 = vmatpush.bf16.msra.mxu0 %v699
  %1006 = vmatpush.bf16.msra.mxu0 %v683
  %1007 = vmatpush.bf16.msra.mxu0 %v667
  %1008 = vmatpush.bf16.msra.mxu0 %v651
  %1009 = vmatpush.bf16.msra.mxu0 %v635
  %1010 = vmatpush.bf16.msra.mxu0 %v619
  %1011 = vmatpush.bf16.msra.mxu0 %v603
  %1012 = vmatpush.bf16.msra.mxu0 %v587
  %1013 = vmatmul.bf16.gmra.mxu0 %v190
  %v1014 = vpop.f32.mrf.mxu0
  %v1015 = vadd.f32 %v159, %v1014
  %v1016 = vpop.f32.mrf.mxu0
  %v1017 = vadd.f32 %v159, %v1016
  %1018 = vmatmul.bf16.gmra.mxu0 %v191
  %v1019 = vpop.f32.mrf.mxu0
  %v1020 = vadd.f32 %v159, %v1019
  %v1021 = vpop.f32.mrf.mxu0
  %v1022 = vadd.f32 %v159, %v1021
  %1023 = vdwg.mxu0
  %1024 = vmatpush.bf16.msra.mxu0 %v700
  %1025 = vmatpush.bf16.msra.mxu0 %v684
  %1026 = vmatpush.bf16.msra.mxu0 %v668
  %1027 = vmatpush.bf16.msra.mxu0 %v652
  %1028 = vmatpush.bf16.msra.mxu0 %v636
  %1029 = vmatpush.bf16.msra.mxu0 %v620
  %1030 = vmatpush.bf16.msra.mxu0 %v604
  %1031 = vmatpush.bf16.msra.mxu0 %v588
  %1032 = vmatmul.bf16.gmra.mxu0 %v190
  %v1033 = vpop.f32.mrf.mxu0
  %v1034 = vadd.f32 %v160, %v1033
  %v1035 = vpop.f32.mrf.mxu0
  %v1036 = vadd.f32 %v160, %v1035
  %1037 = vmatmul.bf16.gmra.mxu0 %v191
  %v1038 = vpop.f32.mrf.mxu0
  %v1039 = vadd.f32 %v160, %v1038
  %v1040 = vpop.f32.mrf.mxu0
  %v1041 = vadd.f32 %v160, %v1040
  %1042 = vdwg.mxu0
  %1043 = vmatpush.bf16.msra.mxu0 %v701
  %1044 = vmatpush.bf16.msra.mxu0 %v685
  %1045 = vmatpush.bf16.msra.mxu0 %v669
  %1046 = vmatpush.bf16.msra.mxu0 %v653
  %1047 = vmatpush.bf16.msra.mxu0 %v637
  %1048 = vmatpush.bf16.msra.mxu0 %v621
  %1049 = vmatpush.bf16.msra.mxu0 %v605
  %1050 = vmatpush.bf16.msra.mxu0 %v589
  %1051 = vmatmul.bf16.gmra.mxu0 %v190
  %v1052 = vpop.f32.mrf.mxu0
  %v1053 = vadd.f32 %v161, %v1052
  %v1054 = vpop.f32.mrf.mxu0
  %v1055 = vadd.f32 %v161, %v1054
  %1056 = vmatmul.bf16.gmra.mxu0 %v191
  %v1057 = vpop.f32.mrf.mxu0
  %v1058 = vadd.f32 %v161, %v1057
  %v1059 = vpop.f32.mrf.mxu0
  %v1060 = vadd.f32 %v161, %v1059
  %1061 = vdwg.mxu0
  %1062 = vmatpush.bf16.msra.mxu0 %v702
  %1063 = vmatpush.bf16.msra.mxu0 %v686
  %1064 = vmatpush.bf16.msra.mxu0 %v670
  %1065 = vmatpush.bf16.msra.mxu0 %v654
  %1066 = vmatpush.bf16.msra.mxu0 %v638
  %1067 = vmatpush.bf16.msra.mxu0 %v622
  %1068 = vmatpush.bf16.msra.mxu0 %v606
  %1069 = vmatpush.bf16.msra.mxu0 %v590
  %1070 = vmatmul.bf16.gmra.mxu0 %v190
  %v1071 = vpop.f32.mrf.mxu0
  %v1072 = vadd.f32 %v162, %v1071
  %v1073 = vpop.f32.mrf.mxu0
  %v1074 = vadd.f32 %v162, %v1073
  %1075 = vmatmul.bf16.gmra.mxu0 %v191
  %v1076 = vpop.f32.mrf.mxu0
  %v1077 = vadd.f32 %v162, %v1076
  %v1078 = vpop.f32.mrf.mxu0
  %v1079 = vadd.f32 %v162, %v1078
  %1080 = vdwg.mxu0
  %1081 = vmatpush.bf16.msra.mxu0 %v703
  %1082 = vmatpush.bf16.msra.mxu0 %v687
  %1083 = vmatpush.bf16.msra.mxu0 %v671
  %1084 = vmatpush.bf16.msra.mxu0 %v655
  %1085 = vmatpush.bf16.msra.mxu0 %v639
  %1086 = vmatpush.bf16.msra.mxu0 %v623
  %1087 = vmatpush.bf16.msra.mxu0 %v607
  %1088 = vmatpush.bf16.msra.mxu0 %v591
  %1089 = vmatmul.bf16.gmra.mxu0 %v190
  %v1090 = vpop.f32.mrf.mxu0
  %v1091 = vadd.f32 %v163, %v1090
  %v1092 = vpop.f32.mrf.mxu0
  %v1093 = vadd.f32 %v163, %v1092
  %1094 = vmatmul.bf16.gmra.mxu0 %v191
  %v1095 = vpop.f32.mrf.mxu0
  %v1096 = vadd.f32 %v163, %v1095
  %v1097 = vpop.f32.mrf.mxu0
  %v1098 = vadd.f32 %v163, %v1097
  %1099 = vdwg.mxu0
  %1100 = vmatpush.bf16.msra.mxu0 %v704
  %1101 = vmatpush.bf16.msra.mxu0 %v688
  %1102 = vmatpush.bf16.msra.mxu0 %v672
  %1103 = vmatpush.bf16.msra.mxu0 %v656
  %1104 = vmatpush.bf16.msra.mxu0 %v640
  %1105 = vmatpush.bf16.msra.mxu0 %v624
  %1106 = vmatpush.bf16.msra.mxu0 %v608
  %1107 = vmatpush.bf16.msra.mxu0 %v592
  %1108 = vmatmul.bf16.gmra.mxu0 %v190
  %v1109 = vpop.f32.mrf.mxu0
  %v1110 = vadd.f32 %v164, %v1109
  %v1111 = vpop.f32.mrf.mxu0
  %v1112 = vadd.f32 %v164, %v1111
  %1113 = vmatmul.bf16.gmra.mxu0 %v191
  %v1114 = vpop.f32.mrf.mxu0
  %v1115 = vadd.f32 %v164, %v1114
  %v1116 = vpop.f32.mrf.mxu0
  %v1117 = vadd.f32 %v164, %v1116
  %1118 = vdwg.mxu0
  %1119 = vmatpush.bf16.msra.mxu0 %v705
  %1120 = vmatpush.bf16.msra.mxu0 %v689
  %1121 = vmatpush.bf16.msra.mxu0 %v673
  %1122 = vmatpush.bf16.msra.mxu0 %v657
  %1123 = vmatpush.bf16.msra.mxu0 %v641
  %1124 = vmatpush.bf16.msra.mxu0 %v625
  %1125 = vmatpush.bf16.msra.mxu0 %v609
  %1126 = vmatpush.bf16.msra.mxu0 %v593
  %1127 = vmatmul.bf16.gmra.mxu0 %v190
  %v1128 = vpop.f32.mrf.mxu0
  %v1129 = vadd.f32 %v165, %v1128
  %v1130 = vpop.f32.mrf.mxu0
  %v1131 = vadd.f32 %v165, %v1130
  %1132 = vmatmul.bf16.gmra.mxu0 %v191
  %v1133 = vpop.f32.mrf.mxu0
  %v1134 = vadd.f32 %v165, %v1133
  %v1135 = vpop.f32.mrf.mxu0
  %v1136 = vadd.f32 %v165, %v1135
  %1137 = vdwg.mxu0
  %vm1138 = vcmp.ge.f32.partialorder %v844, 0.0
  %vm1139 = vcmp.ge.f32.partialorder %v863, 0.0
  %vm1140 = vcmp.ge.f32.partialorder %v882, 0.0
  %vm1141 = vcmp.ge.f32.partialorder %v901, 0.0
  %vm1142 = vcmp.ge.f32.partialorder %v920, 0.0
  %vm1143 = vcmp.ge.f32.partialorder %v939, 0.0
  %vm1144 = vcmp.ge.f32.partialorder %v958, 0.0
  %vm1145 = vcmp.ge.f32.partialorder %v977, 0.0
  %vm1146 = vcmp.ge.f32.partialorder %v996, 0.0
  %vm1147 = vcmp.ge.f32.partialorder %v1015, 0.0
  %vm1148 = vcmp.ge.f32.partialorder %v1034, 0.0
  %vm1149 = vcmp.ge.f32.partialorder %v1053, 0.0
  %vm1150 = vcmp.ge.f32.partialorder %v1072, 0.0
  %vm1151 = vcmp.ge.f32.partialorder %v1091, 0.0
  %vm1152 = vcmp.ge.f32.partialorder %v1110, 0.0
  %vm1153 = vcmp.ge.f32.partialorder %v1129, 0.0
  %vm1154 = vcmp.ge.f32.partialorder %v846, 0.0
  %vm1155 = vcmp.ge.f32.partialorder %v865, 0.0
  %vm1156 = vcmp.ge.f32.partialorder %v884, 0.0
  %vm1157 = vcmp.ge.f32.partialorder %v903, 0.0
  %vm1158 = vcmp.ge.f32.partialorder %v922, 0.0
  %vm1159 = vcmp.ge.f32.partialorder %v941, 0.0
  %vm1160 = vcmp.ge.f32.partialorder %v960, 0.0
  %vm1161 = vcmp.ge.f32.partialorder %v979, 0.0
  %vm1162 = vcmp.ge.f32.partialorder %v998, 0.0
  %vm1163 = vcmp.ge.f32.partialorder %v1017, 0.0
  %vm1164 = vcmp.ge.f32.partialorder %v1036, 0.0
  %vm1165 = vcmp.ge.f32.partialorder %v1055, 0.0
  %vm1166 = vcmp.ge.f32.partialorder %v1074, 0.0
  %vm1167 = vcmp.ge.f32.partialorder %v1093, 0.0
  %vm1168 = vcmp.ge.f32.partialorder %v1112, 0.0
  %vm1169 = vcmp.ge.f32.partialorder %v1131, 0.0
  %vm1170 = vcmp.ge.f32.partialorder %v849, 0.0
  %vm1171 = vcmp.ge.f32.partialorder %v868, 0.0
  %vm1172 = vcmp.ge.f32.partialorder %v887, 0.0
  %vm1173 = vcmp.ge.f32.partialorder %v906, 0.0
  %vm1174 = vcmp.ge.f32.partialorder %v925, 0.0
  %vm1175 = vcmp.ge.f32.partialorder %v944, 0.0
  %vm1176 = vcmp.ge.f32.partialorder %v963, 0.0
  %vm1177 = vcmp.ge.f32.partialorder %v982, 0.0
  %vm1178 = vcmp.ge.f32.partialorder %v1001, 0.0
  %vm1179 = vcmp.ge.f32.partialorder %v1020, 0.0
  %vm1180 = vcmp.ge.f32.partialorder %v1039, 0.0
  %vm1181 = vcmp.ge.f32.partialorder %v1058, 0.0
  %vm1182 = vcmp.ge.f32.partialorder %v1077, 0.0
  %vm1183 = vcmp.ge.f32.partialorder %v1096, 0.0
  %vm1184 = vcmp.ge.f32.partialorder %v1115, 0.0
  %vm1185 = vcmp.ge.f32.partialorder %v1134, 0.0
  %vm1186 = vcmp.ge.f32.partialorder %v851, 0.0
  %vm1187 = vcmp.ge.f32.partialorder %v870, 0.0
  %vm1188 = vcmp.ge.f32.partialorder %v889, 0.0
  %vm1189 = vcmp.ge.f32.partialorder %v908, 0.0
  %vm1190 = vcmp.ge.f32.partialorder %v927, 0.0
  %vm1191 = vcmp.ge.f32.partialorder %v946, 0.0
  %vm1192 = vcmp.ge.f32.partialorder %v965, 0.0
  %vm1193 = vcmp.ge.f32.partialorder %v984, 0.0
  %vm1194 = vcmp.ge.f32.partialorder %v1003, 0.0
  %vm1195 = vcmp.ge.f32.partialorder %v1022, 0.0
  %vm1196 = vcmp.ge.f32.partialorder %v1041, 0.0
  %vm1197 = vcmp.ge.f32.partialorder %v1060, 0.0
  %vm1198 = vcmp.ge.f32.partialorder %v1079, 0.0
  %vm1199 = vcmp.ge.f32.partialorder %v1098, 0.0
  %vm1200 = vcmp.ge.f32.partialorder %v1117, 0.0
  %vm1201 = vcmp.ge.f32.partialorder %v1136, 0.0
  %v1202 = vmul.f32 %v844, 0.01
  %v1203 = vmul.f32 %v863, 0.01
  %v1204 = vmul.f32 %v882, 0.01
  %v1205 = vmul.f32 %v901, 0.01
  %v1206 = vmul.f32 %v920, 0.01
  %v1207 = vmul.f32 %v939, 0.01
  %v1208 = vmul.f32 %v958, 0.01
  %v1209 = vmul.f32 %v977, 0.01
  %v1210 = vmul.f32 %v996, 0.01
  %v1211 = vmul.f32 %v1015, 0.01
  %v1212 = vmul.f32 %v1034, 0.01
  %v1213 = vmul.f32 %v1053, 0.01
  %v1214 = vmul.f32 %v1072, 0.01
  %v1215 = vmul.f32 %v1091, 0.01
  %v1216 = vmul.f32 %v1110, 0.01
  %v1217 = vmul.f32 %v1129, 0.01
  %v1218 = vmul.f32 %v846, 0.01
  %v1219 = vmul.f32 %v865, 0.01
  %v1220 = vmul.f32 %v884, 0.01
  %v1221 = vmul.f32 %v903, 0.01
  %v1222 = vmul.f32 %v922, 0.01
  %v1223 = vmul.f32 %v941, 0.01
  %v1224 = vmul.f32 %v960, 0.01
  %v1225 = vmul.f32 %v979, 0.01
  %v1226 = vmul.f32 %v998, 0.01
  %v1227 = vmul.f32 %v1017, 0.01
  %v1228 = vmul.f32 %v1036, 0.01
  %v1229 = vmul.f32 %v1055, 0.01
  %v1230 = vmul.f32 %v1074, 0.01
  %v1231 = vmul.f32 %v1093, 0.01
  %v1232 = vmul.f32 %v1112, 0.01
  %v1233 = vmul.f32 %v1131, 0.01
  %v1234 = vmul.f32 %v849, 0.01
  %v1235 = vmul.f32 %v868, 0.01
  %v1236 = vmul.f32 %v887, 0.01
  %v1237 = vmul.f32 %v906, 0.01
  %v1238 = vmul.f32 %v925, 0.01
  %v1239 = vmul.f32 %v944, 0.01
  %v1240 = vmul.f32 %v963, 0.01
  %v1241 = vmul.f32 %v982, 0.01
  %v1242 = vmul.f32 %v1001, 0.01
  %v1243 = vmul.f32 %v1020, 0.01
  %v1244 = vmul.f32 %v1039, 0.01
  %v1245 = vmul.f32 %v1058, 0.01
  %v1246 = vmul.f32 %v1077, 0.01
  %v1247 = vmul.f32 %v1096, 0.01
  %v1248 = vmul.f32 %v1115, 0.01
  %v1249 = vmul.f32 %v1134, 0.01
  %v1250 = vmul.f32 %v851, 0.01
  %v1251 = vmul.f32 %v870, 0.01
  %v1252 = vmul.f32 %v889, 0.01
  %v1253 = vmul.f32 %v908, 0.01
  %v1254 = vmul.f32 %v927, 0.01
  %v1255 = vmul.f32 %v946, 0.01
  %v1256 = vmul.f32 %v965, 0.01
  %v1257 = vmul.f32 %v984, 0.01
  %v1258 = vmul.f32 %v1003, 0.01
  %v1259 = vmul.f32 %v1022, 0.01
  %v1260 = vmul.f32 %v1041, 0.01
  %v1261 = vmul.f32 %v1060, 0.01
  %v1262 = vmul.f32 %v1079, 0.01
  %v1263 = vmul.f32 %v1098, 0.01
  %v1264 = vmul.f32 %v1117, 0.01
  %v1265 = vmul.f32 %v1136, 0.01
  %v1266 = vsel %vm1138, %v844, %v1202
  %v1267 = vsel %vm1139, %v863, %v1203
  %v1268 = vsel %vm1140, %v882, %v1204
  %v1269 = vsel %vm1141, %v901, %v1205
  %v1270 = vsel %vm1142, %v920, %v1206
  %v1271 = vsel %vm1143, %v939, %v1207
  %v1272 = vsel %vm1144, %v958, %v1208
  %v1273 = vsel %vm1145, %v977, %v1209
  %v1274 = vsel %vm1146, %v996, %v1210
  %v1275 = vsel %vm1147, %v1015, %v1211
  %v1276 = vsel %vm1148, %v1034, %v1212
  %v1277 = vsel %vm1149, %v1053, %v1213
  %v1278 = vsel %vm1150, %v1072, %v1214
  %v1279 = vsel %vm1151, %v1091, %v1215
  %v1280 = vsel %vm1152, %v1110, %v1216
  %v1281 = vsel %vm1153, %v1129, %v1217
  %v1282 = vsel %vm1154, %v846, %v1218
  %v1283 = vsel %vm1155, %v865, %v1219
  %v1284 = vsel %vm1156, %v884, %v1220
  %v1285 = vsel %vm1157, %v903, %v1221
  %v1286 = vsel %vm1158, %v922, %v1222
  %v1287 = vsel %vm1159, %v941, %v1223
  %v1288 = vsel %vm1160, %v960, %v1224
  %v1289 = vsel %vm1161, %v979, %v1225
  %v1290 = vsel %vm1162, %v998, %v1226
  %v1291 = vsel %vm1163, %v1017, %v1227
  %v1292 = vsel %vm1164, %v1036, %v1228
  %v1293 = vsel %vm1165, %v1055, %v1229
  %v1294 = vsel %vm1166, %v1074, %v1230
  %v1295 = vsel %vm1167, %v1093, %v1231
  %v1296 = vsel %vm1168, %v1112, %v1232
  %v1297 = vsel %vm1169, %v1131, %v1233
  %v1298 = vsel %vm1170, %v849, %v1234
  %v1299 = vsel %vm1171, %v868, %v1235
  %v1300 = vsel %vm1172, %v887, %v1236
  %v1301 = vsel %vm1173, %v906, %v1237
  %v1302 = vsel %vm1174, %v925, %v1238
  %v1303 = vsel %vm1175, %v944, %v1239
  %v1304 = vsel %vm1176, %v963, %v1240
  %v1305 = vsel %vm1177, %v982, %v1241
  %v1306 = vsel %vm1178, %v1001, %v1242
  %v1307 = vsel %vm1179, %v1020, %v1243
  %v1308 = vsel %vm1180, %v1039, %v1244
  %v1309 = vsel %vm1181, %v1058, %v1245
  %v1310 = vsel %vm1182, %v1077, %v1246
  %v1311 = vsel %vm1183, %v1096, %v1247
  %v1312 = vsel %vm1184, %v1115, %v1248
  %v1313 = vsel %vm1185, %v1134, %v1249
  %v1314 = vsel %vm1186, %v851, %v1250
  %v1315 = vsel %vm1187, %v870, %v1251
  %v1316 = vsel %vm1188, %v889, %v1252
  %v1317 = vsel %vm1189, %v908, %v1253
  %v1318 = vsel %vm1190, %v927, %v1254
  %v1319 = vsel %vm1191, %v946, %v1255
  %v1320 = vsel %vm1192, %v965, %v1256
  %v1321 = vsel %vm1193, %v984, %v1257
  %v1322 = vsel %vm1194, %v1003, %v1258
  %v1323 = vsel %vm1195, %v1022, %v1259
  %v1324 = vsel %vm1196, %v1041, %v1260
  %v1325 = vsel %vm1197, %v1060, %v1261
  %v1326 = vsel %vm1198, %v1079, %v1262
  %v1327 = vsel %vm1199, %v1098, %v1263
  %v1328 = vsel %vm1200, %v1117, %v1264
  %v1329 = vsel %vm1201, %v1136, %v1265
  %v1330 = vpack.c.bf16 %v1267, %v1266
  %v1331 = vpack.c.bf16 %v1269, %v1268
  %v1332 = vpack.c.bf16 %v1271, %v1270
  %v1333 = vpack.c.bf16 %v1273, %v1272
  %v1334 = vpack.c.bf16 %v1275, %v1274
  %v1335 = vpack.c.bf16 %v1277, %v1276
  %v1336 = vpack.c.bf16 %v1279, %v1278
  %v1337 = vpack.c.bf16 %v1281, %v1280
  %v1338 = vpack.c.bf16 %v1283, %v1282
  %v1339 = vpack.c.bf16 %v1285, %v1284
  %v1340 = vpack.c.bf16 %v1287, %v1286
  %v1341 = vpack.c.bf16 %v1289, %v1288
  %v1342 = vpack.c.bf16 %v1291, %v1290
  %v1343 = vpack.c.bf16 %v1293, %v1292
  %v1344 = vpack.c.bf16 %v1295, %v1294
  %v1345 = vpack.c.bf16 %v1297, %v1296
  %v1346 = vpack.c.bf16 %v1299, %v1298
  %v1347 = vpack.c.bf16 %v1301, %v1300
  %v1348 = vpack.c.bf16 %v1303, %v1302
  %v1349 = vpack.c.bf16 %v1305, %v1304
  %v1350 = vpack.c.bf16 %v1307, %v1306
  %v1351 = vpack.c.bf16 %v1309, %v1308
  %v1352 = vpack.c.bf16 %v1311, %v1310
  %v1353 = vpack.c.bf16 %v1313, %v1312
  %v1354 = vpack.c.bf16 %v1315, %v1314
  %v1355 = vpack.c.bf16 %v1317, %v1316
  %v1356 = vpack.c.bf16 %v1319, %v1318
  %v1357 = vpack.c.bf16 %v1321, %v1320
  %v1358 = vpack.c.bf16 %v1323, %v1322
  %v1359 = vpack.c.bf16 %v1325, %v1324
  %v1360 = vpack.c.bf16 %v1327, %v1326
  %v1361 = vpack.c.bf16 %v1329, %v1328
  %1362 = vst [vmem:[%s3] sm:$0xff] %v1330
  %1363 = vst [vmem:[%s3 + $0x8] sm:$0xff] %v1331
  %1364 = vst [vmem:[%s3 + $0x10] sm:$0xff] %v1332
  %1365 = vst [vmem:[%s3 + $0x18] sm:$0xff] %v1333
  %1366 = vst [vmem:[%s3 + $0x20] sm:$0xff] %v1334
  %1367 = vst [vmem:[%s3 + $0x28] sm:$0xff] %v1335
  %1368 = vst [vmem:[%s3 + $0x30] sm:$0xff] %v1336
  %1369 = vst [vmem:[%s3 + $0x38] sm:$0xff] %v1337
  %1370 = vst [vmem:[%s3 + $0x40] sm:$0xff] %v1338
  %1371 = vst [vmem:[%s3 + $0x48] sm:$0xff] %v1339
  %1372 = vst [vmem:[%s3 + $0x50] sm:$0xff] %v1340
  %1373 = vst [vmem:[%s3 + $0x58] sm:$0xff] %v1341
  %1374 = vst [vmem:[%s3 + $0x60] sm:$0xff] %v1342
  %1375 = vst [vmem:[%s3 + $0x68] sm:$0xff] %v1343
  %1376 = vst [vmem:[%s3 + $0x70] sm:$0xff] %v1344
  %1377 = vst [vmem:[%s3 + $0x78] sm:$0xff] %v1345
  %1378 = vst [vmem:[%s3 + $0x80] sm:$0xff] %v1346
  %1379 = vst [vmem:[%s3 + $0x88] sm:$0xff] %v1347
  %1380 = vst [vmem:[%s3 + $0x90] sm:$0xff] %v1348
  %1381 = vst [vmem:[%s3 + $0x98] sm:$0xff] %v1349
  %1382 = vst [vmem:[%s3 + $0xa0] sm:$0xff] %v1350
  %1383 = vst [vmem:[%s3 + $0xa8] sm:$0xff] %v1351
  %1384 = vst [vmem:[%s3 + $0xb0] sm:$0xff] %v1352
  %1385 = vst [vmem:[%s3 + $0xb8] sm:$0xff] %v1353
  %1386 = vst [vmem:[%s3 + $0xc0] sm:$0xff] %v1354
  %1387 = vst [vmem:[%s3 + $0xc8] sm:$0xff] %v1355
  %1388 = vst [vmem:[%s3 + $0xd0] sm:$0xff] %v1356
  %1389 = vst [vmem:[%s3 + $0xd8] sm:$0xff] %v1357
  %1390 = vst [vmem:[%s3 + $0xe0] sm:$0xff] %v1358
  %1391 = vst [vmem:[%s3 + $0xe8] sm:$0xff] %v1359
  %1392 = vst [vmem:[%s3 + $0xf0] sm:$0xff] %v1360
  %1393 = vst [vmem:[%s3 + $0xf8] sm:$0xff] %v1361
  // Predicated region
  $region14: #{scob_forward.47} parent=0 // pred_check
    _
  $region15: #{scob_forward.47} parent=0 // pred_check_branch
    %1395 = sbr.rel (0) target = $region17
  $region16: #{scob_forward.47} parent=0 // pred_region
    _
  $region17: #{scob_forward.47} parent=0 // pred_fallthru
    _
  // Predicated region
  $region18: #{scob_forward.47} parent=0 // pred_check
    _
  $region19: #{scob_forward.47} parent=0 // pred_check_branch
    %1397 = sbr.rel (0) target = $region21
  $region20: #{scob_forward.47} parent=0 // pred_region
    _
  $region21: #{scob_forward.47} parent=0 // pred_fallthru
    _

// kernel: scob_forward.54
$region0: #{scob_forward.54}
  #allocation0 [shape = 'u32[]', space=smem, size = 0x4, offset = 0x4, fixed_abs, tag = 'smem constant byte address 0x4 - core index']
  #allocation1 [shape = 'u32[72,128]{1,0:T(1,128)}', space=vmem, size = 0x9000, scoped, tag = 'internal scratch']
  %s0 = inlined_call_operand.vmem [shape: bf16[2,16,128], index: 0, kind: input, shape index: {}]
  %s1 = inlined_call_operand.vmem [shape: f32[1,128], index: 1, kind: input, shape index: {}]
  %s2 = inlined_call_operand.vmem [shape: f32[1,128], index: 2, kind: input, shape index: {}]
  %s3 = inlined_call_operand.vmem [shape: f32[2,1,128], index: 3, kind: output, shape index: {}]
  %s4 = sld [smem:[#allocation0]]
  $region45: #{scob_forward.54} parent=0
    _
  %s6 = ssub.s32 1, %s4
  %s7 = scalar_select 0, %s6, %s4
  loop: start=0, step=1, limit=4
  $region2: #{scob_forward.54} parent=0 // loop_pre_header
    _
  $region3: #{scob_forward.54} parent=0 // loop_header
    %s9 = sphi 0, %s13
    %p10 = scmp.ge.s32.totalorder %s9, 4
    %s19 = sphi 0, %s21
    %s22 = sphi 0, %s19
    %s23 = sphi 0, %s22
    %s39 = sphi 0, %s23
    %s43 = sphi 0, %s43
    %s45 = sphi 0, %s43
    %s46 = sphi 0, %s45
    %s60 = sphi 0, %s46
    %s64 = sphi 0, %s64
    %s66 = sphi 0, %s64
    %s67 = sphi 0, %s66
    %s81 = sphi 0, %s67
    %s87 = sphi 0, %s89
    %s90 = sphi 0, %s87
    %s91 = sphi 0, %s90
    %s107 = sphi 0, %s91
  $region4: #{scob_forward.54} parent=0 // loop_header_branch
    %12 = sbr.rel (%p10) target = $region8
  $region5: #{scob_forward.54} parent=0 // loop_body
    %s14 = ssub.s32 %s9, 1
    %s15 = ssub.s32 %s9, 2
    %s16 = sadd.s32 %s9, 1
    %s17 = ssub.s32 %s9, %s16
    %p18 = scmp.eq.s32.totalorder %s17, 0
    %s20 = sadd.s32 %s19, 1
    %s21 = scalar_select %p18, %s19, %s20
    %p24 = pneg %p18
    %p25 = scmp.eq.s32.totalorder %s9, 1
    %p26 = por %p24, %p25
    %p27 = scmp.ne.s32.totalorder %s19, %s22
    %p28 = scmp.eq.s32.totalorder %s9, 0
    %p29 = por %p27, %p28
    %p30 = scmp.ne.s32.totalorder %s19, %s22
    %p31 = scmp.eq.s32.totalorder %s14, 1
    %p32 = por %p30, %p31
    %p33 = scmp.ne.s32.totalorder %s22, %s23
    %p34 = scmp.eq.s32.totalorder %s14, 0
    %p35 = por %p33, %p34
    %p36 = scmp.ne.s32.totalorder %s22, %s23
    %p37 = scmp.eq.s32.totalorder %s15, 1
    %p38 = por %p36, %p37
    %p40 = scmp.ne.s32.totalorder %s23, %s39
    %p41 = scmp.eq.s32.totalorder %s15, 0
    %p42 = por %p40, %p41
    %s44 = sadd.s32 %s43, 1
    %p47 = scmp.eq.s32.totalorder %s9, 1
    %p48 = scmp.ne.s32.totalorder %s43, %s45
    %p49 = scmp.eq.s32.totalorder %s9, 0
    %p50 = por %p48, %p49
    %p51 = scmp.ne.s32.totalorder %s43, %s45
    %p52 = scmp.eq.s32.totalorder %s14, 1
    %p53 = por %p51, %p52
    %p54 = scmp.ne.s32.totalorder %s45, %s46
    %p55 = scmp.eq.s32.totalorder %s14, 0
    %p56 = por %p54, %p55
    %p57 = scmp.ne.s32.totalorder %s45, %s46
    %p58 = scmp.eq.s32.totalorder %s15, 1
    %p59 = por %p57, %p58
    %p61 = scmp.ne.s32.totalorder %s46, %s60
    %p62 = scmp.eq.s32.totalorder %s15, 0
    %p63 = por %p61, %p62
    %s65 = sadd.s32 %s64, 1
    %p68 = scmp.eq.s32.totalorder %s9, 1
    %p69 = scmp.ne.s32.totalorder %s64, %s66
    %p70 = scmp.eq.s32.totalorder %s9, 0
    %p71 = por %p69, %p70
    %p72 = scmp.ne.s32.totalorder %s64, %s66
    %p73 = scmp.eq.s32.totalorder %s14, 1
    %p74 = por %p72, %p73
    %p75 = scmp.ne.s32.totalorder %s66, %s67
    %p76 = scmp.eq.s32.totalorder %s14, 0
    %p77 = por %p75, %p76
    %p78 = scmp.ne.s32.totalorder %s66, %s67
    %p79 = scmp.eq.s32.totalorder %s15, 1
    %p80 = por %p78, %p79
    %p82 = scmp.ne.s32.totalorder %s67, %s81
    %p83 = scmp.eq.s32.totalorder %s15, 0
    %p84 = por %p82, %p83
    %s85 = ssub.s32 %s9, %s16
    %p86 = scmp.eq.s32.totalorder %s85, 0
    %s88 = sadd.s32 %s87, 1
    %s89 = scalar_select %p86, %s87, %s88
    %p92 = pneg %p86
    %p93 = scmp.eq.s32.totalorder %s9, 1
    %p94 = por %p92, %p93
    %p95 = scmp.ne.s32.totalorder %s87, %s90
    %p96 = scmp.eq.s32.totalorder %s9, 0
    %p97 = por %p95, %p96
    %p98 = scmp.ne.s32.totalorder %s87, %s90
    %p99 = scmp.eq.s32.totalorder %s14, 1
    %p100 = por %p98, %p99
    %p101 = scmp.ne.s32.totalorder %s90, %s91
    %p102 = scmp.eq.s32.totalorder %s14, 0
    %p103 = por %p101, %p102
    %p104 = scmp.ne.s32.totalorder %s90, %s91
    %p105 = scmp.eq.s32.totalorder %s15, 1
    %p106 = por %p104, %p105
    %p108 = scmp.ne.s32.totalorder %s91, %s107
    %p109 = scmp.eq.s32.totalorder %s15, 0
    %p110 = por %p108, %p109
    %p111 = scmp.le.s32.totalorder 1, %s9
    %p112 = scmp.lt.s32.totalorder %s9, 3
    %p113 = pnand %p111, %p112
    %p114 = pneg %p113
    // Predicated region
    $region9: #{scob_forward.54} parent=5 // pred_check
      _
    $region10: #{scob_forward.54} parent=5 // pred_check_branch
      %116 = sbr.rel (%p113) target = $region12
    $region11: #{scob_forward.54} parent=5 // pred_region
      %s117 = ssub.s32 %s9, 1
      // Predicated region
      $region13: #{scob_forward.54} parent=11 // pred_check
        %p118 = pneg %p56
      $region14: #{scob_forward.54} parent=11 // pred_check_branch
        %120 = sbr.rel (%p118) target = $region16
      $region15: #{scob_forward.54} parent=11 // pred_region
        _
      $region16: #{scob_forward.54} parent=11 // pred_fallthru
        _
      // Predicated region
      $region17: #{scob_forward.54} parent=11 // pred_check
        %p121 = pneg %p77
      $region18: #{scob_forward.54} parent=11 // pred_check_branch
        %123 = sbr.rel (%p121) target = $region20
      $region19: #{scob_forward.54} parent=11 // pred_region
        _
      $region20: #{scob_forward.54} parent=11 // pred_fallthru
        _
    $region12: #{scob_forward.54} parent=5 // pred_fallthru
      _
    %p124 = scmp.lt.s32.totalorder %s9, 2
    // Predicated region
    $region21: #{scob_forward.54} parent=5 // pred_check
      %p125 = pneg %p124
    $region22: #{scob_forward.54} parent=5 // pred_check_branch
      %127 = sbr.rel (%p125) target = $region24
    $region23: #{scob_forward.54} parent=5 // pred_region
      // Predicated region
      $region25: #{scob_forward.54} parent=23 // pred_check
        %p128 = pneg %p29
      $region26: #{scob_forward.54} parent=23 // pred_check_branch
        %130 = sbr.rel (%p128) target = $region28
      $region27: #{scob_forward.54} parent=23 // pred_region
        %p131 = scmp.lt.s32.totalorder %s9, 1
        %s132 = scalar_select %p131, %s9, 1
        %s133 = smul.addr %s132, 2
        %s134 = smul.addr %s133, 4
        %s135 = scalar_lea.vmem %s0, %s134
      $region28: #{scob_forward.54} parent=23 // pred_fallthru
        _
    $region24: #{scob_forward.54} parent=5 // pred_fallthru
      _
    %p136 = scmp.le.s32.totalorder 1, %s9
    %p137 = scmp.lt.s32.totalorder %s9, 3
    %p138 = pnand %p136, %p137
    %p139 = pneg %p138
    // Predicated region
    $region29: #{scob_forward.54} parent=5 // pred_check
      _
    $region30: #{scob_forward.54} parent=5 // pred_check_branch
      %141 = sbr.rel (%p138) target = $region32
    $region31: #{scob_forward.54} parent=5 // pred_region
      %s142 = ssub.s32 %s9, 1
      %p143 = scmp.lt.s32.totalorder %s14, 1
      %s144 = scalar_select %p143, %s14, 1
      %s145 = smul.addr %s144, 2
      %s146 = smul.addr %s145, 4
      %s147 = scalar_lea.vmem %s0, %s146
      %p148 = pneg %p35
      %p149 = pneg %p32
      %p150 = pneg %p56
      %p151 = pneg %p53
      %p152 = pneg %p77
      %p153 = pneg %p74
      %p154 = pneg %p103
      %p155 = pneg %p100
      %p156 = scmp.lt.s32.totalorder %s14, 1
      %s157 = scalar_select %p156, %s14, 1
      %s158 = scalar_lea.vmem %s3, %s157
      %p159 = scmp.lt.s32.totalorder %s14, 1
      %s160 = scalar_select %p159, %s14, 1
      %s161 = smul.addr %s160, 2
      %s162 = smul.addr %s161, 4
      %s163 = scalar_lea.vmem %s0, %s162
      %p164 = scmp.lt.s32.totalorder %s14, 1
      %s165 = scalar_select %p164, %s14, 1
      %s166 = scalar_lea.vmem %s3, %s165
      %v167 = vld [vmem:[%s163] sm:$0xf]
      %v168 = vld [vmem:[%s163 + $0x4] sm:$0xf]
      %v169 = vunpack.c.l.bf16 %v167
      %v170 = vunpack.c.l.bf16 %v168
      %v171 = vlaneseq
      %v172 = vand.u32 %v171, 127
      %vm173 = vcmp.lt.s32.totalorder %v172, 16
      %v174 = vsel %vm173, %v169, 0.0
      %v175 = vsel %vm173, %v170, 0.0
      %176 = vadd.xlane.f32.xlu0 %v174
      %v177 = vpop.xlane.xlu0 %176
      %178 = vadd.xlane.f32.xlu0 %v175
      %v179 = vpop.xlane.xlu0 %178
      %v180 = vmul.f32 %v177, 0.0625
      %v181 = vmul.f32 %v179, 0.0625
      %v182 = vsub.f32 %v169, %v180
      %v183 = vsub.f32 %v170, %v181
      %v184 = vsel %vm173, %v182, 0.0
      %v185 = vsel %vm173, %v183, 0.0
      %v186 = vmul.f32 %v184, %v184
      %v187 = vmul.f32 %v185, %v185
      %188 = vadd.xlane.f32.xlu0 %v186
      %v189 = vpop.xlane.xlu0 %188
      %190 = vadd.xlane.f32.xlu0 %v187
      %v191 = vpop.xlane.xlu0 %190
      %v192 = vmul.f32 %v189, 0.0625
      %v193 = vmul.f32 %v191, 0.0625
      %v194 = vadd.f32 %v192, 1e-05
      %v195 = vadd.f32 %v193, 1e-05
      %v196 = vrsqrt.pop %v194
      %v197 = vmul.f32 %v196, %v194
      %v198 = vmul.f32 %v197, %v196
      %v199 = vmul.f32 0.5, %v198
      %v200 = vsub.f32 1.5, %v199
      %v201 = vmul.f32 %v196, %v200
      %vm202 = vweird.f32 %v194
      %vm203 = vweird.f32 %v196
      %vm204 = vmor %vm202, %vm203
      %v205 = vsel %vm204, %v196, %v201
      %v206 = vrsqrt.pop %v195
      %v207 = vmul.f32 %v206, %v195
      %v208 = vmul.f32 %v207, %v206
      %v209 = vmul.f32 0.5, %v208
      %v210 = vsub.f32 1.5, %v209
      %v211 = vmul.f32 %v206, %v210
      %vm212 = vweird.f32 %v195
      %vm213 = vweird.f32 %v206
      %vm214 = vmor %vm212, %vm213
      %v215 = vsel %vm214, %v206, %v211
      %v216 = vmul.f32 %v184, %v205
      %v217 = vmul.f32 %v185, %v215
      %v218 = vld [vmem:[%s1] sm:$0x1]
      %v220 = vperm.slane %v218, 0
      %v222 = vmul.f32 %v216, %v220
      %v223 = vmul.f32 %v217, %v220
      %v224 = vld [vmem:[%s2] sm:$0x1]
      %v226 = vperm.slane %v224, 0
      %v228 = vadd.f32 %v222, %v226
      %v229 = vadd.f32 %v223, %v226
      %v230 = vadd.f32 %v228, %v229
      %v231 = vrot.slane %v230, 4
      %v232 = vadd.f32 %v230, %v231
      %v233 = vrot.slane %v232, 2
      %v234 = vadd.f32 %v232, %v233
      %v235 = vrot.slane %v234, 1
      %v236 = vadd.f32 %v234, %v235
      %v237 = vmul.f32 %v236, 0.0625
      %238 = vst [vmem:[%s166] sm:$0x1] %v237
      %p239 = scmp.lt.s32.totalorder %s14, 1
      %s240 = scalar_select %p239, %s14, 1
      %s241 = scalar_lea.vmem %s3, %s240
      // Predicated region
      $region33: #{scob_forward.54} parent=31 // pred_check
        %p242 = pneg %p100
      $region34: #{scob_forward.54} parent=31 // pred_check_branch
        %244 = sbr.rel (%p242) target = $region36
      $region35: #{scob_forward.54} parent=31 // pred_region
        _
      $region36: #{scob_forward.54} parent=31 // pred_fallthru
        _
    $region32: #{scob_forward.54} parent=5 // pred_fallthru
      _
    %p245 = scmp.le.s32.totalorder 2, %s9
    // Predicated region
    $region37: #{scob_forward.54} parent=5 // pred_check
      %p246 = pneg %p245
    $region38: #{scob_forward.54} parent=5 // pred_check_branch
      %248 = sbr.rel (%p246) target = $region40
    $region39: #{scob_forward.54} parent=5 // pred_region
      %s249 = ssub.s32 %s9, 2
      // Predicated region
      $region41: #{scob_forward.54} parent=39 // pred_check
        %p250 = pneg %p106
      $region42: #{scob_forward.54} parent=39 // pred_check_branch
        %252 = sbr.rel (%p250) target = $region44
      $region43: #{scob_forward.54} parent=39 // pred_region
        %p253 = scmp.lt.s32.totalorder %s15, 1
        %s254 = scalar_select %p253, %s15, 1
        %s255 = scalar_lea.vmem %s3, %s254
      $region44: #{scob_forward.54} parent=39 // pred_fallthru
        _
    $region40: #{scob_forward.54} parent=5 // pred_fallthru
      _
  $region6: #{scob_forward.54} parent=0 // loop_footer
    %s13 = sadd.s32 1, %s9
  $region7: #{scob_forward.54} parent=0 // loop_footer_branch
    %8 = sbr.rel target = $region3
  $region8: #{scob_forward.54} parent=0 // loop_exit
    _

// kernel: scob_forward.29
$region0: #{scob_forward.29}
  #allocation0 [shape = 'u32[]', space=smem, size = 0x4, offset = 0x4, fixed_abs, tag = 'smem constant byte address 0x4 - core index']
  #allocation1 [shape = 'u32[72,128]{1,0:T(1,128)}', space=vmem, size = 0x9000, scoped, tag = 'internal scratch']
  %s0 = inlined_call_operand.vmem [shape: f32[8,8], index: 0, kind: input, shape index: {}]
  %s1 = inlined_call_operand.vmem [shape: bf16[8,2048], index: 1, kind: input, shape index: {}]
  %s2 = inlined_call_operand.vmem [shape: f32[1,2048], index: 2, kind: input, shape index: {}]
  %s3 = inlined_call_operand.vmem [shape: bf16[8,2048], index: 3, kind: output, shape index: {}]
  %s4 = sld [smem:[#allocation0]]
  $region22: #{scob_forward.29} parent=0
    _
  %s6 = ssub.s32 1, %s4
  %s7 = scalar_select 0, %s6, %s4
  // Predicated region
  $region2: #{scob_forward.29} parent=0 // pred_check
    _
  $region3: #{scob_forward.29} parent=0 // pred_check_branch
    %9 = sbr.rel (0) target = $region5
  $region4: #{scob_forward.29} parent=0 // pred_region
    _
  $region5: #{scob_forward.29} parent=0 // pred_fallthru
    _
  // Predicated region
  $region6: #{scob_forward.29} parent=0 // pred_check
    _
  $region7: #{scob_forward.29} parent=0 // pred_check_branch
    %11 = sbr.rel (0) target = $region9
  $region8: #{scob_forward.29} parent=0 // pred_region
    _
  $region9: #{scob_forward.29} parent=0 // pred_fallthru
    _
  // Predicated region
  $region10: #{scob_forward.29} parent=0 // pred_check
    _
  $region11: #{scob_forward.29} parent=0 // pred_check_branch
    %13 = sbr.rel (0) target = $region13
  $region12: #{scob_forward.29} parent=0 // pred_region
    _
  $region13: #{scob_forward.29} parent=0 // pred_fallthru
    _
  %v15 = vld [vmem:[%s0] sm:$0xff]
  %v16 = vpack.c.bf16 %v15, %v15
  %v17 = vld [vmem:[%s1] sm:$0xff]
  %v18 = vld [vmem:[%s1 + $0x8] sm:$0xff]
  %v19 = vld [vmem:[%s1 + $0x10] sm:$0xff]
  %v20 = vld [vmem:[%s1 + $0x18] sm:$0xff]
  %v21 = vld [vmem:[%s1 + $0x20] sm:$0xff]
  %v22 = vld [vmem:[%s1 + $0x28] sm:$0xff]
  %v23 = vld [vmem:[%s1 + $0x30] sm:$0xff]
  %v24 = vld [vmem:[%s1 + $0x38] sm:$0xff]
  %v25 = vld [vmem:[%s2] sm:$0xff]
  %v26 = vld [vmem:[%s2 + $0x8] sm:$0xff]
  %v29 = vperm.slane %v25, 0
  %v30 = vperm.slane %v25, 1
  %v31 = vperm.slane %v25, 2
  %v32 = vperm.slane %v25, 3
  %v33 = vperm.slane %v25, 4
  %v34 = vperm.slane %v25, 5
  %v35 = vperm.slane %v25, 6
  %v36 = vperm.slane %v25, 7
  %v37 = vperm.slane %v26, 0
  %v38 = vperm.slane %v26, 1
  %v39 = vperm.slane %v26, 2
  %v40 = vperm.slane %v26, 3
  %v41 = vperm.slane %v26, 4
  %v42 = vperm.slane %v26, 5
  %v43 = vperm.slane %v26, 6
  %v44 = vperm.slane %v26, 7
  %v69 = vunpack.c.l.b16 %v17
  %v70 = vunpack.c.h.b16 %v17
  %v71 = vunpack.c.l.b16 %v18
  %v72 = vunpack.c.h.b16 %v18
  %v73 = vunpack.c.l.b16 %v19
  %v74 = vunpack.c.h.b16 %v19
  %v75 = vunpack.c.l.b16 %v20
  %v76 = vunpack.c.h.b16 %v20
  %v77 = vunpack.c.l.b16 %v21
  %v78 = vunpack.c.h.b16 %v21
  %v79 = vunpack.c.l.b16 %v22
  %v80 = vunpack.c.h.b16 %v22
  %v81 = vunpack.c.l.b16 %v23
  %v82 = vunpack.c.h.b16 %v23
  %v83 = vunpack.c.l.b16 %v24
  %v84 = vunpack.c.h.b16 %v24
  %v85 = vpack.c.b16 %v69, %v69
  %v86 = vpack.c.b16 %v70, %v70
  %v87 = vpack.c.b16 %v71, %v71
  %v88 = vpack.c.b16 %v72, %v72
  %v89 = vpack.c.b16 %v73, %v73
  %v90 = vpack.c.b16 %v74, %v74
  %v91 = vpack.c.b16 %v75, %v75
  %v92 = vpack.c.b16 %v76, %v76
  %v93 = vpack.c.b16 %v77, %v77
  %v94 = vpack.c.b16 %v78, %v78
  %v95 = vpack.c.b16 %v79, %v79
  %v96 = vpack.c.b16 %v80, %v80
  %v97 = vpack.c.b16 %v81, %v81
  %v98 = vpack.c.b16 %v82, %v82
  %v99 = vpack.c.b16 %v83, %v83
  %v100 = vpack.c.b16 %v84, %v84
  %vm101 = vcmask 64512
  %v103 = vsel %vm101, %v16, 0
  %vm105 = vcmask 1043456
  %v107 = vsel %vm105, %v85, 0
  %v110 = vsel %vm105, %v86, 0
  %v113 = vsel %vm105, %v87, 0
  %v116 = vsel %vm105, %v88, 0
  %v119 = vsel %vm105, %v89, 0
  %v122 = vsel %vm105, %v90, 0
  %v125 = vsel %vm105, %v91, 0
  %v128 = vsel %vm105, %v92, 0
  %v131 = vsel %vm105, %v93, 0
  %v134 = vsel %vm105, %v94, 0
  %v137 = vsel %vm105, %v95, 0
  %v140 = vsel %vm105, %v96, 0
  %v143 = vsel %vm105, %v97, 0
  %v146 = vsel %vm105, %v98, 0
  %v149 = vsel %vm105, %v99, 0
  %v152 = vsel %vm105, %v100, 0
  %154 = vmatpush.bf16.msra.mxu0 0
  %155 = vmatpush.bf16.msra.mxu0 0
  %156 = vmatpush.bf16.msra.mxu0 0
  %157 = vmatpush.bf16.msra.mxu0 0
  %158 = vmatpush.bf16.msra.mxu0 0
  %159 = vmatpush.bf16.msra.mxu0 0
  %160 = vmatpush.bf16.msra.mxu0 0
  %161 = vmatpush.bf16.msra.mxu0 %v107
  %162 = vmatmul.bf16.gmra.mxu0 %v103
  %v163 = vpop.f32.mrf.mxu0
  %v164 = vadd.f32 %v29, %v163
  %v165 = vpop.f32.mrf.mxu0
  %166 = vdwg.mxu0
  %167 = vmatpush.bf16.msra.mxu0 0
  %168 = vmatpush.bf16.msra.mxu0 0
  %169 = vmatpush.bf16.msra.mxu0 0
  %170 = vmatpush.bf16.msra.mxu0 0
  %171 = vmatpush.bf16.msra.mxu0 0
  %172 = vmatpush.bf16.msra.mxu0 0
  %173 = vmatpush.bf16.msra.mxu0 0
  %174 = vmatpush.bf16.msra.mxu0 %v110
  %175 = vmatmul.bf16.gmra.mxu0 %v103
  %v176 = vpop.f32.mrf.mxu0
  %v177 = vadd.f32 %v30, %v176
  %v178 = vpop.f32.mrf.mxu0
  %179 = vdwg.mxu0
  %180 = vmatpush.bf16.msra.mxu0 0
  %181 = vmatpush.bf16.msra.mxu0 0
  %182 = vmatpush.bf16.msra.mxu0 0
  %183 = vmatpush.bf16.msra.mxu0 0
  %184 = vmatpush.bf16.msra.mxu0 0
  %185 = vmatpush.bf16.msra.mxu0 0
  %186 = vmatpush.bf16.msra.mxu0 0
  %187 = vmatpush.bf16.msra.mxu0 %v113
  %188 = vmatmul.bf16.gmra.mxu0 %v103
  %v189 = vpop.f32.mrf.mxu0
  %v190 = vadd.f32 %v31, %v189
  %v191 = vpop.f32.mrf.mxu0
  %192 = vdwg.mxu0
  %193 = vmatpush.bf16.msra.mxu0 0
  %194 = vmatpush.bf16.msra.mxu0 0
  %195 = vmatpush.bf16.msra.mxu0 0
  %196 = vmatpush.bf16.msra.mxu0 0
  %197 = vmatpush.bf16.msra.mxu0 0
  %198 = vmatpush.bf16.msra.mxu0 0
  %199 = vmatpush.bf16.msra.mxu0 0
  %200 = vmatpush.bf16.msra.mxu0 %v116
  %201 = vmatmul.bf16.gmra.mxu0 %v103
  %v202 = vpop.f32.mrf.mxu0
  %v203 = vadd.f32 %v32, %v202
  %v204 = vpop.f32.mrf.mxu0
  %205 = vdwg.mxu0
  %206 = vmatpush.bf16.msra.mxu0 0
  %207 = vmatpush.bf16.msra.mxu0 0
  %208 = vmatpush.bf16.msra.mxu0 0
  %209 = vmatpush.bf16.msra.mxu0 0
  %210 = vmatpush.bf16.msra.mxu0 0
  %211 = vmatpush.bf16.msra.mxu0 0
  %212 = vmatpush.bf16.msra.mxu0 0
  %213 = vmatpush.bf16.msra.mxu0 %v119
  %214 = vmatmul.bf16.gmra.mxu0 %v103
  %v215 = vpop.f32.mrf.mxu0
  %v216 = vadd.f32 %v33, %v215
  %v217 = vpop.f32.mrf.mxu0
  %218 = vdwg.mxu0
  %219 = vmatpush.bf16.msra.mxu0 0
  %220 = vmatpush.bf16.msra.mxu0 0
  %221 = vmatpush.bf16.msra.mxu0 0
  %222 = vmatpush.bf16.msra.mxu0 0
  %223 = vmatpush.bf16.msra.mxu0 0
  %224 = vmatpush.bf16.msra.mxu0 0
  %225 = vmatpush.bf16.msra.mxu0 0
  %226 = vmatpush.bf16.msra.mxu0 %v122
  %227 = vmatmul.bf16.gmra.mxu0 %v103
  %v228 = vpop.f32.mrf.mxu0
  %v229 = vadd.f32 %v34, %v228
  %v230 = vpop.f32.mrf.mxu0
  %231 = vdwg.mxu0
  %232 = vmatpush.bf16.msra.mxu0 0
  %233 = vmatpush.bf16.msra.mxu0 0
  %234 = vmatpush.bf16.msra.mxu0 0
  %235 = vmatpush.bf16.msra.mxu0 0
  %236 = vmatpush.bf16.msra.mxu0 0
  %237 = vmatpush.bf16.msra.mxu0 0
  %238 = vmatpush.bf16.msra.mxu0 0
  %239 = vmatpush.bf16.msra.mxu0 %v125
  %240 = vmatmul.bf16.gmra.mxu0 %v103
  %v241 = vpop.f32.mrf.mxu0
  %v242 = vadd.f32 %v35, %v241
  %v243 = vpop.f32.mrf.mxu0
  %244 = vdwg.mxu0
  %245 = vmatpush.bf16.msra.mxu0 0
  %246 = vmatpush.bf16.msra.mxu0 0
  %247 = vmatpush.bf16.msra.mxu0 0
  %248 = vmatpush.bf16.msra.mxu0 0
  %249 = vmatpush.bf16.msra.mxu0 0
  %250 = vmatpush.bf16.msra.mxu0 0
  %251 = vmatpush.bf16.msra.mxu0 0
  %252 = vmatpush.bf16.msra.mxu0 %v128
  %253 = vmatmul.bf16.gmra.mxu0 %v103
  %v254 = vpop.f32.mrf.mxu0
  %v255 = vadd.f32 %v36, %v254
  %v256 = vpop.f32.mrf.mxu0
  %257 = vdwg.mxu0
  %258 = vmatpush.bf16.msra.mxu0 0
  %259 = vmatpush.bf16.msra.mxu0 0
  %260 = vmatpush.bf16.msra.mxu0 0
  %261 = vmatpush.bf16.msra.mxu0 0
  %262 = vmatpush.bf16.msra.mxu0 0
  %263 = vmatpush.bf16.msra.mxu0 0
  %264 = vmatpush.bf16.msra.mxu0 0
  %265 = vmatpush.bf16.msra.mxu0 %v131
  %266 = vmatmul.bf16.gmra.mxu0 %v103
  %v267 = vpop.f32.mrf.mxu0
  %v268 = vadd.f32 %v37, %v267
  %v269 = vpop.f32.mrf.mxu0
  %270 = vdwg.mxu0
  %271 = vmatpush.bf16.msra.mxu0 0
  %272 = vmatpush.bf16.msra.mxu0 0
  %273 = vmatpush.bf16.msra.mxu0 0
  %274 = vmatpush.bf16.msra.mxu0 0
  %275 = vmatpush.bf16.msra.mxu0 0
  %276 = vmatpush.bf16.msra.mxu0 0
  %277 = vmatpush.bf16.msra.mxu0 0
  %278 = vmatpush.bf16.msra.mxu0 %v134
  %279 = vmatmul.bf16.gmra.mxu0 %v103
  %v280 = vpop.f32.mrf.mxu0
  %v281 = vadd.f32 %v38, %v280
  %v282 = vpop.f32.mrf.mxu0
  %283 = vdwg.mxu0
  %284 = vmatpush.bf16.msra.mxu0 0
  %285 = vmatpush.bf16.msra.mxu0 0
  %286 = vmatpush.bf16.msra.mxu0 0
  %287 = vmatpush.bf16.msra.mxu0 0
  %288 = vmatpush.bf16.msra.mxu0 0
  %289 = vmatpush.bf16.msra.mxu0 0
  %290 = vmatpush.bf16.msra.mxu0 0
  %291 = vmatpush.bf16.msra.mxu0 %v137
  %292 = vmatmul.bf16.gmra.mxu0 %v103
  %v293 = vpop.f32.mrf.mxu0
  %v294 = vadd.f32 %v39, %v293
  %v295 = vpop.f32.mrf.mxu0
  %296 = vdwg.mxu0
  %297 = vmatpush.bf16.msra.mxu0 0
  %298 = vmatpush.bf16.msra.mxu0 0
  %299 = vmatpush.bf16.msra.mxu0 0
  %300 = vmatpush.bf16.msra.mxu0 0
  %301 = vmatpush.bf16.msra.mxu0 0
  %302 = vmatpush.bf16.msra.mxu0 0
  %303 = vmatpush.bf16.msra.mxu0 0
  %304 = vmatpush.bf16.msra.mxu0 %v140
  %305 = vmatmul.bf16.gmra.mxu0 %v103
  %v306 = vpop.f32.mrf.mxu0
  %v307 = vadd.f32 %v40, %v306
  %v308 = vpop.f32.mrf.mxu0
  %309 = vdwg.mxu0
  %310 = vmatpush.bf16.msra.mxu0 0
  %311 = vmatpush.bf16.msra.mxu0 0
  %312 = vmatpush.bf16.msra.mxu0 0
  %313 = vmatpush.bf16.msra.mxu0 0
  %314 = vmatpush.bf16.msra.mxu0 0
  %315 = vmatpush.bf16.msra.mxu0 0
  %316 = vmatpush.bf16.msra.mxu0 0
  %317 = vmatpush.bf16.msra.mxu0 %v143
  %318 = vmatmul.bf16.gmra.mxu0 %v103
  %v319 = vpop.f32.mrf.mxu0
  %v320 = vadd.f32 %v41, %v319
  %v321 = vpop.f32.mrf.mxu0
  %322 = vdwg.mxu0
  %323 = vmatpush.bf16.msra.mxu0 0
  %324 = vmatpush.bf16.msra.mxu0 0
  %325 = vmatpush.bf16.msra.mxu0 0
  %326 = vmatpush.bf16.msra.mxu0 0
  %327 = vmatpush.bf16.msra.mxu0 0
  %328 = vmatpush.bf16.msra.mxu0 0
  %329 = vmatpush.bf16.msra.mxu0 0
  %330 = vmatpush.bf16.msra.mxu0 %v146
  %331 = vmatmul.bf16.gmra.mxu0 %v103
  %v332 = vpop.f32.mrf.mxu0
  %v333 = vadd.f32 %v42, %v332
  %v334 = vpop.f32.mrf.mxu0
  %335 = vdwg.mxu0
  %336 = vmatpush.bf16.msra.mxu0 0
  %337 = vmatpush.bf16.msra.mxu0 0
  %338 = vmatpush.bf16.msra.mxu0 0
  %339 = vmatpush.bf16.msra.mxu0 0
  %340 = vmatpush.bf16.msra.mxu0 0
  %341 = vmatpush.bf16.msra.mxu0 0
  %342 = vmatpush.bf16.msra.mxu0 0
  %343 = vmatpush.bf16.msra.mxu0 %v149
  %344 = vmatmul.bf16.gmra.mxu0 %v103
  %v345 = vpop.f32.mrf.mxu0
  %v346 = vadd.f32 %v43, %v345
  %v347 = vpop.f32.mrf.mxu0
  %348 = vdwg.mxu0
  %349 = vmatpush.bf16.msra.mxu0 0
  %350 = vmatpush.bf16.msra.mxu0 0
  %351 = vmatpush.bf16.msra.mxu0 0
  %352 = vmatpush.bf16.msra.mxu0 0
  %353 = vmatpush.bf16.msra.mxu0 0
  %354 = vmatpush.bf16.msra.mxu0 0
  %355 = vmatpush.bf16.msra.mxu0 0
  %356 = vmatpush.bf16.msra.mxu0 %v152
  %357 = vmatmul.bf16.gmra.mxu0 %v103
  %v358 = vpop.f32.mrf.mxu0
  %v359 = vadd.f32 %v44, %v358
  %v360 = vpop.f32.mrf.mxu0
  %361 = vdwg.mxu0
  %v362 = vmax.f32 %v164, 0.0
  %v363 = vmax.f32 %v177, 0.0
  %v364 = vmax.f32 %v190, 0.0
  %v365 = vmax.f32 %v203, 0.0
  %v366 = vmax.f32 %v216, 0.0
  %v367 = vmax.f32 %v229, 0.0
  %v368 = vmax.f32 %v242, 0.0
  %v369 = vmax.f32 %v255, 0.0
  %v370 = vmax.f32 %v268, 0.0
  %v371 = vmax.f32 %v281, 0.0
  %v372 = vmax.f32 %v294, 0.0
  %v373 = vmax.f32 %v307, 0.0
  %v374 = vmax.f32 %v320, 0.0
  %v375 = vmax.f32 %v333, 0.0
  %v376 = vmax.f32 %v346, 0.0
  %v377 = vmax.f32 %v359, 0.0
  %v378 = vpack.c.bf16 %v363, %v362
  %v379 = vpack.c.bf16 %v365, %v364
  %v380 = vpack.c.bf16 %v367, %v366
  %v381 = vpack.c.bf16 %v369, %v368
  %v382 = vpack.c.bf16 %v371, %v370
  %v383 = vpack.c.bf16 %v373, %v372
  %v384 = vpack.c.bf16 %v375, %v374
  %v385 = vpack.c.bf16 %v377, %v376
  %386 = vst [vmem:[%s3] sm:$0xff] %v378
  %387 = vst [vmem:[%s3 + $0x8] sm:$0xff] %v379
  %388 = vst [vmem:[%s3 + $0x10] sm:$0xff] %v380
  %389 = vst [vmem:[%s3 + $0x18] sm:$0xff] %v381
  %390 = vst [vmem:[%s3 + $0x20] sm:$0xff] %v382
  %391 = vst [vmem:[%s3 + $0x28] sm:$0xff] %v383
  %392 = vst [vmem:[%s3 + $0x30] sm:$0xff] %v384
  %393 = vst [vmem:[%s3 + $0x38] sm:$0xff] %v385
  // Predicated region
  $region14: #{scob_forward.29} parent=0 // pred_check
    _
  $region15: #{scob_forward.29} parent=0 // pred_check_branch
    %395 = sbr.rel (0) target = $region17
  $region16: #{scob_forward.29} parent=0 // pred_region
    _
  $region17: #{scob_forward.29} parent=0 // pred_fallthru
    _
  // Predicated region
  $region18: #{scob_forward.29} parent=0 // pred_check
    _
  $region19: #{scob_forward.29} parent=0 // pred_check_branch
    %397 = sbr.rel (0) target = $region21
  $region20: #{scob_forward.29} parent=0 // pred_region
    _
  $region21: #{scob_forward.29} parent=0 // pred_fallthru
    _

// kernel: scob_forward.32
$region0: #{scob_forward.32}
  #allocation0 [shape = 'u32[]', space=smem, size = 0x4, offset = 0x4, fixed_abs, tag = 'smem constant byte address 0x4 - core index']
  #allocation1 [shape = 'u32[72,128]{1,0:T(1,128)}', space=vmem, size = 0x9000, scoped, tag = 'internal scratch']
  %s0 = inlined_call_operand.vmem [shape: bf16[8,128], index: 0, kind: input, shape index: {}]
  %s1 = inlined_call_operand.vmem [shape: bf16[128,128], index: 1, kind: input, shape index: {}]
  %s2 = inlined_call_operand.vmem [shape: f32[1,128], index: 2, kind: input, shape index: {}]
  %s3 = inlined_call_operand.vmem [shape: bf16[8,128], index: 3, kind: output, shape index: {}]
  %s4 = sld [smem:[#allocation0]]
  $region22: #{scob_forward.32} parent=0
    _
  %s6 = ssub.s32 1, %s4
  %s7 = scalar_select 0, %s6, %s4
  // Predicated region
  $region2: #{scob_forward.32} parent=0 // pred_check
    _
  $region3: #{scob_forward.32} parent=0 // pred_check_branch
    %9 = sbr.rel (0) target = $region5
  $region4: #{scob_forward.32} parent=0 // pred_region
    _
  $region5: #{scob_forward.32} parent=0 // pred_fallthru
    _
  // Predicated region
  $region6: #{scob_forward.32} parent=0 // pred_check
    _
  $region7: #{scob_forward.32} parent=0 // pred_check_branch
    %11 = sbr.rel (0) target = $region9
  $region8: #{scob_forward.32} parent=0 // pred_region
    _
  $region9: #{scob_forward.32} parent=0 // pred_fallthru
    _
  // Predicated region
  $region10: #{scob_forward.32} parent=0 // pred_check
    _
  $region11: #{scob_forward.32} parent=0 // pred_check_branch
    %13 = sbr.rel (0) target = $region13
  $region12: #{scob_forward.32} parent=0 // pred_region
    _
  $region13: #{scob_forward.32} parent=0 // pred_fallthru
    _
  %v14 = vld [vmem:[%s0] sm:$0xf]
  %v15 = vld [vmem:[%s1] sm:$0xf]
  %v16 = vld [vmem:[%s1 + $0x4] sm:$0xf]
  %v17 = vld [vmem:[%s1 + $0x8] sm:$0xf]
  %v18 = vld [vmem:[%s1 + $0xc] sm:$0xf]
  %v19 = vld [vmem:[%s1 + $0x10] sm:$0xf]
  %v20 = vld [vmem:[%s1 + $0x14] sm:$0xf]
  %v21 = vld [vmem:[%s1 + $0x18] sm:$0xf]
  %v22 = vld [vmem:[%s1 + $0x1c] sm:$0xf]
  %v23 = vld [vmem:[%s1 + $0x20] sm:$0xf]
  %v24 = vld [vmem:[%s1 + $0x24] sm:$0xf]
  %v25 = vld [vmem:[%s1 + $0x28] sm:$0xf]
  %v26 = vld [vmem:[%s1 + $0x2c] sm:$0xf]
  %v27 = vld [vmem:[%s1 + $0x30] sm:$0xf]
  %v28 = vld [vmem:[%s1 + $0x34] sm:$0xf]
  %v29 = vld [vmem:[%s1 + $0x38] sm:$0xf]
  %v30 = vld [vmem:[%s1 + $0x3c] sm:$0xf]
  %v31 = vld [vmem:[%s2] sm:$0x1]
  %v33 = vperm.slane %v31, 0
  %v51 = vunpack.c.l.b16 %v15
  %v52 = vunpack.c.l.b16 %v16
  %v53 = vunpack.c.l.b16 %v17
  %v54 = vunpack.c.l.b16 %v18
  %v55 = vunpack.c.l.b16 %v19
  %v56 = vunpack.c.l.b16 %v20
  %v57 = vunpack.c.l.b16 %v21
  %v58 = vunpack.c.l.b16 %v22
  %v59 = vunpack.c.l.b16 %v23
  %v60 = vunpack.c.l.b16 %v24
  %v61 = vunpack.c.l.b16 %v25
  %v62 = vunpack.c.l.b16 %v26
  %v63 = vunpack.c.l.b16 %v27
  %v64 = vunpack.c.l.b16 %v28
  %v65 = vunpack.c.l.b16 %v29
  %v66 = vunpack.c.l.b16 %v30
  %v67 = vpack.c.b16 %v52, %v51
  %v68 = vpack.c.b16 %v54, %v53
  %v69 = vpack.c.b16 %v56, %v55
  %v70 = vpack.c.b16 %v58, %v57
  %v71 = vpack.c.b16 %v60, %v59
  %v72 = vpack.c.b16 %v62, %v61
  %v73 = vpack.c.b16 %v64, %v63
  %v74 = vpack.c.b16 %v66, %v65
  %83 = vmatpush.bf16.msra.mxu0 %v74
  %84 = vmatpush.bf16.msra.mxu0 %v73
  %85 = vmatpush.bf16.msra.mxu0 %v72
  %86 = vmatpush.bf16.msra.mxu0 %v71
  %87 = vmatpush.bf16.msra.mxu0 %v70
  %88 = vmatpush.bf16.msra.mxu0 %v69
  %89 = vmatpush.bf16.msra.mxu0 %v68
  %90 = vmatpush.bf16.msra.mxu0 %v67
  %91 = vmatmul.bf16.gmra.mxu0 %v14
  %v92 = vpop.f32.mrf.mxu0
  %v93 = vadd.f32 %v33, %v92
  %v94 = vpop.f32.mrf.mxu0
  %95 = vdwg.mxu0
  %v96 = vpack.c.bf16 %v93, %v93
  %97 = vst [vmem:[%s3] sm:$0xf] %v96
  // Predicated region
  $region14: #{scob_forward.32} parent=0 // pred_check
    _
  $region15: #{scob_forward.32} parent=0 // pred_check_branch
    %99 = sbr.rel (0) target = $region17
  $region16: #{scob_forward.32} parent=0 // pred_region
    _
  $region17: #{scob_forward.32} parent=0 // pred_fallthru
    _
  // Predicated region
  $region18: #{scob_forward.32} parent=0 // pred_check
    _
  $region19: #{scob_forward.32} parent=0 // pred_check_branch
    %101 = sbr.rel (0) target = $region21
  $region20: #{scob_forward.32} parent=0 // pred_region
    _
  $region21: #{scob_forward.32} parent=0 // pred_fallthru
    _

// kernel: scob_forward.31
$region0: #{scob_forward.31}
  #allocation0 [shape = 'u32[]', space=smem, size = 0x4, offset = 0x4, fixed_abs, tag = 'smem constant byte address 0x4 - core index']
  #allocation1 [shape = 'u32[72,128]{1,0:T(1,128)}', space=vmem, size = 0x9000, scoped, tag = 'internal scratch']
  #allocation2 [shape = 'f32[8,128]{1,0:T(8,128)}', space=vmem, size = 0x1000, scoped, tag = 'scratch operand']
  %s0 = inlined_call_operand.vmem [shape: bf16[8,2048], index: 0, kind: input, shape index: {}]
  %s1 = inlined_call_operand.vmem [shape: bf16[2048,128], index: 1, kind: input, shape index: {}]
  %s2 = inlined_call_operand.vmem [shape: f32[1,128], index: 2, kind: input, shape index: {}]
  %s3 = inlined_call_operand.vmem [shape: f32[8,128], index: 3, kind: input, shape index: {}]
  %s4 = inlined_call_operand.vmem [shape: bf16[8,128], index: 4, kind: output, shape index: {}]
  %s5 = sld [smem:[#allocation0]]
  $region57: #{scob_forward.31} parent=0
    _
  %s7 = ssub.s32 1, %s5
  %s8 = scalar_select 0, %s7, %s5
  loop: start=0, step=1, limit=6
  $region2: #{scob_forward.31} parent=0 // loop_pre_header
    _
  $region3: #{scob_forward.31} parent=0 // loop_header
    %s10 = sphi 0, %s14
    %p11 = scmp.ge.s32.totalorder %s10, 6
    %s17 = sphi 0, %s29
    %s18 = sphi 0, %s25
    %s19 = sphi 0, %s17
    %s20 = sphi 0, %s18
    %s21 = sphi 0, %s19
    %s22 = sphi 0, %s20
    %s34 = sphi 0, %s36
    %s37 = sphi 0, %s34
    %s38 = sphi 0, %s37
    %s54 = sphi 0, %s38
    %s60 = sphi 0, %s62
    %s63 = sphi 0, %s60
    %s64 = sphi 0, %s63
    %s80 = sphi 0, %s64
    %s84 = sphi 0, %s84
    %s86 = sphi 0, %s84
    %s87 = sphi 0, %s86
    %s101 = sphi 0, %s87
    %s107 = sphi 0, %s109
    %s110 = sphi 0, %s107
    %s111 = sphi 0, %s110
    %s127 = sphi 0, %s111
    %s133 = sphi 0, %s135
    %s136 = sphi 0, %s133
    %s137 = sphi 0, %s136
    %s153 = sphi 0, %s137
  $region4: #{scob_forward.31} parent=0 // loop_header_branch
    %13 = sbr.rel (%p11) target = $region8
  $region5: #{scob_forward.31} parent=0 // loop_body
    %s15 = ssub.s32 %s10, 1
    %s16 = ssub.s32 %s10, 2
    %s23 = sadd.s32 1, %s18
    %p24 = scmp.ge.s32.totalorder %s23, 4
    %s25 = scalar_select %p24, 0, %s23
    %s26 = sadd.s32 1, %s17
    %s27 = scalar_select %p24, %s26, %s17
    %p28 = scmp.ge.s32.totalorder %s27, 1
    %s29 = scalar_select %p28, 0, %s27
    %s30 = ssub.s32 %s17, %s29
    %s31 = ssub.s32 %s18, %s25
    %s32 = sor.u32 %s30, %s31
    %p33 = scmp.eq.s32.totalorder %s32, 0
    %s35 = sadd.s32 %s34, 1
    %s36 = scalar_select %p33, %s34, %s35
    %p39 = pneg %p33
    %p40 = scmp.eq.s32.totalorder %s10, 3
    %p41 = por %p39, %p40
    %p42 = scmp.ne.s32.totalorder %s34, %s37
    %p43 = scmp.eq.s32.totalorder %s10, 0
    %p44 = por %p42, %p43
    %p45 = scmp.ne.s32.totalorder %s34, %s37
    %p46 = scmp.eq.s32.totalorder %s15, 3
    %p47 = por %p45, %p46
    %p48 = scmp.ne.s32.totalorder %s37, %s38
    %p49 = scmp.eq.s32.totalorder %s15, 0
    %p50 = por %p48, %p49
    %p51 = scmp.ne.s32.totalorder %s37, %s38
    %p52 = scmp.eq.s32.totalorder %s16, 3
    %p53 = por %p51, %p52
    %p55 = scmp.ne.s32.totalorder %s38, %s54
    %p56 = scmp.eq.s32.totalorder %s16, 0
    %p57 = por %p55, %p56
    %s58 = ssub.s32 %s18, %s25
    %p59 = scmp.eq.s32.totalorder %s58, 0
    %s61 = sadd.s32 %s60, 1
    %s62 = scalar_select %p59, %s60, %s61
    %p65 = pneg %p59
    %p66 = scmp.eq.s32.totalorder %s10, 3
    %p67 = por %p65, %p66
    %p68 = scmp.ne.s32.totalorder %s60, %s63
    %p69 = scmp.eq.s32.totalorder %s10, 0
    %p70 = por %p68, %p69
    %p71 = scmp.ne.s32.totalorder %s60, %s63
    %p72 = scmp.eq.s32.totalorder %s15, 3
    %p73 = por %p71, %p72
    %p74 = scmp.ne.s32.totalorder %s63, %s64
    %p75 = scmp.eq.s32.totalorder %s15, 0
    %p76 = por %p74, %p75
    %p77 = scmp.ne.s32.totalorder %s63, %s64
    %p78 = scmp.eq.s32.totalorder %s16, 3
    %p79 = por %p77, %p78
    %p81 = scmp.ne.s32.totalorder %s64, %s80
    %p82 = scmp.eq.s32.totalorder %s16, 0
    %p83 = por %p81, %p82
    %s85 = sadd.s32 %s84, 1
    %p88 = scmp.eq.s32.totalorder %s10, 3
    %p89 = scmp.ne.s32.totalorder %s84, %s86
    %p90 = scmp.eq.s32.totalorder %s10, 0
    %p91 = por %p89, %p90
    %p92 = scmp.ne.s32.totalorder %s84, %s86
    %p93 = scmp.eq.s32.totalorder %s15, 3
    %p94 = por %p92, %p93
    %p95 = scmp.ne.s32.totalorder %s86, %s87
    %p96 = scmp.eq.s32.totalorder %s15, 0
    %p97 = por %p95, %p96
    %p98 = scmp.ne.s32.totalorder %s86, %s87
    %p99 = scmp.eq.s32.totalorder %s16, 3
    %p100 = por %p98, %p99
    %p102 = scmp.ne.s32.totalorder %s87, %s101
    %p103 = scmp.eq.s32.totalorder %s16, 0
    %p104 = por %p102, %p103
    %s105 = ssub.s32 %s17, %s29
    %p106 = scmp.eq.s32.totalorder %s105, 0
    %s108 = sadd.s32 %s107, 1
    %s109 = scalar_select %p106, %s107, %s108
    %p112 = pneg %p106
    %p113 = scmp.eq.s32.totalorder %s10, 3
    %p114 = por %p112, %p113
    %p115 = scmp.ne.s32.totalorder %s107, %s110
    %p116 = scmp.eq.s32.totalorder %s10, 0
    %p117 = por %p115, %p116
    %p118 = scmp.ne.s32.totalorder %s107, %s110
    %p119 = scmp.eq.s32.totalorder %s15, 3
    %p120 = por %p118, %p119
    %p121 = scmp.ne.s32.totalorder %s110, %s111
    %p122 = scmp.eq.s32.totalorder %s15, 0
    %p123 = por %p121, %p122
    %p124 = scmp.ne.s32.totalorder %s110, %s111
    %p125 = scmp.eq.s32.totalorder %s16, 3
    %p126 = por %p124, %p125
    %p128 = scmp.ne.s32.totalorder %s111, %s127
    %p129 = scmp.eq.s32.totalorder %s16, 0
    %p130 = por %p128, %p129
    %s131 = ssub.s32 %s17, %s29
    %p132 = scmp.eq.s32.totalorder %s131, 0
    %s134 = sadd.s32 %s133, 1
    %s135 = scalar_select %p132, %s133, %s134
    %p138 = pneg %p132
    %p139 = scmp.eq.s32.totalorder %s10, 3
    %p140 = por %p138, %p139
    %p141 = scmp.ne.s32.totalorder %s133, %s136
    %p142 = scmp.eq.s32.totalorder %s10, 0
    %p143 = por %p141, %p142
    %p144 = scmp.ne.s32.totalorder %s133, %s136
    %p145 = scmp.eq.s32.totalorder %s15, 3
    %p146 = por %p144, %p145
    %p147 = scmp.ne.s32.totalorder %s136, %s137
    %p148 = scmp.eq.s32.totalorder %s15, 0
    %p149 = por %p147, %p148
    %p150 = scmp.ne.s32.totalorder %s136, %s137
    %p151 = scmp.eq.s32.totalorder %s16, 3
    %p152 = por %p150, %p151
    %p154 = scmp.ne.s32.totalorder %s137, %s153
    %p155 = scmp.eq.s32.totalorder %s16, 0
    %p156 = por %p154, %p155
    %p157 = scmp.le.s32.totalorder 1, %s10
    %p158 = scmp.lt.s32.totalorder %s10, 5
    %p159 = pnand %p157, %p158
    %p160 = pneg %p159
    // Predicated region
    $region9: #{scob_forward.31} parent=5 // pred_check
      _
    $region10: #{scob_forward.31} parent=5 // pred_check_branch
      %162 = sbr.rel (%p159) target = $region12
    $region11: #{scob_forward.31} parent=5 // pred_region
      %s163 = ssub.s32 %s10, 1
      // Predicated region
      $region13: #{scob_forward.31} parent=11 // pred_check
        %p164 = pneg %p97
      $region14: #{scob_forward.31} parent=11 // pred_check_branch
        %166 = sbr.rel (%p164) target = $region16
      $region15: #{scob_forward.31} parent=11 // pred_region
        _
      $region16: #{scob_forward.31} parent=11 // pred_fallthru
        _
      // Predicated region
      $region17: #{scob_forward.31} parent=11 // pred_check
        %p167 = pneg %p123
      $region18: #{scob_forward.31} parent=11 // pred_check_branch
        %169 = sbr.rel (%p167) target = $region20
      $region19: #{scob_forward.31} parent=11 // pred_region
        %p170 = scmp.lt.s32.totalorder %s19, 0
        %s171 = scalar_select %p170, %s19, 0
        %s172 = smul.addr %s171, 8
        %s173 = scalar_lea.vmem %s3, %s172
      $region20: #{scob_forward.31} parent=11 // pred_fallthru
        _
    $region12: #{scob_forward.31} parent=5 // pred_fallthru
      _
    %p174 = scmp.lt.s32.totalorder %s10, 4
    // Predicated region
    $region21: #{scob_forward.31} parent=5 // pred_check
      %p175 = pneg %p174
    $region22: #{scob_forward.31} parent=5 // pred_check_branch
      %177 = sbr.rel (%p175) target = $region24
    $region23: #{scob_forward.31} parent=5 // pred_region
      // Predicated region
      $region25: #{scob_forward.31} parent=23 // pred_check
        %p178 = pneg %p44
      $region26: #{scob_forward.31} parent=23 // pred_check_branch
        %180 = sbr.rel (%p178) target = $region28
      $region27: #{scob_forward.31} parent=23 // pred_region
        %s181 = smul.u32 4, %s18
        %p182 = scmp.lt.s32.totalorder %s17, 0
        %s183 = scalar_select %p182, %s17, 0
        %p184 = scmp.lt.s32.totalorder %s181, 15
        %s185 = scalar_select %p184, %s181, 15
        %s186 = smul.addr %s183, 16
        %s187 = sadd.s32 %s185, %s186
        %s188 = smul.addr %s187, 4
        %s189 = scalar_lea.vmem %s0, %s188
        %s190 = smul.u32 4, %s18
      $region28: #{scob_forward.31} parent=23 // pred_fallthru
        _
      // Predicated region
      $region29: #{scob_forward.31} parent=23 // pred_check
        %p191 = pneg %p70
      $region30: #{scob_forward.31} parent=23 // pred_check_branch
        %193 = sbr.rel (%p191) target = $region32
      $region31: #{scob_forward.31} parent=23 // pred_region
        %s194 = smul.u32 64, %s18
        %p195 = scmp.lt.s32.totalorder %s194, 255
        %s196 = scalar_select %p195, %s194, 255
        %s197 = smul.addr %s196, 4
        %s198 = scalar_lea.vmem %s1, %s197
        %s199 = smul.u32 64, %s18
      $region32: #{scob_forward.31} parent=23 // pred_fallthru
        _
    $region24: #{scob_forward.31} parent=5 // pred_fallthru
      _
    %p200 = scmp.le.s32.totalorder 1, %s10
    %p201 = scmp.lt.s32.totalorder %s10, 5
    %p202 = pnand %p200, %p201
    %p203 = pneg %p202
    // Predicated region
    $region33: #{scob_forward.31} parent=5 // pred_check
      _
    $region34: #{scob_forward.31} parent=5 // pred_check_branch
      %205 = sbr.rel (%p202) target = $region36
    $region35: #{scob_forward.31} parent=5 // pred_region
      %s206 = ssub.s32 %s10, 1
      %s207 = smul.u32 4, %s20
      %p208 = scmp.lt.s32.totalorder %s19, 0
      %s209 = scalar_select %p208, %s19, 0
      %p210 = scmp.lt.s32.totalorder %s207, 15
      %s211 = scalar_select %p210, %s207, 15
      %s212 = smul.addr %s209, 16
      %s213 = sadd.s32 %s211, %s212
      %s214 = smul.addr %s213, 4
      %s215 = scalar_lea.vmem %s0, %s214
      %p216 = pneg %p50
      %p217 = pneg %p47
      %s218 = smul.u32 64, %s20
      %p219 = scmp.lt.s32.totalorder %s218, 255
      %s220 = scalar_select %p219, %s218, 255
      %s221 = smul.addr %s220, 4
      %s222 = scalar_lea.vmem %s1, %s221
      %p223 = pneg %p76
      %p224 = pneg %p73
      %p225 = pneg %p97
      %p226 = pneg %p94
      %p227 = scmp.lt.s32.totalorder %s19, 0
      %s228 = scalar_select %p227, %s19, 0
      %s229 = smul.addr %s228, 8
      %s230 = scalar_lea.vmem %s3, %s229
      %p231 = pneg %p123
      %p232 = pneg %p120
      %p233 = pneg %p149
      %p234 = pneg %p146
      %p235 = scmp.lt.s32.totalorder %s19, 0
      %s236 = scalar_select %p235, %s19, 0
      %s237 = smul.addr %s236, 4
      %s238 = scalar_lea.vmem %s4, %s237
      %s239 = smul.u32 4, %s20
      %p240 = scmp.lt.s32.totalorder %s19, 0
      %s241 = scalar_select %p240, %s19, 0
      %p242 = scmp.lt.s32.totalorder %s239, 15
      %s243 = scalar_select %p242, %s239, 15
      %s244 = smul.addr %s241, 16
      %s245 = sadd.s32 %s243, %s244
      %s246 = smul.addr %s245, 4
      %s247 = scalar_lea.vmem %s0, %s246
      %s248 = smul.u32 4, %s20
      %s249 = smul.u32 64, %s20
      %p250 = scmp.lt.s32.totalorder %s249, 255
      %s251 = scalar_select %p250, %s249, 255
      %s252 = smul.addr %s251, 4
      %s253 = scalar_lea.vmem %s1, %s252
      %s254 = smul.u32 64, %s20
      %p255 = scmp.lt.s32.totalorder %s19, 0
      %s256 = scalar_select %p255, %s19, 0
      %s257 = smul.addr %s256, 8
      %s258 = scalar_lea.vmem %s3, %s257
      %p259 = scmp.lt.s32.totalorder %s19, 0
      %s260 = scalar_select %p259, %s19, 0
      %s261 = smul.addr %s260, 4
      %s262 = scalar_lea.vmem %s4, %s261
      %v263 = vld [vmem:[%s247] sm:$0xff]
      %v264 = vld [vmem:[%s247 + $0x8] sm:$0xff]
      %v265 = vld [vmem:[%s253] sm:$0xf]
      %v266 = vld [vmem:[%s253 + $0x4] sm:$0xf]
      %v267 = vld [vmem:[%s253 + $0x8] sm:$0xf]
      %v268 = vld [vmem:[%s253 + $0xc] sm:$0xf]
      %v269 = vld [vmem:[%s253 + $0x10] sm:$0xf]
      %v270 = vld [vmem:[%s253 + $0x14] sm:$0xf]
      %v271 = vld [vmem:[%s253 + $0x18] sm:$0xf]
      %v272 = vld [vmem:[%s253 + $0x1c] sm:$0xf]
      %v273 = vld [vmem:[%s253 + $0x20] sm:$0xf]
      %v274 = vld [vmem:[%s253 + $0x24] sm:$0xf]
      %v275 = vld [vmem:[%s253 + $0x28] sm:$0xf]
      %v276 = vld [vmem:[%s253 + $0x2c] sm:$0xf]
      %v277 = vld [vmem:[%s253 + $0x30] sm:$0xf]
      %v278 = vld [vmem:[%s253 + $0x34] sm:$0xf]
      %v279 = vld [vmem:[%s253 + $0x38] sm:$0xf]
      %v280 = vld [vmem:[%s253 + $0x3c] sm:$0xf]
      %v281 = vld [vmem:[%s253 + $0x40] sm:$0xf]
      %v282 = vld [vmem:[%s253 + $0x44] sm:$0xf]
      %v283 = vld [vmem:[%s253 + $0x48] sm:$0xf]
      %v284 = vld [vmem:[%s253 + $0x4c] sm:$0xf]
      %v285 = vld [vmem:[%s253 + $0x50] sm:$0xf]
      %v286 = vld [vmem:[%s253 + $0x54] sm:$0xf]
      %v287 = vld [vmem:[%s253 + $0x58] sm:$0xf]
      %v288 = vld [vmem:[%s253 + $0x5c] sm:$0xf]
      %v289 = vld [vmem:[%s253 + $0x60] sm:$0xf]
      %v290 = vld [vmem:[%s253 + $0x64] sm:$0xf]
      %v291 = vld [vmem:[%s253 + $0x68] sm:$0xf]
      %v292 = vld [vmem:[%s253 + $0x6c] sm:$0xf]
      %v293 = vld [vmem:[%s253 + $0x70] sm:$0xf]
      %v294 = vld [vmem:[%s253 + $0x74] sm:$0xf]
      %v295 = vld [vmem:[%s253 + $0x78] sm:$0xf]
      %v296 = vld [vmem:[%s253 + $0x7c] sm:$0xf]
      %v297 = vld [vmem:[%s253 + $0x80] sm:$0xf]
      %v298 = vld [vmem:[%s253 + $0x84] sm:$0xf]
      %v299 = vld [vmem:[%s253 + $0x88] sm:$0xf]
      %v300 = vld [vmem:[%s253 + $0x8c] sm:$0xf]
      %v301 = vld [vmem:[%s253 + $0x90] sm:$0xf]
      %v302 = vld [vmem:[%s253 + $0x94] sm:$0xf]
      %v303 = vld [vmem:[%s253 + $0x98] sm:$0xf]
      %v304 = vld [vmem:[%s253 + $0x9c] sm:$0xf]
      %v305 = vld [vmem:[%s253 + $0xa0] sm:$0xf]
      %v306 = vld [vmem:[%s253 + $0xa4] sm:$0xf]
      %v307 = vld [vmem:[%s253 + $0xa8] sm:$0xf]
      %v308 = vld [vmem:[%s253 + $0xac] sm:$0xf]
      %v309 = vld [vmem:[%s253 + $0xb0] sm:$0xf]
      %v310 = vld [vmem:[%s253 + $0xb4] sm:$0xf]
      %v311 = vld [vmem:[%s253 + $0xb8] sm:$0xf]
      %v312 = vld [vmem:[%s253 + $0xbc] sm:$0xf]
      %v313 = vld [vmem:[%s253 + $0xc0] sm:$0xf]
      %v314 = vld [vmem:[%s253 + $0xc4] sm:$0xf]
      %v315 = vld [vmem:[%s253 + $0xc8] sm:$0xf]
      %v316 = vld [vmem:[%s253 + $0xcc] sm:$0xf]
      %v317 = vld [vmem:[%s253 + $0xd0] sm:$0xf]
      %v318 = vld [vmem:[%s253 + $0xd4] sm:$0xf]
      %v319 = vld [vmem:[%s253 + $0xd8] sm:$0xf]
      %v320 = vld [vmem:[%s253 + $0xdc] sm:$0xf]
      %v321 = vld [vmem:[%s253 + $0xe0] sm:$0xf]
      %v322 = vld [vmem:[%s253 + $0xe4] sm:$0xf]
      %v323 = vld [vmem:[%s253 + $0xe8] sm:$0xf]
      %v324 = vld [vmem:[%s253 + $0xec] sm:$0xf]
      %v325 = vld [vmem:[%s253 + $0xf0] sm:$0xf]
      %v326 = vld [vmem:[%s253 + $0xf4] sm:$0xf]
      %v327 = vld [vmem:[%s253 + $0xf8] sm:$0xf]
      %v328 = vld [vmem:[%s253 + $0xfc] sm:$0xf]
      %v331 = vunpack.c.l.b16 %v263
      %v332 = vunpack.c.h.b16 %v263
      %v333 = vunpack.c.l.b16 %v264
      %v334 = vunpack.c.h.b16 %v264
      %v335 = vpack.c.b16 %v331, %v331
      %v336 = vpack.c.b16 %v332, %v332
      %v337 = vpack.c.b16 %v333, %v333
      %v338 = vpack.c.b16 %v334, %v334
      %v407 = vunpack.c.l.b16 %v265
      %v408 = vunpack.c.l.b16 %v266
      %v409 = vunpack.c.l.b16 %v267
      %v410 = vunpack.c.l.b16 %v268
      %v411 = vunpack.c.l.b16 %v269
      %v412 = vunpack.c.l.b16 %v270
      %v413 = vunpack.c.l.b16 %v271
      %v414 = vunpack.c.l.b16 %v272
      %v415 = vunpack.c.l.b16 %v273
      %v416 = vunpack.c.l.b16 %v274
      %v417 = vunpack.c.l.b16 %v275
      %v418 = vunpack.c.l.b16 %v276
      %v419 = vunpack.c.l.b16 %v277
      %v420 = vunpack.c.l.b16 %v278
      %v421 = vunpack.c.l.b16 %v279
      %v422 = vunpack.c.l.b16 %v280
      %v423 = vunpack.c.l.b16 %v281
      %v424 = vunpack.c.l.b16 %v282
      %v425 = vunpack.c.l.b16 %v283
      %v426 = vunpack.c.l.b16 %v284
      %v427 = vunpack.c.l.b16 %v285
      %v428 = vunpack.c.l.b16 %v286
      %v429 = vunpack.c.l.b16 %v287
      %v430 = vunpack.c.l.b16 %v288
      %v431 = vunpack.c.l.b16 %v289
      %v432 = vunpack.c.l.b16 %v290
      %v433 = vunpack.c.l.b16 %v291
      %v434 = vunpack.c.l.b16 %v292
      %v435 = vunpack.c.l.b16 %v293
      %v436 = vunpack.c.l.b16 %v294
      %v437 = vunpack.c.l.b16 %v295
      %v438 = vunpack.c.l.b16 %v296
      %v439 = vunpack.c.l.b16 %v297
      %v440 = vunpack.c.l.b16 %v298
      %v441 = vunpack.c.l.b16 %v299
      %v442 = vunpack.c.l.b16 %v300
      %v443 = vunpack.c.l.b16 %v301
      %v444 = vunpack.c.l.b16 %v302
      %v445 = vunpack.c.l.b16 %v303
      %v446 = vunpack.c.l.b16 %v304
      %v447 = vunpack.c.l.b16 %v305
      %v448 = vunpack.c.l.b16 %v306
      %v449 = vunpack.c.l.b16 %v307
      %v450 = vunpack.c.l.b16 %v308
      %v451 = vunpack.c.l.b16 %v309
      %v452 = vunpack.c.l.b16 %v310
      %v453 = vunpack.c.l.b16 %v311
      %v454 = vunpack.c.l.b16 %v312
      %v455 = vunpack.c.l.b16 %v313
      %v456 = vunpack.c.l.b16 %v314
      %v457 = vunpack.c.l.b16 %v315
      %v458 = vunpack.c.l.b16 %v316
      %v459 = vunpack.c.l.b16 %v317
      %v460 = vunpack.c.l.b16 %v318
      %v461 = vunpack.c.l.b16 %v319
      %v462 = vunpack.c.l.b16 %v320
      %v463 = vunpack.c.l.b16 %v321
      %v464 = vunpack.c.l.b16 %v322
      %v465 = vunpack.c.l.b16 %v323
      %v466 = vunpack.c.l.b16 %v324
      %v467 = vunpack.c.l.b16 %v325
      %v468 = vunpack.c.l.b16 %v326
      %v469 = vunpack.c.l.b16 %v327
      %v470 = vunpack.c.l.b16 %v328
      %v471 = vpack.c.b16 %v408, %v407
      %v472 = vpack.c.b16 %v410, %v409
      %v473 = vpack.c.b16 %v412, %v411
      %v474 = vpack.c.b16 %v414, %v413
      %v475 = vpack.c.b16 %v416, %v415
      %v476 = vpack.c.b16 %v418, %v417
      %v477 = vpack.c.b16 %v420, %v419
      %v478 = vpack.c.b16 %v422, %v421
      %v479 = vpack.c.b16 %v424, %v423
      %v480 = vpack.c.b16 %v426, %v425
      %v481 = vpack.c.b16 %v428, %v427
      %v482 = vpack.c.b16 %v430, %v429
      %v483 = vpack.c.b16 %v432, %v431
      %v484 = vpack.c.b16 %v434, %v433
      %v485 = vpack.c.b16 %v436, %v435
      %v486 = vpack.c.b16 %v438, %v437
      %v487 = vpack.c.b16 %v440, %v439
      %v488 = vpack.c.b16 %v442, %v441
      %v489 = vpack.c.b16 %v444, %v443
      %v490 = vpack.c.b16 %v446, %v445
      %v491 = vpack.c.b16 %v448, %v447
      %v492 = vpack.c.b16 %v450, %v449
      %v493 = vpack.c.b16 %v452, %v451
      %v494 = vpack.c.b16 %v454, %v453
      %v495 = vpack.c.b16 %v456, %v455
      %v496 = vpack.c.b16 %v458, %v457
      %v497 = vpack.c.b16 %v460, %v459
      %v498 = vpack.c.b16 %v462, %v461
      %v499 = vpack.c.b16 %v464, %v463
      %v500 = vpack.c.b16 %v466, %v465
      %v501 = vpack.c.b16 %v468, %v467
      %v502 = vpack.c.b16 %v470, %v469
      %535 = vmatpush.bf16.msra.mxu0 %v478
      %536 = vmatpush.bf16.msra.mxu0 %v477
      %537 = vmatpush.bf16.msra.mxu0 %v476
      %538 = vmatpush.bf16.msra.mxu0 %v475
      %539 = vmatpush.bf16.msra.mxu0 %v474
      %540 = vmatpush.bf16.msra.mxu0 %v473
      %541 = vmatpush.bf16.msra.mxu0 %v472
      %542 = vmatpush.bf16.msra.mxu0 %v471
      %543 = vmatmul.bf16.gmra.mxu0 %v335
      %v544 = vpop.f32.mrf.mxu0
      %v545 = vadd.f32 0.0, %v544
      %v546 = vpop.f32.mrf.mxu0
      %547 = vdwg.mxu0
      %548 = vmatpush.bf16.msra.mxu0 %v486
      %549 = vmatpush.bf16.msra.mxu0 %v485
      %550 = vmatpush.bf16.msra.mxu0 %v484
      %551 = vmatpush.bf16.msra.mxu0 %v483
      %552 = vmatpush.bf16.msra.mxu0 %v482
      %553 = vmatpush.bf16.msra.mxu0 %v481
      %554 = vmatpush.bf16.msra.mxu0 %v480
      %555 = vmatpush.bf16.msra.mxu0 %v479
      %556 = vmatmul.bf16.gmra.mxu0 %v336
      %v557 = vpop.f32.mrf.mxu0
      %v558 = vadd.f32 %v545, %v557
      %v559 = vpop.f32.mrf.mxu0
      %560 = vdwg.mxu0
      %561 = vmatpush.bf16.msra.mxu0 %v494
      %562 = vmatpush.bf16.msra.mxu0 %v493
      %563 = vmatpush.bf16.msra.mxu0 %v492
      %564 = vmatpush.bf16.msra.mxu0 %v491
      %565 = vmatpush.bf16.msra.mxu0 %v490
      %566 = vmatpush.bf16.msra.mxu0 %v489
      %567 = vmatpush.bf16.msra.mxu0 %v488
      %568 = vmatpush.bf16.msra.mxu0 %v487
      %569 = vmatmul.bf16.gmra.mxu0 %v337
      %v570 = vpop.f32.mrf.mxu0
      %v571 = vadd.f32 %v558, %v570
      %v572 = vpop.f32.mrf.mxu0
      %573 = vdwg.mxu0
      %574 = vmatpush.bf16.msra.mxu0 %v502
      %575 = vmatpush.bf16.msra.mxu0 %v501
      %576 = vmatpush.bf16.msra.mxu0 %v500
      %577 = vmatpush.bf16.msra.mxu0 %v499
      %578 = vmatpush.bf16.msra.mxu0 %v498
      %579 = vmatpush.bf16.msra.mxu0 %v497
      %580 = vmatpush.bf16.msra.mxu0 %v496
      %581 = vmatpush.bf16.msra.mxu0 %v495
      %582 = vmatmul.bf16.gmra.mxu0 %v338
      %v583 = vpop.f32.mrf.mxu0
      %v584 = vadd.f32 %v571, %v583
      %v585 = vpop.f32.mrf.mxu0
      %586 = vdwg.mxu0
      %p587 = scmp.eq.s32.totalorder %s20, 0
      // Predicated region
      $region37: #{scob_forward.31} parent=35 // pred_check
        %p588 = pneg %p587
      $region38: #{scob_forward.31} parent=35 // pred_check_branch
        %590 = sbr.rel (%p588) target = $region40
      $region39: #{scob_forward.31} parent=35 // pred_region
        %591 = vst [vmem:[#allocation2] sm:$0xff] 0.0
      $region40: #{scob_forward.31} parent=35 // pred_fallthru
        _
      %v592 = vld [vmem:[#allocation2] sm:$0xff]
      %v593 = vadd.f32 %v592, %v584
      %594 = vst [vmem:[#allocation2] sm:$0xff] %v593
      %p595 = scmp.eq.s32.totalorder %s20, 3
      // Predicated region
      $region41: #{scob_forward.31} parent=35 // pred_check
        %p596 = pneg %p595
      $region42: #{scob_forward.31} parent=35 // pred_check_branch
        %598 = sbr.rel (%p596) target = $region44
      $region43: #{scob_forward.31} parent=35 // pred_region
        %v599 = vld [vmem:[#allocation2] sm:$0xff]
        %v600 = vld [vmem:[%s2] sm:$0x1]
        %v602 = vperm.slane %v600, 0
        %v604 = vadd.f32 %v599, %v602
        %v605 = vld [vmem:[%s258] sm:$0xff]
        %v606 = vadd.f32 %v604, %v605
        %v607 = vpack.c.bf16 %v606, %v606
        %608 = vst [vmem:[%s262] sm:$0xf] %v607
      $region44: #{scob_forward.31} parent=35 // pred_fallthru
        _
      %p609 = scmp.lt.s32.totalorder %s19, 0
      %s610 = scalar_select %p609, %s19, 0
      %s611 = smul.addr %s610, 4
      %s612 = scalar_lea.vmem %s4, %s611
      // Predicated region
      $region45: #{scob_forward.31} parent=35 // pred_check
        %p613 = pneg %p146
      $region46: #{scob_forward.31} parent=35 // pred_check_branch
        %615 = sbr.rel (%p613) target = $region48
      $region47: #{scob_forward.31} parent=35 // pred_region
        _
      $region48: #{scob_forward.31} parent=35 // pred_fallthru
        _
      // Predicated region
      $region49: #{scob_forward.31} parent=35 // pred_check
        %p616 = pneg %p146
      $region50: #{scob_forward.31} parent=35 // pred_check_branch
        %618 = sbr.rel (%p616) target = $region52
      $region51: #{scob_forward.31} parent=35 // pred_region
        %p619 = scmp.lt.s32.totalorder %s19, 0
        %s620 = scalar_select %p619, %s19, 0
        %s621 = smul.addr %s620, 4
        %s622 = scalar_lea.vmem %s4, %s621
      $region52: #{scob_forward.31} parent=35 // pred_fallthru
        _
    $region36: #{scob_forward.31} parent=5 // pred_fallthru
      _
    %p623 = scmp.le.s32.totalorder 2, %s10
    // Predicated region
    $region53: #{scob_forward.31} parent=5 // pred_check
      %p624 = pneg %p623
    $region54: #{scob_forward.31} parent=5 // pred_check_branch
      %626 = sbr.rel (%p624) target = $region56
    $region55: #{scob_forward.31} parent=5 // pred_region
      %s627 = ssub.s32 %s10, 2
    $region56: #{scob_forward.31} parent=5 // pred_fallthru
      _
  $region6: #{scob_forward.31} parent=0 // loop_footer
    %s14 = sadd.s32 1, %s10
  $region7: #{scob_forward.31} parent=0 // loop_footer_branch
    %9 = sbr.rel target = $region3
  $region8: #{scob_forward.31} parent=0 // loop_exit
    _

// kernel: scob_forward.33
$region0: #{scob_forward.33}
  #allocation0 [shape = 'u32[]', space=smem, size = 0x4, offset = 0x4, fixed_abs, tag = 'smem constant byte address 0x4 - core index']
  #allocation1 [shape = 'u32[72,128]{1,0:T(1,128)}', space=vmem, size = 0x9000, scoped, tag = 'internal scratch']
  %s0 = inlined_call_operand.vmem [shape: bf16[16,3,4,2], index: 0, kind: input, shape index: {}]
  %s1 = inlined_call_operand.vmem [shape: bf16[16,4,2], index: 1, kind: output, shape index: {}]
  %s2 = sld [smem:[#allocation0]]
  $region37: #{scob_forward.33} parent=0
    _
  %s4 = ssub.s32 1, %s2
  %s5 = scalar_select 0, %s4, %s2
  loop: start=0, step=1, limit=18
  $region2: #{scob_forward.33} parent=0 // loop_pre_header
    _
  $region3: #{scob_forward.33} parent=0 // loop_header
    %s7 = sphi 0, %s11
    %p8 = scmp.ge.s32.totalorder %s7, 18
    %s17 = sphi 0, %s19
    %s20 = sphi 0, %s17
    %s21 = sphi 0, %s20
    %s37 = sphi 0, %s21
    %s43 = sphi 0, %s45
    %s46 = sphi 0, %s43
    %s47 = sphi 0, %s46
    %s63 = sphi 0, %s47
  $region4: #{scob_forward.33} parent=0 // loop_header_branch
    %10 = sbr.rel (%p8) target = $region8
  $region5: #{scob_forward.33} parent=0 // loop_body
    %s12 = ssub.s32 %s7, 1
    %s13 = ssub.s32 %s7, 2
    %s14 = sadd.s32 %s7, 1
    %s15 = ssub.s32 %s7, %s14
    %p16 = scmp.eq.s32.totalorder %s15, 0
    %s18 = sadd.s32 %s17, 1
    %s19 = scalar_select %p16, %s17, %s18
    %p22 = pneg %p16
    %p23 = scmp.eq.s32.totalorder %s7, 15
    %p24 = por %p22, %p23
    %p25 = scmp.ne.s32.totalorder %s17, %s20
    %p26 = scmp.eq.s32.totalorder %s7, 0
    %p27 = por %p25, %p26
    %p28 = scmp.ne.s32.totalorder %s17, %s20
    %p29 = scmp.eq.s32.totalorder %s12, 15
    %p30 = por %p28, %p29
    %p31 = scmp.ne.s32.totalorder %s20, %s21
    %p32 = scmp.eq.s32.totalorder %s12, 0
    %p33 = por %p31, %p32
    %p34 = scmp.ne.s32.totalorder %s20, %s21
    %p35 = scmp.eq.s32.totalorder %s13, 15
    %p36 = por %p34, %p35
    %p38 = scmp.ne.s32.totalorder %s21, %s37
    %p39 = scmp.eq.s32.totalorder %s13, 0
    %p40 = por %p38, %p39
    %s41 = ssub.s32 %s7, %s14
    %p42 = scmp.eq.s32.totalorder %s41, 0
    %s44 = sadd.s32 %s43, 1
    %s45 = scalar_select %p42, %s43, %s44
    %p48 = pneg %p42
    %p49 = scmp.eq.s32.totalorder %s7, 15
    %p50 = por %p48, %p49
    %p51 = scmp.ne.s32.totalorder %s43, %s46
    %p52 = scmp.eq.s32.totalorder %s7, 0
    %p53 = por %p51, %p52
    %p54 = scmp.ne.s32.totalorder %s43, %s46
    %p55 = scmp.eq.s32.totalorder %s12, 15
    %p56 = por %p54, %p55
    %p57 = scmp.ne.s32.totalorder %s46, %s47
    %p58 = scmp.eq.s32.totalorder %s12, 0
    %p59 = por %p57, %p58
    %p60 = scmp.ne.s32.totalorder %s46, %s47
    %p61 = scmp.eq.s32.totalorder %s13, 15
    %p62 = por %p60, %p61
    %p64 = scmp.ne.s32.totalorder %s47, %s63
    %p65 = scmp.eq.s32.totalorder %s13, 0
    %p66 = por %p64, %p65
    %p67 = scmp.le.s32.totalorder 1, %s7
    %p68 = scmp.lt.s32.totalorder %s7, 17
    %p69 = pnand %p67, %p68
    %p70 = pneg %p69
    // Predicated region
    $region9: #{scob_forward.33} parent=5 // pred_check
      _
    $region10: #{scob_forward.33} parent=5 // pred_check_branch
      %72 = sbr.rel (%p69) target = $region12
    $region11: #{scob_forward.33} parent=5 // pred_region
      %s73 = ssub.s32 %s7, 1
    $region12: #{scob_forward.33} parent=5 // pred_fallthru
      _
    %p74 = scmp.lt.s32.totalorder %s7, 16
    // Predicated region
    $region13: #{scob_forward.33} parent=5 // pred_check
      %p75 = pneg %p74
    $region14: #{scob_forward.33} parent=5 // pred_check_branch
      %77 = sbr.rel (%p75) target = $region16
    $region15: #{scob_forward.33} parent=5 // pred_region
      // Predicated region
      $region17: #{scob_forward.33} parent=15 // pred_check
        %p78 = pneg %p27
      $region18: #{scob_forward.33} parent=15 // pred_check_branch
        %80 = sbr.rel (%p78) target = $region20
      $region19: #{scob_forward.33} parent=15 // pred_region
        %p81 = scmp.lt.s32.totalorder %s7, 15
        %s82 = scalar_select %p81, %s7, 15
        %s83 = smul.addr %s82, 3
        %s84 = smul.addr %s83, 2
        %s85 = scalar_lea.vmem %s0, %s84
      $region20: #{scob_forward.33} parent=15 // pred_fallthru
        _
    $region16: #{scob_forward.33} parent=5 // pred_fallthru
      _
    %p86 = scmp.le.s32.totalorder 1, %s7
    %p87 = scmp.lt.s32.totalorder %s7, 17
    %p88 = pnand %p86, %p87
    %p89 = pneg %p88
    // Predicated region
    $region21: #{scob_forward.33} parent=5 // pred_check
      _
    $region22: #{scob_forward.33} parent=5 // pred_check_branch
      %91 = sbr.rel (%p88) target = $region24
    $region23: #{scob_forward.33} parent=5 // pred_region
      %s92 = ssub.s32 %s7, 1
      %p93 = scmp.lt.s32.totalorder %s12, 15
      %s94 = scalar_select %p93, %s12, 15
      %s95 = smul.addr %s94, 3
      %s96 = smul.addr %s95, 2
      %s97 = scalar_lea.vmem %s0, %s96
      %p98 = pneg %p33
      %p99 = pneg %p30
      %p100 = pneg %p59
      %p101 = pneg %p56
      %p102 = scmp.lt.s32.totalorder %s12, 15
      %s103 = scalar_select %p102, %s12, 15
      %s104 = smul.addr %s103, 2
      %s105 = scalar_lea.vmem %s1, %s104
      %p106 = scmp.lt.s32.totalorder %s12, 15
      %s107 = scalar_select %p106, %s12, 15
      %s108 = smul.addr %s107, 3
      %s109 = smul.addr %s108, 2
      %s110 = scalar_lea.vmem %s0, %s109
      %p111 = scmp.lt.s32.totalorder %s12, 15
      %s112 = scalar_select %p111, %s12, 15
      %s113 = smul.addr %s112, 2
      %s114 = scalar_lea.vmem %s1, %s113
      %v116 = vld [vmem:[%s110] sm:$0x3]
      %s117 = scalar_lea.vmem %s110, 2
      %v118 = vld [vmem:[%s117] sm:$0x3]
      %s119 = scalar_lea.vmem %s110, 4
      %v120 = vld [vmem:[%s119] sm:$0x3]
      %vm121 = vcmask 15360
      %v123 = vsel %vm121, %v116, 0
      %v126 = vsel %vm121, %v118, 0
      %128 = vmatpush.bf16.xpose.msra.mxu0 0
      %129 = vmatpush.bf16.xpose.msra.mxu0 0
      %130 = vmatpush.bf16.xpose.msra.mxu0 0
      %131 = vmatpush.bf16.xpose.msra.mxu0 0
      %132 = vmatpush.bf16.xpose.msra.mxu0 0
      %133 = vmatpush.bf16.xpose.msra.mxu0 0
      %134 = vmatpush.bf16.xpose.msra.mxu0 0
      %135 = vmatpush.bf16.xpose.msra.mxu0 %v126
      %136 = vmatmul.bf16.gmra.mxu0 %v123
      %v137 = vpop.f32.mrf.mxu0
      %v138 = vadd.f32 0.0, %v137
      %v139 = vpop.f32.mrf.mxu0
      %140 = vdwg.mxu0
      %vm141 = vcmask 27648
      %v142 = vsel %vm141, %v138, -inf
      %143 = vmax.xlane.f32.xlu0 %v142
      %v144 = vpop.xlane.xlu0 %143
      %v145 = vsub.f32 %v138, %v144
      %v146 = vmul.f32 %v145, 1.442695
      %v147 = vpow.pop %v146
      %v148 = vsel %vm141, %v147, 0.0
      %149 = vadd.xlane.f32.xlu0 %v148
      %v150 = vpop.xlane.xlu0 %149
      %v151 = vrcp.pop %v150
      %v152 = vmul.f32 %v147, %v151
      %v153 = vpack.c.bf16 %v152, %v152
      %vm154 = vcmask 31744
      %v156 = vsel %vm154, %v153, 0
      %vm158 = vcmask 1041408
      %v160 = vsel %vm158, %v120, 0
      %162 = vmatpush.bf16.msra.mxu0 0
      %163 = vmatpush.bf16.msra.mxu0 0
      %164 = vmatpush.bf16.msra.mxu0 0
      %165 = vmatpush.bf16.msra.mxu0 0
      %166 = vmatpush.bf16.msra.mxu0 0
      %167 = vmatpush.bf16.msra.mxu0 0
      %168 = vmatpush.bf16.msra.mxu0 0
      %169 = vmatpush.bf16.msra.mxu0 %v160
      %170 = vmatmul.bf16.gmra.mxu0 %v156
      %v171 = vpop.f32.mrf.mxu0
      %v172 = vadd.f32 0.0, %v171
      %v173 = vpop.f32.mrf.mxu0
      %174 = vdwg.mxu0
      %v175 = vpack.c.bf16 %v172, %v172
      %vm176 = vcmask 9216
      %177 = vst.msk [vmem:[%s114] sm:$0x3] %vm176, %v175
      %p178 = scmp.lt.s32.totalorder %s12, 15
      %s179 = scalar_select %p178, %s12, 15
      %s180 = smul.addr %s179, 2
      %s181 = scalar_lea.vmem %s1, %s180
      // Predicated region
      $region25: #{scob_forward.33} parent=23 // pred_check
        %p182 = pneg %p56
      $region26: #{scob_forward.33} parent=23 // pred_check_branch
        %184 = sbr.rel (%p182) target = $region28
      $region27: #{scob_forward.33} parent=23 // pred_region
        _
      $region28: #{scob_forward.33} parent=23 // pred_fallthru
        _
    $region24: #{scob_forward.33} parent=5 // pred_fallthru
      _
    %p185 = scmp.le.s32.totalorder 2, %s7
    // Predicated region
    $region29: #{scob_forward.33} parent=5 // pred_check
      %p186 = pneg %p185
    $region30: #{scob_forward.33} parent=5 // pred_check_branch
      %188 = sbr.rel (%p186) target = $region32
    $region31: #{scob_forward.33} parent=5 // pred_region
      %s189 = ssub.s32 %s7, 2
      // Predicated region
      $region33: #{scob_forward.33} parent=31 // pred_check
        %p190 = pneg %p62
      $region34: #{scob_forward.33} parent=31 // pred_check_branch
        %192 = sbr.rel (%p190) target = $region36
      $region35: #{scob_forward.33} parent=31 // pred_region
        %p193 = scmp.lt.s32.totalorder %s13, 15
        %s194 = scalar_select %p193, %s13, 15
        %s195 = smul.addr %s194, 2
        %s196 = scalar_lea.vmem %s1, %s195
      $region36: #{scob_forward.33} parent=31 // pred_fallthru
        _
    $region32: #{scob_forward.33} parent=5 // pred_fallthru
      _
  $region6: #{scob_forward.33} parent=0 // loop_footer
    %s11 = sadd.s32 1, %s7
  $region7: #{scob_forward.33} parent=0 // loop_footer_branch
    %6 = sbr.rel target = $region3
  $region8: #{scob_forward.33} parent=0 // loop_exit
    _

// kernel: scob_forward.34
$region0: #{scob_forward.34}
  #allocation0 [shape = 'u32[]', space=smem, size = 0x4, offset = 0x4, fixed_abs, tag = 'smem constant byte address 0x4 - core index']
  #allocation1 [shape = 'u32[72,128]{1,0:T(1,128)}', space=vmem, size = 0x9000, scoped, tag = 'internal scratch']
  %s0 = inlined_call_operand.vmem [shape: bf16[8,16], index: 0, kind: input, shape index: {}]
  %s1 = inlined_call_operand.vmem [shape: bf16[16,128], index: 1, kind: input, shape index: {}]
  %s2 = inlined_call_operand.vmem [shape: f32[1,128], index: 2, kind: input, shape index: {}]
  %s3 = inlined_call_operand.vmem [shape: bf16[8,128], index: 3, kind: input, shape index: {}]
  %s4 = inlined_call_operand.vmem [shape: f32[1,128], index: 4, kind: input, shape index: {}]
  %s5 = inlined_call_operand.vmem [shape: f32[1,128], index: 5, kind: input, shape index: {}]
  %s6 = inlined_call_operand.vmem [shape: bf16[8,128], index: 6, kind: output, shape index: {}]
  %s7 = sld [smem:[#allocation0]]
  $region34: #{scob_forward.34} parent=0
    _
  %s9 = ssub.s32 1, %s7
  %s10 = scalar_select 0, %s9, %s7
  // Predicated region
  $region2: #{scob_forward.34} parent=0 // pred_check
    _
  $region3: #{scob_forward.34} parent=0 // pred_check_branch
    %12 = sbr.rel (0) target = $region5
  $region4: #{scob_forward.34} parent=0 // pred_region
    _
  $region5: #{scob_forward.34} parent=0 // pred_fallthru
    _
  // Predicated region
  $region6: #{scob_forward.34} parent=0 // pred_check
    _
  $region7: #{scob_forward.34} parent=0 // pred_check_branch
    %14 = sbr.rel (0) target = $region9
  $region8: #{scob_forward.34} parent=0 // pred_region
    _
  $region9: #{scob_forward.34} parent=0 // pred_fallthru
    _
  // Predicated region
  $region10: #{scob_forward.34} parent=0 // pred_check
    _
  $region11: #{scob_forward.34} parent=0 // pred_check_branch
    %16 = sbr.rel (0) target = $region13
  $region12: #{scob_forward.34} parent=0 // pred_region
    _
  $region13: #{scob_forward.34} parent=0 // pred_fallthru
    _
  // Predicated region
  $region14: #{scob_forward.34} parent=0 // pred_check
    _
  $region15: #{scob_forward.34} parent=0 // pred_check_branch
    %18 = sbr.rel (0) target = $region17
  $region16: #{scob_forward.34} parent=0 // pred_region
    _
  $region17: #{scob_forward.34} parent=0 // pred_fallthru
    _
  // Predicated region
  $region18: #{scob_forward.34} parent=0 // pred_check
    _
  $region19: #{scob_forward.34} parent=0 // pred_check_branch
    %20 = sbr.rel (0) target = $region21
  $region20: #{scob_forward.34} parent=0 // pred_region
    _
  $region21: #{scob_forward.34} parent=0 // pred_fallthru
    _
  // Predicated region
  $region22: #{scob_forward.34} parent=0 // pred_check
    _
  $region23: #{scob_forward.34} parent=0 // pred_check_branch
    %22 = sbr.rel (0) target = $region25
  $region24: #{scob_forward.34} parent=0 // pred_region
    _
  $region25: #{scob_forward.34} parent=0 // pred_fallthru
    _
  %v24 = vld [vmem:[%s0] sm:$0xf]
  %v25 = vld [vmem:[%s1] sm:$0xf]
  %v26 = vld [vmem:[%s1 + $0x4] sm:$0xf]
  %v27 = vld [vmem:[%s2] sm:$0x1]
  %v29 = vperm.slane %v27, 0
  %v33 = vunpack.c.l.b16 %v25
  %v34 = vunpack.c.l.b16 %v26
  %v35 = vpack.c.b16 %v34, %v33
  %vm37 = vcmask 130048
  %v39 = vsel %vm37, %v24, 0
  %41 = vmatpush.bf16.msra.mxu0 0
  %42 = vmatpush.bf16.msra.mxu0 0
  %43 = vmatpush.bf16.msra.mxu0 0
  %44 = vmatpush.bf16.msra.mxu0 0
  %45 = vmatpush.bf16.msra.mxu0 0
  %46 = vmatpush.bf16.msra.mxu0 0
  %47 = vmatpush.bf16.msra.mxu0 0
  %48 = vmatpush.bf16.msra.mxu0 %v35
  %49 = vmatmul.bf16.gmra.mxu0 %v39
  %v50 = vpop.f32.mrf.mxu0
  %v51 = vadd.f32 %v29, %v50
  %v52 = vpop.f32.mrf.mxu0
  %53 = vdwg.mxu0
  %v54 = vld [vmem:[%s3] sm:$0xf]
  %v55 = vunpack.c.l.bf16 %v54
  %v56 = vadd.f32 %v51, %v55
  %v57 = vlaneseq
  %v58 = vand.u32 %v57, 127
  %vm59 = vcmp.lt.s32.totalorder %v58, 16
  %v60 = vsel %vm59, %v56, 0.0
  %61 = vadd.xlane.f32.xlu0 %v60
  %v62 = vpop.xlane.xlu0 %61
  %v63 = vmul.f32 %v62, 0.0625
  %v64 = vsub.f32 %v56, %v63
  %v65 = vsel %vm59, %v64, 0.0
  %v66 = vmul.f32 %v65, %v65
  %67 = vadd.xlane.f32.xlu0 %v66
  %v68 = vpop.xlane.xlu0 %67
  %v69 = vmul.f32 %v68, 0.0625
  %v70 = vadd.f32 %v69, 1e-05
  %v71 = vrsqrt.pop %v70
  %v72 = vmul.f32 %v71, %v70
  %v73 = vmul.f32 %v72, %v71
  %v74 = vmul.f32 0.5, %v73
  %v75 = vsub.f32 1.5, %v74
  %v76 = vmul.f32 %v71, %v75
  %vm77 = vweird.f32 %v70
  %vm78 = vweird.f32 %v71
  %vm79 = vmor %vm77, %vm78
  %v80 = vsel %vm79, %v71, %v76
  %v81 = vmul.f32 %v65, %v80
  %v82 = vld [vmem:[%s4] sm:$0x1]
  %v84 = vperm.slane %v82, 0
  %v86 = vmul.f32 %v81, %v84
  %v87 = vld [vmem:[%s5] sm:$0x1]
  %v89 = vperm.slane %v87, 0
  %v91 = vadd.f32 %v86, %v89
  %v92 = vpack.c.bf16 %v91, %v91
  %93 = vst [vmem:[%s6] sm:$0xf] %v92
  // Predicated region
  $region26: #{scob_forward.34} parent=0 // pred_check
    _
  $region27: #{scob_forward.34} parent=0 // pred_check_branch
    %95 = sbr.rel (0) target = $region29
  $region28: #{scob_forward.34} parent=0 // pred_region
    _
  $region29: #{scob_forward.34} parent=0 // pred_fallthru
    _
  // Predicated region
  $region30: #{scob_forward.34} parent=0 // pred_check
    _
  $region31: #{scob_forward.34} parent=0 // pred_check_branch
    %97 = sbr.rel (0) target = $region33
  $region32: #{scob_forward.34} parent=0 // pred_region
    _
  $region33: #{scob_forward.34} parent=0 // pred_fallthru
    _

// kernel: scob_forward.36
$region0: #{scob_forward.36}
  #allocation0 [shape = 'u32[]', space=smem, size = 0x4, offset = 0x4, fixed_abs, tag = 'smem constant byte address 0x4 - core index']
  #allocation1 [shape = 'u32[72,128]{1,0:T(1,128)}', space=vmem, size = 0x9000, scoped, tag = 'internal scratch']
  #allocation2 [shape = 'f32[8,128]{1,0:T(8,128)}', space=vmem, size = 0x1000, scoped, tag = 'scratch operand']
  %s0 = inlined_call_operand.vmem [shape: bf16[8,2048], index: 0, kind: input, shape index: {}]
  %s1 = inlined_call_operand.vmem [shape: bf16[2048,128], index: 1, kind: input, shape index: {}]
  %s2 = inlined_call_operand.vmem [shape: f32[1,128], index: 2, kind: input, shape index: {}]
  %s3 = inlined_call_operand.vmem [shape: bf16[8,128], index: 3, kind: input, shape index: {}]
  %s4 = inlined_call_operand.vmem [shape: f32[1,128], index: 4, kind: input, shape index: {}]
  %s5 = inlined_call_operand.vmem [shape: f32[1,128], index: 5, kind: input, shape index: {}]
  %s6 = inlined_call_operand.vmem [shape: bf16[8,128], index: 6, kind: output, shape index: {}]
  %s7 = sld [smem:[#allocation0]]
  $region65: #{scob_forward.36} parent=0
    _
  %s9 = ssub.s32 1, %s7
  %s10 = scalar_select 0, %s9, %s7
  loop: start=0, step=1, limit=6
  $region2: #{scob_forward.36} parent=0 // loop_pre_header
    _
  $region3: #{scob_forward.36} parent=0 // loop_header
    %s12 = sphi 0, %s16
    %p13 = scmp.ge.s32.totalorder %s12, 6
    %s19 = sphi 0, %s31
    %s20 = sphi 0, %s27
    %s21 = sphi 0, %s19
    %s22 = sphi 0, %s20
    %s23 = sphi 0, %s21
    %s24 = sphi 0, %s22
    %s36 = sphi 0, %s38
    %s39 = sphi 0, %s36
    %s40 = sphi 0, %s39
    %s56 = sphi 0, %s40
    %s62 = sphi 0, %s64
    %s65 = sphi 0, %s62
    %s66 = sphi 0, %s65
    %s82 = sphi 0, %s66
    %s86 = sphi 0, %s86
    %s88 = sphi 0, %s86
    %s89 = sphi 0, %s88
    %s103 = sphi 0, %s89
    %s109 = sphi 0, %s111
    %s112 = sphi 0, %s109
    %s113 = sphi 0, %s112
    %s129 = sphi 0, %s113
    %s133 = sphi 0, %s133
    %s135 = sphi 0, %s133
    %s136 = sphi 0, %s135
    %s150 = sphi 0, %s136
    %s154 = sphi 0, %s154
    %s156 = sphi 0, %s154
    %s157 = sphi 0, %s156
    %s171 = sphi 0, %s157
    %s177 = sphi 0, %s179
    %s180 = sphi 0, %s177
    %s181 = sphi 0, %s180
    %s197 = sphi 0, %s181
  $region4: #{scob_forward.36} parent=0 // loop_header_branch
    %15 = sbr.rel (%p13) target = $region8
  $region5: #{scob_forward.36} parent=0 // loop_body
    %s17 = ssub.s32 %s12, 1
    %s18 = ssub.s32 %s12, 2
    %s25 = sadd.s32 1, %s20
    %p26 = scmp.ge.s32.totalorder %s25, 4
    %s27 = scalar_select %p26, 0, %s25
    %s28 = sadd.s32 1, %s19
    %s29 = scalar_select %p26, %s28, %s19
    %p30 = scmp.ge.s32.totalorder %s29, 1
    %s31 = scalar_select %p30, 0, %s29
    %s32 = ssub.s32 %s19, %s31
    %s33 = ssub.s32 %s20, %s27
    %s34 = sor.u32 %s32, %s33
    %p35 = scmp.eq.s32.totalorder %s34, 0
    %s37 = sadd.s32 %s36, 1
    %s38 = scalar_select %p35, %s36, %s37
    %p41 = pneg %p35
    %p42 = scmp.eq.s32.totalorder %s12, 3
    %p43 = por %p41, %p42
    %p44 = scmp.ne.s32.totalorder %s36, %s39
    %p45 = scmp.eq.s32.totalorder %s12, 0
    %p46 = por %p44, %p45
    %p47 = scmp.ne.s32.totalorder %s36, %s39
    %p48 = scmp.eq.s32.totalorder %s17, 3
    %p49 = por %p47, %p48
    %p50 = scmp.ne.s32.totalorder %s39, %s40
    %p51 = scmp.eq.s32.totalorder %s17, 0
    %p52 = por %p50, %p51
    %p53 = scmp.ne.s32.totalorder %s39, %s40
    %p54 = scmp.eq.s32.totalorder %s18, 3
    %p55 = por %p53, %p54
    %p57 = scmp.ne.s32.totalorder %s40, %s56
    %p58 = scmp.eq.s32.totalorder %s18, 0
    %p59 = por %p57, %p58
    %s60 = ssub.s32 %s20, %s27
    %p61 = scmp.eq.s32.totalorder %s60, 0
    %s63 = sadd.s32 %s62, 1
    %s64 = scalar_select %p61, %s62, %s63
    %p67 = pneg %p61
    %p68 = scmp.eq.s32.totalorder %s12, 3
    %p69 = por %p67, %p68
    %p70 = scmp.ne.s32.totalorder %s62, %s65
    %p71 = scmp.eq.s32.totalorder %s12, 0
    %p72 = por %p70, %p71
    %p73 = scmp.ne.s32.totalorder %s62, %s65
    %p74 = scmp.eq.s32.totalorder %s17, 3
    %p75 = por %p73, %p74
    %p76 = scmp.ne.s32.totalorder %s65, %s66
    %p77 = scmp.eq.s32.totalorder %s17, 0
    %p78 = por %p76, %p77
    %p79 = scmp.ne.s32.totalorder %s65, %s66
    %p80 = scmp.eq.s32.totalorder %s18, 3
    %p81 = por %p79, %p80
    %p83 = scmp.ne.s32.totalorder %s66, %s82
    %p84 = scmp.eq.s32.totalorder %s18, 0
    %p85 = por %p83, %p84
    %s87 = sadd.s32 %s86, 1
    %p90 = scmp.eq.s32.totalorder %s12, 3
    %p91 = scmp.ne.s32.totalorder %s86, %s88
    %p92 = scmp.eq.s32.totalorder %s12, 0
    %p93 = por %p91, %p92
    %p94 = scmp.ne.s32.totalorder %s86, %s88
    %p95 = scmp.eq.s32.totalorder %s17, 3
    %p96 = por %p94, %p95
    %p97 = scmp.ne.s32.totalorder %s88, %s89
    %p98 = scmp.eq.s32.totalorder %s17, 0
    %p99 = por %p97, %p98
    %p100 = scmp.ne.s32.totalorder %s88, %s89
    %p101 = scmp.eq.s32.totalorder %s18, 3
    %p102 = por %p100, %p101
    %p104 = scmp.ne.s32.totalorder %s89, %s103
    %p105 = scmp.eq.s32.totalorder %s18, 0
    %p106 = por %p104, %p105
    %s107 = ssub.s32 %s19, %s31
    %p108 = scmp.eq.s32.totalorder %s107, 0
    %s110 = sadd.s32 %s109, 1
    %s111 = scalar_select %p108, %s109, %s110
    %p114 = pneg %p108
    %p115 = scmp.eq.s32.totalorder %s12, 3
    %p116 = por %p114, %p115
    %p117 = scmp.ne.s32.totalorder %s109, %s112
    %p118 = scmp.eq.s32.totalorder %s12, 0
    %p119 = por %p117, %p118
    %p120 = scmp.ne.s32.totalorder %s109, %s112
    %p121 = scmp.eq.s32.totalorder %s17, 3
    %p122 = por %p120, %p121
    %p123 = scmp.ne.s32.totalorder %s112, %s113
    %p124 = scmp.eq.s32.totalorder %s17, 0
    %p125 = por %p123, %p124
    %p126 = scmp.ne.s32.totalorder %s112, %s113
    %p127 = scmp.eq.s32.totalorder %s18, 3
    %p128 = por %p126, %p127
    %p130 = scmp.ne.s32.totalorder %s113, %s129
    %p131 = scmp.eq.s32.totalorder %s18, 0
    %p132 = por %p130, %p131
    %s134 = sadd.s32 %s133, 1
    %p137 = scmp.eq.s32.totalorder %s12, 3
    %p138 = scmp.ne.s32.totalorder %s133, %s135
    %p139 = scmp.eq.s32.totalorder %s12, 0
    %p140 = por %p138, %p139
    %p141 = scmp.ne.s32.totalorder %s133, %s135
    %p142 = scmp.eq.s32.totalorder %s17, 3
    %p143 = por %p141, %p142
    %p144 = scmp.ne.s32.totalorder %s135, %s136
    %p145 = scmp.eq.s32.totalorder %s17, 0
    %p146 = por %p144, %p145
    %p147 = scmp.ne.s32.totalorder %s135, %s136
    %p148 = scmp.eq.s32.totalorder %s18, 3
    %p149 = por %p147, %p148
    %p151 = scmp.ne.s32.totalorder %s136, %s150
    %p152 = scmp.eq.s32.totalorder %s18, 0
    %p153 = por %p151, %p152
    %s155 = sadd.s32 %s154, 1
    %p158 = scmp.eq.s32.totalorder %s12, 3
    %p159 = scmp.ne.s32.totalorder %s154, %s156
    %p160 = scmp.eq.s32.totalorder %s12, 0
    %p161 = por %p159, %p160
    %p162 = scmp.ne.s32.totalorder %s154, %s156
    %p163 = scmp.eq.s32.totalorder %s17, 3
    %p164 = por %p162, %p163
    %p165 = scmp.ne.s32.totalorder %s156, %s157
    %p166 = scmp.eq.s32.totalorder %s17, 0
    %p167 = por %p165, %p166
    %p168 = scmp.ne.s32.totalorder %s156, %s157
    %p169 = scmp.eq.s32.totalorder %s18, 3
    %p170 = por %p168, %p169
    %p172 = scmp.ne.s32.totalorder %s157, %s171
    %p173 = scmp.eq.s32.totalorder %s18, 0
    %p174 = por %p172, %p173
    %s175 = ssub.s32 %s19, %s31
    %p176 = scmp.eq.s32.totalorder %s175, 0
    %s178 = sadd.s32 %s177, 1
    %s179 = scalar_select %p176, %s177, %s178
    %p182 = pneg %p176
    %p183 = scmp.eq.s32.totalorder %s12, 3
    %p184 = por %p182, %p183
    %p185 = scmp.ne.s32.totalorder %s177, %s180
    %p186 = scmp.eq.s32.totalorder %s12, 0
    %p187 = por %p185, %p186
    %p188 = scmp.ne.s32.totalorder %s177, %s180
    %p189 = scmp.eq.s32.totalorder %s17, 3
    %p190 = por %p188, %p189
    %p191 = scmp.ne.s32.totalorder %s180, %s181
    %p192 = scmp.eq.s32.totalorder %s17, 0
    %p193 = por %p191, %p192
    %p194 = scmp.ne.s32.totalorder %s180, %s181
    %p195 = scmp.eq.s32.totalorder %s18, 3
    %p196 = por %p194, %p195
    %p198 = scmp.ne.s32.totalorder %s181, %s197
    %p199 = scmp.eq.s32.totalorder %s18, 0
    %p200 = por %p198, %p199
    %p201 = scmp.le.s32.totalorder 1, %s12
    %p202 = scmp.lt.s32.totalorder %s12, 5
    %p203 = pnand %p201, %p202
    %p204 = pneg %p203
    // Predicated region
    $region9: #{scob_forward.36} parent=5 // pred_check
      _
    $region10: #{scob_forward.36} parent=5 // pred_check_branch
      %206 = sbr.rel (%p203) target = $region12
    $region11: #{scob_forward.36} parent=5 // pred_region
      %s207 = ssub.s32 %s12, 1
      // Predicated region
      $region13: #{scob_forward.36} parent=11 // pred_check
        %p208 = pneg %p99
      $region14: #{scob_forward.36} parent=11 // pred_check_branch
        %210 = sbr.rel (%p208) target = $region16
      $region15: #{scob_forward.36} parent=11 // pred_region
        _
      $region16: #{scob_forward.36} parent=11 // pred_fallthru
        _
      // Predicated region
      $region17: #{scob_forward.36} parent=11 // pred_check
        %p211 = pneg %p125
      $region18: #{scob_forward.36} parent=11 // pred_check_branch
        %213 = sbr.rel (%p211) target = $region20
      $region19: #{scob_forward.36} parent=11 // pred_region
        %p214 = scmp.lt.s32.totalorder %s21, 0
        %s215 = scalar_select %p214, %s21, 0
        %s216 = smul.addr %s215, 4
        %s217 = scalar_lea.vmem %s3, %s216
      $region20: #{scob_forward.36} parent=11 // pred_fallthru
        _
      // Predicated region
      $region21: #{scob_forward.36} parent=11 // pred_check
        %p218 = pneg %p146
      $region22: #{scob_forward.36} parent=11 // pred_check_branch
        %220 = sbr.rel (%p218) target = $region24
      $region23: #{scob_forward.36} parent=11 // pred_region
        _
      $region24: #{scob_forward.36} parent=11 // pred_fallthru
        _
      // Predicated region
      $region25: #{scob_forward.36} parent=11 // pred_check
        %p221 = pneg %p167
      $region26: #{scob_forward.36} parent=11 // pred_check_branch
        %223 = sbr.rel (%p221) target = $region28
      $region27: #{scob_forward.36} parent=11 // pred_region
        _
      $region28: #{scob_forward.36} parent=11 // pred_fallthru
        _
    $region12: #{scob_forward.36} parent=5 // pred_fallthru
      _
    %p224 = scmp.lt.s32.totalorder %s12, 4
    // Predicated region
    $region29: #{scob_forward.36} parent=5 // pred_check
      %p225 = pneg %p224
    $region30: #{scob_forward.36} parent=5 // pred_check_branch
      %227 = sbr.rel (%p225) target = $region32
    $region31: #{scob_forward.36} parent=5 // pred_region
      // Predicated region
      $region33: #{scob_forward.36} parent=31 // pred_check
        %p228 = pneg %p46
      $region34: #{scob_forward.36} parent=31 // pred_check_branch
        %230 = sbr.rel (%p228) target = $region36
      $region35: #{scob_forward.36} parent=31 // pred_region
        %s231 = smul.u32 4, %s20
        %p232 = scmp.lt.s32.totalorder %s19, 0
        %s233 = scalar_select %p232, %s19, 0
        %p234 = scmp.lt.s32.totalorder %s231, 15
        %s235 = scalar_select %p234, %s231, 15
        %s236 = smul.addr %s233, 16
        %s237 = sadd.s32 %s235, %s236
        %s238 = smul.addr %s237, 4
        %s239 = scalar_lea.vmem %s0, %s238
        %s240 = smul.u32 4, %s20
      $region36: #{scob_forward.36} parent=31 // pred_fallthru
        _
      // Predicated region
      $region37: #{scob_forward.36} parent=31 // pred_check
        %p241 = pneg %p72
      $region38: #{scob_forward.36} parent=31 // pred_check_branch
        %243 = sbr.rel (%p241) target = $region40
      $region39: #{scob_forward.36} parent=31 // pred_region
        %s244 = smul.u32 64, %s20
        %p245 = scmp.lt.s32.totalorder %s244, 255
        %s246 = scalar_select %p245, %s244, 255
        %s247 = smul.addr %s246, 4
        %s248 = scalar_lea.vmem %s1, %s247
        %s249 = smul.u32 64, %s20
      $region40: #{scob_forward.36} parent=31 // pred_fallthru
        _
    $region32: #{scob_forward.36} parent=5 // pred_fallthru
      _
    %p250 = scmp.le.s32.totalorder 1, %s12
    %p251 = scmp.lt.s32.totalorder %s12, 5
    %p252 = pnand %p250, %p251
    %p253 = pneg %p252
    // Predicated region
    $region41: #{scob_forward.36} parent=5 // pred_check
      _
    $region42: #{scob_forward.36} parent=5 // pred_check_branch
      %255 = sbr.rel (%p252) target = $region44
    $region43: #{scob_forward.36} parent=5 // pred_region
      %s256 = ssub.s32 %s12, 1
      %s257 = smul.u32 4, %s22
      %p258 = scmp.lt.s32.totalorder %s21, 0
      %s259 = scalar_select %p258, %s21, 0
      %p260 = scmp.lt.s32.totalorder %s257, 15
      %s261 = scalar_select %p260, %s257, 15
      %s262 = smul.addr %s259, 16
      %s263 = sadd.s32 %s261, %s262
      %s264 = smul.addr %s263, 4
      %s265 = scalar_lea.vmem %s0, %s264
      %p266 = pneg %p52
      %p267 = pneg %p49
      %s268 = smul.u32 64, %s22
      %p269 = scmp.lt.s32.totalorder %s268, 255
      %s270 = scalar_select %p269, %s268, 255
      %s271 = smul.addr %s270, 4
      %s272 = scalar_lea.vmem %s1, %s271
      %p273 = pneg %p78
      %p274 = pneg %p75
      %p275 = pneg %p99
      %p276 = pneg %p96
      %p277 = scmp.lt.s32.totalorder %s21, 0
      %s278 = scalar_select %p277, %s21, 0
      %s279 = smul.addr %s278, 4
      %s280 = scalar_lea.vmem %s3, %s279
      %p281 = pneg %p125
      %p282 = pneg %p122
      %p283 = pneg %p146
      %p284 = pneg %p143
      %p285 = pneg %p167
      %p286 = pneg %p164
      %p287 = pneg %p193
      %p288 = pneg %p190
      %p289 = scmp.lt.s32.totalorder %s21, 0
      %s290 = scalar_select %p289, %s21, 0
      %s291 = smul.addr %s290, 4
      %s292 = scalar_lea.vmem %s6, %s291
      %s293 = smul.u32 4, %s22
      %p294 = scmp.lt.s32.totalorder %s21, 0
      %s295 = scalar_select %p294, %s21, 0
      %p296 = scmp.lt.s32.totalorder %s293, 15
      %s297 = scalar_select %p296, %s293, 15
      %s298 = smul.addr %s295, 16
      %s299 = sadd.s32 %s297, %s298
      %s300 = smul.addr %s299, 4
      %s301 = scalar_lea.vmem %s0, %s300
      %s302 = smul.u32 4, %s22
      %s303 = smul.u32 64, %s22
      %p304 = scmp.lt.s32.totalorder %s303, 255
      %s305 = scalar_select %p304, %s303, 255
      %s306 = smul.addr %s305, 4
      %s307 = scalar_lea.vmem %s1, %s306
      %s308 = smul.u32 64, %s22
      %p309 = scmp.lt.s32.totalorder %s21, 0
      %s310 = scalar_select %p309, %s21, 0
      %s311 = smul.addr %s310, 4
      %s312 = scalar_lea.vmem %s3, %s311
      %p313 = scmp.lt.s32.totalorder %s21, 0
      %s314 = scalar_select %p313, %s21, 0
      %s315 = smul.addr %s314, 4
      %s316 = scalar_lea.vmem %s6, %s315
      %v317 = vld [vmem:[%s301] sm:$0xff]
      %v318 = vld [vmem:[%s301 + $0x8] sm:$0xff]
      %v319 = vld [vmem:[%s307] sm:$0xf]
      %v320 = vld [vmem:[%s307 + $0x4] sm:$0xf]
      %v321 = vld [vmem:[%s307 + $0x8] sm:$0xf]
      %v322 = vld [vmem:[%s307 + $0xc] sm:$0xf]
      %v323 = vld [vmem:[%s307 + $0x10] sm:$0xf]
      %v324 = vld [vmem:[%s307 + $0x14] sm:$0xf]
      %v325 = vld [vmem:[%s307 + $0x18] sm:$0xf]
      %v326 = vld [vmem:[%s307 + $0x1c] sm:$0xf]
      %v327 = vld [vmem:[%s307 + $0x20] sm:$0xf]
      %v328 = vld [vmem:[%s307 + $0x24] sm:$0xf]
      %v329 = vld [vmem:[%s307 + $0x28] sm:$0xf]
      %v330 = vld [vmem:[%s307 + $0x2c] sm:$0xf]
      %v331 = vld [vmem:[%s307 + $0x30] sm:$0xf]
      %v332 = vld [vmem:[%s307 + $0x34] sm:$0xf]
      %v333 = vld [vmem:[%s307 + $0x38] sm:$0xf]
      %v334 = vld [vmem:[%s307 + $0x3c] sm:$0xf]
      %v335 = vld [vmem:[%s307 + $0x40] sm:$0xf]
      %v336 = vld [vmem:[%s307 + $0x44] sm:$0xf]
      %v337 = vld [vmem:[%s307 + $0x48] sm:$0xf]
      %v338 = vld [vmem:[%s307 + $0x4c] sm:$0xf]
      %v339 = vld [vmem:[%s307 + $0x50] sm:$0xf]
      %v340 = vld [vmem:[%s307 + $0x54] sm:$0xf]
      %v341 = vld [vmem:[%s307 + $0x58] sm:$0xf]
      %v342 = vld [vmem:[%s307 + $0x5c] sm:$0xf]
      %v343 = vld [vmem:[%s307 + $0x60] sm:$0xf]
      %v344 = vld [vmem:[%s307 + $0x64] sm:$0xf]
      %v345 = vld [vmem:[%s307 + $0x68] sm:$0xf]
      %v346 = vld [vmem:[%s307 + $0x6c] sm:$0xf]
      %v347 = vld [vmem:[%s307 + $0x70] sm:$0xf]
      %v348 = vld [vmem:[%s307 + $0x74] sm:$0xf]
      %v349 = vld [vmem:[%s307 + $0x78] sm:$0xf]
      %v350 = vld [vmem:[%s307 + $0x7c] sm:$0xf]
      %v351 = vld [vmem:[%s307 + $0x80] sm:$0xf]
      %v352 = vld [vmem:[%s307 + $0x84] sm:$0xf]
      %v353 = vld [vmem:[%s307 + $0x88] sm:$0xf]
      %v354 = vld [vmem:[%s307 + $0x8c] sm:$0xf]
      %v355 = vld [vmem:[%s307 + $0x90] sm:$0xf]
      %v356 = vld [vmem:[%s307 + $0x94] sm:$0xf]
      %v357 = vld [vmem:[%s307 + $0x98] sm:$0xf]
      %v358 = vld [vmem:[%s307 + $0x9c] sm:$0xf]
      %v359 = vld [vmem:[%s307 + $0xa0] sm:$0xf]
      %v360 = vld [vmem:[%s307 + $0xa4] sm:$0xf]
      %v361 = vld [vmem:[%s307 + $0xa8] sm:$0xf]
      %v362 = vld [vmem:[%s307 + $0xac] sm:$0xf]
      %v363 = vld [vmem:[%s307 + $0xb0] sm:$0xf]
      %v364 = vld [vmem:[%s307 + $0xb4] sm:$0xf]
      %v365 = vld [vmem:[%s307 + $0xb8] sm:$0xf]
      %v366 = vld [vmem:[%s307 + $0xbc] sm:$0xf]
      %v367 = vld [vmem:[%s307 + $0xc0] sm:$0xf]
      %v368 = vld [vmem:[%s307 + $0xc4] sm:$0xf]
      %v369 = vld [vmem:[%s307 + $0xc8] sm:$0xf]
      %v370 = vld [vmem:[%s307 + $0xcc] sm:$0xf]
      %v371 = vld [vmem:[%s307 + $0xd0] sm:$0xf]
      %v372 = vld [vmem:[%s307 + $0xd4] sm:$0xf]
      %v373 = vld [vmem:[%s307 + $0xd8] sm:$0xf]
      %v374 = vld [vmem:[%s307 + $0xdc] sm:$0xf]
      %v375 = vld [vmem:[%s307 + $0xe0] sm:$0xf]
      %v376 = vld [vmem:[%s307 + $0xe4] sm:$0xf]
      %v377 = vld [vmem:[%s307 + $0xe8] sm:$0xf]
      %v378 = vld [vmem:[%s307 + $0xec] sm:$0xf]
      %v379 = vld [vmem:[%s307 + $0xf0] sm:$0xf]
      %v380 = vld [vmem:[%s307 + $0xf4] sm:$0xf]
      %v381 = vld [vmem:[%s307 + $0xf8] sm:$0xf]
      %v382 = vld [vmem:[%s307 + $0xfc] sm:$0xf]
      %v385 = vunpack.c.l.b16 %v317
      %v386 = vunpack.c.h.b16 %v317
      %v387 = vunpack.c.l.b16 %v318
      %v388 = vunpack.c.h.b16 %v318
      %v389 = vpack.c.b16 %v385, %v385
      %v390 = vpack.c.b16 %v386, %v386
      %v391 = vpack.c.b16 %v387, %v387
      %v392 = vpack.c.b16 %v388, %v388
      %v461 = vunpack.c.l.b16 %v319
      %v462 = vunpack.c.l.b16 %v320
      %v463 = vunpack.c.l.b16 %v321
      %v464 = vunpack.c.l.b16 %v322
      %v465 = vunpack.c.l.b16 %v323
      %v466 = vunpack.c.l.b16 %v324
      %v467 = vunpack.c.l.b16 %v325
      %v468 = vunpack.c.l.b16 %v326
      %v469 = vunpack.c.l.b16 %v327
      %v470 = vunpack.c.l.b16 %v328
      %v471 = vunpack.c.l.b16 %v329
      %v472 = vunpack.c.l.b16 %v330
      %v473 = vunpack.c.l.b16 %v331
      %v474 = vunpack.c.l.b16 %v332
      %v475 = vunpack.c.l.b16 %v333
      %v476 = vunpack.c.l.b16 %v334
      %v477 = vunpack.c.l.b16 %v335
      %v478 = vunpack.c.l.b16 %v336
      %v479 = vunpack.c.l.b16 %v337
      %v480 = vunpack.c.l.b16 %v338
      %v481 = vunpack.c.l.b16 %v339
      %v482 = vunpack.c.l.b16 %v340
      %v483 = vunpack.c.l.b16 %v341
      %v484 = vunpack.c.l.b16 %v342
      %v485 = vunpack.c.l.b16 %v343
      %v486 = vunpack.c.l.b16 %v344
      %v487 = vunpack.c.l.b16 %v345
      %v488 = vunpack.c.l.b16 %v346
      %v489 = vunpack.c.l.b16 %v347
      %v490 = vunpack.c.l.b16 %v348
      %v491 = vunpack.c.l.b16 %v349
      %v492 = vunpack.c.l.b16 %v350
      %v493 = vunpack.c.l.b16 %v351
      %v494 = vunpack.c.l.b16 %v352
      %v495 = vunpack.c.l.b16 %v353
      %v496 = vunpack.c.l.b16 %v354
      %v497 = vunpack.c.l.b16 %v355
      %v498 = vunpack.c.l.b16 %v356
      %v499 = vunpack.c.l.b16 %v357
      %v500 = vunpack.c.l.b16 %v358
      %v501 = vunpack.c.l.b16 %v359
      %v502 = vunpack.c.l.b16 %v360
      %v503 = vunpack.c.l.b16 %v361
      %v504 = vunpack.c.l.b16 %v362
      %v505 = vunpack.c.l.b16 %v363
      %v506 = vunpack.c.l.b16 %v364
      %v507 = vunpack.c.l.b16 %v365
      %v508 = vunpack.c.l.b16 %v366
      %v509 = vunpack.c.l.b16 %v367
      %v510 = vunpack.c.l.b16 %v368
      %v511 = vunpack.c.l.b16 %v369
      %v512 = vunpack.c.l.b16 %v370
      %v513 = vunpack.c.l.b16 %v371
      %v514 = vunpack.c.l.b16 %v372
      %v515 = vunpack.c.l.b16 %v373
      %v516 = vunpack.c.l.b16 %v374
      %v517 = vunpack.c.l.b16 %v375
      %v518 = vunpack.c.l.b16 %v376
      %v519 = vunpack.c.l.b16 %v377
      %v520 = vunpack.c.l.b16 %v378
      %v521 = vunpack.c.l.b16 %v379
      %v522 = vunpack.c.l.b16 %v380
      %v523 = vunpack.c.l.b16 %v381
      %v524 = vunpack.c.l.b16 %v382
      %v525 = vpack.c.b16 %v462, %v461
      %v526 = vpack.c.b16 %v464, %v463
      %v527 = vpack.c.b16 %v466, %v465
      %v528 = vpack.c.b16 %v468, %v467
      %v529 = vpack.c.b16 %v470, %v469
      %v530 = vpack.c.b16 %v472, %v471
      %v531 = vpack.c.b16 %v474, %v473
      %v532 = vpack.c.b16 %v476, %v475
      %v533 = vpack.c.b16 %v478, %v477
      %v534 = vpack.c.b16 %v480, %v479
      %v535 = vpack.c.b16 %v482, %v481
      %v536 = vpack.c.b16 %v484, %v483
      %v537 = vpack.c.b16 %v486, %v485
      %v538 = vpack.c.b16 %v488, %v487
      %v539 = vpack.c.b16 %v490, %v489
      %v540 = vpack.c.b16 %v492, %v491
      %v541 = vpack.c.b16 %v494, %v493
      %v542 = vpack.c.b16 %v496, %v495
      %v543 = vpack.c.b16 %v498, %v497
      %v544 = vpack.c.b16 %v500, %v499
      %v545 = vpack.c.b16 %v502, %v501
      %v546 = vpack.c.b16 %v504, %v503
      %v547 = vpack.c.b16 %v506, %v505
      %v548 = vpack.c.b16 %v508, %v507
      %v549 = vpack.c.b16 %v510, %v509
      %v550 = vpack.c.b16 %v512, %v511
      %v551 = vpack.c.b16 %v514, %v513
      %v552 = vpack.c.b16 %v516, %v515
      %v553 = vpack.c.b16 %v518, %v517
      %v554 = vpack.c.b16 %v520, %v519
      %v555 = vpack.c.b16 %v522, %v521
      %v556 = vpack.c.b16 %v524, %v523
      %589 = vmatpush.bf16.msra.mxu0 %v532
      %590 = vmatpush.bf16.msra.mxu0 %v531
      %591 = vmatpush.bf16.msra.mxu0 %v530
      %592 = vmatpush.bf16.msra.mxu0 %v529
      %593 = vmatpush.bf16.msra.mxu0 %v528
      %594 = vmatpush.bf16.msra.mxu0 %v527
      %595 = vmatpush.bf16.msra.mxu0 %v526
      %596 = vmatpush.bf16.msra.mxu0 %v525
      %597 = vmatmul.bf16.gmra.mxu0 %v389
      %v598 = vpop.f32.mrf.mxu0
      %v599 = vadd.f32 0.0, %v598
      %v600 = vpop.f32.mrf.mxu0
      %601 = vdwg.mxu0
      %602 = vmatpush.bf16.msra.mxu0 %v540
      %603 = vmatpush.bf16.msra.mxu0 %v539
      %604 = vmatpush.bf16.msra.mxu0 %v538
      %605 = vmatpush.bf16.msra.mxu0 %v537
      %606 = vmatpush.bf16.msra.mxu0 %v536
      %607 = vmatpush.bf16.msra.mxu0 %v535
      %608 = vmatpush.bf16.msra.mxu0 %v534
      %609 = vmatpush.bf16.msra.mxu0 %v533
      %610 = vmatmul.bf16.gmra.mxu0 %v390
      %v611 = vpop.f32.mrf.mxu0
      %v612 = vadd.f32 %v599, %v611
      %v613 = vpop.f32.mrf.mxu0
      %614 = vdwg.mxu0
      %615 = vmatpush.bf16.msra.mxu0 %v548
      %616 = vmatpush.bf16.msra.mxu0 %v547
      %617 = vmatpush.bf16.msra.mxu0 %v546
      %618 = vmatpush.bf16.msra.mxu0 %v545
      %619 = vmatpush.bf16.msra.mxu0 %v544
      %620 = vmatpush.bf16.msra.mxu0 %v543
      %621 = vmatpush.bf16.msra.mxu0 %v542
      %622 = vmatpush.bf16.msra.mxu0 %v541
      %623 = vmatmul.bf16.gmra.mxu0 %v391
      %v624 = vpop.f32.mrf.mxu0
      %v625 = vadd.f32 %v612, %v624
      %v626 = vpop.f32.mrf.mxu0
      %627 = vdwg.mxu0
      %628 = vmatpush.bf16.msra.mxu0 %v556
      %629 = vmatpush.bf16.msra.mxu0 %v555
      %630 = vmatpush.bf16.msra.mxu0 %v554
      %631 = vmatpush.bf16.msra.mxu0 %v553
      %632 = vmatpush.bf16.msra.mxu0 %v552
      %633 = vmatpush.bf16.msra.mxu0 %v551
      %634 = vmatpush.bf16.msra.mxu0 %v550
      %635 = vmatpush.bf16.msra.mxu0 %v549
      %636 = vmatmul.bf16.gmra.mxu0 %v392
      %v637 = vpop.f32.mrf.mxu0
      %v638 = vadd.f32 %v625, %v637
      %v639 = vpop.f32.mrf.mxu0
      %640 = vdwg.mxu0
      %p641 = scmp.eq.s32.totalorder %s22, 0
      // Predicated region
      $region45: #{scob_forward.36} parent=43 // pred_check
        %p642 = pneg %p641
      $region46: #{scob_forward.36} parent=43 // pred_check_branch
        %644 = sbr.rel (%p642) target = $region48
      $region47: #{scob_forward.36} parent=43 // pred_region
        %645 = vst [vmem:[#allocation2] sm:$0xff] 0.0
      $region48: #{scob_forward.36} parent=43 // pred_fallthru
        _
      %v646 = vld [vmem:[#allocation2] sm:$0xff]
      %v647 = vadd.f32 %v646, %v638
      %648 = vst [vmem:[#allocation2] sm:$0xff] %v647
      %p649 = scmp.eq.s32.totalorder %s22, 3
      // Predicated region
      $region49: #{scob_forward.36} parent=43 // pred_check
        %p650 = pneg %p649
      $region50: #{scob_forward.36} parent=43 // pred_check_branch
        %652 = sbr.rel (%p650) target = $region52
      $region51: #{scob_forward.36} parent=43 // pred_region
        %v653 = vld [vmem:[#allocation2] sm:$0xff]
        %v654 = vld [vmem:[%s2] sm:$0x1]
        %v656 = vperm.slane %v654, 0
        %v658 = vadd.f32 %v653, %v656
        %v659 = vld [vmem:[%s312] sm:$0xf]
        %v660 = vunpack.c.l.bf16 %v659
        %v661 = vadd.f32 %v658, %v660
        %v662 = vlaneseq
        %v663 = vand.u32 %v662, 127
        %vm664 = vcmp.lt.s32.totalorder %v663, 16
        %v665 = vsel %vm664, %v661, 0.0
        %666 = vadd.xlane.f32.xlu0 %v665
        %v667 = vpop.xlane.xlu0 %666
        %v668 = vmul.f32 %v667, 0.0625
        %v669 = vsub.f32 %v661, %v668
        %v670 = vsel %vm664, %v669, 0.0
        %v671 = vmul.f32 %v670, %v670
        %672 = vadd.xlane.f32.xlu0 %v671
        %v673 = vpop.xlane.xlu0 %672
        %v674 = vmul.f32 %v673, 0.0625
        %v675 = vadd.f32 %v674, 1e-05
        %v676 = vrsqrt.pop %v675
        %v677 = vmul.f32 %v676, %v675
        %v678 = vmul.f32 %v677, %v676
        %v679 = vmul.f32 0.5, %v678
        %v680 = vsub.f32 1.5, %v679
        %v681 = vmul.f32 %v676, %v680
        %vm682 = vweird.f32 %v675
        %vm683 = vweird.f32 %v676
        %vm684 = vmor %vm682, %vm683
        %v685 = vsel %vm684, %v676, %v681
        %v686 = vmul.f32 %v670, %v685
        %v687 = vld [vmem:[%s4] sm:$0x1]
        %v689 = vperm.slane %v687, 0
        %v691 = vmul.f32 %v686, %v689
        %v692 = vld [vmem:[%s5] sm:$0x1]
        %v694 = vperm.slane %v692, 0
        %v696 = vadd.f32 %v691, %v694
        %v697 = vpack.c.bf16 %v696, %v696
        %698 = vst [vmem:[%s316] sm:$0xf] %v697
      $region52: #{scob_forward.36} parent=43 // pred_fallthru
        _
      %p699 = scmp.lt.s32.totalorder %s21, 0
      %s700 = scalar_select %p699, %s21, 0
      %s701 = smul.addr %s700, 4
      %s702 = scalar_lea.vmem %s6, %s701
      // Predicated region
      $region53: #{scob_forward.36} parent=43 // pred_check
        %p703 = pneg %p190
      $region54: #{scob_forward.36} parent=43 // pred_check_branch
        %705 = sbr.rel (%p703) target = $region56
      $region55: #{scob_forward.36} parent=43 // pred_region
        _
      $region56: #{scob_forward.36} parent=43 // pred_fallthru
        _
      // Predicated region
      $region57: #{scob_forward.36} parent=43 // pred_check
        %p706 = pneg %p190
      $region58: #{scob_forward.36} parent=43 // pred_check_branch
        %708 = sbr.rel (%p706) target = $region60
      $region59: #{scob_forward.36} parent=43 // pred_region
        %p709 = scmp.lt.s32.totalorder %s21, 0
        %s710 = scalar_select %p709, %s21, 0
        %s711 = smul.addr %s710, 4
        %s712 = scalar_lea.vmem %s6, %s711
      $region60: #{scob_forward.36} parent=43 // pred_fallthru
        _
    $region44: #{scob_forward.36} parent=5 // pred_fallthru
      _
    %p713 = scmp.le.s32.totalorder 2, %s12
    // Predicated region
    $region61: #{scob_forward.36} parent=5 // pred_check
      %p714 = pneg %p713
    $region62: #{scob_forward.36} parent=5 // pred_check_branch
      %716 = sbr.rel (%p714) target = $region64
    $region63: #{scob_forward.36} parent=5 // pred_region
      %s717 = ssub.s32 %s12, 2
    $region64: #{scob_forward.36} parent=5 // pred_fallthru
      _
  $region6: #{scob_forward.36} parent=0 // loop_footer
    %s16 = sadd.s32 1, %s12
  $region7: #{scob_forward.36} parent=0 // loop_footer_branch
    %11 = sbr.rel target = $region3
  $region8: #{scob_forward.36} parent=0 // loop_exit
    _

// kernel: scob_forward.42
$region0: #{scob_forward.42}
  #allocation0 [shape = 'u32[]', space=smem, size = 0x4, offset = 0x4, fixed_abs, tag = 'smem constant byte address 0x4 - core index']
  #allocation1 [shape = 'u32[72,128]{1,0:T(1,128)}', space=vmem, size = 0x9000, scoped, tag = 'internal scratch']
  %s0 = inlined_call_operand.vmem [shape: bf16[2,4,128], index: 0, kind: input, shape index: {}]
  %s1 = inlined_call_operand.vmem [shape: f32[1,128], index: 1, kind: input, shape index: {}]
  %s2 = inlined_call_operand.vmem [shape: f32[1,128], index: 2, kind: input, shape index: {}]
  %s3 = inlined_call_operand.vmem [shape: f32[2,1,128], index: 3, kind: output, shape index: {}]
  %s4 = sld [smem:[#allocation0]]
  $region45: #{scob_forward.42} parent=0
    _
  %s6 = ssub.s32 1, %s4
  %s7 = scalar_select 0, %s6, %s4
  loop: start=0, step=1, limit=4
  $region2: #{scob_forward.42} parent=0 // loop_pre_header
    _
  $region3: #{scob_forward.42} parent=0 // loop_header
    %s9 = sphi 0, %s13
    %p10 = scmp.ge.s32.totalorder %s9, 4
    %s19 = sphi 0, %s21
    %s22 = sphi 0, %s19
    %s23 = sphi 0, %s22
    %s39 = sphi 0, %s23
    %s43 = sphi 0, %s43
    %s45 = sphi 0, %s43
    %s46 = sphi 0, %s45
    %s60 = sphi 0, %s46
    %s64 = sphi 0, %s64
    %s66 = sphi 0, %s64
    %s67 = sphi 0, %s66
    %s81 = sphi 0, %s67
    %s87 = sphi 0, %s89
    %s90 = sphi 0, %s87
    %s91 = sphi 0, %s90
    %s107 = sphi 0, %s91
  $region4: #{scob_forward.42} parent=0 // loop_header_branch
    %12 = sbr.rel (%p10) target = $region8
  $region5: #{scob_forward.42} parent=0 // loop_body
    %s14 = ssub.s32 %s9, 1
    %s15 = ssub.s32 %s9, 2
    %s16 = sadd.s32 %s9, 1
    %s17 = ssub.s32 %s9, %s16
    %p18 = scmp.eq.s32.totalorder %s17, 0
    %s20 = sadd.s32 %s19, 1
    %s21 = scalar_select %p18, %s19, %s20
    %p24 = pneg %p18
    %p25 = scmp.eq.s32.totalorder %s9, 1
    %p26 = por %p24, %p25
    %p27 = scmp.ne.s32.totalorder %s19, %s22
    %p28 = scmp.eq.s32.totalorder %s9, 0
    %p29 = por %p27, %p28
    %p30 = scmp.ne.s32.totalorder %s19, %s22
    %p31 = scmp.eq.s32.totalorder %s14, 1
    %p32 = por %p30, %p31
    %p33 = scmp.ne.s32.totalorder %s22, %s23
    %p34 = scmp.eq.s32.totalorder %s14, 0
    %p35 = por %p33, %p34
    %p36 = scmp.ne.s32.totalorder %s22, %s23
    %p37 = scmp.eq.s32.totalorder %s15, 1
    %p38 = por %p36, %p37
    %p40 = scmp.ne.s32.totalorder %s23, %s39
    %p41 = scmp.eq.s32.totalorder %s15, 0
    %p42 = por %p40, %p41
    %s44 = sadd.s32 %s43, 1
    %p47 = scmp.eq.s32.totalorder %s9, 1
    %p48 = scmp.ne.s32.totalorder %s43, %s45
    %p49 = scmp.eq.s32.totalorder %s9, 0
    %p50 = por %p48, %p49
    %p51 = scmp.ne.s32.totalorder %s43, %s45
    %p52 = scmp.eq.s32.totalorder %s14, 1
    %p53 = por %p51, %p52
    %p54 = scmp.ne.s32.totalorder %s45, %s46
    %p55 = scmp.eq.s32.totalorder %s14, 0
    %p56 = por %p54, %p55
    %p57 = scmp.ne.s32.totalorder %s45, %s46
    %p58 = scmp.eq.s32.totalorder %s15, 1
    %p59 = por %p57, %p58
    %p61 = scmp.ne.s32.totalorder %s46, %s60
    %p62 = scmp.eq.s32.totalorder %s15, 0
    %p63 = por %p61, %p62
    %s65 = sadd.s32 %s64, 1
    %p68 = scmp.eq.s32.totalorder %s9, 1
    %p69 = scmp.ne.s32.totalorder %s64, %s66
    %p70 = scmp.eq.s32.totalorder %s9, 0
    %p71 = por %p69, %p70
    %p72 = scmp.ne.s32.totalorder %s64, %s66
    %p73 = scmp.eq.s32.totalorder %s14, 1
    %p74 = por %p72, %p73
    %p75 = scmp.ne.s32.totalorder %s66, %s67
    %p76 = scmp.eq.s32.totalorder %s14, 0
    %p77 = por %p75, %p76
    %p78 = scmp.ne.s32.totalorder %s66, %s67
    %p79 = scmp.eq.s32.totalorder %s15, 1
    %p80 = por %p78, %p79
    %p82 = scmp.ne.s32.totalorder %s67, %s81
    %p83 = scmp.eq.s32.totalorder %s15, 0
    %p84 = por %p82, %p83
    %s85 = ssub.s32 %s9, %s16
    %p86 = scmp.eq.s32.totalorder %s85, 0
    %s88 = sadd.s32 %s87, 1
    %s89 = scalar_select %p86, %s87, %s88
    %p92 = pneg %p86
    %p93 = scmp.eq.s32.totalorder %s9, 1
    %p94 = por %p92, %p93
    %p95 = scmp.ne.s32.totalorder %s87, %s90
    %p96 = scmp.eq.s32.totalorder %s9, 0
    %p97 = por %p95, %p96
    %p98 = scmp.ne.s32.totalorder %s87, %s90
    %p99 = scmp.eq.s32.totalorder %s14, 1
    %p100 = por %p98, %p99
    %p101 = scmp.ne.s32.totalorder %s90, %s91
    %p102 = scmp.eq.s32.totalorder %s14, 0
    %p103 = por %p101, %p102
    %p104 = scmp.ne.s32.totalorder %s90, %s91
    %p105 = scmp.eq.s32.totalorder %s15, 1
    %p106 = por %p104, %p105
    %p108 = scmp.ne.s32.totalorder %s91, %s107
    %p109 = scmp.eq.s32.totalorder %s15, 0
    %p110 = por %p108, %p109
    %p111 = scmp.le.s32.totalorder 1, %s9
    %p112 = scmp.lt.s32.totalorder %s9, 3
    %p113 = pnand %p111, %p112
    %p114 = pneg %p113
    // Predicated region
    $region9: #{scob_forward.42} parent=5 // pred_check
      _
    $region10: #{scob_forward.42} parent=5 // pred_check_branch
      %116 = sbr.rel (%p113) target = $region12
    $region11: #{scob_forward.42} parent=5 // pred_region
      %s117 = ssub.s32 %s9, 1
      // Predicated region
      $region13: #{scob_forward.42} parent=11 // pred_check
        %p118 = pneg %p56
      $region14: #{scob_forward.42} parent=11 // pred_check_branch
        %120 = sbr.rel (%p118) target = $region16
      $region15: #{scob_forward.42} parent=11 // pred_region
        _
      $region16: #{scob_forward.42} parent=11 // pred_fallthru
        _
      // Predicated region
      $region17: #{scob_forward.42} parent=11 // pred_check
        %p121 = pneg %p77
      $region18: #{scob_forward.42} parent=11 // pred_check_branch
        %123 = sbr.rel (%p121) target = $region20
      $region19: #{scob_forward.42} parent=11 // pred_region
        _
      $region20: #{scob_forward.42} parent=11 // pred_fallthru
        _
    $region12: #{scob_forward.42} parent=5 // pred_fallthru
      _
    %p124 = scmp.lt.s32.totalorder %s9, 2
    // Predicated region
    $region21: #{scob_forward.42} parent=5 // pred_check
      %p125 = pneg %p124
    $region22: #{scob_forward.42} parent=5 // pred_check_branch
      %127 = sbr.rel (%p125) target = $region24
    $region23: #{scob_forward.42} parent=5 // pred_region
      // Predicated region
      $region25: #{scob_forward.42} parent=23 // pred_check
        %p128 = pneg %p29
      $region26: #{scob_forward.42} parent=23 // pred_check_branch
        %130 = sbr.rel (%p128) target = $region28
      $region27: #{scob_forward.42} parent=23 // pred_region
        %p131 = scmp.lt.s32.totalorder %s9, 1
        %s132 = scalar_select %p131, %s9, 1
        %s133 = smul.addr %s132, 2
        %s134 = scalar_lea.vmem %s0, %s133
      $region28: #{scob_forward.42} parent=23 // pred_fallthru
        _
    $region24: #{scob_forward.42} parent=5 // pred_fallthru
      _
    %p135 = scmp.le.s32.totalorder 1, %s9
    %p136 = scmp.lt.s32.totalorder %s9, 3
    %p137 = pnand %p135, %p136
    %p138 = pneg %p137
    // Predicated region
    $region29: #{scob_forward.42} parent=5 // pred_check
      _
    $region30: #{scob_forward.42} parent=5 // pred_check_branch
      %140 = sbr.rel (%p137) target = $region32
    $region31: #{scob_forward.42} parent=5 // pred_region
      %s141 = ssub.s32 %s9, 1
      %p142 = scmp.lt.s32.totalorder %s14, 1
      %s143 = scalar_select %p142, %s14, 1
      %s144 = smul.addr %s143, 2
      %s145 = scalar_lea.vmem %s0, %s144
      %p146 = pneg %p35
      %p147 = pneg %p32
      %p148 = pneg %p56
      %p149 = pneg %p53
      %p150 = pneg %p77
      %p151 = pneg %p74
      %p152 = pneg %p103
      %p153 = pneg %p100
      %p154 = scmp.lt.s32.totalorder %s14, 1
      %s155 = scalar_select %p154, %s14, 1
      %s156 = scalar_lea.vmem %s3, %s155
      %p157 = scmp.lt.s32.totalorder %s14, 1
      %s158 = scalar_select %p157, %s14, 1
      %s159 = smul.addr %s158, 2
      %s160 = scalar_lea.vmem %s0, %s159
      %p161 = scmp.lt.s32.totalorder %s14, 1
      %s162 = scalar_select %p161, %s14, 1
      %s163 = scalar_lea.vmem %s3, %s162
      %v164 = vld [vmem:[%s160] sm:$0x3]
      %v165 = vunpack.c.l.bf16 %v164
      %v166 = vlaneseq
      %v167 = vand.u32 %v166, 127
      %vm168 = vcmp.lt.s32.totalorder %v167, 16
      %v169 = vsel %vm168, %v165, 0.0
      %vm170 = vcmask 1043456
      %v171 = vsel %vm170, %v169, 0.0
      %172 = vadd.xlane.f32.xlu0 %v171
      %v173 = vpop.xlane.xlu0 %172
      %v174 = vmul.f32 %v173, 0.0625
      %v175 = vsub.f32 %v165, %v174
      %v176 = vsel %vm168, %v175, 0.0
      %v177 = vmul.f32 %v176, %v176
      %v178 = vsel %vm170, %v177, 0.0
      %179 = vadd.xlane.f32.xlu0 %v178
      %v180 = vpop.xlane.xlu0 %179
      %v181 = vmul.f32 %v180, 0.0625
      %v182 = vadd.f32 %v181, 1e-05
      %v183 = vrsqrt.pop %v182
      %v184 = vmul.f32 %v183, %v182
      %v185 = vmul.f32 %v184, %v183
      %v186 = vmul.f32 0.5, %v185
      %v187 = vsub.f32 1.5, %v186
      %v188 = vmul.f32 %v183, %v187
      %vm189 = vweird.f32 %v182
      %vm190 = vweird.f32 %v183
      %vm191 = vmor %vm189, %vm190
      %v192 = vsel %vm191, %v183, %v188
      %v193 = vmul.f32 %v176, %v192
      %v194 = vld [vmem:[%s1] sm:$0x1]
      %v196 = vperm.slane %v194, 0
      %v198 = vmul.f32 %v193, %v196
      %v199 = vld [vmem:[%s2] sm:$0x1]
      %v201 = vperm.slane %v199, 0
      %v203 = vadd.f32 %v198, %v201
      %v204 = vsel %vm170, %v203, 0.0
      %v205 = vrot.slane %v204, 4
      %v206 = vadd.f32 %v204, %v205
      %v207 = vrot.slane %v206, 2
      %v208 = vadd.f32 %v206, %v207
      %v209 = vrot.slane %v208, 1
      %v210 = vadd.f32 %v208, %v209
      %v211 = vmul.f32 %v210, 0.25
      %212 = vst [vmem:[%s163] sm:$0x1] %v211
      %p213 = scmp.lt.s32.totalorder %s14, 1
      %s214 = scalar_select %p213, %s14, 1
      %s215 = scalar_lea.vmem %s3, %s214
      // Predicated region
      $region33: #{scob_forward.42} parent=31 // pred_check
        %p216 = pneg %p100
      $region34: #{scob_forward.42} parent=31 // pred_check_branch
        %218 = sbr.rel (%p216) target = $region36
      $region35: #{scob_forward.42} parent=31 // pred_region
        _
      $region36: #{scob_forward.42} parent=31 // pred_fallthru
        _
    $region32: #{scob_forward.42} parent=5 // pred_fallthru
      _
    %p219 = scmp.le.s32.totalorder 2, %s9
    // Predicated region
    $region37: #{scob_forward.42} parent=5 // pred_check
      %p220 = pneg %p219
    $region38: #{scob_forward.42} parent=5 // pred_check_branch
      %222 = sbr.rel (%p220) target = $region40
    $region39: #{scob_forward.42} parent=5 // pred_region
      %s223 = ssub.s32 %s9, 2
      // Predicated region
      $region41: #{scob_forward.42} parent=39 // pred_check
        %p224 = pneg %p106
      $region42: #{scob_forward.42} parent=39 // pred_check_branch
        %226 = sbr.rel (%p224) target = $region44
      $region43: #{scob_forward.42} parent=39 // pred_region
        %p227 = scmp.lt.s32.totalorder %s15, 1
        %s228 = scalar_select %p227, %s15, 1
        %s229 = scalar_lea.vmem %s3, %s228
      $region44: #{scob_forward.42} parent=39 // pred_fallthru
        _
    $region40: #{scob_forward.42} parent=5 // pred_fallthru
      _
  $region6: #{scob_forward.42} parent=0 // loop_footer
    %s13 = sadd.s32 1, %s9
  $region7: #{scob_forward.42} parent=0 // loop_footer_branch
    %8 = sbr.rel target = $region3
  $region8: #{scob_forward.42} parent=0 // loop_exit
    _

// kernel: scob_forward.35
$region0: #{scob_forward.35}
  #allocation0 [shape = 'u32[]', space=smem, size = 0x4, offset = 0x4, fixed_abs, tag = 'smem constant byte address 0x4 - core index']
  #allocation1 [shape = 'u32[72,128]{1,0:T(1,128)}', space=vmem, size = 0x9000, scoped, tag = 'internal scratch']
  %s0 = inlined_call_operand.vmem [shape: bf16[8,128], index: 0, kind: input, shape index: {}]
  %s1 = inlined_call_operand.vmem [shape: bf16[128,2048], index: 1, kind: input, shape index: {}]
  %s2 = inlined_call_operand.vmem [shape: f32[1,2048], index: 2, kind: input, shape index: {}]
  %s3 = inlined_call_operand.vmem [shape: bf16[8,2048], index: 3, kind: output, shape index: {}]
  %s4 = sld [smem:[#allocation0]]
  $region22: #{scob_forward.35} parent=0
    _
  %s6 = ssub.s32 1, %s4
  %s7 = scalar_select 0, %s6, %s4
  // Predicated region
  $region2: #{scob_forward.35} parent=0 // pred_check
    _
  $region3: #{scob_forward.35} parent=0 // pred_check_branch
    %9 = sbr.rel (0) target = $region5
  $region4: #{scob_forward.35} parent=0 // pred_region
    _
  $region5: #{scob_forward.35} parent=0 // pred_fallthru
    _
  // Predicated region
  $region6: #{scob_forward.35} parent=0 // pred_check
    _
  $region7: #{scob_forward.35} parent=0 // pred_check_branch
    %11 = sbr.rel (0) target = $region9
  $region8: #{scob_forward.35} parent=0 // pred_region
    _
  $region9: #{scob_forward.35} parent=0 // pred_fallthru
    _
  // Predicated region
  $region10: #{scob_forward.35} parent=0 // pred_check
    _
  $region11: #{scob_forward.35} parent=0 // pred_check_branch
    %13 = sbr.rel (0) target = $region13
  $region12: #{scob_forward.35} parent=0 // pred_region
    _
  $region13: #{scob_forward.35} parent=0 // pred_fallthru
    _
  %v14 = vld [vmem:[%s0] sm:$0xf]
  %v15 = vld [vmem:[%s1] sm:$0xff]
  %v16 = vld [vmem:[%s1 + $0x8] sm:$0xff]
  %v17 = vld [vmem:[%s1 + $0x10] sm:$0xff]
  %v18 = vld [vmem:[%s1 + $0x18] sm:$0xff]
  %v19 = vld [vmem:[%s1 + $0x20] sm:$0xff]
  %v20 = vld [vmem:[%s1 + $0x28] sm:$0xff]
  %v21 = vld [vmem:[%s1 + $0x30] sm:$0xff]
  %v22 = vld [vmem:[%s1 + $0x38] sm:$0xff]
  %v23 = vld [vmem:[%s1 + $0x40] sm:$0xff]
  %v24 = vld [vmem:[%s1 + $0x48] sm:$0xff]
  %v25 = vld [vmem:[%s1 + $0x50] sm:$0xff]
  %v26 = vld [vmem:[%s1 + $0x58] sm:$0xff]
  %v27 = vld [vmem:[%s1 + $0x60] sm:$0xff]
  %v28 = vld [vmem:[%s1 + $0x68] sm:$0xff]
  %v29 = vld [vmem:[%s1 + $0x70] sm:$0xff]
  %v30 = vld [vmem:[%s1 + $0x78] sm:$0xff]
  %v31 = vld [vmem:[%s1 + $0x80] sm:$0xff]
  %v32 = vld [vmem:[%s1 + $0x88] sm:$0xff]
  %v33 = vld [vmem:[%s1 + $0x90] sm:$0xff]
  %v34 = vld [vmem:[%s1 + $0x98] sm:$0xff]
  %v35 = vld [vmem:[%s1 + $0xa0] sm:$0xff]
  %v36 = vld [vmem:[%s1 + $0xa8] sm:$0xff]
  %v37 = vld [vmem:[%s1 + $0xb0] sm:$0xff]
  %v38 = vld [vmem:[%s1 + $0xb8] sm:$0xff]
  %v39 = vld [vmem:[%s1 + $0xc0] sm:$0xff]
  %v40 = vld [vmem:[%s1 + $0xc8] sm:$0xff]
  %v41 = vld [vmem:[%s1 + $0xd0] sm:$0xff]
  %v42 = vld [vmem:[%s1 + $0xd8] sm:$0xff]
  %v43 = vld [vmem:[%s1 + $0xe0] sm:$0xff]
  %v44 = vld [vmem:[%s1 + $0xe8] sm:$0xff]
  %v45 = vld [vmem:[%s1 + $0xf0] sm:$0xff]
  %v46 = vld [vmem:[%s1 + $0xf8] sm:$0xff]
  %v47 = vld [vmem:[%s1 + $0x100] sm:$0xff]
  %v48 = vld [vmem:[%s1 + $0x108] sm:$0xff]
  %v49 = vld [vmem:[%s1 + $0x110] sm:$0xff]
  %v50 = vld [vmem:[%s1 + $0x118] sm:$0xff]
  %v51 = vld [vmem:[%s1 + $0x120] sm:$0xff]
  %v52 = vld [vmem:[%s1 + $0x128] sm:$0xff]
  %v53 = vld [vmem:[%s1 + $0x130] sm:$0xff]
  %v54 = vld [vmem:[%s1 + $0x138] sm:$0xff]
  %v55 = vld [vmem:[%s1 + $0x140] sm:$0xff]
  %v56 = vld [vmem:[%s1 + $0x148] sm:$0xff]
  %v57 = vld [vmem:[%s1 + $0x150] sm:$0xff]
  %v58 = vld [vmem:[%s1 + $0x158] sm:$0xff]
  %v59 = vld [vmem:[%s1 + $0x160] sm:$0xff]
  %v60 = vld [vmem:[%s1 + $0x168] sm:$0xff]
  %v61 = vld [vmem:[%s1 + $0x170] sm:$0xff]
  %v62 = vld [vmem:[%s1 + $0x178] sm:$0xff]
  %v63 = vld [vmem:[%s1 + $0x180] sm:$0xff]
  %v64 = vld [vmem:[%s1 + $0x188] sm:$0xff]
  %v65 = vld [vmem:[%s1 + $0x190] sm:$0xff]
  %v66 = vld [vmem:[%s1 + $0x198] sm:$0xff]
  %v67 = vld [vmem:[%s1 + $0x1a0] sm:$0xff]
  %v68 = vld [vmem:[%s1 + $0x1a8] sm:$0xff]
  %v69 = vld [vmem:[%s1 + $0x1b0] sm:$0xff]
  %v70 = vld [vmem:[%s1 + $0x1b8] sm:$0xff]
  %v71 = vld [vmem:[%s1 + $0x1c0] sm:$0xff]
  %v72 = vld [vmem:[%s1 + $0x1c8] sm:$0xff]
  %v73 = vld [vmem:[%s1 + $0x1d0] sm:$0xff]
  %v74 = vld [vmem:[%s1 + $0x1d8] sm:$0xff]
  %v75 = vld [vmem:[%s1 + $0x1e0] sm:$0xff]
  %v76 = vld [vmem:[%s1 + $0x1e8] sm:$0xff]
  %v77 = vld [vmem:[%s1 + $0x1f0] sm:$0xff]
  %v78 = vld [vmem:[%s1 + $0x1f8] sm:$0xff]
  %v79 = vld [vmem:[%s1 + $0x200] sm:$0xff]
  %v80 = vld [vmem:[%s1 + $0x208] sm:$0xff]
  %v81 = vld [vmem:[%s1 + $0x210] sm:$0xff]
  %v82 = vld [vmem:[%s1 + $0x218] sm:$0xff]
  %v83 = vld [vmem:[%s1 + $0x220] sm:$0xff]
  %v84 = vld [vmem:[%s1 + $0x228] sm:$0xff]
  %v85 = vld [vmem:[%s1 + $0x230] sm:$0xff]
  %v86 = vld [vmem:[%s1 + $0x238] sm:$0xff]
  %v87 = vld [vmem:[%s1 + $0x240] sm:$0xff]
  %v88 = vld [vmem:[%s1 + $0x248] sm:$0xff]
  %v89 = vld [vmem:[%s1 + $0x250] sm:$0xff]
  %v90 = vld [vmem:[%s1 + $0x258] sm:$0xff]
  %v91 = vld [vmem:[%s1 + $0x260] sm:$0xff]
  %v92 = vld [vmem:[%s1 + $0x268] sm:$0xff]
  %v93 = vld [vmem:[%s1 + $0x270] sm:$0xff]
  %v94 = vld [vmem:[%s1 + $0x278] sm:$0xff]
  %v95 = vld [vmem:[%s1 + $0x280] sm:$0xff]
  %v96 = vld [vmem:[%s1 + $0x288] sm:$0xff]
  %v97 = vld [vmem:[%s1 + $0x290] sm:$0xff]
  %v98 = vld [vmem:[%s1 + $0x298] sm:$0xff]
  %v99 = vld [vmem:[%s1 + $0x2a0] sm:$0xff]
  %v100 = vld [vmem:[%s1 + $0x2a8] sm:$0xff]
  %v101 = vld [vmem:[%s1 + $0x2b0] sm:$0xff]
  %v102 = vld [vmem:[%s1 + $0x2b8] sm:$0xff]
  %v103 = vld [vmem:[%s1 + $0x2c0] sm:$0xff]
  %v104 = vld [vmem:[%s1 + $0x2c8] sm:$0xff]
  %v105 = vld [vmem:[%s1 + $0x2d0] sm:$0xff]
  %v106 = vld [vmem:[%s1 + $0x2d8] sm:$0xff]
  %v107 = vld [vmem:[%s1 + $0x2e0] sm:$0xff]
  %v108 = vld [vmem:[%s1 + $0x2e8] sm:$0xff]
  %v109 = vld [vmem:[%s1 + $0x2f0] sm:$0xff]
  %v110 = vld [vmem:[%s1 + $0x2f8] sm:$0xff]
  %v111 = vld [vmem:[%s1 + $0x300] sm:$0xff]
  %v112 = vld [vmem:[%s1 + $0x308] sm:$0xff]
  %v113 = vld [vmem:[%s1 + $0x310] sm:$0xff]
  %v114 = vld [vmem:[%s1 + $0x318] sm:$0xff]
  %v115 = vld [vmem:[%s1 + $0x320] sm:$0xff]
  %v116 = vld [vmem:[%s1 + $0x328] sm:$0xff]
  %v117 = vld [vmem:[%s1 + $0x330] sm:$0xff]
  %v118 = vld [vmem:[%s1 + $0x338] sm:$0xff]
  %v119 = vld [vmem:[%s1 + $0x340] sm:$0xff]
  %v120 = vld [vmem:[%s1 + $0x348] sm:$0xff]
  %v121 = vld [vmem:[%s1 + $0x350] sm:$0xff]
  %v122 = vld [vmem:[%s1 + $0x358] sm:$0xff]
  %v123 = vld [vmem:[%s1 + $0x360] sm:$0xff]
  %v124 = vld [vmem:[%s1 + $0x368] sm:$0xff]
  %v125 = vld [vmem:[%s1 + $0x370] sm:$0xff]
  %v126 = vld [vmem:[%s1 + $0x378] sm:$0xff]
  %v127 = vld [vmem:[%s1 + $0x380] sm:$0xff]
  %v128 = vld [vmem:[%s1 + $0x388] sm:$0xff]
  %v129 = vld [vmem:[%s1 + $0x390] sm:$0xff]
  %v130 = vld [vmem:[%s1 + $0x398] sm:$0xff]
  %v131 = vld [vmem:[%s1 + $0x3a0] sm:$0xff]
  %v132 = vld [vmem:[%s1 + $0x3a8] sm:$0xff]
  %v133 = vld [vmem:[%s1 + $0x3b0] sm:$0xff]
  %v134 = vld [vmem:[%s1 + $0x3b8] sm:$0xff]
  %v135 = vld [vmem:[%s1 + $0x3c0] sm:$0xff]
  %v136 = vld [vmem:[%s1 + $0x3c8] sm:$0xff]
  %v137 = vld [vmem:[%s1 + $0x3d0] sm:$0xff]
  %v138 = vld [vmem:[%s1 + $0x3d8] sm:$0xff]
  %v139 = vld [vmem:[%s1 + $0x3e0] sm:$0xff]
  %v140 = vld [vmem:[%s1 + $0x3e8] sm:$0xff]
  %v141 = vld [vmem:[%s1 + $0x3f0] sm:$0xff]
  %v142 = vld [vmem:[%s1 + $0x3f8] sm:$0xff]
  %v143 = vld [vmem:[%s2] sm:$0xff]
  %v144 = vld [vmem:[%s2 + $0x8] sm:$0xff]
  %v147 = vperm.slane %v143, 0
  %v148 = vperm.slane %v143, 1
  %v149 = vperm.slane %v143, 2
  %v150 = vperm.slane %v143, 3
  %v151 = vperm.slane %v143, 4
  %v152 = vperm.slane %v143, 5
  %v153 = vperm.slane %v143, 6
  %v154 = vperm.slane %v143, 7
  %v155 = vperm.slane %v144, 0
  %v156 = vperm.slane %v144, 1
  %v157 = vperm.slane %v144, 2
  %v158 = vperm.slane %v144, 3
  %v159 = vperm.slane %v144, 4
  %v160 = vperm.slane %v144, 5
  %v161 = vperm.slane %v144, 6
  %v162 = vperm.slane %v144, 7
  %v307 = vunpack.c.l.b16 %v15
  %v308 = vunpack.c.h.b16 %v15
  %v309 = vunpack.c.l.b16 %v16
  %v310 = vunpack.c.h.b16 %v16
  %v311 = vunpack.c.l.b16 %v17
  %v312 = vunpack.c.h.b16 %v17
  %v313 = vunpack.c.l.b16 %v18
  %v314 = vunpack.c.h.b16 %v18
  %v315 = vunpack.c.l.b16 %v19
  %v316 = vunpack.c.h.b16 %v19
  %v317 = vunpack.c.l.b16 %v20
  %v318 = vunpack.c.h.b16 %v20
  %v319 = vunpack.c.l.b16 %v21
  %v320 = vunpack.c.h.b16 %v21
  %v321 = vunpack.c.l.b16 %v22
  %v322 = vunpack.c.h.b16 %v22
  %v323 = vunpack.c.l.b16 %v23
  %v324 = vunpack.c.h.b16 %v23
  %v325 = vunpack.c.l.b16 %v24
  %v326 = vunpack.c.h.b16 %v24
  %v327 = vunpack.c.l.b16 %v25
  %v328 = vunpack.c.h.b16 %v25
  %v329 = vunpack.c.l.b16 %v26
  %v330 = vunpack.c.h.b16 %v26
  %v331 = vunpack.c.l.b16 %v27
  %v332 = vunpack.c.h.b16 %v27
  %v333 = vunpack.c.l.b16 %v28
  %v334 = vunpack.c.h.b16 %v28
  %v335 = vunpack.c.l.b16 %v29
  %v336 = vunpack.c.h.b16 %v29
  %v337 = vunpack.c.l.b16 %v30
  %v338 = vunpack.c.h.b16 %v30
  %v339 = vunpack.c.l.b16 %v31
  %v340 = vunpack.c.h.b16 %v31
  %v341 = vunpack.c.l.b16 %v32
  %v342 = vunpack.c.h.b16 %v32
  %v343 = vunpack.c.l.b16 %v33
  %v344 = vunpack.c.h.b16 %v33
  %v345 = vunpack.c.l.b16 %v34
  %v346 = vunpack.c.h.b16 %v34
  %v347 = vunpack.c.l.b16 %v35
  %v348 = vunpack.c.h.b16 %v35
  %v349 = vunpack.c.l.b16 %v36
  %v350 = vunpack.c.h.b16 %v36
  %v351 = vunpack.c.l.b16 %v37
  %v352 = vunpack.c.h.b16 %v37
  %v353 = vunpack.c.l.b16 %v38
  %v354 = vunpack.c.h.b16 %v38
  %v355 = vunpack.c.l.b16 %v39
  %v356 = vunpack.c.h.b16 %v39
  %v357 = vunpack.c.l.b16 %v40
  %v358 = vunpack.c.h.b16 %v40
  %v359 = vunpack.c.l.b16 %v41
  %v360 = vunpack.c.h.b16 %v41
  %v361 = vunpack.c.l.b16 %v42
  %v362 = vunpack.c.h.b16 %v42
  %v363 = vunpack.c.l.b16 %v43
  %v364 = vunpack.c.h.b16 %v43
  %v365 = vunpack.c.l.b16 %v44
  %v366 = vunpack.c.h.b16 %v44
  %v367 = vunpack.c.l.b16 %v45
  %v368 = vunpack.c.h.b16 %v45
  %v369 = vunpack.c.l.b16 %v46
  %v370 = vunpack.c.h.b16 %v46
  %v371 = vunpack.c.l.b16 %v47
  %v372 = vunpack.c.h.b16 %v47
  %v373 = vunpack.c.l.b16 %v48
  %v374 = vunpack.c.h.b16 %v48
  %v375 = vunpack.c.l.b16 %v49
  %v376 = vunpack.c.h.b16 %v49
  %v377 = vunpack.c.l.b16 %v50
  %v378 = vunpack.c.h.b16 %v50
  %v379 = vunpack.c.l.b16 %v51
  %v380 = vunpack.c.h.b16 %v51
  %v381 = vunpack.c.l.b16 %v52
  %v382 = vunpack.c.h.b16 %v52
  %v383 = vunpack.c.l.b16 %v53
  %v384 = vunpack.c.h.b16 %v53
  %v385 = vunpack.c.l.b16 %v54
  %v386 = vunpack.c.h.b16 %v54
  %v387 = vunpack.c.l.b16 %v55
  %v388 = vunpack.c.h.b16 %v55
  %v389 = vunpack.c.l.b16 %v56
  %v390 = vunpack.c.h.b16 %v56
  %v391 = vunpack.c.l.b16 %v57
  %v392 = vunpack.c.h.b16 %v57
  %v393 = vunpack.c.l.b16 %v58
  %v394 = vunpack.c.h.b16 %v58
  %v395 = vunpack.c.l.b16 %v59
  %v396 = vunpack.c.h.b16 %v59
  %v397 = vunpack.c.l.b16 %v60
  %v398 = vunpack.c.h.b16 %v60
  %v399 = vunpack.c.l.b16 %v61
  %v400 = vunpack.c.h.b16 %v61
  %v401 = vunpack.c.l.b16 %v62
  %v402 = vunpack.c.h.b16 %v62
  %v403 = vunpack.c.l.b16 %v63
  %v404 = vunpack.c.h.b16 %v63
  %v405 = vunpack.c.l.b16 %v64
  %v406 = vunpack.c.h.b16 %v64
  %v407 = vunpack.c.l.b16 %v65
  %v408 = vunpack.c.h.b16 %v65
  %v409 = vunpack.c.l.b16 %v66
  %v410 = vunpack.c.h.b16 %v66
  %v411 = vunpack.c.l.b16 %v67
  %v412 = vunpack.c.h.b16 %v67
  %v413 = vunpack.c.l.b16 %v68
  %v414 = vunpack.c.h.b16 %v68
  %v415 = vunpack.c.l.b16 %v69
  %v416 = vunpack.c.h.b16 %v69
  %v417 = vunpack.c.l.b16 %v70
  %v418 = vunpack.c.h.b16 %v70
  %v419 = vunpack.c.l.b16 %v71
  %v420 = vunpack.c.h.b16 %v71
  %v421 = vunpack.c.l.b16 %v72
  %v422 = vunpack.c.h.b16 %v72
  %v423 = vunpack.c.l.b16 %v73
  %v424 = vunpack.c.h.b16 %v73
  %v425 = vunpack.c.l.b16 %v74
  %v426 = vunpack.c.h.b16 %v74
  %v427 = vunpack.c.l.b16 %v75
  %v428 = vunpack.c.h.b16 %v75
  %v429 = vunpack.c.l.b16 %v76
  %v430 = vunpack.c.h.b16 %v76
  %v431 = vunpack.c.l.b16 %v77
  %v432 = vunpack.c.h.b16 %v77
  %v433 = vunpack.c.l.b16 %v78
  %v434 = vunpack.c.h.b16 %v78
  %v435 = vunpack.c.l.b16 %v79
  %v436 = vunpack.c.h.b16 %v79
  %v437 = vunpack.c.l.b16 %v80
  %v438 = vunpack.c.h.b16 %v80
  %v439 = vunpack.c.l.b16 %v81
  %v440 = vunpack.c.h.b16 %v81
  %v441 = vunpack.c.l.b16 %v82
  %v442 = vunpack.c.h.b16 %v82
  %v443 = vunpack.c.l.b16 %v83
  %v444 = vunpack.c.h.b16 %v83
  %v445 = vunpack.c.l.b16 %v84
  %v446 = vunpack.c.h.b16 %v84
  %v447 = vunpack.c.l.b16 %v85
  %v448 = vunpack.c.h.b16 %v85
  %v449 = vunpack.c.l.b16 %v86
  %v450 = vunpack.c.h.b16 %v86
  %v451 = vunpack.c.l.b16 %v87
  %v452 = vunpack.c.h.b16 %v87
  %v453 = vunpack.c.l.b16 %v88
  %v454 = vunpack.c.h.b16 %v88
  %v455 = vunpack.c.l.b16 %v89
  %v456 = vunpack.c.h.b16 %v89
  %v457 = vunpack.c.l.b16 %v90
  %v458 = vunpack.c.h.b16 %v90
  %v459 = vunpack.c.l.b16 %v91
  %v460 = vunpack.c.h.b16 %v91
  %v461 = vunpack.c.l.b16 %v92
  %v462 = vunpack.c.h.b16 %v92
  %v463 = vunpack.c.l.b16 %v93
  %v464 = vunpack.c.h.b16 %v93
  %v465 = vunpack.c.l.b16 %v94
  %v466 = vunpack.c.h.b16 %v94
  %v467 = vunpack.c.l.b16 %v95
  %v468 = vunpack.c.h.b16 %v95
  %v469 = vunpack.c.l.b16 %v96
  %v470 = vunpack.c.h.b16 %v96
  %v471 = vunpack.c.l.b16 %v97
  %v472 = vunpack.c.h.b16 %v97
  %v473 = vunpack.c.l.b16 %v98
  %v474 = vunpack.c.h.b16 %v98
  %v475 = vunpack.c.l.b16 %v99
  %v476 = vunpack.c.h.b16 %v99
  %v477 = vunpack.c.l.b16 %v100
  %v478 = vunpack.c.h.b16 %v100
  %v479 = vunpack.c.l.b16 %v101
  %v480 = vunpack.c.h.b16 %v101
  %v481 = vunpack.c.l.b16 %v102
  %v482 = vunpack.c.h.b16 %v102
  %v483 = vunpack.c.l.b16 %v103
  %v484 = vunpack.c.h.b16 %v103
  %v485 = vunpack.c.l.b16 %v104
  %v486 = vunpack.c.h.b16 %v104
  %v487 = vunpack.c.l.b16 %v105
  %v488 = vunpack.c.h.b16 %v105
  %v489 = vunpack.c.l.b16 %v106
  %v490 = vunpack.c.h.b16 %v106
  %v491 = vunpack.c.l.b16 %v107
  %v492 = vunpack.c.h.b16 %v107
  %v493 = vunpack.c.l.b16 %v108
  %v494 = vunpack.c.h.b16 %v108
  %v495 = vunpack.c.l.b16 %v109
  %v496 = vunpack.c.h.b16 %v109
  %v497 = vunpack.c.l.b16 %v110
  %v498 = vunpack.c.h.b16 %v110
  %v499 = vunpack.c.l.b16 %v111
  %v500 = vunpack.c.h.b16 %v111
  %v501 = vunpack.c.l.b16 %v112
  %v502 = vunpack.c.h.b16 %v112
  %v503 = vunpack.c.l.b16 %v113
  %v504 = vunpack.c.h.b16 %v113
  %v505 = vunpack.c.l.b16 %v114
  %v506 = vunpack.c.h.b16 %v114
  %v507 = vunpack.c.l.b16 %v115
  %v508 = vunpack.c.h.b16 %v115
  %v509 = vunpack.c.l.b16 %v116
  %v510 = vunpack.c.h.b16 %v116
  %v511 = vunpack.c.l.b16 %v117
  %v512 = vunpack.c.h.b16 %v117
  %v513 = vunpack.c.l.b16 %v118
  %v514 = vunpack.c.h.b16 %v118
  %v515 = vunpack.c.l.b16 %v119
  %v516 = vunpack.c.h.b16 %v119
  %v517 = vunpack.c.l.b16 %v120
  %v518 = vunpack.c.h.b16 %v120
  %v519 = vunpack.c.l.b16 %v121
  %v520 = vunpack.c.h.b16 %v121
  %v521 = vunpack.c.l.b16 %v122
  %v522 = vunpack.c.h.b16 %v122
  %v523 = vunpack.c.l.b16 %v123
  %v524 = vunpack.c.h.b16 %v123
  %v525 = vunpack.c.l.b16 %v124
  %v526 = vunpack.c.h.b16 %v124
  %v527 = vunpack.c.l.b16 %v125
  %v528 = vunpack.c.h.b16 %v125
  %v529 = vunpack.c.l.b16 %v126
  %v530 = vunpack.c.h.b16 %v126
  %v531 = vunpack.c.l.b16 %v127
  %v532 = vunpack.c.h.b16 %v127
  %v533 = vunpack.c.l.b16 %v128
  %v534 = vunpack.c.h.b16 %v128
  %v535 = vunpack.c.l.b16 %v129
  %v536 = vunpack.c.h.b16 %v129
  %v537 = vunpack.c.l.b16 %v130
  %v538 = vunpack.c.h.b16 %v130
  %v539 = vunpack.c.l.b16 %v131
  %v540 = vunpack.c.h.b16 %v131
  %v541 = vunpack.c.l.b16 %v132
  %v542 = vunpack.c.h.b16 %v132
  %v543 = vunpack.c.l.b16 %v133
  %v544 = vunpack.c.h.b16 %v133
  %v545 = vunpack.c.l.b16 %v134
  %v546 = vunpack.c.h.b16 %v134
  %v547 = vunpack.c.l.b16 %v135
  %v548 = vunpack.c.h.b16 %v135
  %v549 = vunpack.c.l.b16 %v136
  %v550 = vunpack.c.h.b16 %v136
  %v551 = vunpack.c.l.b16 %v137
  %v552 = vunpack.c.h.b16 %v137
  %v553 = vunpack.c.l.b16 %v138
  %v554 = vunpack.c.h.b16 %v138
  %v555 = vunpack.c.l.b16 %v139
  %v556 = vunpack.c.h.b16 %v139
  %v557 = vunpack.c.l.b16 %v140
  %v558 = vunpack.c.h.b16 %v140
  %v559 = vunpack.c.l.b16 %v141
  %v560 = vunpack.c.h.b16 %v141
  %v561 = vunpack.c.l.b16 %v142
  %v562 = vunpack.c.h.b16 %v142
  %v563 = vpack.c.b16 %v323, %v307
  %v564 = vpack.c.b16 %v324, %v308
  %v565 = vpack.c.b16 %v325, %v309
  %v566 = vpack.c.b16 %v326, %v310
  %v567 = vpack.c.b16 %v327, %v311
  %v568 = vpack.c.b16 %v328, %v312
  %v569 = vpack.c.b16 %v329, %v313
  %v570 = vpack.c.b16 %v330, %v314
  %v571 = vpack.c.b16 %v331, %v315
  %v572 = vpack.c.b16 %v332, %v316
  %v573 = vpack.c.b16 %v333, %v317
  %v574 = vpack.c.b16 %v334, %v318
  %v575 = vpack.c.b16 %v335, %v319
  %v576 = vpack.c.b16 %v336, %v320
  %v577 = vpack.c.b16 %v337, %v321
  %v578 = vpack.c.b16 %v338, %v322
  %v579 = vpack.c.b16 %v355, %v339
  %v580 = vpack.c.b16 %v356, %v340
  %v581 = vpack.c.b16 %v357, %v341
  %v582 = vpack.c.b16 %v358, %v342
  %v583 = vpack.c.b16 %v359, %v343
  %v584 = vpack.c.b16 %v360, %v344
  %v585 = vpack.c.b16 %v361, %v345
  %v586 = vpack.c.b16 %v362, %v346
  %v587 = vpack.c.b16 %v363, %v347
  %v588 = vpack.c.b16 %v364, %v348
  %v589 = vpack.c.b16 %v365, %v349
  %v590 = vpack.c.b16 %v366, %v350
  %v591 = vpack.c.b16 %v367, %v351
  %v592 = vpack.c.b16 %v368, %v352
  %v593 = vpack.c.b16 %v369, %v353
  %v594 = vpack.c.b16 %v370, %v354
  %v595 = vpack.c.b16 %v387, %v371
  %v596 = vpack.c.b16 %v388, %v372
  %v597 = vpack.c.b16 %v389, %v373
  %v598 = vpack.c.b16 %v390, %v374
  %v599 = vpack.c.b16 %v391, %v375
  %v600 = vpack.c.b16 %v392, %v376
  %v601 = vpack.c.b16 %v393, %v377
  %v602 = vpack.c.b16 %v394, %v378
  %v603 = vpack.c.b16 %v395, %v379
  %v604 = vpack.c.b16 %v396, %v380
  %v605 = vpack.c.b16 %v397, %v381
  %v606 = vpack.c.b16 %v398, %v382
  %v607 = vpack.c.b16 %v399, %v383
  %v608 = vpack.c.b16 %v400, %v384
  %v609 = vpack.c.b16 %v401, %v385
  %v610 = vpack.c.b16 %v402, %v386
  %v611 = vpack.c.b16 %v419, %v403
  %v612 = vpack.c.b16 %v420, %v404
  %v613 = vpack.c.b16 %v421, %v405
  %v614 = vpack.c.b16 %v422, %v406
  %v615 = vpack.c.b16 %v423, %v407
  %v616 = vpack.c.b16 %v424, %v408
  %v617 = vpack.c.b16 %v425, %v409
  %v618 = vpack.c.b16 %v426, %v410
  %v619 = vpack.c.b16 %v427, %v411
  %v620 = vpack.c.b16 %v428, %v412
  %v621 = vpack.c.b16 %v429, %v413
  %v622 = vpack.c.b16 %v430, %v414
  %v623 = vpack.c.b16 %v431, %v415
  %v624 = vpack.c.b16 %v432, %v416
  %v625 = vpack.c.b16 %v433, %v417
  %v626 = vpack.c.b16 %v434, %v418
  %v627 = vpack.c.b16 %v451, %v435
  %v628 = vpack.c.b16 %v452, %v436
  %v629 = vpack.c.b16 %v453, %v437
  %v630 = vpack.c.b16 %v454, %v438
  %v631 = vpack.c.b16 %v455, %v439
  %v632 = vpack.c.b16 %v456, %v440
  %v633 = vpack.c.b16 %v457, %v441
  %v634 = vpack.c.b16 %v458, %v442
  %v635 = vpack.c.b16 %v459, %v443
  %v636 = vpack.c.b16 %v460, %v444
  %v637 = vpack.c.b16 %v461, %v445
  %v638 = vpack.c.b16 %v462, %v446
  %v639 = vpack.c.b16 %v463, %v447
  %v640 = vpack.c.b16 %v464, %v448
  %v641 = vpack.c.b16 %v465, %v449
  %v642 = vpack.c.b16 %v466, %v450
  %v643 = vpack.c.b16 %v483, %v467
  %v644 = vpack.c.b16 %v484, %v468
  %v645 = vpack.c.b16 %v485, %v469
  %v646 = vpack.c.b16 %v486, %v470
  %v647 = vpack.c.b16 %v487, %v471
  %v648 = vpack.c.b16 %v488, %v472
  %v649 = vpack.c.b16 %v489, %v473
  %v650 = vpack.c.b16 %v490, %v474
  %v651 = vpack.c.b16 %v491, %v475
  %v652 = vpack.c.b16 %v492, %v476
  %v653 = vpack.c.b16 %v493, %v477
  %v654 = vpack.c.b16 %v494, %v478
  %v655 = vpack.c.b16 %v495, %v479
  %v656 = vpack.c.b16 %v496, %v480
  %v657 = vpack.c.b16 %v497, %v481
  %v658 = vpack.c.b16 %v498, %v482
  %v659 = vpack.c.b16 %v515, %v499
  %v660 = vpack.c.b16 %v516, %v500
  %v661 = vpack.c.b16 %v517, %v501
  %v662 = vpack.c.b16 %v518, %v502
  %v663 = vpack.c.b16 %v519, %v503
  %v664 = vpack.c.b16 %v520, %v504
  %v665 = vpack.c.b16 %v521, %v505
  %v666 = vpack.c.b16 %v522, %v506
  %v667 = vpack.c.b16 %v523, %v507
  %v668 = vpack.c.b16 %v524, %v508
  %v669 = vpack.c.b16 %v525, %v509
  %v670 = vpack.c.b16 %v526, %v510
  %v671 = vpack.c.b16 %v527, %v511
  %v672 = vpack.c.b16 %v528, %v512
  %v673 = vpack.c.b16 %v529, %v513
  %v674 = vpack.c.b16 %v530, %v514
  %v675 = vpack.c.b16 %v547, %v531
  %v676 = vpack.c.b16 %v548, %v532
  %v677 = vpack.c.b16 %v549, %v533
  %v678 = vpack.c.b16 %v550, %v534
  %v679 = vpack.c.b16 %v551, %v535
  %v680 = vpack.c.b16 %v552, %v536
  %v681 = vpack.c.b16 %v553, %v537
  %v682 = vpack.c.b16 %v554, %v538
  %v683 = vpack.c.b16 %v555, %v539
  %v684 = vpack.c.b16 %v556, %v540
  %v685 = vpack.c.b16 %v557, %v541
  %v686 = vpack.c.b16 %v558, %v542
  %v687 = vpack.c.b16 %v559, %v543
  %v688 = vpack.c.b16 %v560, %v544
  %v689 = vpack.c.b16 %v561, %v545
  %v690 = vpack.c.b16 %v562, %v546
  %819 = vmatpush.bf16.msra.mxu0 %v675
  %820 = vmatpush.bf16.msra.mxu0 %v659
  %821 = vmatpush.bf16.msra.mxu0 %v643
  %822 = vmatpush.bf16.msra.mxu0 %v627
  %823 = vmatpush.bf16.msra.mxu0 %v611
  %824 = vmatpush.bf16.msra.mxu0 %v595
  %825 = vmatpush.bf16.msra.mxu0 %v579
  %826 = vmatpush.bf16.msra.mxu0 %v563
  %827 = vmatmul.bf16.gmra.mxu0 %v14
  %v828 = vpop.f32.mrf.mxu0
  %v829 = vadd.f32 %v147, %v828
  %v830 = vpop.f32.mrf.mxu0
  %831 = vdwg.mxu0
  %832 = vmatpush.bf16.msra.mxu0 %v676
  %833 = vmatpush.bf16.msra.mxu0 %v660
  %834 = vmatpush.bf16.msra.mxu0 %v644
  %835 = vmatpush.bf16.msra.mxu0 %v628
  %836 = vmatpush.bf16.msra.mxu0 %v612
  %837 = vmatpush.bf16.msra.mxu0 %v596
  %838 = vmatpush.bf16.msra.mxu0 %v580
  %839 = vmatpush.bf16.msra.mxu0 %v564
  %840 = vmatmul.bf16.gmra.mxu0 %v14
  %v841 = vpop.f32.mrf.mxu0
  %v842 = vadd.f32 %v148, %v841
  %v843 = vpop.f32.mrf.mxu0
  %844 = vdwg.mxu0
  %845 = vmatpush.bf16.msra.mxu0 %v677
  %846 = vmatpush.bf16.msra.mxu0 %v661
  %847 = vmatpush.bf16.msra.mxu0 %v645
  %848 = vmatpush.bf16.msra.mxu0 %v629
  %849 = vmatpush.bf16.msra.mxu0 %v613
  %850 = vmatpush.bf16.msra.mxu0 %v597
  %851 = vmatpush.bf16.msra.mxu0 %v581
  %852 = vmatpush.bf16.msra.mxu0 %v565
  %853 = vmatmul.bf16.gmra.mxu0 %v14
  %v854 = vpop.f32.mrf.mxu0
  %v855 = vadd.f32 %v149, %v854
  %v856 = vpop.f32.mrf.mxu0
  %857 = vdwg.mxu0
  %858 = vmatpush.bf16.msra.mxu0 %v678
  %859 = vmatpush.bf16.msra.mxu0 %v662
  %860 = vmatpush.bf16.msra.mxu0 %v646
  %861 = vmatpush.bf16.msra.mxu0 %v630
  %862 = vmatpush.bf16.msra.mxu0 %v614
  %863 = vmatpush.bf16.msra.mxu0 %v598
  %864 = vmatpush.bf16.msra.mxu0 %v582
  %865 = vmatpush.bf16.msra.mxu0 %v566
  %866 = vmatmul.bf16.gmra.mxu0 %v14
  %v867 = vpop.f32.mrf.mxu0
  %v868 = vadd.f32 %v150, %v867
  %v869 = vpop.f32.mrf.mxu0
  %870 = vdwg.mxu0
  %871 = vmatpush.bf16.msra.mxu0 %v679
  %872 = vmatpush.bf16.msra.mxu0 %v663
  %873 = vmatpush.bf16.msra.mxu0 %v647
  %874 = vmatpush.bf16.msra.mxu0 %v631
  %875 = vmatpush.bf16.msra.mxu0 %v615
  %876 = vmatpush.bf16.msra.mxu0 %v599
  %877 = vmatpush.bf16.msra.mxu0 %v583
  %878 = vmatpush.bf16.msra.mxu0 %v567
  %879 = vmatmul.bf16.gmra.mxu0 %v14
  %v880 = vpop.f32.mrf.mxu0
  %v881 = vadd.f32 %v151, %v880
  %v882 = vpop.f32.mrf.mxu0
  %883 = vdwg.mxu0
  %884 = vmatpush.bf16.msra.mxu0 %v680
  %885 = vmatpush.bf16.msra.mxu0 %v664
  %886 = vmatpush.bf16.msra.mxu0 %v648
  %887 = vmatpush.bf16.msra.mxu0 %v632
  %888 = vmatpush.bf16.msra.mxu0 %v616
  %889 = vmatpush.bf16.msra.mxu0 %v600
  %890 = vmatpush.bf16.msra.mxu0 %v584
  %891 = vmatpush.bf16.msra.mxu0 %v568
  %892 = vmatmul.bf16.gmra.mxu0 %v14
  %v893 = vpop.f32.mrf.mxu0
  %v894 = vadd.f32 %v152, %v893
  %v895 = vpop.f32.mrf.mxu0
  %896 = vdwg.mxu0
  %897 = vmatpush.bf16.msra.mxu0 %v681
  %898 = vmatpush.bf16.msra.mxu0 %v665
  %899 = vmatpush.bf16.msra.mxu0 %v649
  %900 = vmatpush.bf16.msra.mxu0 %v633
  %901 = vmatpush.bf16.msra.mxu0 %v617
  %902 = vmatpush.bf16.msra.mxu0 %v601
  %903 = vmatpush.bf16.msra.mxu0 %v585
  %904 = vmatpush.bf16.msra.mxu0 %v569
  %905 = vmatmul.bf16.gmra.mxu0 %v14
  %v906 = vpop.f32.mrf.mxu0
  %v907 = vadd.f32 %v153, %v906
  %v908 = vpop.f32.mrf.mxu0
  %909 = vdwg.mxu0
  %910 = vmatpush.bf16.msra.mxu0 %v682
  %911 = vmatpush.bf16.msra.mxu0 %v666
  %912 = vmatpush.bf16.msra.mxu0 %v650
  %913 = vmatpush.bf16.msra.mxu0 %v634
  %914 = vmatpush.bf16.msra.mxu0 %v618
  %915 = vmatpush.bf16.msra.mxu0 %v602
  %916 = vmatpush.bf16.msra.mxu0 %v586
  %917 = vmatpush.bf16.msra.mxu0 %v570
  %918 = vmatmul.bf16.gmra.mxu0 %v14
  %v919 = vpop.f32.mrf.mxu0
  %v920 = vadd.f32 %v154, %v919
  %v921 = vpop.f32.mrf.mxu0
  %922 = vdwg.mxu0
  %923 = vmatpush.bf16.msra.mxu0 %v683
  %924 = vmatpush.bf16.msra.mxu0 %v667
  %925 = vmatpush.bf16.msra.mxu0 %v651
  %926 = vmatpush.bf16.msra.mxu0 %v635
  %927 = vmatpush.bf16.msra.mxu0 %v619
  %928 = vmatpush.bf16.msra.mxu0 %v603
  %929 = vmatpush.bf16.msra.mxu0 %v587
  %930 = vmatpush.bf16.msra.mxu0 %v571
  %931 = vmatmul.bf16.gmra.mxu0 %v14
  %v932 = vpop.f32.mrf.mxu0
  %v933 = vadd.f32 %v155, %v932
  %v934 = vpop.f32.mrf.mxu0
  %935 = vdwg.mxu0
  %936 = vmatpush.bf16.msra.mxu0 %v684
  %937 = vmatpush.bf16.msra.mxu0 %v668
  %938 = vmatpush.bf16.msra.mxu0 %v652
  %939 = vmatpush.bf16.msra.mxu0 %v636
  %940 = vmatpush.bf16.msra.mxu0 %v620
  %941 = vmatpush.bf16.msra.mxu0 %v604
  %942 = vmatpush.bf16.msra.mxu0 %v588
  %943 = vmatpush.bf16.msra.mxu0 %v572
  %944 = vmatmul.bf16.gmra.mxu0 %v14
  %v945 = vpop.f32.mrf.mxu0
  %v946 = vadd.f32 %v156, %v945
  %v947 = vpop.f32.mrf.mxu0
  %948 = vdwg.mxu0
  %949 = vmatpush.bf16.msra.mxu0 %v685
  %950 = vmatpush.bf16.msra.mxu0 %v669
  %951 = vmatpush.bf16.msra.mxu0 %v653
  %952 = vmatpush.bf16.msra.mxu0 %v637
  %953 = vmatpush.bf16.msra.mxu0 %v621
  %954 = vmatpush.bf16.msra.mxu0 %v605
  %955 = vmatpush.bf16.msra.mxu0 %v589
  %956 = vmatpush.bf16.msra.mxu0 %v573
  %957 = vmatmul.bf16.gmra.mxu0 %v14
  %v958 = vpop.f32.mrf.mxu0
  %v959 = vadd.f32 %v157, %v958
  %v960 = vpop.f32.mrf.mxu0
  %961 = vdwg.mxu0
  %962 = vmatpush.bf16.msra.mxu0 %v686
  %963 = vmatpush.bf16.msra.mxu0 %v670
  %964 = vmatpush.bf16.msra.mxu0 %v654
  %965 = vmatpush.bf16.msra.mxu0 %v638
  %966 = vmatpush.bf16.msra.mxu0 %v622
  %967 = vmatpush.bf16.msra.mxu0 %v606
  %968 = vmatpush.bf16.msra.mxu0 %v590
  %969 = vmatpush.bf16.msra.mxu0 %v574
  %970 = vmatmul.bf16.gmra.mxu0 %v14
  %v971 = vpop.f32.mrf.mxu0
  %v972 = vadd.f32 %v158, %v971
  %v973 = vpop.f32.mrf.mxu0
  %974 = vdwg.mxu0
  %975 = vmatpush.bf16.msra.mxu0 %v687
  %976 = vmatpush.bf16.msra.mxu0 %v671
  %977 = vmatpush.bf16.msra.mxu0 %v655
  %978 = vmatpush.bf16.msra.mxu0 %v639
  %979 = vmatpush.bf16.msra.mxu0 %v623
  %980 = vmatpush.bf16.msra.mxu0 %v607
  %981 = vmatpush.bf16.msra.mxu0 %v591
  %982 = vmatpush.bf16.msra.mxu0 %v575
  %983 = vmatmul.bf16.gmra.mxu0 %v14
  %v984 = vpop.f32.mrf.mxu0
  %v985 = vadd.f32 %v159, %v984
  %v986 = vpop.f32.mrf.mxu0
  %987 = vdwg.mxu0
  %988 = vmatpush.bf16.msra.mxu0 %v688
  %989 = vmatpush.bf16.msra.mxu0 %v672
  %990 = vmatpush.bf16.msra.mxu0 %v656
  %991 = vmatpush.bf16.msra.mxu0 %v640
  %992 = vmatpush.bf16.msra.mxu0 %v624
  %993 = vmatpush.bf16.msra.mxu0 %v608
  %994 = vmatpush.bf16.msra.mxu0 %v592
  %995 = vmatpush.bf16.msra.mxu0 %v576
  %996 = vmatmul.bf16.gmra.mxu0 %v14
  %v997 = vpop.f32.mrf.mxu0
  %v998 = vadd.f32 %v160, %v997
  %v999 = vpop.f32.mrf.mxu0
  %1000 = vdwg.mxu0
  %1001 = vmatpush.bf16.msra.mxu0 %v689
  %1002 = vmatpush.bf16.msra.mxu0 %v673
  %1003 = vmatpush.bf16.msra.mxu0 %v657
  %1004 = vmatpush.bf16.msra.mxu0 %v641
  %1005 = vmatpush.bf16.msra.mxu0 %v625
  %1006 = vmatpush.bf16.msra.mxu0 %v609
  %1007 = vmatpush.bf16.msra.mxu0 %v593
  %1008 = vmatpush.bf16.msra.mxu0 %v577
  %1009 = vmatmul.bf16.gmra.mxu0 %v14
  %v1010 = vpop.f32.mrf.mxu0
  %v1011 = vadd.f32 %v161, %v1010
  %v1012 = vpop.f32.mrf.mxu0
  %1013 = vdwg.mxu0
  %1014 = vmatpush.bf16.msra.mxu0 %v690
  %1015 = vmatpush.bf16.msra.mxu0 %v674
  %1016 = vmatpush.bf16.msra.mxu0 %v658
  %1017 = vmatpush.bf16.msra.mxu0 %v642
  %1018 = vmatpush.bf16.msra.mxu0 %v626
  %1019 = vmatpush.bf16.msra.mxu0 %v610
  %1020 = vmatpush.bf16.msra.mxu0 %v594
  %1021 = vmatpush.bf16.msra.mxu0 %v578
  %1022 = vmatmul.bf16.gmra.mxu0 %v14
  %v1023 = vpop.f32.mrf.mxu0
  %v1024 = vadd.f32 %v162, %v1023
  %v1025 = vpop.f32.mrf.mxu0
  %1026 = vdwg.mxu0
  %vm1027 = vcmp.ge.f32.partialorder %v829, 0.0
  %vm1028 = vcmp.ge.f32.partialorder %v842, 0.0
  %vm1029 = vcmp.ge.f32.partialorder %v855, 0.0
  %vm1030 = vcmp.ge.f32.partialorder %v868, 0.0
  %vm1031 = vcmp.ge.f32.partialorder %v881, 0.0
  %vm1032 = vcmp.ge.f32.partialorder %v894, 0.0
  %vm1033 = vcmp.ge.f32.partialorder %v907, 0.0
  %vm1034 = vcmp.ge.f32.partialorder %v920, 0.0
  %vm1035 = vcmp.ge.f32.partialorder %v933, 0.0
  %vm1036 = vcmp.ge.f32.partialorder %v946, 0.0
  %vm1037 = vcmp.ge.f32.partialorder %v959, 0.0
  %vm1038 = vcmp.ge.f32.partialorder %v972, 0.0
  %vm1039 = vcmp.ge.f32.partialorder %v985, 0.0
  %vm1040 = vcmp.ge.f32.partialorder %v998, 0.0
  %vm1041 = vcmp.ge.f32.partialorder %v1011, 0.0
  %vm1042 = vcmp.ge.f32.partialorder %v1024, 0.0
  %v1043 = vmul.f32 %v829, 0.01
  %v1044 = vmul.f32 %v842, 0.01
  %v1045 = vmul.f32 %v855, 0.01
  %v1046 = vmul.f32 %v868, 0.01
  %v1047 = vmul.f32 %v881, 0.01
  %v1048 = vmul.f32 %v894, 0.01
  %v1049 = vmul.f32 %v907, 0.01
  %v1050 = vmul.f32 %v920, 0.01
  %v1051 = vmul.f32 %v933, 0.01
  %v1052 = vmul.f32 %v946, 0.01
  %v1053 = vmul.f32 %v959, 0.01
  %v1054 = vmul.f32 %v972, 0.01
  %v1055 = vmul.f32 %v985, 0.01
  %v1056 = vmul.f32 %v998, 0.01
  %v1057 = vmul.f32 %v1011, 0.01
  %v1058 = vmul.f32 %v1024, 0.01
  %v1059 = vsel %vm1027, %v829, %v1043
  %v1060 = vsel %vm1028, %v842, %v1044
  %v1061 = vsel %vm1029, %v855, %v1045
  %v1062 = vsel %vm1030, %v868, %v1046
  %v1063 = vsel %vm1031, %v881, %v1047
  %v1064 = vsel %vm1032, %v894, %v1048
  %v1065 = vsel %vm1033, %v907, %v1049
  %v1066 = vsel %vm1034, %v920, %v1050
  %v1067 = vsel %vm1035, %v933, %v1051
  %v1068 = vsel %vm1036, %v946, %v1052
  %v1069 = vsel %vm1037, %v959, %v1053
  %v1070 = vsel %vm1038, %v972, %v1054
  %v1071 = vsel %vm1039, %v985, %v1055
  %v1072 = vsel %vm1040, %v998, %v1056
  %v1073 = vsel %vm1041, %v1011, %v1057
  %v1074 = vsel %vm1042, %v1024, %v1058
  %v1075 = vpack.c.bf16 %v1060, %v1059
  %v1076 = vpack.c.bf16 %v1062, %v1061
  %v1077 = vpack.c.bf16 %v1064, %v1063
  %v1078 = vpack.c.bf16 %v1066, %v1065
  %v1079 = vpack.c.bf16 %v1068, %v1067
  %v1080 = vpack.c.bf16 %v1070, %v1069
  %v1081 = vpack.c.bf16 %v1072, %v1071
  %v1082 = vpack.c.bf16 %v1074, %v1073
  %1083 = vst [vmem:[%s3] sm:$0xff] %v1075
  %1084 = vst [vmem:[%s3 + $0x8] sm:$0xff] %v1076
  %1085 = vst [vmem:[%s3 + $0x10] sm:$0xff] %v1077
  %1086 = vst [vmem:[%s3 + $0x18] sm:$0xff] %v1078
  %1087 = vst [vmem:[%s3 + $0x20] sm:$0xff] %v1079
  %1088 = vst [vmem:[%s3 + $0x28] sm:$0xff] %v1080
  %1089 = vst [vmem:[%s3 + $0x30] sm:$0xff] %v1081
  %1090 = vst [vmem:[%s3 + $0x38] sm:$0xff] %v1082
  // Predicated region
  $region14: #{scob_forward.35} parent=0 // pred_check
    _
  $region15: #{scob_forward.35} parent=0 // pred_check_branch
    %1092 = sbr.rel (0) target = $region17
  $region16: #{scob_forward.35} parent=0 // pred_region
    _
  $region17: #{scob_forward.35} parent=0 // pred_fallthru
    _
  // Predicated region
  $region18: #{scob_forward.35} parent=0 // pred_check
    _
  $region19: #{scob_forward.35} parent=0 // pred_check_branch
    %1094 = sbr.rel (0) target = $region21
  $region20: #{scob_forward.35} parent=0 // pred_region
    _
  $region21: #{scob_forward.35} parent=0 // pred_fallthru
    _

// kernel: scob_forward.55
$region0: #{scob_forward.55}
  #allocation0 [shape = 'u32[]', space=smem, size = 0x4, offset = 0x4, fixed_abs, tag = 'smem constant byte address 0x4 - core index']
  #allocation1 [shape = 'u32[72,128]{1,0:T(1,128)}', space=vmem, size = 0x9000, scoped, tag = 'internal scratch']
  %s0 = inlined_call_operand.vmem [shape: f32[8,32], index: 0, kind: input, shape index: {}]
  %s1 = inlined_call_operand.vmem [shape: bf16[32,128], index: 1, kind: input, shape index: {}]
  %s2 = inlined_call_operand.vmem [shape: f32[1,128], index: 2, kind: input, shape index: {}]
  %s3 = inlined_call_operand.vmem [shape: f32[8,128], index: 3, kind: output, shape index: {}]
  %s4 = sld [smem:[#allocation0]]
  $region22: #{scob_forward.55} parent=0
    _
  %s6 = ssub.s32 1, %s4
  %s7 = scalar_select 0, %s6, %s4
  // Predicated region
  $region2: #{scob_forward.55} parent=0 // pred_check
    _
  $region3: #{scob_forward.55} parent=0 // pred_check_branch
    %9 = sbr.rel (0) target = $region5
  $region4: #{scob_forward.55} parent=0 // pred_region
    _
  $region5: #{scob_forward.55} parent=0 // pred_fallthru
    _
  // Predicated region
  $region6: #{scob_forward.55} parent=0 // pred_check
    _
  $region7: #{scob_forward.55} parent=0 // pred_check_branch
    %11 = sbr.rel (0) target = $region9
  $region8: #{scob_forward.55} parent=0 // pred_region
    _
  $region9: #{scob_forward.55} parent=0 // pred_fallthru
    _
  // Predicated region
  $region10: #{scob_forward.55} parent=0 // pred_check
    _
  $region11: #{scob_forward.55} parent=0 // pred_check_branch
    %13 = sbr.rel (0) target = $region13
  $region12: #{scob_forward.55} parent=0 // pred_region
    _
  $region13: #{scob_forward.55} parent=0 // pred_fallthru
    _
  %v15 = vld [vmem:[%s0] sm:$0xff]
  %v16 = vpack.c.bf16 %v15, %v15
  %v17 = vld [vmem:[%s1] sm:$0xf]
  %v18 = vld [vmem:[%s1 + $0x4] sm:$0xf]
  %v19 = vld [vmem:[%s1 + $0x8] sm:$0xf]
  %v20 = vld [vmem:[%s1 + $0xc] sm:$0xf]
  %v21 = vld [vmem:[%s2] sm:$0x1]
  %v23 = vperm.slane %v21, 0
  %v29 = vunpack.c.l.b16 %v17
  %v30 = vunpack.c.l.b16 %v18
  %v31 = vunpack.c.l.b16 %v19
  %v32 = vunpack.c.l.b16 %v20
  %v33 = vpack.c.b16 %v30, %v29
  %v34 = vpack.c.b16 %v32, %v31
  %vm37 = vcmask 261120
  %v39 = vsel %vm37, %v16, 0
  %41 = vmatpush.bf16.msra.mxu0 0
  %42 = vmatpush.bf16.msra.mxu0 0
  %43 = vmatpush.bf16.msra.mxu0 0
  %44 = vmatpush.bf16.msra.mxu0 0
  %45 = vmatpush.bf16.msra.mxu0 0
  %46 = vmatpush.bf16.msra.mxu0 0
  %47 = vmatpush.bf16.msra.mxu0 %v34
  %48 = vmatpush.bf16.msra.mxu0 %v33
  %49 = vmatmul.bf16.gmra.mxu0 %v39
  %v50 = vpop.f32.mrf.mxu0
  %v51 = vadd.f32 %v23, %v50
  %v52 = vpop.f32.mrf.mxu0
  %53 = vdwg.mxu0
  %v54 = vxor.u32 %v51, 2147483648
  %v55 = vmul.f32 %v54, 1.442695
  %v56 = vpow.pop %v55
  %v57 = vadd.f32 %v56, 1.0
  %v58 = vrcp.pop %v57
  %v59 = vmul.f32 %v57, %v58
  %v60 = vsub.f32 1.0, %v59
  %v61 = vmul.f32 %v58, %v60
  %v62 = vadd.f32 %v58, %v61
  %vm63 = vweird.f32 %v57
  %vm64 = vweird.f32 %v58
  %vm65 = vmor %vm63, %vm64
  %v66 = vsel %vm65, %v58, %v62
  %v67 = vand.u32 2147483647, %v57
  %vm68 = vcmp.eq.f32.partialorder %v67, 8.507059e+37
  %v69 = vand.u32 %v57, 2147483648
  %v70 = vor.u32 1.1754944e-38, %v69
  %v71 = vsel %vm68, %v70, %v66
  %v72 = vmul.f32 1.0, %v71
  %73 = vst [vmem:[%s3] sm:$0xff] %v72
  // Predicated region
  $region14: #{scob_forward.55} parent=0 // pred_check
    _
  $region15: #{scob_forward.55} parent=0 // pred_check_branch
    %75 = sbr.rel (0) target = $region17
  $region16: #{scob_forward.55} parent=0 // pred_region
    _
  $region17: #{scob_forward.55} parent=0 // pred_fallthru
    _
  // Predicated region
  $region18: #{scob_forward.55} parent=0 // pred_check
    _
  $region19: #{scob_forward.55} parent=0 // pred_check_branch
    %77 = sbr.rel (0) target = $region21
  $region20: #{scob_forward.55} parent=0 // pred_region
    _
  $region21: #{scob_forward.55} parent=0 // pred_fallthru
    _

// kernel: scob_forward.56
$region0: #{scob_forward.56}
  #allocation0 [shape = 'u32[]', space=smem, size = 0x4, offset = 0x4, fixed_abs, tag = 'smem constant byte address 0x4 - core index']
  #allocation1 [shape = 'u32[72,128]{1,0:T(1,128)}', space=vmem, size = 0x9000, scoped, tag = 'internal scratch']
  %s0 = inlined_call_operand.vmem [shape: f32[8,32], index: 0, kind: input, shape index: {}]
  %s1 = inlined_call_operand.vmem [shape: bf16[32,128], index: 1, kind: input, shape index: {}]
  %s2 = inlined_call_operand.vmem [shape: f32[1,128], index: 2, kind: input, shape index: {}]
  %s3 = inlined_call_operand.vmem [shape: bf16[8,128], index: 3, kind: output, shape index: {}]
  %s4 = sld [smem:[#allocation0]]
  $region22: #{scob_forward.56} parent=0
    _
  %s6 = ssub.s32 1, %s4
  %s7 = scalar_select 0, %s6, %s4
  // Predicated region
  $region2: #{scob_forward.56} parent=0 // pred_check
    _
  $region3: #{scob_forward.56} parent=0 // pred_check_branch
    %9 = sbr.rel (0) target = $region5
  $region4: #{scob_forward.56} parent=0 // pred_region
    _
  $region5: #{scob_forward.56} parent=0 // pred_fallthru
    _
  // Predicated region
  $region6: #{scob_forward.56} parent=0 // pred_check
    _
  $region7: #{scob_forward.56} parent=0 // pred_check_branch
    %11 = sbr.rel (0) target = $region9
  $region8: #{scob_forward.56} parent=0 // pred_region
    _
  $region9: #{scob_forward.56} parent=0 // pred_fallthru
    _
  // Predicated region
  $region10: #{scob_forward.56} parent=0 // pred_check
    _
  $region11: #{scob_forward.56} parent=0 // pred_check_branch
    %13 = sbr.rel (0) target = $region13
  $region12: #{scob_forward.56} parent=0 // pred_region
    _
  $region13: #{scob_forward.56} parent=0 // pred_fallthru
    _
  %v15 = vld [vmem:[%s0] sm:$0xff]
  %v16 = vpack.c.bf16 %v15, %v15
  %v17 = vld [vmem:[%s1] sm:$0xf]
  %v18 = vld [vmem:[%s1 + $0x4] sm:$0xf]
  %v19 = vld [vmem:[%s1 + $0x8] sm:$0xf]
  %v20 = vld [vmem:[%s1 + $0xc] sm:$0xf]
  %v21 = vld [vmem:[%s2] sm:$0x1]
  %v23 = vperm.slane %v21, 0
  %v29 = vunpack.c.l.b16 %v17
  %v30 = vunpack.c.l.b16 %v18
  %v31 = vunpack.c.l.b16 %v19
  %v32 = vunpack.c.l.b16 %v20
  %v33 = vpack.c.b16 %v30, %v29
  %v34 = vpack.c.b16 %v32, %v31
  %vm37 = vcmask 261120
  %v39 = vsel %vm37, %v16, 0
  %41 = vmatpush.bf16.msra.mxu0 0
  %42 = vmatpush.bf16.msra.mxu0 0
  %43 = vmatpush.bf16.msra.mxu0 0
  %44 = vmatpush.bf16.msra.mxu0 0
  %45 = vmatpush.bf16.msra.mxu0 0
  %46 = vmatpush.bf16.msra.mxu0 0
  %47 = vmatpush.bf16.msra.mxu0 %v34
  %48 = vmatpush.bf16.msra.mxu0 %v33
  %49 = vmatmul.bf16.gmra.mxu0 %v39
  %v50 = vpop.f32.mrf.mxu0
  %v51 = vadd.f32 %v23, %v50
  %v52 = vpop.f32.mrf.mxu0
  %53 = vdwg.mxu0
  %vm54 = vcmp.ge.f32.partialorder %v51, 0.0
  %v55 = vmul.f32 %v51, 0.01
  %v56 = vsel %vm54, %v51, %v55
  %v57 = vpack.c.bf16 %v56, %v56
  %58 = vst [vmem:[%s3] sm:$0xf] %v57
  // Predicated region
  $region14: #{scob_forward.56} parent=0 // pred_check
    _
  $region15: #{scob_forward.56} parent=0 // pred_check_branch
    %60 = sbr.rel (0) target = $region17
  $region16: #{scob_forward.56} parent=0 // pred_region
    _
  $region17: #{scob_forward.56} parent=0 // pred_fallthru
    _
  // Predicated region
  $region18: #{scob_forward.56} parent=0 // pred_check
    _
  $region19: #{scob_forward.56} parent=0 // pred_check_branch
    %62 = sbr.rel (0) target = $region21
  $region20: #{scob_forward.56} parent=0 // pred_region
    _
  $region21: #{scob_forward.56} parent=0 // pred_fallthru
    _

// kernel: scob_forward.57
$region0: #{scob_forward.57}
  #allocation0 [shape = 'u32[]', space=smem, size = 0x4, offset = 0x4, fixed_abs, tag = 'smem constant byte address 0x4 - core index']
  #allocation1 [shape = 'u32[72,128]{1,0:T(1,128)}', space=vmem, size = 0x9000, scoped, tag = 'internal scratch']
  %s0 = inlined_call_operand.vmem [shape: bf16[8,32], index: 0, kind: input, shape index: {}]
  %s1 = inlined_call_operand.vmem [shape: bf16[32,128], index: 1, kind: input, shape index: {}]
  %s2 = inlined_call_operand.vmem [shape: f32[1,128], index: 2, kind: input, shape index: {}]
  %s3 = inlined_call_operand.vmem [shape: f32[8,128], index: 3, kind: output, shape index: {}]
  %s4 = sld [smem:[#allocation0]]
  $region22: #{scob_forward.57} parent=0
    _
  %s6 = ssub.s32 1, %s4
  %s7 = scalar_select 0, %s6, %s4
  // Predicated region
  $region2: #{scob_forward.57} parent=0 // pred_check
    _
  $region3: #{scob_forward.57} parent=0 // pred_check_branch
    %9 = sbr.rel (0) target = $region5
  $region4: #{scob_forward.57} parent=0 // pred_region
    _
  $region5: #{scob_forward.57} parent=0 // pred_fallthru
    _
  // Predicated region
  $region6: #{scob_forward.57} parent=0 // pred_check
    _
  $region7: #{scob_forward.57} parent=0 // pred_check_branch
    %11 = sbr.rel (0) target = $region9
  $region8: #{scob_forward.57} parent=0 // pred_region
    _
  $region9: #{scob_forward.57} parent=0 // pred_fallthru
    _
  // Predicated region
  $region10: #{scob_forward.57} parent=0 // pred_check
    _
  $region11: #{scob_forward.57} parent=0 // pred_check_branch
    %13 = sbr.rel (0) target = $region13
  $region12: #{scob_forward.57} parent=0 // pred_region
    _
  $region13: #{scob_forward.57} parent=0 // pred_fallthru
    _
  %v15 = vld [vmem:[%s0] sm:$0xf]
  %v16 = vld [vmem:[%s1] sm:$0xf]
  %v17 = vld [vmem:[%s1 + $0x4] sm:$0xf]
  %v18 = vld [vmem:[%s1 + $0x8] sm:$0xf]
  %v19 = vld [vmem:[%s1 + $0xc] sm:$0xf]
  %v20 = vld [vmem:[%s2] sm:$0x1]
  %v22 = vperm.slane %v20, 0
  %v28 = vunpack.c.l.b16 %v16
  %v29 = vunpack.c.l.b16 %v17
  %v30 = vunpack.c.l.b16 %v18
  %v31 = vunpack.c.l.b16 %v19
  %v32 = vpack.c.b16 %v29, %v28
  %v33 = vpack.c.b16 %v31, %v30
  %vm36 = vcmask 261120
  %v38 = vsel %vm36, %v15, 0
  %40 = vmatpush.bf16.msra.mxu0 0
  %41 = vmatpush.bf16.msra.mxu0 0
  %42 = vmatpush.bf16.msra.mxu0 0
  %43 = vmatpush.bf16.msra.mxu0 0
  %44 = vmatpush.bf16.msra.mxu0 0
  %45 = vmatpush.bf16.msra.mxu0 0
  %46 = vmatpush.bf16.msra.mxu0 %v33
  %47 = vmatpush.bf16.msra.mxu0 %v32
  %48 = vmatmul.bf16.gmra.mxu0 %v38
  %v49 = vpop.f32.mrf.mxu0
  %v50 = vadd.f32 %v22, %v49
  %v51 = vpop.f32.mrf.mxu0
  %52 = vdwg.mxu0
  %53 = vst [vmem:[%s3] sm:$0xff] %v50
  // Predicated region
  $region14: #{scob_forward.57} parent=0 // pred_check
    _
  $region15: #{scob_forward.57} parent=0 // pred_check_branch
    %55 = sbr.rel (0) target = $region17
  $region16: #{scob_forward.57} parent=0 // pred_region
    _
  $region17: #{scob_forward.57} parent=0 // pred_fallthru
    _
  // Predicated region
  $region18: #{scob_forward.57} parent=0 // pred_check
    _
  $region19: #{scob_forward.57} parent=0 // pred_check_branch
    %57 = sbr.rel (0) target = $region21
  $region20: #{scob_forward.57} parent=0 // pred_region
    _
  $region21: #{scob_forward.57} parent=0 // pred_fallthru
    _

</llo_original>
